<compile_context>
chip_gen: v5e
topology: v5e:2x2
jax: 0.10.0
libtpu: 0.0.40
codegen_flags: <defaults>
</compile_context>

<pallas_src>
import functools

import jax
import jax.numpy as jnp
from jax.experimental import pallas as pl
from jax.experimental.pallas import tpu as pltpu


_VMEM_LIMIT = 32 * 1024 * 1024


# ---------------------------------------------------------------------------
# Pallas kernel: fused (X @ W) + bias (+ ReLU)   (conv layers via im2col)
# ---------------------------------------------------------------------------
def _mm_bias_kernel(x_ref, w_ref, b_ref, o_ref, *, relu):
    acc = jnp.dot(x_ref[...], w_ref[...], preferred_element_type=jnp.float32)
    acc = acc + b_ref[...]          # (1, N) broadcasts over rows, f32
    if relu:
        acc = jnp.maximum(acc, 0.0)
    o_ref[...] = acc.astype(o_ref.dtype)


def _pick_tm(m, cap=2048):
    """Largest 8-aligned M tile <= cap, but keep >=2 grid steps (v7x 2 TCs)."""
    tm = min(cap, m)
    if m >= 16 and tm > m // 2:
        tm = m // 2
    return max(8, (tm // 8) * 8)


def pallas_matmul_bias(x, w, b2d, *, relu, out_dtype):
    """x: (M, K) bf16, w: (K, N) bf16, b2d: (1, N) f32 -> (M, N) out_dtype."""
    m, k = x.shape
    _, n = w.shape
    tm = _pick_tm(m)
    return pl.pallas_call(
        functools.partial(_mm_bias_kernel, relu=relu),
        out_shape=jax.ShapeDtypeStruct((m, n), out_dtype),
        grid=(pl.cdiv(m, tm),),
        in_specs=[
            pl.BlockSpec((tm, k), lambda i: (i, 0)),   # M-tiled activations
            pl.BlockSpec((k, n), lambda i: (0, 0)),    # resident weights
            pl.BlockSpec((1, n), lambda i: (0, 0)),    # resident bias
        ],
        out_specs=pl.BlockSpec((tm, n), lambda i: (i, 0)),
        compiler_params=pltpu.CompilerParams(
            dimension_semantics=("parallel",),
            vmem_limit_bytes=_VMEM_LIMIT,
        ),
    )(x, w, b2d)


# ---------------------------------------------------------------------------
# Pallas kernel: fused classifier head  relu(f @ W1 + b1) @ W2 + b2
# ---------------------------------------------------------------------------
def _fc_head_kernel(f_ref, w1_ref, b1_ref, w2_ref, b2_ref, o_ref):
    h = jnp.dot(f_ref[...], w1_ref[...], preferred_element_type=jnp.float32)
    h = jnp.maximum(h + b1_ref[...], 0.0)
    logits = jnp.dot(h.astype(w2_ref.dtype), w2_ref[...],
                     preferred_element_type=jnp.float32)
    o_ref[...] = (logits + b2_ref[...]).astype(o_ref.dtype)


def pallas_fc_head(f, w1, b1_2d, w2, b2_2d):
    """f: (B, 4096) bf16, w1: (4096, 64) bf16, w2: (64, n_classes) bf16."""
    bsz, k1 = f.shape
    n1 = w1.shape[1]
    n2 = w2.shape[1]
    return pl.pallas_call(
        _fc_head_kernel,
        out_shape=jax.ShapeDtypeStruct((bsz, n2), jnp.float32),
        grid=(1,),
        in_specs=[
            pl.BlockSpec((bsz, k1), lambda i: (0, 0)),
            pl.BlockSpec((k1, n1), lambda i: (0, 0)),
            pl.BlockSpec((1, n1), lambda i: (0, 0)),
            pl.BlockSpec((n1, n2), lambda i: (0, 0)),
            pl.BlockSpec((1, n2), lambda i: (0, 0)),
        ],
        out_specs=pl.BlockSpec((bsz, n2), lambda i: (0, 0)),
        compiler_params=pltpu.CompilerParams(
            dimension_semantics=("arbitrary",),
            vmem_limit_bytes=_VMEM_LIMIT,
        ),
    )(f, w1, b1_2d, w2, b2_2d)


# ---------------------------------------------------------------------------
# Conv2d(k=4, s=2, p=1) + ReLU via im2col + Pallas matmul (bf16 activations)
# ---------------------------------------------------------------------------
def conv4x4_s2_p1_relu(x_nhwc, wf, b2d):
    """x_nhwc: (B, H, W, Cin) bf16; wf: (16*Cin, Cout) bf16; b2d: (1, Cout) f32."""
    B, H, W, Cin = x_nhwc.shape
    Cout = wf.shape[1]
    Ho, Wo = H // 2, W // 2

    xp = jnp.pad(x_nhwc, ((0, 0), (1, 1), (1, 1), (0, 0)))

    # im2col: for each (kh, kw) grab the strided sub-grid -> (B, Ho, Wo, Cin)
    patches = [xp[:, kh:kh + 2 * Ho:2, kw:kw + 2 * Wo:2, :]
               for kh in range(4) for kw in range(4)]
    patches = jnp.stack(patches, axis=3)                 # (B, Ho, Wo, 16, Cin)
    pm = patches.reshape(B * Ho * Wo, 16 * Cin)          # rows: (kh, kw, cin)

    out = pallas_matmul_bias(pm, wf, b2d, relu=True, out_dtype=jnp.bfloat16)
    return out.reshape(B, Ho, Wo, Cout)


# ---------------------------------------------------------------------------
# Parameter init (deterministic, synthetic; shapes match the PyTorch module)
# ---------------------------------------------------------------------------
def init_params(key, n_classes):
    conv_shapes = [
        (24, 3, 4, 4),
        (36, 24, 4, 4),
        (48, 36, 4, 4),
        (64, 48, 4, 4),
    ]
    params = {"conv": [], "fc": []}
    keys = jax.random.split(key, len(conv_shapes) + 2)

    # Convs: xavier_uniform weights, zero bias (matches weights_init).
    for i, shp in enumerate(conv_shapes):
        cout, cin, kh, kw = shp
        fan_in, fan_out = cin * kh * kw, cout * kh * kw
        bound = (6.0 / (fan_in + fan_out)) ** 0.5
        w = jax.random.uniform(keys[i], shp, jnp.float32, -bound, bound)
        bch = jnp.zeros((cout,), jnp.float32)
        params["conv"].append((w, bch))

    # Linears: PyTorch-default-style uniform(-1/sqrt(fan_in), 1/sqrt(fan_in)).
    fc_shapes = [(4096, 64), (64, n_classes)]
    for j, (fin, fout) in enumerate(fc_shapes):
        bound = 1.0 / (fin ** 0.5)
        kw_, kb_ = jax.random.split(keys[len(conv_shapes) + j])
        w = jax.random.uniform(kw_, (fin, fout), jnp.float32, -bound, bound)
        bfc = jax.random.uniform(kb_, (fout,), jnp.float32, -bound, bound)
        params["fc"].append((w, bfc))
    return params


def prepare_params(params):
    """One-time weight-layout work: done outside the per-step forward.

    * conv OIHW -> (KH*KW*Cin, Cout) flat, row order (kh, kw, cin), bf16.
    * biases reshaped to (1, N) f32 (kernel-broadcast layout).
    * W1 rows permuted so (NHWC-flatten) @ W1p == (NCHW-flatten) @ W1,
      matching PyTorch's Flatten on (B, C, H, W) exactly — the activation is
      never transposed.
    """
    prepped = {"conv": [], "fc": []}
    for (w, b) in params["conv"]:
        cout, cin = w.shape[0], w.shape[1]
        wf = jnp.transpose(w, (2, 3, 1, 0)).reshape(16 * cin, cout)
        prepped["conv"].append((wf.astype(jnp.bfloat16),
                                b.reshape(1, cout).astype(jnp.float32)))

    w1, b1 = params["fc"][0]
    w2, b2 = params["fc"][1]
    C4, H4, W4 = 64, 8, 8                    # last conv: (B, 8, 8, 64)
    w1p = jnp.transpose(w1.reshape(C4, H4, W4, w1.shape[1]),
                        (1, 2, 0, 3)).reshape(w1.shape)
    prepped["fc"].append((w1p.astype(jnp.bfloat16),
                          b1.reshape(1, -1).astype(jnp.float32)))
    prepped["fc"].append((w2.astype(jnp.bfloat16),
                          b2.reshape(1, -1).astype(jnp.float32)))
    return prepped


# ---------------------------------------------------------------------------
# Forward pass
# ---------------------------------------------------------------------------
def forward(prepped, x_nchw):
    B = x_nchw.shape[0]
    x = jnp.transpose(x_nchw, (0, 2, 3, 1)).astype(jnp.bfloat16)  # NCHW -> NHWC

    for (wf, b2d) in prepped["conv"]:
        x = conv4x4_s2_p1_relu(x, wf, b2d)                        # (B, 8, 8, 64)

    _, H4, W4, C4 = x.shape
    f = x.reshape(B, H4 * W4 * C4)                                # NHWC flatten (free)

    w1p, b1 = prepped["fc"][0]
    w2, b2 = prepped["fc"][1]
    return pallas_fc_head(f, w1p, b1, w2, b2)                     # (B, n_classes) f32


if __name__ == "__main__":
    n_classes = 9
    key = jax.random.PRNGKey(0)
    k_params, k_x = jax.random.split(key)

    params = init_params(k_params, n_classes)
    prepped = prepare_params(params)
    x = jax.random.normal(k_x, (2, 3, 128, 128), dtype=jnp.float32)

    logits = jax.jit(forward)(prepped, x)
    logits = jax.block_until_ready(logits)

    assert logits.shape == (2, n_classes), logits.shape
    assert logits.dtype == jnp.float32
    assert jnp.all(jnp.isfinite(logits))
    print("KERNEL_OK")
</pallas_src>

<mosaic_0001>
module attributes {stable_mosaic.version = 11 : i64} {
  func.func @_mm_bias_kernel(%arg0: i32, %arg1: memref<2048x48xbf16, #tpu.memory_space<vmem>>, %arg2: memref<48x24xbf16, #tpu.memory_space<vmem>>, %arg3: memref<1x24xf32, #tpu.memory_space<vmem>>, %arg4: memref<2048x24xbf16, #tpu.memory_space<vmem>>) attributes {dimension_semantics = [#tpu.dimension_semantics<parallel>], iteration_bounds = array<i64: 4>, scalar_prefetch = 0 : i64, scratch_operands = 0 : i64, tpu.core_type = #tpu.core_type<tc>, window_params = [{transform_indices = @transform_0, window_bounds = array<i64: 2048, 48>}, {pipeline_mode = #tpu.pipeline_mode<synchronous>, transform_indices = @transform_1, window_bounds = array<i64: 48, 24>}, {pipeline_mode = #tpu.pipeline_mode<synchronous>, transform_indices = @transform_2, window_bounds = array<i64: 1, 24>}, {transform_indices = @transform_3, window_bounds = array<i64: 2048, 24>}]} {
    %c0 = arith.constant 0 : index
    %c0_0 = arith.constant 0 : index
    %0 = vector.load %arg1[%c0, %c0_0] : memref<2048x48xbf16, #tpu.memory_space<vmem>>, vector<2048x48xbf16>
    %c0_1 = arith.constant 0 : index
    %c0_2 = arith.constant 0 : index
    %1 = vector.load %arg2[%c0_1, %c0_2] : memref<48x24xbf16, #tpu.memory_space<vmem>>, vector<48x24xbf16>
    %cst = arith.constant dense<0.000000e+00> : vector<2048x24xf32>
    %2 = tpu.matmul %0, %1, %cst {dimension_numbers = #tpu.dot_dimension_numbers<[1], [0], [0], [1], [0, 0, 1, 1], [], []>} : vector<2048x48xbf16>, vector<48x24xbf16>, vector<2048x24xf32> -> vector<2048x24xf32>
    %c0_3 = arith.constant 0 : index
    %c0_4 = arith.constant 0 : index
    %3 = vector.load %arg3[%c0_3, %c0_4] : memref<1x24xf32, #tpu.memory_space<vmem>>, vector<1x24xf32>
    %4 = vector.broadcast %3 : vector<1x24xf32> to vector<2048x24xf32>
    %5 = arith.addf %2, %4 : vector<2048x24xf32>
    %cst_5 = arith.constant 0.000000e+00 : f32
    %6 = vector.broadcast %cst_5 : f32 to vector<2048x24xf32>
    %7 = arith.maximumf %5, %6 : vector<2048x24xf32>
    %8 = arith.truncf %7 : vector<2048x24xf32> to vector<2048x24xbf16>
    %c0_6 = arith.constant 0 : index
    %c0_7 = arith.constant 0 : index
    %9 = vector.load %arg4[%c0_6, %c0_7] : memref<2048x24xbf16, #tpu.memory_space<vmem>>, vector<2048x24xbf16>
    tpu.vector_store %arg4[%c0_6, %c0_7], %8 {strides = array<i32>} : memref<2048x24xbf16, #tpu.memory_space<vmem>>, vector<2048x24xbf16>,
    return
  }
  func.func @transform_0(%arg0: i32) -> (i32, i32) {
    %c0_i32 = arith.constant 0 : i32
    %c0_i32_0 = arith.constant 0 : i32
    return %arg0, %c0_i32 : i32, i32
  }
  func.func @transform_1(%arg0: i32) -> (i32, i32) {
    %c0_i32 = arith.constant 0 : i32
    %c0_i32_0 = arith.constant 0 : i32
    %c0_i32_1 = arith.constant 0 : i32
    return %c0_i32, %c0_i32_0 : i32, i32
  }
  func.func @transform_2(%arg0: i32) -> (i32, i32) {
    %c0_i32 = arith.constant 0 : i32
    %c0_i32_0 = arith.constant 0 : i32
    %c0_i32_1 = arith.constant 0 : i32
    return %c0_i32, %c0_i32_0 : i32, i32
  }
  func.func @transform_3(%arg0: i32) -> (i32, i32) {
    %c0_i32 = arith.constant 0 : i32
    %c0_i32_0 = arith.constant 0 : i32
    return %arg0, %c0_i32 : i32, i32
  }
}

module attributes {stable_mosaic.version = 11 : i64} {
  func.func @_mm_bias_kernel(%arg0: i32, %arg1: memref<1024x384xbf16, #tpu.memory_space<vmem>>, %arg2: memref<384x36xbf16, #tpu.memory_space<vmem>>, %arg3: memref<1x36xf32, #tpu.memory_space<vmem>>, %arg4: memref<1024x36xbf16, #tpu.memory_space<vmem>>) attributes {dimension_semantics = [#tpu.dimension_semantics<parallel>], iteration_bounds = array<i64: 2>, scalar_prefetch = 0 : i64, scratch_operands = 0 : i64, tpu.core_type = #tpu.core_type<tc>, window_params = [{transform_indices = @transform_0, window_bounds = array<i64: 1024, 384>}, {pipeline_mode = #tpu.pipeline_mode<synchronous>, transform_indices = @transform_1, window_bounds = array<i64: 384, 36>}, {pipeline_mode = #tpu.pipeline_mode<synchronous>, transform_indices = @transform_2, window_bounds = array<i64: 1, 36>}, {transform_indices = @transform_3, window_bounds = array<i64: 1024, 36>}]} {
    %c0 = arith.constant 0 : index
    %c0_0 = arith.constant 0 : index
    %0 = vector.load %arg1[%c0, %c0_0] : memref<1024x384xbf16, #tpu.memory_space<vmem>>, vector<1024x384xbf16>
    %c0_1 = arith.constant 0 : index
    %c0_2 = arith.constant 0 : index
    %1 = vector.load %arg2[%c0_1, %c0_2] : memref<384x36xbf16, #tpu.memory_space<vmem>>, vector<384x36xbf16>
    %cst = arith.constant dense<0.000000e+00> : vector<1024x36xf32>
    %2 = tpu.matmul %0, %1, %cst {dimension_numbers = #tpu.dot_dimension_numbers<[1], [0], [0], [1], [0, 0, 1, 1], [], []>} : vector<1024x384xbf16>, vector<384x36xbf16>, vector<1024x36xf32> -> vector<1024x36xf32>
    %c0_3 = arith.constant 0 : index
    %c0_4 = arith.constant 0 : index
    %3 = vector.load %arg3[%c0_3, %c0_4] : memref<1x36xf32, #tpu.memory_space<vmem>>, vector<1x36xf32>
    %4 = vector.broadcast %3 : vector<1x36xf32> to vector<1024x36xf32>
    %5 = arith.addf %2, %4 : vector<1024x36xf32>
    %cst_5 = arith.constant 0.000000e+00 : f32
    %6 = vector.broadcast %cst_5 : f32 to vector<1024x36xf32>
    %7 = arith.maximumf %5, %6 : vector<1024x36xf32>
    %8 = arith.truncf %7 : vector<1024x36xf32> to vector<1024x36xbf16>
    %c0_6 = arith.constant 0 : index
    %c0_7 = arith.constant 0 : index
    %9 = vector.load %arg4[%c0_6, %c0_7] : memref<1024x36xbf16, #tpu.memory_space<vmem>>, vector<1024x36xbf16>
    tpu.vector_store %arg4[%c0_6, %c0_7], %8 {strides = array<i32>} : memref<1024x36xbf16, #tpu.memory_space<vmem>>, vector<1024x36xbf16>,
    return
  }
  func.func @transform_0(%arg0: i32) -> (i32, i32) {
    %c0_i32 = arith.constant 0 : i32
    %c0_i32_0 = arith.constant 0 : i32
    return %arg0, %c0_i32 : i32, i32
  }
  func.func @transform_1(%arg0: i32) -> (i32, i32) {
    %c0_i32 = arith.constant 0 : i32
    %c0_i32_0 = arith.constant 0 : i32
    %c0_i32_1 = arith.constant 0 : i32
    return %c0_i32, %c0_i32_0 : i32, i32
  }
  func.func @transform_2(%arg0: i32) -> (i32, i32) {
    %c0_i32 = arith.constant 0 : i32
    %c0_i32_0 = arith.constant 0 : i32
    %c0_i32_1 = arith.constant 0 : i32
    return %c0_i32, %c0_i32_0 : i32, i32
  }
  func.func @transform_3(%arg0: i32) -> (i32, i32) {
    %c0_i32 = arith.constant 0 : i32
    %c0_i32_0 = arith.constant 0 : i32
    return %arg0, %c0_i32 : i32, i32
  }
}

module attributes {stable_mosaic.version = 11 : i64} {
  func.func @_mm_bias_kernel(%arg0: i32, %arg1: memref<256x576xbf16, #tpu.memory_space<vmem>>, %arg2: memref<576x48xbf16, #tpu.memory_space<vmem>>, %arg3: memref<1x48xf32, #tpu.memory_space<vmem>>, %arg4: memref<256x48xbf16, #tpu.memory_space<vmem>>) attributes {dimension_semantics = [#tpu.dimension_semantics<parallel>], iteration_bounds = array<i64: 2>, scalar_prefetch = 0 : i64, scratch_operands = 0 : i64, tpu.core_type = #tpu.core_type<tc>, window_params = [{transform_indices = @transform_0, window_bounds = array<i64: 256, 576>}, {pipeline_mode = #tpu.pipeline_mode<synchronous>, transform_indices = @transform_1, window_bounds = array<i64: 576, 48>}, {pipeline_mode = #tpu.pipeline_mode<synchronous>, transform_indices = @transform_2, window_bounds = array<i64: 1, 48>}, {transform_indices = @transform_3, window_bounds = array<i64: 256, 48>}]} {
    %c0 = arith.constant 0 : index
    %c0_0 = arith.constant 0 : index
    %0 = vector.load %arg1[%c0, %c0_0] : memref<256x576xbf16, #tpu.memory_space<vmem>>, vector<256x576xbf16>
    %c0_1 = arith.constant 0 : index
    %c0_2 = arith.constant 0 : index
    %1 = vector.load %arg2[%c0_1, %c0_2] : memref<576x48xbf16, #tpu.memory_space<vmem>>, vector<576x48xbf16>
    %cst = arith.constant dense<0.000000e+00> : vector<256x48xf32>
    %2 = tpu.matmul %0, %1, %cst {dimension_numbers = #tpu.dot_dimension_numbers<[1], [0], [0], [1], [0, 0, 1, 1], [], []>} : vector<256x576xbf16>, vector<576x48xbf16>, vector<256x48xf32> -> vector<256x48xf32>
    %c0_3 = arith.constant 0 : index
    %c0_4 = arith.constant 0 : index
    %3 = vector.load %arg3[%c0_3, %c0_4] : memref<1x48xf32, #tpu.memory_space<vmem>>, vector<1x48xf32>
    %4 = vector.broadcast %3 : vector<1x48xf32> to vector<256x48xf32>
    %5 = arith.addf %2, %4 : vector<256x48xf32>
    %cst_5 = arith.constant 0.000000e+00 : f32
    %6 = vector.broadcast %cst_5 : f32 to vector<256x48xf32>
    %7 = arith.maximumf %5, %6 : vector<256x48xf32>
    %8 = arith.truncf %7 : vector<256x48xf32> to vector<256x48xbf16>
    %c0_6 = arith.constant 0 : index
    %c0_7 = arith.constant 0 : index
    %9 = vector.load %arg4[%c0_6, %c0_7] : memref<256x48xbf16, #tpu.memory_space<vmem>>, vector<256x48xbf16>
    tpu.vector_store %arg4[%c0_6, %c0_7], %8 {strides = array<i32>} : memref<256x48xbf16, #tpu.memory_space<vmem>>, vector<256x48xbf16>,
    return
  }
  func.func @transform_0(%arg0: i32) -> (i32, i32) {
    %c0_i32 = arith.constant 0 : i32
    %c0_i32_0 = arith.constant 0 : i32
    return %arg0, %c0_i32 : i32, i32
  }
  func.func @transform_1(%arg0: i32) -> (i32, i32) {
    %c0_i32 = arith.constant 0 : i32
    %c0_i32_0 = arith.constant 0 : i32
    %c0_i32_1 = arith.constant 0 : i32
    return %c0_i32, %c0_i32_0 : i32, i32
  }
  func.func @transform_2(%arg0: i32) -> (i32, i32) {
    %c0_i32 = arith.constant 0 : i32
    %c0_i32_0 = arith.constant 0 : i32
    %c0_i32_1 = arith.constant 0 : i32
    return %c0_i32, %c0_i32_0 : i32, i32
  }
  func.func @transform_3(%arg0: i32) -> (i32, i32) {
    %c0_i32 = arith.constant 0 : i32
    %c0_i32_0 = arith.constant 0 : i32
    return %arg0, %c0_i32 : i32, i32
  }
}

module attributes {stable_mosaic.version = 11 : i64} {
  func.func @_mm_bias_kernel(%arg0: i32, %arg1: memref<64x768xbf16, #tpu.memory_space<vmem>>, %arg2: memref<768x64xbf16, #tpu.memory_space<vmem>>, %arg3: memref<1x64xf32, #tpu.memory_space<vmem>>, %arg4: memref<64x64xbf16, #tpu.memory_space<vmem>>) attributes {dimension_semantics = [#tpu.dimension_semantics<parallel>], iteration_bounds = array<i64: 2>, scalar_prefetch = 0 : i64, scratch_operands = 0 : i64, tpu.core_type = #tpu.core_type<tc>, window_params = [{transform_indices = @transform_0, window_bounds = array<i64: 64, 768>}, {pipeline_mode = #tpu.pipeline_mode<synchronous>, transform_indices = @transform_1, window_bounds = array<i64: 768, 64>}, {pipeline_mode = #tpu.pipeline_mode<synchronous>, transform_indices = @transform_2, window_bounds = array<i64: 1, 64>}, {transform_indices = @transform_3, window_bounds = array<i64: 64, 64>}]} {
    %c0 = arith.constant 0 : index
    %c0_0 = arith.constant 0 : index
    %0 = vector.load %arg1[%c0, %c0_0] : memref<64x768xbf16, #tpu.memory_space<vmem>>, vector<64x768xbf16>
    %c0_1 = arith.constant 0 : index
    %c0_2 = arith.constant 0 : index
    %1 = vector.load %arg2[%c0_1, %c0_2] : memref<768x64xbf16, #tpu.memory_space<vmem>>, vector<768x64xbf16>
    %cst = arith.constant dense<0.000000e+00> : vector<64x64xf32>
    %2 = tpu.matmul %0, %1, %cst {dimension_numbers = #tpu.dot_dimension_numbers<[1], [0], [0], [1], [0, 0, 1, 1], [], []>} : vector<64x768xbf16>, vector<768x64xbf16>, vector<64x64xf32> -> vector<64x64xf32>
    %c0_3 = arith.constant 0 : index
    %c0_4 = arith.constant 0 : index
    %3 = vector.load %arg3[%c0_3, %c0_4] : memref<1x64xf32, #tpu.memory_space<vmem>>, vector<1x64xf32>
    %4 = vector.broadcast %3 : vector<1x64xf32> to vector<64x64xf32>
    %5 = arith.addf %2, %4 : vector<64x64xf32>
    %cst_5 = arith.constant 0.000000e+00 : f32
    %6 = vector.broadcast %cst_5 : f32 to vector<64x64xf32>
    %7 = arith.maximumf %5, %6 : vector<64x64xf32>
    %8 = arith.truncf %7 : vector<64x64xf32> to vector<64x64xbf16>
    %c0_6 = arith.constant 0 : index
    %c0_7 = arith.constant 0 : index
    %9 = vector.load %arg4[%c0_6, %c0_7] : memref<64x64xbf16, #tpu.memory_space<vmem>>, vector<64x64xbf16>
    tpu.vector_store %arg4[%c0_6, %c0_7], %8 {strides = array<i32>} : memref<64x64xbf16, #tpu.memory_space<vmem>>, vector<64x64xbf16>,
    return
  }
  func.func @transform_0(%arg0: i32) -> (i32, i32) {
    %c0_i32 = arith.constant 0 : i32
    %c0_i32_0 = arith.constant 0 : i32
    return %arg0, %c0_i32 : i32, i32
  }
  func.func @transform_1(%arg0: i32) -> (i32, i32) {
    %c0_i32 = arith.constant 0 : i32
    %c0_i32_0 = arith.constant 0 : i32
    %c0_i32_1 = arith.constant 0 : i32
    return %c0_i32, %c0_i32_0 : i32, i32
  }
  func.func @transform_2(%arg0: i32) -> (i32, i32) {
    %c0_i32 = arith.constant 0 : i32
    %c0_i32_0 = arith.constant 0 : i32
    %c0_i32_1 = arith.constant 0 : i32
    return %c0_i32, %c0_i32_0 : i32, i32
  }
  func.func @transform_3(%arg0: i32) -> (i32, i32) {
    %c0_i32 = arith.constant 0 : i32
    %c0_i32_0 = arith.constant 0 : i32
    return %arg0, %c0_i32 : i32, i32
  }
}

module attributes {stable_mosaic.version = 11 : i64} {
  func.func @_fc_head_kernel(%arg0: i32, %arg1: memref<2x4096xbf16, #tpu.memory_space<vmem>>, %arg2: memref<4096x64xbf16, #tpu.memory_space<vmem>>, %arg3: memref<1x64xf32, #tpu.memory_space<vmem>>, %arg4: memref<64x9xbf16, #tpu.memory_space<vmem>>, %arg5: memref<1x9xf32, #tpu.memory_space<vmem>>, %arg6: memref<2x9xf32, #tpu.memory_space<vmem>>) attributes {dimension_semantics = [#tpu.dimension_semantics<arbitrary>], iteration_bounds = array<i64: 1>, scalar_prefetch = 0 : i64, scratch_operands = 0 : i64, tpu.core_type = #tpu.core_type<tc>, window_params = [{pipeline_mode = #tpu.pipeline_mode<synchronous>, transform_indices = @transform_0, window_bounds = array<i64: 2, 4096>}, {pipeline_mode = #tpu.pipeline_mode<synchronous>, transform_indices = @transform_1, window_bounds = array<i64: 4096, 64>}, {pipeline_mode = #tpu.pipeline_mode<synchronous>, transform_indices = @transform_2, window_bounds = array<i64: 1, 64>}, {pipeline_mode = #tpu.pipeline_mode<synchronous>, transform_indices = @transform_3, window_bounds = array<i64: 64, 9>}, {pipeline_mode = #tpu.pipeline_mode<synchronous>, transform_indices = @transform_4, window_bounds = array<i64: 1, 9>}, {pipeline_mode = #tpu.pipeline_mode<synchronous>, transform_indices = @transform_5, window_bounds = array<i64: 2, 9>}]} {
    %c0 = arith.constant 0 : index
    %c0_0 = arith.constant 0 : index
    %0 = vector.load %arg1[%c0, %c0_0] : memref<2x4096xbf16, #tpu.memory_space<vmem>>, vector<2x4096xbf16>
    %c0_1 = arith.constant 0 : index
    %c0_2 = arith.constant 0 : index
    %1 = vector.load %arg2[%c0_1, %c0_2] : memref<4096x64xbf16, #tpu.memory_space<vmem>>, vector<4096x64xbf16>
    %cst = arith.constant dense<0.000000e+00> : vector<2x64xf32>
    %2 = tpu.matmul %0, %1, %cst {dimension_numbers = #tpu.dot_dimension_numbers<[1], [0], [0], [1], [0, 0, 1, 1], [], []>} : vector<2x4096xbf16>, vector<4096x64xbf16>, vector<2x64xf32> -> vector<2x64xf32>
    %c0_3 = arith.constant 0 : index
    %c0_4 = arith.constant 0 : index
    %3 = vector.load %arg3[%c0_3, %c0_4] : memref<1x64xf32, #tpu.memory_space<vmem>>, vector<1x64xf32>
    %4 = vector.broadcast %3 : vector<1x64xf32> to vector<2x64xf32>
    %5 = arith.addf %2, %4 : vector<2x64xf32>
    %cst_5 = arith.constant 0.000000e+00 : f32
    %6 = vector.broadcast %cst_5 : f32 to vector<2x64xf32>
    %7 = arith.maximumf %5, %6 : vector<2x64xf32>
    %8 = arith.truncf %7 : vector<2x64xf32> to vector<2x64xbf16>
    %c0_6 = arith.constant 0 : index
    %c0_7 = arith.constant 0 : index
    %9 = vector.load %arg4[%c0_6, %c0_7] : memref<64x9xbf16, #tpu.memory_space<vmem>>, vector<64x9xbf16>
    %cst_8 = arith.constant dense<0.000000e+00> : vector<2x9xf32>
    %10 = tpu.matmul %8, %9, %cst_8 {dimension_numbers = #tpu.dot_dimension_numbers<[1], [0], [0], [1], [0, 0, 1, 1], [], []>} : vector<2x64xbf16>, vector<64x9xbf16>, vector<2x9xf32> -> vector<2x9xf32>
    %c0_9 = arith.constant 0 : index
    %c0_10 = arith.constant 0 : index
    %11 = vector.load %arg5[%c0_9, %c0_10] : memref<1x9xf32, #tpu.memory_space<vmem>>, vector<1x9xf32>
    %12 = vector.broadcast %11 : vector<1x9xf32> to vector<2x9xf32>
    %13 = arith.addf %10, %12 : vector<2x9xf32>
    %c0_11 = arith.constant 0 : index
    %c0_12 = arith.constant 0 : index
    %14 = vector.load %arg6[%c0_11, %c0_12] : memref<2x9xf32, #tpu.memory_space<vmem>>, vector<2x9xf32>
    tpu.vector_store %arg6[%c0_11, %c0_12], %13 {strides = array<i32>} : memref<2x9xf32, #tpu.memory_space<vmem>>, vector<2x9xf32>,
    return
  }
  func.func @transform_0(%arg0: i32) -> (i32, i32) {
    %c0_i32 = arith.constant 0 : i32
    %c0_i32_0 = arith.constant 0 : i32
    %c0_i32_1 = arith.constant 0 : i32
    return %c0_i32, %c0_i32_0 : i32, i32
  }
  func.func @transform_1(%arg0: i32) -> (i32, i32) {
    %c0_i32 = arith.constant 0 : i32
    %c0_i32_0 = arith.constant 0 : i32
    %c0_i32_1 = arith.constant 0 : i32
    return %c0_i32, %c0_i32_0 : i32, i32
  }
  func.func @transform_2(%arg0: i32) -> (i32, i32) {
    %c0_i32 = arith.constant 0 : i32
    %c0_i32_0 = arith.constant 0 : i32
    %c0_i32_1 = arith.constant 0 : i32
    return %c0_i32, %c0_i32_0 : i32, i32
  }
  func.func @transform_3(%arg0: i32) -> (i32, i32) {
    %c0_i32 = arith.constant 0 : i32
    %c0_i32_0 = arith.constant 0 : i32
    %c0_i32_1 = arith.constant 0 : i32
    return %c0_i32, %c0_i32_0 : i32, i32
  }
  func.func @transform_4(%arg0: i32) -> (i32, i32) {
    %c0_i32 = arith.constant 0 : i32
    %c0_i32_0 = arith.constant 0 : i32
    %c0_i32_1 = arith.constant 0 : i32
    return %c0_i32, %c0_i32_0 : i32, i32
  }
  func.func @transform_5(%arg0: i32) -> (i32, i32) {
    %c0_i32 = arith.constant 0 : i32
    %c0_i32_0 = arith.constant 0 : i32
    %c0_i32_1 = arith.constant 0 : i32
    return %c0_i32, %c0_i32_0 : i32, i32
  }
}

</mosaic_0001>

<llo_original>
// kernel: forward.5
$region0: #{forward.5}
  #allocation0 [shape = 'u32[]', space=smem, size = 0x4, offset = 0x4, fixed_abs, tag = 'smem constant byte address 0x4 - core index']
  #allocation1 [shape = 'u32[72,128]{1,0:T(1,128)}', space=vmem, size = 0x9000, scoped, tag = 'internal scratch']
  %s0 = inlined_call_operand.vmem [shape: bf16[8192,48], index: 0, kind: input, shape index: {}]
  %s1 = inlined_call_operand.vmem [shape: bf16[48,24], index: 1, kind: input, shape index: {}]
  %s2 = inlined_call_operand.vmem [shape: f32[1,24], index: 2, kind: input, shape index: {}]
  %s3 = inlined_call_operand.vmem [shape: bf16[8192,24], index: 3, kind: output, shape index: {}]
  %s4 = sld [smem:[#allocation0]]
  $region45: #{forward.5} parent=0
    _
  %s6 = ssub.s32 1, %s4
  %s7 = scalar_select 0, %s6, %s4
  loop: start=0, step=1, limit=6
  $region2: #{forward.5} parent=0 // loop_pre_header
    _
  $region3: #{forward.5} parent=0 // loop_header
    %s9 = sphi 0, %s13
    %p10 = scmp.ge.s32.totalorder %s9, 6
    %s19 = sphi 0, %s21
    %s22 = sphi 0, %s19
    %s23 = sphi 0, %s22
    %s39 = sphi 0, %s23
    %s43 = sphi 0, %s43
    %s45 = sphi 0, %s43
    %s46 = sphi 0, %s45
    %s60 = sphi 0, %s46
    %s64 = sphi 0, %s64
    %s66 = sphi 0, %s64
    %s67 = sphi 0, %s66
    %s81 = sphi 0, %s67
    %s87 = sphi 0, %s89
    %s90 = sphi 0, %s87
    %s91 = sphi 0, %s90
    %s107 = sphi 0, %s91
  $region4: #{forward.5} parent=0 // loop_header_branch
    %12 = sbr.rel (%p10) target = $region8
  $region5: #{forward.5} parent=0 // loop_body
    %s14 = ssub.s32 %s9, 1
    %s15 = ssub.s32 %s9, 2
    %s16 = sadd.s32 %s9, 1
    %s17 = ssub.s32 %s9, %s16
    %p18 = scmp.eq.s32.totalorder %s17, 0
    %s20 = sadd.s32 %s19, 1
    %s21 = scalar_select %p18, %s19, %s20
    %p24 = pneg %p18
    %p25 = scmp.eq.s32.totalorder %s9, 3
    %p26 = por %p24, %p25
    %p27 = scmp.ne.s32.totalorder %s19, %s22
    %p28 = scmp.eq.s32.totalorder %s9, 0
    %p29 = por %p27, %p28
    %p30 = scmp.ne.s32.totalorder %s19, %s22
    %p31 = scmp.eq.s32.totalorder %s14, 3
    %p32 = por %p30, %p31
    %p33 = scmp.ne.s32.totalorder %s22, %s23
    %p34 = scmp.eq.s32.totalorder %s14, 0
    %p35 = por %p33, %p34
    %p36 = scmp.ne.s32.totalorder %s22, %s23
    %p37 = scmp.eq.s32.totalorder %s15, 3
    %p38 = por %p36, %p37
    %p40 = scmp.ne.s32.totalorder %s23, %s39
    %p41 = scmp.eq.s32.totalorder %s15, 0
    %p42 = por %p40, %p41
    %s44 = sadd.s32 %s43, 1
    %p47 = scmp.eq.s32.totalorder %s9, 3
    %p48 = scmp.ne.s32.totalorder %s43, %s45
    %p49 = scmp.eq.s32.totalorder %s9, 0
    %p50 = por %p48, %p49
    %p51 = scmp.ne.s32.totalorder %s43, %s45
    %p52 = scmp.eq.s32.totalorder %s14, 3
    %p53 = por %p51, %p52
    %p54 = scmp.ne.s32.totalorder %s45, %s46
    %p55 = scmp.eq.s32.totalorder %s14, 0
    %p56 = por %p54, %p55
    %p57 = scmp.ne.s32.totalorder %s45, %s46
    %p58 = scmp.eq.s32.totalorder %s15, 3
    %p59 = por %p57, %p58
    %p61 = scmp.ne.s32.totalorder %s46, %s60
    %p62 = scmp.eq.s32.totalorder %s15, 0
    %p63 = por %p61, %p62
    %s65 = sadd.s32 %s64, 1
    %p68 = scmp.eq.s32.totalorder %s9, 3
    %p69 = scmp.ne.s32.totalorder %s64, %s66
    %p70 = scmp.eq.s32.totalorder %s9, 0
    %p71 = por %p69, %p70
    %p72 = scmp.ne.s32.totalorder %s64, %s66
    %p73 = scmp.eq.s32.totalorder %s14, 3
    %p74 = por %p72, %p73
    %p75 = scmp.ne.s32.totalorder %s66, %s67
    %p76 = scmp.eq.s32.totalorder %s14, 0
    %p77 = por %p75, %p76
    %p78 = scmp.ne.s32.totalorder %s66, %s67
    %p79 = scmp.eq.s32.totalorder %s15, 3
    %p80 = por %p78, %p79
    %p82 = scmp.ne.s32.totalorder %s67, %s81
    %p83 = scmp.eq.s32.totalorder %s15, 0
    %p84 = por %p82, %p83
    %s85 = ssub.s32 %s9, %s16
    %p86 = scmp.eq.s32.totalorder %s85, 0
    %s88 = sadd.s32 %s87, 1
    %s89 = scalar_select %p86, %s87, %s88
    %p92 = pneg %p86
    %p93 = scmp.eq.s32.totalorder %s9, 3
    %p94 = por %p92, %p93
    %p95 = scmp.ne.s32.totalorder %s87, %s90
    %p96 = scmp.eq.s32.totalorder %s9, 0
    %p97 = por %p95, %p96
    %p98 = scmp.ne.s32.totalorder %s87, %s90
    %p99 = scmp.eq.s32.totalorder %s14, 3
    %p100 = por %p98, %p99
    %p101 = scmp.ne.s32.totalorder %s90, %s91
    %p102 = scmp.eq.s32.totalorder %s14, 0
    %p103 = por %p101, %p102
    %p104 = scmp.ne.s32.totalorder %s90, %s91
    %p105 = scmp.eq.s32.totalorder %s15, 3
    %p106 = por %p104, %p105
    %p108 = scmp.ne.s32.totalorder %s91, %s107
    %p109 = scmp.eq.s32.totalorder %s15, 0
    %p110 = por %p108, %p109
    %p111 = scmp.le.s32.totalorder 1, %s9
    %p112 = scmp.lt.s32.totalorder %s9, 5
    %p113 = pnand %p111, %p112
    %p114 = pneg %p113
    // Predicated region
    $region9: #{forward.5} parent=5 // pred_check
      _
    $region10: #{forward.5} parent=5 // pred_check_branch
      %116 = sbr.rel (%p113) target = $region12
    $region11: #{forward.5} parent=5 // pred_region
      %s117 = ssub.s32 %s9, 1
      // Predicated region
      $region13: #{forward.5} parent=11 // pred_check
        %p118 = pneg %p56
      $region14: #{forward.5} parent=11 // pred_check_branch
        %120 = sbr.rel (%p118) target = $region16
      $region15: #{forward.5} parent=11 // pred_region
        _
      $region16: #{forward.5} parent=11 // pred_fallthru
        _
      // Predicated region
      $region17: #{forward.5} parent=11 // pred_check
        %p121 = pneg %p77
      $region18: #{forward.5} parent=11 // pred_check_branch
        %123 = sbr.rel (%p121) target = $region20
      $region19: #{forward.5} parent=11 // pred_region
        _
      $region20: #{forward.5} parent=11 // pred_fallthru
        _
    $region12: #{forward.5} parent=5 // pred_fallthru
      _
    %p124 = scmp.lt.s32.totalorder %s9, 4
    // Predicated region
    $region21: #{forward.5} parent=5 // pred_check
      %p125 = pneg %p124
    $region22: #{forward.5} parent=5 // pred_check_branch
      %127 = sbr.rel (%p125) target = $region24
    $region23: #{forward.5} parent=5 // pred_region
      // Predicated region
      $region25: #{forward.5} parent=23 // pred_check
        %p128 = pneg %p29
      $region26: #{forward.5} parent=23 // pred_check_branch
        %130 = sbr.rel (%p128) target = $region28
      $region27: #{forward.5} parent=23 // pred_region
        %s131 = smul.u32 256, %s9
        %p132 = scmp.lt.s32.totalorder %s131, 1023
        %s133 = scalar_select %p132, %s131, 1023
        %s134 = smul.addr %s133, 4
        %s135 = scalar_lea.vmem %s0, %s134
        %s136 = smul.u32 256, %s9
      $region28: #{forward.5} parent=23 // pred_fallthru
        _
    $region24: #{forward.5} parent=5 // pred_fallthru
      _
    %p137 = scmp.le.s32.totalorder 1, %s9
    %p138 = scmp.lt.s32.totalorder %s9, 5
    %p139 = pnand %p137, %p138
    %p140 = pneg %p139
    // Predicated region
    $region29: #{forward.5} parent=5 // pred_check
      _
    $region30: #{forward.5} parent=5 // pred_check_branch
      %142 = sbr.rel (%p139) target = $region32
    $region31: #{forward.5} parent=5 // pred_region
      %s143 = ssub.s32 %s9, 1
      %s144 = smul.u32 256, %s14
      %p145 = scmp.lt.s32.totalorder %s144, 1023
      %s146 = scalar_select %p145, %s144, 1023
      %s147 = smul.addr %s146, 4
      %s148 = scalar_lea.vmem %s0, %s147
      %p149 = pneg %p35
      %p150 = pneg %p32
      %p151 = pneg %p56
      %p152 = pneg %p53
      %p153 = pneg %p77
      %p154 = pneg %p74
      %p155 = pneg %p103
      %p156 = pneg %p100
      %s157 = smul.u32 256, %s14
      %p158 = scmp.lt.s32.totalorder %s157, 1023
      %s159 = scalar_select %p158, %s157, 1023
      %s160 = smul.addr %s159, 4
      %s161 = scalar_lea.vmem %s3, %s160
      %s162 = smul.u32 256, %s14
      %p163 = scmp.lt.s32.totalorder %s162, 1023
      %s164 = scalar_select %p163, %s162, 1023
      %s165 = smul.addr %s164, 4
      %s166 = scalar_lea.vmem %s0, %s165
      %s167 = smul.u32 256, %s14
      %s168 = smul.u32 256, %s14
      %p169 = scmp.lt.s32.totalorder %s168, 1023
      %s170 = scalar_select %p169, %s168, 1023
      %s171 = smul.addr %s170, 4
      %s172 = scalar_lea.vmem %s3, %s171
      %s173 = smul.u32 256, %s14
      %v175 = vld [vmem:[%s166] sm:$0xf]
      %v176 = vld [vmem:[%s166 + $0x4] sm:$0xf]
      %v177 = vld [vmem:[%s166 + $0x8] sm:$0xf]
      %v178 = vld [vmem:[%s166 + $0xc] sm:$0xf]
      %v179 = vld [vmem:[%s166 + $0x10] sm:$0xf]
      %v180 = vld [vmem:[%s166 + $0x14] sm:$0xf]
      %v181 = vld [vmem:[%s166 + $0x18] sm:$0xf]
      %v182 = vld [vmem:[%s166 + $0x1c] sm:$0xf]
      %v183 = vld [vmem:[%s166 + $0x20] sm:$0xf]
      %v184 = vld [vmem:[%s166 + $0x24] sm:$0xf]
      %v185 = vld [vmem:[%s166 + $0x28] sm:$0xf]
      %v186 = vld [vmem:[%s166 + $0x2c] sm:$0xf]
      %v187 = vld [vmem:[%s166 + $0x30] sm:$0xf]
      %v188 = vld [vmem:[%s166 + $0x34] sm:$0xf]
      %v189 = vld [vmem:[%s166 + $0x38] sm:$0xf]
      %v190 = vld [vmem:[%s166 + $0x3c] sm:$0xf]
      %v191 = vld [vmem:[%s166 + $0x40] sm:$0xf]
      %v192 = vld [vmem:[%s166 + $0x44] sm:$0xf]
      %v193 = vld [vmem:[%s166 + $0x48] sm:$0xf]
      %v194 = vld [vmem:[%s166 + $0x4c] sm:$0xf]
      %v195 = vld [vmem:[%s166 + $0x50] sm:$0xf]
      %v196 = vld [vmem:[%s166 + $0x54] sm:$0xf]
      %v197 = vld [vmem:[%s166 + $0x58] sm:$0xf]
      %v198 = vld [vmem:[%s166 + $0x5c] sm:$0xf]
      %v199 = vld [vmem:[%s166 + $0x60] sm:$0xf]
      %v200 = vld [vmem:[%s166 + $0x64] sm:$0xf]
      %v201 = vld [vmem:[%s166 + $0x68] sm:$0xf]
      %v202 = vld [vmem:[%s166 + $0x6c] sm:$0xf]
      %v203 = vld [vmem:[%s166 + $0x70] sm:$0xf]
      %v204 = vld [vmem:[%s166 + $0x74] sm:$0xf]
      %v205 = vld [vmem:[%s166 + $0x78] sm:$0xf]
      %v206 = vld [vmem:[%s166 + $0x7c] sm:$0xf]
      %v207 = vld [vmem:[%s166 + $0x80] sm:$0xf]
      %v208 = vld [vmem:[%s166 + $0x84] sm:$0xf]
      %v209 = vld [vmem:[%s166 + $0x88] sm:$0xf]
      %v210 = vld [vmem:[%s166 + $0x8c] sm:$0xf]
      %v211 = vld [vmem:[%s166 + $0x90] sm:$0xf]
      %v212 = vld [vmem:[%s166 + $0x94] sm:$0xf]
      %v213 = vld [vmem:[%s166 + $0x98] sm:$0xf]
      %v214 = vld [vmem:[%s166 + $0x9c] sm:$0xf]
      %v215 = vld [vmem:[%s166 + $0xa0] sm:$0xf]
      %v216 = vld [vmem:[%s166 + $0xa4] sm:$0xf]
      %v217 = vld [vmem:[%s166 + $0xa8] sm:$0xf]
      %v218 = vld [vmem:[%s166 + $0xac] sm:$0xf]
      %v219 = vld [vmem:[%s166 + $0xb0] sm:$0xf]
      %v220 = vld [vmem:[%s166 + $0xb4] sm:$0xf]
      %v221 = vld [vmem:[%s166 + $0xb8] sm:$0xf]
      %v222 = vld [vmem:[%s166 + $0xbc] sm:$0xf]
      %v223 = vld [vmem:[%s166 + $0xc0] sm:$0xf]
      %v224 = vld [vmem:[%s166 + $0xc4] sm:$0xf]
      %v225 = vld [vmem:[%s166 + $0xc8] sm:$0xf]
      %v226 = vld [vmem:[%s166 + $0xcc] sm:$0xf]
      %v227 = vld [vmem:[%s166 + $0xd0] sm:$0xf]
      %v228 = vld [vmem:[%s166 + $0xd4] sm:$0xf]
      %v229 = vld [vmem:[%s166 + $0xd8] sm:$0xf]
      %v230 = vld [vmem:[%s166 + $0xdc] sm:$0xf]
      %v231 = vld [vmem:[%s166 + $0xe0] sm:$0xf]
      %v232 = vld [vmem:[%s166 + $0xe4] sm:$0xf]
      %v233 = vld [vmem:[%s166 + $0xe8] sm:$0xf]
      %v234 = vld [vmem:[%s166 + $0xec] sm:$0xf]
      %v235 = vld [vmem:[%s166 + $0xf0] sm:$0xf]
      %v236 = vld [vmem:[%s166 + $0xf4] sm:$0xf]
      %v237 = vld [vmem:[%s166 + $0xf8] sm:$0xf]
      %v238 = vld [vmem:[%s166 + $0xfc] sm:$0xf]
      %v239 = vld [vmem:[%s166 + $0x100] sm:$0xf]
      %v240 = vld [vmem:[%s166 + $0x104] sm:$0xf]
      %v241 = vld [vmem:[%s166 + $0x108] sm:$0xf]
      %v242 = vld [vmem:[%s166 + $0x10c] sm:$0xf]
      %v243 = vld [vmem:[%s166 + $0x110] sm:$0xf]
      %v244 = vld [vmem:[%s166 + $0x114] sm:$0xf]
      %v245 = vld [vmem:[%s166 + $0x118] sm:$0xf]
      %v246 = vld [vmem:[%s166 + $0x11c] sm:$0xf]
      %v247 = vld [vmem:[%s166 + $0x120] sm:$0xf]
      %v248 = vld [vmem:[%s166 + $0x124] sm:$0xf]
      %v249 = vld [vmem:[%s166 + $0x128] sm:$0xf]
      %v250 = vld [vmem:[%s166 + $0x12c] sm:$0xf]
      %v251 = vld [vmem:[%s166 + $0x130] sm:$0xf]
      %v252 = vld [vmem:[%s166 + $0x134] sm:$0xf]
      %v253 = vld [vmem:[%s166 + $0x138] sm:$0xf]
      %v254 = vld [vmem:[%s166 + $0x13c] sm:$0xf]
      %v255 = vld [vmem:[%s166 + $0x140] sm:$0xf]
      %v256 = vld [vmem:[%s166 + $0x144] sm:$0xf]
      %v257 = vld [vmem:[%s166 + $0x148] sm:$0xf]
      %v258 = vld [vmem:[%s166 + $0x14c] sm:$0xf]
      %v259 = vld [vmem:[%s166 + $0x150] sm:$0xf]
      %v260 = vld [vmem:[%s166 + $0x154] sm:$0xf]
      %v261 = vld [vmem:[%s166 + $0x158] sm:$0xf]
      %v262 = vld [vmem:[%s166 + $0x15c] sm:$0xf]
      %v263 = vld [vmem:[%s166 + $0x160] sm:$0xf]
      %v264 = vld [vmem:[%s166 + $0x164] sm:$0xf]
      %v265 = vld [vmem:[%s166 + $0x168] sm:$0xf]
      %v266 = vld [vmem:[%s166 + $0x16c] sm:$0xf]
      %v267 = vld [vmem:[%s166 + $0x170] sm:$0xf]
      %v268 = vld [vmem:[%s166 + $0x174] sm:$0xf]
      %v269 = vld [vmem:[%s166 + $0x178] sm:$0xf]
      %v270 = vld [vmem:[%s166 + $0x17c] sm:$0xf]
      %v271 = vld [vmem:[%s166 + $0x180] sm:$0xf]
      %v272 = vld [vmem:[%s166 + $0x184] sm:$0xf]
      %v273 = vld [vmem:[%s166 + $0x188] sm:$0xf]
      %v274 = vld [vmem:[%s166 + $0x18c] sm:$0xf]
      %v275 = vld [vmem:[%s166 + $0x190] sm:$0xf]
      %v276 = vld [vmem:[%s166 + $0x194] sm:$0xf]
      %v277 = vld [vmem:[%s166 + $0x198] sm:$0xf]
      %v278 = vld [vmem:[%s166 + $0x19c] sm:$0xf]
      %v279 = vld [vmem:[%s166 + $0x1a0] sm:$0xf]
      %v280 = vld [vmem:[%s166 + $0x1a4] sm:$0xf]
      %v281 = vld [vmem:[%s166 + $0x1a8] sm:$0xf]
      %v282 = vld [vmem:[%s166 + $0x1ac] sm:$0xf]
      %v283 = vld [vmem:[%s166 + $0x1b0] sm:$0xf]
      %v284 = vld [vmem:[%s166 + $0x1b4] sm:$0xf]
      %v285 = vld [vmem:[%s166 + $0x1b8] sm:$0xf]
      %v286 = vld [vmem:[%s166 + $0x1bc] sm:$0xf]
      %v287 = vld [vmem:[%s166 + $0x1c0] sm:$0xf]
      %v288 = vld [vmem:[%s166 + $0x1c4] sm:$0xf]
      %v289 = vld [vmem:[%s166 + $0x1c8] sm:$0xf]
      %v290 = vld [vmem:[%s166 + $0x1cc] sm:$0xf]
      %v291 = vld [vmem:[%s166 + $0x1d0] sm:$0xf]
      %v292 = vld [vmem:[%s166 + $0x1d4] sm:$0xf]
      %v293 = vld [vmem:[%s166 + $0x1d8] sm:$0xf]
      %v294 = vld [vmem:[%s166 + $0x1dc] sm:$0xf]
      %v295 = vld [vmem:[%s166 + $0x1e0] sm:$0xf]
      %v296 = vld [vmem:[%s166 + $0x1e4] sm:$0xf]
      %v297 = vld [vmem:[%s166 + $0x1e8] sm:$0xf]
      %v298 = vld [vmem:[%s166 + $0x1ec] sm:$0xf]
      %v299 = vld [vmem:[%s166 + $0x1f0] sm:$0xf]
      %v300 = vld [vmem:[%s166 + $0x1f4] sm:$0xf]
      %v301 = vld [vmem:[%s166 + $0x1f8] sm:$0xf]
      %v302 = vld [vmem:[%s166 + $0x1fc] sm:$0xf]
      %v303 = vld [vmem:[%s166 + $0x200] sm:$0xf]
      %v304 = vld [vmem:[%s166 + $0x204] sm:$0xf]
      %v305 = vld [vmem:[%s166 + $0x208] sm:$0xf]
      %v306 = vld [vmem:[%s166 + $0x20c] sm:$0xf]
      %v307 = vld [vmem:[%s166 + $0x210] sm:$0xf]
      %v308 = vld [vmem:[%s166 + $0x214] sm:$0xf]
      %v309 = vld [vmem:[%s166 + $0x218] sm:$0xf]
      %v310 = vld [vmem:[%s166 + $0x21c] sm:$0xf]
      %v311 = vld [vmem:[%s166 + $0x220] sm:$0xf]
      %v312 = vld [vmem:[%s166 + $0x224] sm:$0xf]
      %v313 = vld [vmem:[%s166 + $0x228] sm:$0xf]
      %v314 = vld [vmem:[%s166 + $0x22c] sm:$0xf]
      %v315 = vld [vmem:[%s166 + $0x230] sm:$0xf]
      %v316 = vld [vmem:[%s166 + $0x234] sm:$0xf]
      %v317 = vld [vmem:[%s166 + $0x238] sm:$0xf]
      %v318 = vld [vmem:[%s166 + $0x23c] sm:$0xf]
      %v319 = vld [vmem:[%s166 + $0x240] sm:$0xf]
      %v320 = vld [vmem:[%s166 + $0x244] sm:$0xf]
      %v321 = vld [vmem:[%s166 + $0x248] sm:$0xf]
      %v322 = vld [vmem:[%s166 + $0x24c] sm:$0xf]
      %v323 = vld [vmem:[%s166 + $0x250] sm:$0xf]
      %v324 = vld [vmem:[%s166 + $0x254] sm:$0xf]
      %v325 = vld [vmem:[%s166 + $0x258] sm:$0xf]
      %v326 = vld [vmem:[%s166 + $0x25c] sm:$0xf]
      %v327 = vld [vmem:[%s166 + $0x260] sm:$0xf]
      %v328 = vld [vmem:[%s166 + $0x264] sm:$0xf]
      %v329 = vld [vmem:[%s166 + $0x268] sm:$0xf]
      %v330 = vld [vmem:[%s166 + $0x26c] sm:$0xf]
      %v331 = vld [vmem:[%s166 + $0x270] sm:$0xf]
      %v332 = vld [vmem:[%s166 + $0x274] sm:$0xf]
      %v333 = vld [vmem:[%s166 + $0x278] sm:$0xf]
      %v334 = vld [vmem:[%s166 + $0x27c] sm:$0xf]
      %v335 = vld [vmem:[%s166 + $0x280] sm:$0xf]
      %v336 = vld [vmem:[%s166 + $0x284] sm:$0xf]
      %v337 = vld [vmem:[%s166 + $0x288] sm:$0xf]
      %v338 = vld [vmem:[%s166 + $0x28c] sm:$0xf]
      %v339 = vld [vmem:[%s166 + $0x290] sm:$0xf]
      %v340 = vld [vmem:[%s166 + $0x294] sm:$0xf]
      %v341 = vld [vmem:[%s166 + $0x298] sm:$0xf]
      %v342 = vld [vmem:[%s166 + $0x29c] sm:$0xf]
      %v343 = vld [vmem:[%s166 + $0x2a0] sm:$0xf]
      %v344 = vld [vmem:[%s166 + $0x2a4] sm:$0xf]
      %v345 = vld [vmem:[%s166 + $0x2a8] sm:$0xf]
      %v346 = vld [vmem:[%s166 + $0x2ac] sm:$0xf]
      %v347 = vld [vmem:[%s166 + $0x2b0] sm:$0xf]
      %v348 = vld [vmem:[%s166 + $0x2b4] sm:$0xf]
      %v349 = vld [vmem:[%s166 + $0x2b8] sm:$0xf]
      %v350 = vld [vmem:[%s166 + $0x2bc] sm:$0xf]
      %v351 = vld [vmem:[%s166 + $0x2c0] sm:$0xf]
      %v352 = vld [vmem:[%s166 + $0x2c4] sm:$0xf]
      %v353 = vld [vmem:[%s166 + $0x2c8] sm:$0xf]
      %v354 = vld [vmem:[%s166 + $0x2cc] sm:$0xf]
      %v355 = vld [vmem:[%s166 + $0x2d0] sm:$0xf]
      %v356 = vld [vmem:[%s166 + $0x2d4] sm:$0xf]
      %v357 = vld [vmem:[%s166 + $0x2d8] sm:$0xf]
      %v358 = vld [vmem:[%s166 + $0x2dc] sm:$0xf]
      %v359 = vld [vmem:[%s166 + $0x2e0] sm:$0xf]
      %v360 = vld [vmem:[%s166 + $0x2e4] sm:$0xf]
      %v361 = vld [vmem:[%s166 + $0x2e8] sm:$0xf]
      %v362 = vld [vmem:[%s166 + $0x2ec] sm:$0xf]
      %v363 = vld [vmem:[%s166 + $0x2f0] sm:$0xf]
      %v364 = vld [vmem:[%s166 + $0x2f4] sm:$0xf]
      %v365 = vld [vmem:[%s166 + $0x2f8] sm:$0xf]
      %v366 = vld [vmem:[%s166 + $0x2fc] sm:$0xf]
      %v367 = vld [vmem:[%s166 + $0x300] sm:$0xf]
      %v368 = vld [vmem:[%s166 + $0x304] sm:$0xf]
      %v369 = vld [vmem:[%s166 + $0x308] sm:$0xf]
      %v370 = vld [vmem:[%s166 + $0x30c] sm:$0xf]
      %v371 = vld [vmem:[%s166 + $0x310] sm:$0xf]
      %v372 = vld [vmem:[%s166 + $0x314] sm:$0xf]
      %v373 = vld [vmem:[%s166 + $0x318] sm:$0xf]
      %v374 = vld [vmem:[%s166 + $0x31c] sm:$0xf]
      %v375 = vld [vmem:[%s166 + $0x320] sm:$0xf]
      %v376 = vld [vmem:[%s166 + $0x324] sm:$0xf]
      %v377 = vld [vmem:[%s166 + $0x328] sm:$0xf]
      %v378 = vld [vmem:[%s166 + $0x32c] sm:$0xf]
      %v379 = vld [vmem:[%s166 + $0x330] sm:$0xf]
      %v380 = vld [vmem:[%s166 + $0x334] sm:$0xf]
      %v381 = vld [vmem:[%s166 + $0x338] sm:$0xf]
      %v382 = vld [vmem:[%s166 + $0x33c] sm:$0xf]
      %v383 = vld [vmem:[%s166 + $0x340] sm:$0xf]
      %v384 = vld [vmem:[%s166 + $0x344] sm:$0xf]
      %v385 = vld [vmem:[%s166 + $0x348] sm:$0xf]
      %v386 = vld [vmem:[%s166 + $0x34c] sm:$0xf]
      %v387 = vld [vmem:[%s166 + $0x350] sm:$0xf]
      %v388 = vld [vmem:[%s166 + $0x354] sm:$0xf]
      %v389 = vld [vmem:[%s166 + $0x358] sm:$0xf]
      %v390 = vld [vmem:[%s166 + $0x35c] sm:$0xf]
      %v391 = vld [vmem:[%s166 + $0x360] sm:$0xf]
      %v392 = vld [vmem:[%s166 + $0x364] sm:$0xf]
      %v393 = vld [vmem:[%s166 + $0x368] sm:$0xf]
      %v394 = vld [vmem:[%s166 + $0x36c] sm:$0xf]
      %v395 = vld [vmem:[%s166 + $0x370] sm:$0xf]
      %v396 = vld [vmem:[%s166 + $0x374] sm:$0xf]
      %v397 = vld [vmem:[%s166 + $0x378] sm:$0xf]
      %v398 = vld [vmem:[%s166 + $0x37c] sm:$0xf]
      %v399 = vld [vmem:[%s166 + $0x380] sm:$0xf]
      %v400 = vld [vmem:[%s166 + $0x384] sm:$0xf]
      %v401 = vld [vmem:[%s166 + $0x388] sm:$0xf]
      %v402 = vld [vmem:[%s166 + $0x38c] sm:$0xf]
      %v403 = vld [vmem:[%s166 + $0x390] sm:$0xf]
      %v404 = vld [vmem:[%s166 + $0x394] sm:$0xf]
      %v405 = vld [vmem:[%s166 + $0x398] sm:$0xf]
      %v406 = vld [vmem:[%s166 + $0x39c] sm:$0xf]
      %v407 = vld [vmem:[%s166 + $0x3a0] sm:$0xf]
      %v408 = vld [vmem:[%s166 + $0x3a4] sm:$0xf]
      %v409 = vld [vmem:[%s166 + $0x3a8] sm:$0xf]
      %v410 = vld [vmem:[%s166 + $0x3ac] sm:$0xf]
      %v411 = vld [vmem:[%s166 + $0x3b0] sm:$0xf]
      %v412 = vld [vmem:[%s166 + $0x3b4] sm:$0xf]
      %v413 = vld [vmem:[%s166 + $0x3b8] sm:$0xf]
      %v414 = vld [vmem:[%s166 + $0x3bc] sm:$0xf]
      %v415 = vld [vmem:[%s166 + $0x3c0] sm:$0xf]
      %v416 = vld [vmem:[%s166 + $0x3c4] sm:$0xf]
      %v417 = vld [vmem:[%s166 + $0x3c8] sm:$0xf]
      %v418 = vld [vmem:[%s166 + $0x3cc] sm:$0xf]
      %v419 = vld [vmem:[%s166 + $0x3d0] sm:$0xf]
      %v420 = vld [vmem:[%s166 + $0x3d4] sm:$0xf]
      %v421 = vld [vmem:[%s166 + $0x3d8] sm:$0xf]
      %v422 = vld [vmem:[%s166 + $0x3dc] sm:$0xf]
      %v423 = vld [vmem:[%s166 + $0x3e0] sm:$0xf]
      %v424 = vld [vmem:[%s166 + $0x3e4] sm:$0xf]
      %v425 = vld [vmem:[%s166 + $0x3e8] sm:$0xf]
      %v426 = vld [vmem:[%s166 + $0x3ec] sm:$0xf]
      %v427 = vld [vmem:[%s166 + $0x3f0] sm:$0xf]
      %v428 = vld [vmem:[%s166 + $0x3f4] sm:$0xf]
      %v429 = vld [vmem:[%s166 + $0x3f8] sm:$0xf]
      %v430 = vld [vmem:[%s166 + $0x3fc] sm:$0xf]
      %v431 = vld [vmem:[%s1] sm:$0xf]
      %v432 = vld [vmem:[%s1 + $0x4] sm:$0xf]
      %v433 = vld [vmem:[%s1 + $0x8] sm:$0xf]
      %v434 = vld [vmem:[%s1 + $0xc] sm:$0xf]
      %v435 = vld [vmem:[%s1 + $0x10] sm:$0xf]
      %v436 = vld [vmem:[%s1 + $0x14] sm:$0xf]
      %v437 = vld [vmem:[%s2] sm:$0x1]
      %v439 = vperm.slane %v437, 0
      %v697 = vunpack.c.l.b16 %v175
      %v698 = vunpack.c.l.b16 %v176
      %v699 = vunpack.c.l.b16 %v177
      %v700 = vunpack.c.l.b16 %v178
      %v701 = vunpack.c.l.b16 %v179
      %v702 = vunpack.c.l.b16 %v180
      %v703 = vunpack.c.l.b16 %v181
      %v704 = vunpack.c.l.b16 %v182
      %v705 = vunpack.c.l.b16 %v183
      %v706 = vunpack.c.l.b16 %v184
      %v707 = vunpack.c.l.b16 %v185
      %v708 = vunpack.c.l.b16 %v186
      %v709 = vunpack.c.l.b16 %v187
      %v710 = vunpack.c.l.b16 %v188
      %v711 = vunpack.c.l.b16 %v189
      %v712 = vunpack.c.l.b16 %v190
      %v713 = vunpack.c.l.b16 %v191
      %v714 = vunpack.c.l.b16 %v192
      %v715 = vunpack.c.l.b16 %v193
      %v716 = vunpack.c.l.b16 %v194
      %v717 = vunpack.c.l.b16 %v195
      %v718 = vunpack.c.l.b16 %v196
      %v719 = vunpack.c.l.b16 %v197
      %v720 = vunpack.c.l.b16 %v198
      %v721 = vunpack.c.l.b16 %v199
      %v722 = vunpack.c.l.b16 %v200
      %v723 = vunpack.c.l.b16 %v201
      %v724 = vunpack.c.l.b16 %v202
      %v725 = vunpack.c.l.b16 %v203
      %v726 = vunpack.c.l.b16 %v204
      %v727 = vunpack.c.l.b16 %v205
      %v728 = vunpack.c.l.b16 %v206
      %v729 = vunpack.c.l.b16 %v207
      %v730 = vunpack.c.l.b16 %v208
      %v731 = vunpack.c.l.b16 %v209
      %v732 = vunpack.c.l.b16 %v210
      %v733 = vunpack.c.l.b16 %v211
      %v734 = vunpack.c.l.b16 %v212
      %v735 = vunpack.c.l.b16 %v213
      %v736 = vunpack.c.l.b16 %v214
      %v737 = vunpack.c.l.b16 %v215
      %v738 = vunpack.c.l.b16 %v216
      %v739 = vunpack.c.l.b16 %v217
      %v740 = vunpack.c.l.b16 %v218
      %v741 = vunpack.c.l.b16 %v219
      %v742 = vunpack.c.l.b16 %v220
      %v743 = vunpack.c.l.b16 %v221
      %v744 = vunpack.c.l.b16 %v222
      %v745 = vunpack.c.l.b16 %v223
      %v746 = vunpack.c.l.b16 %v224
      %v747 = vunpack.c.l.b16 %v225
      %v748 = vunpack.c.l.b16 %v226
      %v749 = vunpack.c.l.b16 %v227
      %v750 = vunpack.c.l.b16 %v228
      %v751 = vunpack.c.l.b16 %v229
      %v752 = vunpack.c.l.b16 %v230
      %v753 = vunpack.c.l.b16 %v231
      %v754 = vunpack.c.l.b16 %v232
      %v755 = vunpack.c.l.b16 %v233
      %v756 = vunpack.c.l.b16 %v234
      %v757 = vunpack.c.l.b16 %v235
      %v758 = vunpack.c.l.b16 %v236
      %v759 = vunpack.c.l.b16 %v237
      %v760 = vunpack.c.l.b16 %v238
      %v761 = vunpack.c.l.b16 %v239
      %v762 = vunpack.c.l.b16 %v240
      %v763 = vunpack.c.l.b16 %v241
      %v764 = vunpack.c.l.b16 %v242
      %v765 = vunpack.c.l.b16 %v243
      %v766 = vunpack.c.l.b16 %v244
      %v767 = vunpack.c.l.b16 %v245
      %v768 = vunpack.c.l.b16 %v246
      %v769 = vunpack.c.l.b16 %v247
      %v770 = vunpack.c.l.b16 %v248
      %v771 = vunpack.c.l.b16 %v249
      %v772 = vunpack.c.l.b16 %v250
      %v773 = vunpack.c.l.b16 %v251
      %v774 = vunpack.c.l.b16 %v252
      %v775 = vunpack.c.l.b16 %v253
      %v776 = vunpack.c.l.b16 %v254
      %v777 = vunpack.c.l.b16 %v255
      %v778 = vunpack.c.l.b16 %v256
      %v779 = vunpack.c.l.b16 %v257
      %v780 = vunpack.c.l.b16 %v258
      %v781 = vunpack.c.l.b16 %v259
      %v782 = vunpack.c.l.b16 %v260
      %v783 = vunpack.c.l.b16 %v261
      %v784 = vunpack.c.l.b16 %v262
      %v785 = vunpack.c.l.b16 %v263
      %v786 = vunpack.c.l.b16 %v264
      %v787 = vunpack.c.l.b16 %v265
      %v788 = vunpack.c.l.b16 %v266
      %v789 = vunpack.c.l.b16 %v267
      %v790 = vunpack.c.l.b16 %v268
      %v791 = vunpack.c.l.b16 %v269
      %v792 = vunpack.c.l.b16 %v270
      %v793 = vunpack.c.l.b16 %v271
      %v794 = vunpack.c.l.b16 %v272
      %v795 = vunpack.c.l.b16 %v273
      %v796 = vunpack.c.l.b16 %v274
      %v797 = vunpack.c.l.b16 %v275
      %v798 = vunpack.c.l.b16 %v276
      %v799 = vunpack.c.l.b16 %v277
      %v800 = vunpack.c.l.b16 %v278
      %v801 = vunpack.c.l.b16 %v279
      %v802 = vunpack.c.l.b16 %v280
      %v803 = vunpack.c.l.b16 %v281
      %v804 = vunpack.c.l.b16 %v282
      %v805 = vunpack.c.l.b16 %v283
      %v806 = vunpack.c.l.b16 %v284
      %v807 = vunpack.c.l.b16 %v285
      %v808 = vunpack.c.l.b16 %v286
      %v809 = vunpack.c.l.b16 %v287
      %v810 = vunpack.c.l.b16 %v288
      %v811 = vunpack.c.l.b16 %v289
      %v812 = vunpack.c.l.b16 %v290
      %v813 = vunpack.c.l.b16 %v291
      %v814 = vunpack.c.l.b16 %v292
      %v815 = vunpack.c.l.b16 %v293
      %v816 = vunpack.c.l.b16 %v294
      %v817 = vunpack.c.l.b16 %v295
      %v818 = vunpack.c.l.b16 %v296
      %v819 = vunpack.c.l.b16 %v297
      %v820 = vunpack.c.l.b16 %v298
      %v821 = vunpack.c.l.b16 %v299
      %v822 = vunpack.c.l.b16 %v300
      %v823 = vunpack.c.l.b16 %v301
      %v824 = vunpack.c.l.b16 %v302
      %v825 = vunpack.c.l.b16 %v303
      %v826 = vunpack.c.l.b16 %v304
      %v827 = vunpack.c.l.b16 %v305
      %v828 = vunpack.c.l.b16 %v306
      %v829 = vunpack.c.l.b16 %v307
      %v830 = vunpack.c.l.b16 %v308
      %v831 = vunpack.c.l.b16 %v309
      %v832 = vunpack.c.l.b16 %v310
      %v833 = vunpack.c.l.b16 %v311
      %v834 = vunpack.c.l.b16 %v312
      %v835 = vunpack.c.l.b16 %v313
      %v836 = vunpack.c.l.b16 %v314
      %v837 = vunpack.c.l.b16 %v315
      %v838 = vunpack.c.l.b16 %v316
      %v839 = vunpack.c.l.b16 %v317
      %v840 = vunpack.c.l.b16 %v318
      %v841 = vunpack.c.l.b16 %v319
      %v842 = vunpack.c.l.b16 %v320
      %v843 = vunpack.c.l.b16 %v321
      %v844 = vunpack.c.l.b16 %v322
      %v845 = vunpack.c.l.b16 %v323
      %v846 = vunpack.c.l.b16 %v324
      %v847 = vunpack.c.l.b16 %v325
      %v848 = vunpack.c.l.b16 %v326
      %v849 = vunpack.c.l.b16 %v327
      %v850 = vunpack.c.l.b16 %v328
      %v851 = vunpack.c.l.b16 %v329
      %v852 = vunpack.c.l.b16 %v330
      %v853 = vunpack.c.l.b16 %v331
      %v854 = vunpack.c.l.b16 %v332
      %v855 = vunpack.c.l.b16 %v333
      %v856 = vunpack.c.l.b16 %v334
      %v857 = vunpack.c.l.b16 %v335
      %v858 = vunpack.c.l.b16 %v336
      %v859 = vunpack.c.l.b16 %v337
      %v860 = vunpack.c.l.b16 %v338
      %v861 = vunpack.c.l.b16 %v339
      %v862 = vunpack.c.l.b16 %v340
      %v863 = vunpack.c.l.b16 %v341
      %v864 = vunpack.c.l.b16 %v342
      %v865 = vunpack.c.l.b16 %v343
      %v866 = vunpack.c.l.b16 %v344
      %v867 = vunpack.c.l.b16 %v345
      %v868 = vunpack.c.l.b16 %v346
      %v869 = vunpack.c.l.b16 %v347
      %v870 = vunpack.c.l.b16 %v348
      %v871 = vunpack.c.l.b16 %v349
      %v872 = vunpack.c.l.b16 %v350
      %v873 = vunpack.c.l.b16 %v351
      %v874 = vunpack.c.l.b16 %v352
      %v875 = vunpack.c.l.b16 %v353
      %v876 = vunpack.c.l.b16 %v354
      %v877 = vunpack.c.l.b16 %v355
      %v878 = vunpack.c.l.b16 %v356
      %v879 = vunpack.c.l.b16 %v357
      %v880 = vunpack.c.l.b16 %v358
      %v881 = vunpack.c.l.b16 %v359
      %v882 = vunpack.c.l.b16 %v360
      %v883 = vunpack.c.l.b16 %v361
      %v884 = vunpack.c.l.b16 %v362
      %v885 = vunpack.c.l.b16 %v363
      %v886 = vunpack.c.l.b16 %v364
      %v887 = vunpack.c.l.b16 %v365
      %v888 = vunpack.c.l.b16 %v366
      %v889 = vunpack.c.l.b16 %v367
      %v890 = vunpack.c.l.b16 %v368
      %v891 = vunpack.c.l.b16 %v369
      %v892 = vunpack.c.l.b16 %v370
      %v893 = vunpack.c.l.b16 %v371
      %v894 = vunpack.c.l.b16 %v372
      %v895 = vunpack.c.l.b16 %v373
      %v896 = vunpack.c.l.b16 %v374
      %v897 = vunpack.c.l.b16 %v375
      %v898 = vunpack.c.l.b16 %v376
      %v899 = vunpack.c.l.b16 %v377
      %v900 = vunpack.c.l.b16 %v378
      %v901 = vunpack.c.l.b16 %v379
      %v902 = vunpack.c.l.b16 %v380
      %v903 = vunpack.c.l.b16 %v381
      %v904 = vunpack.c.l.b16 %v382
      %v905 = vunpack.c.l.b16 %v383
      %v906 = vunpack.c.l.b16 %v384
      %v907 = vunpack.c.l.b16 %v385
      %v908 = vunpack.c.l.b16 %v386
      %v909 = vunpack.c.l.b16 %v387
      %v910 = vunpack.c.l.b16 %v388
      %v911 = vunpack.c.l.b16 %v389
      %v912 = vunpack.c.l.b16 %v390
      %v913 = vunpack.c.l.b16 %v391
      %v914 = vunpack.c.l.b16 %v392
      %v915 = vunpack.c.l.b16 %v393
      %v916 = vunpack.c.l.b16 %v394
      %v917 = vunpack.c.l.b16 %v395
      %v918 = vunpack.c.l.b16 %v396
      %v919 = vunpack.c.l.b16 %v397
      %v920 = vunpack.c.l.b16 %v398
      %v921 = vunpack.c.l.b16 %v399
      %v922 = vunpack.c.l.b16 %v400
      %v923 = vunpack.c.l.b16 %v401
      %v924 = vunpack.c.l.b16 %v402
      %v925 = vunpack.c.l.b16 %v403
      %v926 = vunpack.c.l.b16 %v404
      %v927 = vunpack.c.l.b16 %v405
      %v928 = vunpack.c.l.b16 %v406
      %v929 = vunpack.c.l.b16 %v407
      %v930 = vunpack.c.l.b16 %v408
      %v931 = vunpack.c.l.b16 %v409
      %v932 = vunpack.c.l.b16 %v410
      %v933 = vunpack.c.l.b16 %v411
      %v934 = vunpack.c.l.b16 %v412
      %v935 = vunpack.c.l.b16 %v413
      %v936 = vunpack.c.l.b16 %v414
      %v937 = vunpack.c.l.b16 %v415
      %v938 = vunpack.c.l.b16 %v416
      %v939 = vunpack.c.l.b16 %v417
      %v940 = vunpack.c.l.b16 %v418
      %v941 = vunpack.c.l.b16 %v419
      %v942 = vunpack.c.l.b16 %v420
      %v943 = vunpack.c.l.b16 %v421
      %v944 = vunpack.c.l.b16 %v422
      %v945 = vunpack.c.l.b16 %v423
      %v946 = vunpack.c.l.b16 %v424
      %v947 = vunpack.c.l.b16 %v425
      %v948 = vunpack.c.l.b16 %v426
      %v949 = vunpack.c.l.b16 %v427
      %v950 = vunpack.c.l.b16 %v428
      %v951 = vunpack.c.l.b16 %v429
      %v952 = vunpack.c.l.b16 %v430
      %v953 = vpack.c.b16 %v698, %v697
      %v954 = vpack.c.b16 %v700, %v699
      %v955 = vpack.c.b16 %v702, %v701
      %v956 = vpack.c.b16 %v704, %v703
      %v957 = vpack.c.b16 %v706, %v705
      %v958 = vpack.c.b16 %v708, %v707
      %v959 = vpack.c.b16 %v710, %v709
      %v960 = vpack.c.b16 %v712, %v711
      %v961 = vpack.c.b16 %v714, %v713
      %v962 = vpack.c.b16 %v716, %v715
      %v963 = vpack.c.b16 %v718, %v717
      %v964 = vpack.c.b16 %v720, %v719
      %v965 = vpack.c.b16 %v722, %v721
      %v966 = vpack.c.b16 %v724, %v723
      %v967 = vpack.c.b16 %v726, %v725
      %v968 = vpack.c.b16 %v728, %v727
      %v969 = vpack.c.b16 %v730, %v729
      %v970 = vpack.c.b16 %v732, %v731
      %v971 = vpack.c.b16 %v734, %v733
      %v972 = vpack.c.b16 %v736, %v735
      %v973 = vpack.c.b16 %v738, %v737
      %v974 = vpack.c.b16 %v740, %v739
      %v975 = vpack.c.b16 %v742, %v741
      %v976 = vpack.c.b16 %v744, %v743
      %v977 = vpack.c.b16 %v746, %v745
      %v978 = vpack.c.b16 %v748, %v747
      %v979 = vpack.c.b16 %v750, %v749
      %v980 = vpack.c.b16 %v752, %v751
      %v981 = vpack.c.b16 %v754, %v753
      %v982 = vpack.c.b16 %v756, %v755
      %v983 = vpack.c.b16 %v758, %v757
      %v984 = vpack.c.b16 %v760, %v759
      %v985 = vpack.c.b16 %v762, %v761
      %v986 = vpack.c.b16 %v764, %v763
      %v987 = vpack.c.b16 %v766, %v765
      %v988 = vpack.c.b16 %v768, %v767
      %v989 = vpack.c.b16 %v770, %v769
      %v990 = vpack.c.b16 %v772, %v771
      %v991 = vpack.c.b16 %v774, %v773
      %v992 = vpack.c.b16 %v776, %v775
      %v993 = vpack.c.b16 %v778, %v777
      %v994 = vpack.c.b16 %v780, %v779
      %v995 = vpack.c.b16 %v782, %v781
      %v996 = vpack.c.b16 %v784, %v783
      %v997 = vpack.c.b16 %v786, %v785
      %v998 = vpack.c.b16 %v788, %v787
      %v999 = vpack.c.b16 %v790, %v789
      %v1000 = vpack.c.b16 %v792, %v791
      %v1001 = vpack.c.b16 %v794, %v793
      %v1002 = vpack.c.b16 %v796, %v795
      %v1003 = vpack.c.b16 %v798, %v797
      %v1004 = vpack.c.b16 %v800, %v799
      %v1005 = vpack.c.b16 %v802, %v801
      %v1006 = vpack.c.b16 %v804, %v803
      %v1007 = vpack.c.b16 %v806, %v805
      %v1008 = vpack.c.b16 %v808, %v807
      %v1009 = vpack.c.b16 %v810, %v809
      %v1010 = vpack.c.b16 %v812, %v811
      %v1011 = vpack.c.b16 %v814, %v813
      %v1012 = vpack.c.b16 %v816, %v815
      %v1013 = vpack.c.b16 %v818, %v817
      %v1014 = vpack.c.b16 %v820, %v819
      %v1015 = vpack.c.b16 %v822, %v821
      %v1016 = vpack.c.b16 %v824, %v823
      %v1017 = vpack.c.b16 %v826, %v825
      %v1018 = vpack.c.b16 %v828, %v827
      %v1019 = vpack.c.b16 %v830, %v829
      %v1020 = vpack.c.b16 %v832, %v831
      %v1021 = vpack.c.b16 %v834, %v833
      %v1022 = vpack.c.b16 %v836, %v835
      %v1023 = vpack.c.b16 %v838, %v837
      %v1024 = vpack.c.b16 %v840, %v839
      %v1025 = vpack.c.b16 %v842, %v841
      %v1026 = vpack.c.b16 %v844, %v843
      %v1027 = vpack.c.b16 %v846, %v845
      %v1028 = vpack.c.b16 %v848, %v847
      %v1029 = vpack.c.b16 %v850, %v849
      %v1030 = vpack.c.b16 %v852, %v851
      %v1031 = vpack.c.b16 %v854, %v853
      %v1032 = vpack.c.b16 %v856, %v855
      %v1033 = vpack.c.b16 %v858, %v857
      %v1034 = vpack.c.b16 %v860, %v859
      %v1035 = vpack.c.b16 %v862, %v861
      %v1036 = vpack.c.b16 %v864, %v863
      %v1037 = vpack.c.b16 %v866, %v865
      %v1038 = vpack.c.b16 %v868, %v867
      %v1039 = vpack.c.b16 %v870, %v869
      %v1040 = vpack.c.b16 %v872, %v871
      %v1041 = vpack.c.b16 %v874, %v873
      %v1042 = vpack.c.b16 %v876, %v875
      %v1043 = vpack.c.b16 %v878, %v877
      %v1044 = vpack.c.b16 %v880, %v879
      %v1045 = vpack.c.b16 %v882, %v881
      %v1046 = vpack.c.b16 %v884, %v883
      %v1047 = vpack.c.b16 %v886, %v885
      %v1048 = vpack.c.b16 %v888, %v887
      %v1049 = vpack.c.b16 %v890, %v889
      %v1050 = vpack.c.b16 %v892, %v891
      %v1051 = vpack.c.b16 %v894, %v893
      %v1052 = vpack.c.b16 %v896, %v895
      %v1053 = vpack.c.b16 %v898, %v897
      %v1054 = vpack.c.b16 %v900, %v899
      %v1055 = vpack.c.b16 %v902, %v901
      %v1056 = vpack.c.b16 %v904, %v903
      %v1057 = vpack.c.b16 %v906, %v905
      %v1058 = vpack.c.b16 %v908, %v907
      %v1059 = vpack.c.b16 %v910, %v909
      %v1060 = vpack.c.b16 %v912, %v911
      %v1061 = vpack.c.b16 %v914, %v913
      %v1062 = vpack.c.b16 %v916, %v915
      %v1063 = vpack.c.b16 %v918, %v917
      %v1064 = vpack.c.b16 %v920, %v919
      %v1065 = vpack.c.b16 %v922, %v921
      %v1066 = vpack.c.b16 %v924, %v923
      %v1067 = vpack.c.b16 %v926, %v925
      %v1068 = vpack.c.b16 %v928, %v927
      %v1069 = vpack.c.b16 %v930, %v929
      %v1070 = vpack.c.b16 %v932, %v931
      %v1071 = vpack.c.b16 %v934, %v933
      %v1072 = vpack.c.b16 %v936, %v935
      %v1073 = vpack.c.b16 %v938, %v937
      %v1074 = vpack.c.b16 %v940, %v939
      %v1075 = vpack.c.b16 %v942, %v941
      %v1076 = vpack.c.b16 %v944, %v943
      %v1077 = vpack.c.b16 %v946, %v945
      %v1078 = vpack.c.b16 %v948, %v947
      %v1079 = vpack.c.b16 %v950, %v949
      %v1080 = vpack.c.b16 %v952, %v951
      %v1087 = vunpack.c.l.b16 %v431
      %v1088 = vunpack.c.l.b16 %v432
      %v1089 = vunpack.c.l.b16 %v433
      %v1090 = vunpack.c.l.b16 %v434
      %v1091 = vunpack.c.l.b16 %v435
      %v1092 = vunpack.c.l.b16 %v436
      %v1093 = vpack.c.b16 %v1088, %v1087
      %v1094 = vpack.c.b16 %v1090, %v1089
      %v1095 = vpack.c.b16 %v1092, %v1091
      %vm1099 = vcmask 392192
      %v1101 = vsel %vm1099, %v953, 0
      %v1104 = vsel %vm1099, %v954, 0
      %v1107 = vsel %vm1099, %v955, 0
      %v1110 = vsel %vm1099, %v956, 0
      %v1113 = vsel %vm1099, %v957, 0
      %v1116 = vsel %vm1099, %v958, 0
      %v1119 = vsel %vm1099, %v959, 0
      %v1122 = vsel %vm1099, %v960, 0
      %v1125 = vsel %vm1099, %v961, 0
      %v1128 = vsel %vm1099, %v962, 0
      %v1131 = vsel %vm1099, %v963, 0
      %v1134 = vsel %vm1099, %v964, 0
      %v1137 = vsel %vm1099, %v965, 0
      %v1140 = vsel %vm1099, %v966, 0
      %v1143 = vsel %vm1099, %v967, 0
      %v1146 = vsel %vm1099, %v968, 0
      %v1149 = vsel %vm1099, %v969, 0
      %v1152 = vsel %vm1099, %v970, 0
      %v1155 = vsel %vm1099, %v971, 0
      %v1158 = vsel %vm1099, %v972, 0
      %v1161 = vsel %vm1099, %v973, 0
      %v1164 = vsel %vm1099, %v974, 0
      %v1167 = vsel %vm1099, %v975, 0
      %v1170 = vsel %vm1099, %v976, 0
      %v1173 = vsel %vm1099, %v977, 0
      %v1176 = vsel %vm1099, %v978, 0
      %v1179 = vsel %vm1099, %v979, 0
      %v1182 = vsel %vm1099, %v980, 0
      %v1185 = vsel %vm1099, %v981, 0
      %v1188 = vsel %vm1099, %v982, 0
      %v1191 = vsel %vm1099, %v983, 0
      %v1194 = vsel %vm1099, %v984, 0
      %v1197 = vsel %vm1099, %v985, 0
      %v1200 = vsel %vm1099, %v986, 0
      %v1203 = vsel %vm1099, %v987, 0
      %v1206 = vsel %vm1099, %v988, 0
      %v1209 = vsel %vm1099, %v989, 0
      %v1212 = vsel %vm1099, %v990, 0
      %v1215 = vsel %vm1099, %v991, 0
      %v1218 = vsel %vm1099, %v992, 0
      %v1221 = vsel %vm1099, %v993, 0
      %v1224 = vsel %vm1099, %v994, 0
      %v1227 = vsel %vm1099, %v995, 0
      %v1230 = vsel %vm1099, %v996, 0
      %v1233 = vsel %vm1099, %v997, 0
      %v1236 = vsel %vm1099, %v998, 0
      %v1239 = vsel %vm1099, %v999, 0
      %v1242 = vsel %vm1099, %v1000, 0
      %v1245 = vsel %vm1099, %v1001, 0
      %v1248 = vsel %vm1099, %v1002, 0
      %v1251 = vsel %vm1099, %v1003, 0
      %v1254 = vsel %vm1099, %v1004, 0
      %v1257 = vsel %vm1099, %v1005, 0
      %v1260 = vsel %vm1099, %v1006, 0
      %v1263 = vsel %vm1099, %v1007, 0
      %v1266 = vsel %vm1099, %v1008, 0
      %v1269 = vsel %vm1099, %v1009, 0
      %v1272 = vsel %vm1099, %v1010, 0
      %v1275 = vsel %vm1099, %v1011, 0
      %v1278 = vsel %vm1099, %v1012, 0
      %v1281 = vsel %vm1099, %v1013, 0
      %v1284 = vsel %vm1099, %v1014, 0
      %v1287 = vsel %vm1099, %v1015, 0
      %v1290 = vsel %vm1099, %v1016, 0
      %v1293 = vsel %vm1099, %v1017, 0
      %v1296 = vsel %vm1099, %v1018, 0
      %v1299 = vsel %vm1099, %v1019, 0
      %v1302 = vsel %vm1099, %v1020, 0
      %v1305 = vsel %vm1099, %v1021, 0
      %v1308 = vsel %vm1099, %v1022, 0
      %v1311 = vsel %vm1099, %v1023, 0
      %v1314 = vsel %vm1099, %v1024, 0
      %v1317 = vsel %vm1099, %v1025, 0
      %v1320 = vsel %vm1099, %v1026, 0
      %v1323 = vsel %vm1099, %v1027, 0
      %v1326 = vsel %vm1099, %v1028, 0
      %v1329 = vsel %vm1099, %v1029, 0
      %v1332 = vsel %vm1099, %v1030, 0
      %v1335 = vsel %vm1099, %v1031, 0
      %v1338 = vsel %vm1099, %v1032, 0
      %v1341 = vsel %vm1099, %v1033, 0
      %v1344 = vsel %vm1099, %v1034, 0
      %v1347 = vsel %vm1099, %v1035, 0
      %v1350 = vsel %vm1099, %v1036, 0
      %v1353 = vsel %vm1099, %v1037, 0
      %v1356 = vsel %vm1099, %v1038, 0
      %v1359 = vsel %vm1099, %v1039, 0
      %v1362 = vsel %vm1099, %v1040, 0
      %v1365 = vsel %vm1099, %v1041, 0
      %v1368 = vsel %vm1099, %v1042, 0
      %v1371 = vsel %vm1099, %v1043, 0
      %v1374 = vsel %vm1099, %v1044, 0
      %v1377 = vsel %vm1099, %v1045, 0
      %v1380 = vsel %vm1099, %v1046, 0
      %v1383 = vsel %vm1099, %v1047, 0
      %v1386 = vsel %vm1099, %v1048, 0
      %v1389 = vsel %vm1099, %v1049, 0
      %v1392 = vsel %vm1099, %v1050, 0
      %v1395 = vsel %vm1099, %v1051, 0
      %v1398 = vsel %vm1099, %v1052, 0
      %v1401 = vsel %vm1099, %v1053, 0
      %v1404 = vsel %vm1099, %v1054, 0
      %v1407 = vsel %vm1099, %v1055, 0
      %v1410 = vsel %vm1099, %v1056, 0
      %v1413 = vsel %vm1099, %v1057, 0
      %v1416 = vsel %vm1099, %v1058, 0
      %v1419 = vsel %vm1099, %v1059, 0
      %v1422 = vsel %vm1099, %v1060, 0
      %v1425 = vsel %vm1099, %v1061, 0
      %v1428 = vsel %vm1099, %v1062, 0
      %v1431 = vsel %vm1099, %v1063, 0
      %v1434 = vsel %vm1099, %v1064, 0
      %v1437 = vsel %vm1099, %v1065, 0
      %v1440 = vsel %vm1099, %v1066, 0
      %v1443 = vsel %vm1099, %v1067, 0
      %v1446 = vsel %vm1099, %v1068, 0
      %v1449 = vsel %vm1099, %v1069, 0
      %v1452 = vsel %vm1099, %v1070, 0
      %v1455 = vsel %vm1099, %v1071, 0
      %v1458 = vsel %vm1099, %v1072, 0
      %v1461 = vsel %vm1099, %v1073, 0
      %v1464 = vsel %vm1099, %v1074, 0
      %v1467 = vsel %vm1099, %v1075, 0
      %v1470 = vsel %vm1099, %v1076, 0
      %v1473 = vsel %vm1099, %v1077, 0
      %v1476 = vsel %vm1099, %v1078, 0
      %v1479 = vsel %vm1099, %v1079, 0
      %v1482 = vsel %vm1099, %v1080, 0
      %1484 = vmatpush.bf16.msra.mxu0 0
      %1485 = vmatpush.bf16.msra.mxu0 0
      %1486 = vmatpush.bf16.msra.mxu0 0
      %1487 = vmatpush.bf16.msra.mxu0 0
      %1488 = vmatpush.bf16.msra.mxu0 0
      %1489 = vmatpush.bf16.msra.mxu0 %v1095
      %1490 = vmatpush.bf16.msra.mxu0 %v1094
      %1491 = vmatpush.bf16.msra.mxu0 %v1093
      %1492 = vmatmul.bf16.gmra.mxu0 %v1101
      %v1493 = vpop.f32.mrf.mxu0
      %v1494 = vadd.f32 %v439, %v1493
      %v1495 = vpop.f32.mrf.mxu0
      %v1496 = vadd.f32 %v439, %v1495
      %1497 = vmatmul.bf16.gmra.mxu0 %v1104
      %v1498 = vpop.f32.mrf.mxu0
      %v1499 = vadd.f32 %v439, %v1498
      %v1500 = vpop.f32.mrf.mxu0
      %v1501 = vadd.f32 %v439, %v1500
      %1502 = vmatmul.bf16.gmra.mxu0 %v1107
      %v1503 = vpop.f32.mrf.mxu0
      %v1504 = vadd.f32 %v439, %v1503
      %v1505 = vpop.f32.mrf.mxu0
      %v1506 = vadd.f32 %v439, %v1505
      %1507 = vmatmul.bf16.gmra.mxu0 %v1110
      %v1508 = vpop.f32.mrf.mxu0
      %v1509 = vadd.f32 %v439, %v1508
      %v1510 = vpop.f32.mrf.mxu0
      %v1511 = vadd.f32 %v439, %v1510
      %1512 = vmatmul.bf16.gmra.mxu0 %v1113
      %v1513 = vpop.f32.mrf.mxu0
      %v1514 = vadd.f32 %v439, %v1513
      %v1515 = vpop.f32.mrf.mxu0
      %v1516 = vadd.f32 %v439, %v1515
      %1517 = vmatmul.bf16.gmra.mxu0 %v1116
      %v1518 = vpop.f32.mrf.mxu0
      %v1519 = vadd.f32 %v439, %v1518
      %v1520 = vpop.f32.mrf.mxu0
      %v1521 = vadd.f32 %v439, %v1520
      %1522 = vmatmul.bf16.gmra.mxu0 %v1119
      %v1523 = vpop.f32.mrf.mxu0
      %v1524 = vadd.f32 %v439, %v1523
      %v1525 = vpop.f32.mrf.mxu0
      %v1526 = vadd.f32 %v439, %v1525
      %1527 = vmatmul.bf16.gmra.mxu0 %v1122
      %v1528 = vpop.f32.mrf.mxu0
      %v1529 = vadd.f32 %v439, %v1528
      %v1530 = vpop.f32.mrf.mxu0
      %v1531 = vadd.f32 %v439, %v1530
      %1532 = vmatmul.bf16.gmra.mxu0 %v1125
      %v1533 = vpop.f32.mrf.mxu0
      %v1534 = vadd.f32 %v439, %v1533
      %v1535 = vpop.f32.mrf.mxu0
      %v1536 = vadd.f32 %v439, %v1535
      %1537 = vmatmul.bf16.gmra.mxu0 %v1128
      %v1538 = vpop.f32.mrf.mxu0
      %v1539 = vadd.f32 %v439, %v1538
      %v1540 = vpop.f32.mrf.mxu0
      %v1541 = vadd.f32 %v439, %v1540
      %1542 = vmatmul.bf16.gmra.mxu0 %v1131
      %v1543 = vpop.f32.mrf.mxu0
      %v1544 = vadd.f32 %v439, %v1543
      %v1545 = vpop.f32.mrf.mxu0
      %v1546 = vadd.f32 %v439, %v1545
      %1547 = vmatmul.bf16.gmra.mxu0 %v1134
      %v1548 = vpop.f32.mrf.mxu0
      %v1549 = vadd.f32 %v439, %v1548
      %v1550 = vpop.f32.mrf.mxu0
      %v1551 = vadd.f32 %v439, %v1550
      %1552 = vmatmul.bf16.gmra.mxu0 %v1137
      %v1553 = vpop.f32.mrf.mxu0
      %v1554 = vadd.f32 %v439, %v1553
      %v1555 = vpop.f32.mrf.mxu0
      %v1556 = vadd.f32 %v439, %v1555
      %1557 = vmatmul.bf16.gmra.mxu0 %v1140
      %v1558 = vpop.f32.mrf.mxu0
      %v1559 = vadd.f32 %v439, %v1558
      %v1560 = vpop.f32.mrf.mxu0
      %v1561 = vadd.f32 %v439, %v1560
      %1562 = vmatmul.bf16.gmra.mxu0 %v1143
      %v1563 = vpop.f32.mrf.mxu0
      %v1564 = vadd.f32 %v439, %v1563
      %v1565 = vpop.f32.mrf.mxu0
      %v1566 = vadd.f32 %v439, %v1565
      %1567 = vmatmul.bf16.gmra.mxu0 %v1146
      %v1568 = vpop.f32.mrf.mxu0
      %v1569 = vadd.f32 %v439, %v1568
      %v1570 = vpop.f32.mrf.mxu0
      %v1571 = vadd.f32 %v439, %v1570
      %1572 = vmatmul.bf16.gmra.mxu0 %v1149
      %v1573 = vpop.f32.mrf.mxu0
      %v1574 = vadd.f32 %v439, %v1573
      %v1575 = vpop.f32.mrf.mxu0
      %v1576 = vadd.f32 %v439, %v1575
      %1577 = vmatmul.bf16.gmra.mxu0 %v1152
      %v1578 = vpop.f32.mrf.mxu0
      %v1579 = vadd.f32 %v439, %v1578
      %v1580 = vpop.f32.mrf.mxu0
      %v1581 = vadd.f32 %v439, %v1580
      %1582 = vmatmul.bf16.gmra.mxu0 %v1155
      %v1583 = vpop.f32.mrf.mxu0
      %v1584 = vadd.f32 %v439, %v1583
      %v1585 = vpop.f32.mrf.mxu0
      %v1586 = vadd.f32 %v439, %v1585
      %1587 = vmatmul.bf16.gmra.mxu0 %v1158
      %v1588 = vpop.f32.mrf.mxu0
      %v1589 = vadd.f32 %v439, %v1588
      %v1590 = vpop.f32.mrf.mxu0
      %v1591 = vadd.f32 %v439, %v1590
      %1592 = vmatmul.bf16.gmra.mxu0 %v1161
      %v1593 = vpop.f32.mrf.mxu0
      %v1594 = vadd.f32 %v439, %v1593
      %v1595 = vpop.f32.mrf.mxu0
      %v1596 = vadd.f32 %v439, %v1595
      %1597 = vmatmul.bf16.gmra.mxu0 %v1164
      %v1598 = vpop.f32.mrf.mxu0
      %v1599 = vadd.f32 %v439, %v1598
      %v1600 = vpop.f32.mrf.mxu0
      %v1601 = vadd.f32 %v439, %v1600
      %1602 = vmatmul.bf16.gmra.mxu0 %v1167
      %v1603 = vpop.f32.mrf.mxu0
      %v1604 = vadd.f32 %v439, %v1603
      %v1605 = vpop.f32.mrf.mxu0
      %v1606 = vadd.f32 %v439, %v1605
      %1607 = vmatmul.bf16.gmra.mxu0 %v1170
      %v1608 = vpop.f32.mrf.mxu0
      %v1609 = vadd.f32 %v439, %v1608
      %v1610 = vpop.f32.mrf.mxu0
      %v1611 = vadd.f32 %v439, %v1610
      %1612 = vmatmul.bf16.gmra.mxu0 %v1173
      %v1613 = vpop.f32.mrf.mxu0
      %v1614 = vadd.f32 %v439, %v1613
      %v1615 = vpop.f32.mrf.mxu0
      %v1616 = vadd.f32 %v439, %v1615
      %1617 = vmatmul.bf16.gmra.mxu0 %v1176
      %v1618 = vpop.f32.mrf.mxu0
      %v1619 = vadd.f32 %v439, %v1618
      %v1620 = vpop.f32.mrf.mxu0
      %v1621 = vadd.f32 %v439, %v1620
      %1622 = vmatmul.bf16.gmra.mxu0 %v1179
      %v1623 = vpop.f32.mrf.mxu0
      %v1624 = vadd.f32 %v439, %v1623
      %v1625 = vpop.f32.mrf.mxu0
      %v1626 = vadd.f32 %v439, %v1625
      %1627 = vmatmul.bf16.gmra.mxu0 %v1182
      %v1628 = vpop.f32.mrf.mxu0
      %v1629 = vadd.f32 %v439, %v1628
      %v1630 = vpop.f32.mrf.mxu0
      %v1631 = vadd.f32 %v439, %v1630
      %1632 = vmatmul.bf16.gmra.mxu0 %v1185
      %v1633 = vpop.f32.mrf.mxu0
      %v1634 = vadd.f32 %v439, %v1633
      %v1635 = vpop.f32.mrf.mxu0
      %v1636 = vadd.f32 %v439, %v1635
      %1637 = vmatmul.bf16.gmra.mxu0 %v1188
      %v1638 = vpop.f32.mrf.mxu0
      %v1639 = vadd.f32 %v439, %v1638
      %v1640 = vpop.f32.mrf.mxu0
      %v1641 = vadd.f32 %v439, %v1640
      %1642 = vmatmul.bf16.gmra.mxu0 %v1191
      %v1643 = vpop.f32.mrf.mxu0
      %v1644 = vadd.f32 %v439, %v1643
      %v1645 = vpop.f32.mrf.mxu0
      %v1646 = vadd.f32 %v439, %v1645
      %1647 = vmatmul.bf16.gmra.mxu0 %v1194
      %v1648 = vpop.f32.mrf.mxu0
      %v1649 = vadd.f32 %v439, %v1648
      %v1650 = vpop.f32.mrf.mxu0
      %v1651 = vadd.f32 %v439, %v1650
      %1652 = vmatmul.bf16.gmra.mxu0 %v1197
      %v1653 = vpop.f32.mrf.mxu0
      %v1654 = vadd.f32 %v439, %v1653
      %v1655 = vpop.f32.mrf.mxu0
      %v1656 = vadd.f32 %v439, %v1655
      %1657 = vmatmul.bf16.gmra.mxu0 %v1200
      %v1658 = vpop.f32.mrf.mxu0
      %v1659 = vadd.f32 %v439, %v1658
      %v1660 = vpop.f32.mrf.mxu0
      %v1661 = vadd.f32 %v439, %v1660
      %1662 = vmatmul.bf16.gmra.mxu0 %v1203
      %v1663 = vpop.f32.mrf.mxu0
      %v1664 = vadd.f32 %v439, %v1663
      %v1665 = vpop.f32.mrf.mxu0
      %v1666 = vadd.f32 %v439, %v1665
      %1667 = vmatmul.bf16.gmra.mxu0 %v1206
      %v1668 = vpop.f32.mrf.mxu0
      %v1669 = vadd.f32 %v439, %v1668
      %v1670 = vpop.f32.mrf.mxu0
      %v1671 = vadd.f32 %v439, %v1670
      %1672 = vmatmul.bf16.gmra.mxu0 %v1209
      %v1673 = vpop.f32.mrf.mxu0
      %v1674 = vadd.f32 %v439, %v1673
      %v1675 = vpop.f32.mrf.mxu0
      %v1676 = vadd.f32 %v439, %v1675
      %1677 = vmatmul.bf16.gmra.mxu0 %v1212
      %v1678 = vpop.f32.mrf.mxu0
      %v1679 = vadd.f32 %v439, %v1678
      %v1680 = vpop.f32.mrf.mxu0
      %v1681 = vadd.f32 %v439, %v1680
      %1682 = vmatmul.bf16.gmra.mxu0 %v1215
      %v1683 = vpop.f32.mrf.mxu0
      %v1684 = vadd.f32 %v439, %v1683
      %v1685 = vpop.f32.mrf.mxu0
      %v1686 = vadd.f32 %v439, %v1685
      %1687 = vmatmul.bf16.gmra.mxu0 %v1218
      %v1688 = vpop.f32.mrf.mxu0
      %v1689 = vadd.f32 %v439, %v1688
      %v1690 = vpop.f32.mrf.mxu0
      %v1691 = vadd.f32 %v439, %v1690
      %1692 = vmatmul.bf16.gmra.mxu0 %v1221
      %v1693 = vpop.f32.mrf.mxu0
      %v1694 = vadd.f32 %v439, %v1693
      %v1695 = vpop.f32.mrf.mxu0
      %v1696 = vadd.f32 %v439, %v1695
      %1697 = vmatmul.bf16.gmra.mxu0 %v1224
      %v1698 = vpop.f32.mrf.mxu0
      %v1699 = vadd.f32 %v439, %v1698
      %v1700 = vpop.f32.mrf.mxu0
      %v1701 = vadd.f32 %v439, %v1700
      %1702 = vmatmul.bf16.gmra.mxu0 %v1227
      %v1703 = vpop.f32.mrf.mxu0
      %v1704 = vadd.f32 %v439, %v1703
      %v1705 = vpop.f32.mrf.mxu0
      %v1706 = vadd.f32 %v439, %v1705
      %1707 = vmatmul.bf16.gmra.mxu0 %v1230
      %v1708 = vpop.f32.mrf.mxu0
      %v1709 = vadd.f32 %v439, %v1708
      %v1710 = vpop.f32.mrf.mxu0
      %v1711 = vadd.f32 %v439, %v1710
      %1712 = vmatmul.bf16.gmra.mxu0 %v1233
      %v1713 = vpop.f32.mrf.mxu0
      %v1714 = vadd.f32 %v439, %v1713
      %v1715 = vpop.f32.mrf.mxu0
      %v1716 = vadd.f32 %v439, %v1715
      %1717 = vmatmul.bf16.gmra.mxu0 %v1236
      %v1718 = vpop.f32.mrf.mxu0
      %v1719 = vadd.f32 %v439, %v1718
      %v1720 = vpop.f32.mrf.mxu0
      %v1721 = vadd.f32 %v439, %v1720
      %1722 = vmatmul.bf16.gmra.mxu0 %v1239
      %v1723 = vpop.f32.mrf.mxu0
      %v1724 = vadd.f32 %v439, %v1723
      %v1725 = vpop.f32.mrf.mxu0
      %v1726 = vadd.f32 %v439, %v1725
      %1727 = vmatmul.bf16.gmra.mxu0 %v1242
      %v1728 = vpop.f32.mrf.mxu0
      %v1729 = vadd.f32 %v439, %v1728
      %v1730 = vpop.f32.mrf.mxu0
      %v1731 = vadd.f32 %v439, %v1730
      %1732 = vmatmul.bf16.gmra.mxu0 %v1245
      %v1733 = vpop.f32.mrf.mxu0
      %v1734 = vadd.f32 %v439, %v1733
      %v1735 = vpop.f32.mrf.mxu0
      %v1736 = vadd.f32 %v439, %v1735
      %1737 = vmatmul.bf16.gmra.mxu0 %v1248
      %v1738 = vpop.f32.mrf.mxu0
      %v1739 = vadd.f32 %v439, %v1738
      %v1740 = vpop.f32.mrf.mxu0
      %v1741 = vadd.f32 %v439, %v1740
      %1742 = vmatmul.bf16.gmra.mxu0 %v1251
      %v1743 = vpop.f32.mrf.mxu0
      %v1744 = vadd.f32 %v439, %v1743
      %v1745 = vpop.f32.mrf.mxu0
      %v1746 = vadd.f32 %v439, %v1745
      %1747 = vmatmul.bf16.gmra.mxu0 %v1254
      %v1748 = vpop.f32.mrf.mxu0
      %v1749 = vadd.f32 %v439, %v1748
      %v1750 = vpop.f32.mrf.mxu0
      %v1751 = vadd.f32 %v439, %v1750
      %1752 = vmatmul.bf16.gmra.mxu0 %v1257
      %v1753 = vpop.f32.mrf.mxu0
      %v1754 = vadd.f32 %v439, %v1753
      %v1755 = vpop.f32.mrf.mxu0
      %v1756 = vadd.f32 %v439, %v1755
      %1757 = vmatmul.bf16.gmra.mxu0 %v1260
      %v1758 = vpop.f32.mrf.mxu0
      %v1759 = vadd.f32 %v439, %v1758
      %v1760 = vpop.f32.mrf.mxu0
      %v1761 = vadd.f32 %v439, %v1760
      %1762 = vmatmul.bf16.gmra.mxu0 %v1263
      %v1763 = vpop.f32.mrf.mxu0
      %v1764 = vadd.f32 %v439, %v1763
      %v1765 = vpop.f32.mrf.mxu0
      %v1766 = vadd.f32 %v439, %v1765
      %1767 = vmatmul.bf16.gmra.mxu0 %v1266
      %v1768 = vpop.f32.mrf.mxu0
      %v1769 = vadd.f32 %v439, %v1768
      %v1770 = vpop.f32.mrf.mxu0
      %v1771 = vadd.f32 %v439, %v1770
      %1772 = vmatmul.bf16.gmra.mxu0 %v1269
      %v1773 = vpop.f32.mrf.mxu0
      %v1774 = vadd.f32 %v439, %v1773
      %v1775 = vpop.f32.mrf.mxu0
      %v1776 = vadd.f32 %v439, %v1775
      %1777 = vmatmul.bf16.gmra.mxu0 %v1272
      %v1778 = vpop.f32.mrf.mxu0
      %v1779 = vadd.f32 %v439, %v1778
      %v1780 = vpop.f32.mrf.mxu0
      %v1781 = vadd.f32 %v439, %v1780
      %1782 = vmatmul.bf16.gmra.mxu0 %v1275
      %v1783 = vpop.f32.mrf.mxu0
      %v1784 = vadd.f32 %v439, %v1783
      %v1785 = vpop.f32.mrf.mxu0
      %v1786 = vadd.f32 %v439, %v1785
      %1787 = vmatmul.bf16.gmra.mxu0 %v1278
      %v1788 = vpop.f32.mrf.mxu0
      %v1789 = vadd.f32 %v439, %v1788
      %v1790 = vpop.f32.mrf.mxu0
      %v1791 = vadd.f32 %v439, %v1790
      %1792 = vmatmul.bf16.gmra.mxu0 %v1281
      %v1793 = vpop.f32.mrf.mxu0
      %v1794 = vadd.f32 %v439, %v1793
      %v1795 = vpop.f32.mrf.mxu0
      %v1796 = vadd.f32 %v439, %v1795
      %1797 = vmatmul.bf16.gmra.mxu0 %v1284
      %v1798 = vpop.f32.mrf.mxu0
      %v1799 = vadd.f32 %v439, %v1798
      %v1800 = vpop.f32.mrf.mxu0
      %v1801 = vadd.f32 %v439, %v1800
      %1802 = vmatmul.bf16.gmra.mxu0 %v1287
      %v1803 = vpop.f32.mrf.mxu0
      %v1804 = vadd.f32 %v439, %v1803
      %v1805 = vpop.f32.mrf.mxu0
      %v1806 = vadd.f32 %v439, %v1805
      %1807 = vmatmul.bf16.gmra.mxu0 %v1290
      %v1808 = vpop.f32.mrf.mxu0
      %v1809 = vadd.f32 %v439, %v1808
      %v1810 = vpop.f32.mrf.mxu0
      %v1811 = vadd.f32 %v439, %v1810
      %1812 = vmatmul.bf16.gmra.mxu0 %v1293
      %v1813 = vpop.f32.mrf.mxu0
      %v1814 = vadd.f32 %v439, %v1813
      %v1815 = vpop.f32.mrf.mxu0
      %v1816 = vadd.f32 %v439, %v1815
      %1817 = vmatmul.bf16.gmra.mxu0 %v1296
      %v1818 = vpop.f32.mrf.mxu0
      %v1819 = vadd.f32 %v439, %v1818
      %v1820 = vpop.f32.mrf.mxu0
      %v1821 = vadd.f32 %v439, %v1820
      %1822 = vmatmul.bf16.gmra.mxu0 %v1299
      %v1823 = vpop.f32.mrf.mxu0
      %v1824 = vadd.f32 %v439, %v1823
      %v1825 = vpop.f32.mrf.mxu0
      %v1826 = vadd.f32 %v439, %v1825
      %1827 = vmatmul.bf16.gmra.mxu0 %v1302
      %v1828 = vpop.f32.mrf.mxu0
      %v1829 = vadd.f32 %v439, %v1828
      %v1830 = vpop.f32.mrf.mxu0
      %v1831 = vadd.f32 %v439, %v1830
      %1832 = vmatmul.bf16.gmra.mxu0 %v1305
      %v1833 = vpop.f32.mrf.mxu0
      %v1834 = vadd.f32 %v439, %v1833
      %v1835 = vpop.f32.mrf.mxu0
      %v1836 = vadd.f32 %v439, %v1835
      %1837 = vmatmul.bf16.gmra.mxu0 %v1308
      %v1838 = vpop.f32.mrf.mxu0
      %v1839 = vadd.f32 %v439, %v1838
      %v1840 = vpop.f32.mrf.mxu0
      %v1841 = vadd.f32 %v439, %v1840
      %1842 = vmatmul.bf16.gmra.mxu0 %v1311
      %v1843 = vpop.f32.mrf.mxu0
      %v1844 = vadd.f32 %v439, %v1843
      %v1845 = vpop.f32.mrf.mxu0
      %v1846 = vadd.f32 %v439, %v1845
      %1847 = vmatmul.bf16.gmra.mxu0 %v1314
      %v1848 = vpop.f32.mrf.mxu0
      %v1849 = vadd.f32 %v439, %v1848
      %v1850 = vpop.f32.mrf.mxu0
      %v1851 = vadd.f32 %v439, %v1850
      %1852 = vmatmul.bf16.gmra.mxu0 %v1317
      %v1853 = vpop.f32.mrf.mxu0
      %v1854 = vadd.f32 %v439, %v1853
      %v1855 = vpop.f32.mrf.mxu0
      %v1856 = vadd.f32 %v439, %v1855
      %1857 = vmatmul.bf16.gmra.mxu0 %v1320
      %v1858 = vpop.f32.mrf.mxu0
      %v1859 = vadd.f32 %v439, %v1858
      %v1860 = vpop.f32.mrf.mxu0
      %v1861 = vadd.f32 %v439, %v1860
      %1862 = vmatmul.bf16.gmra.mxu0 %v1323
      %v1863 = vpop.f32.mrf.mxu0
      %v1864 = vadd.f32 %v439, %v1863
      %v1865 = vpop.f32.mrf.mxu0
      %v1866 = vadd.f32 %v439, %v1865
      %1867 = vmatmul.bf16.gmra.mxu0 %v1326
      %v1868 = vpop.f32.mrf.mxu0
      %v1869 = vadd.f32 %v439, %v1868
      %v1870 = vpop.f32.mrf.mxu0
      %v1871 = vadd.f32 %v439, %v1870
      %1872 = vmatmul.bf16.gmra.mxu0 %v1329
      %v1873 = vpop.f32.mrf.mxu0
      %v1874 = vadd.f32 %v439, %v1873
      %v1875 = vpop.f32.mrf.mxu0
      %v1876 = vadd.f32 %v439, %v1875
      %1877 = vmatmul.bf16.gmra.mxu0 %v1332
      %v1878 = vpop.f32.mrf.mxu0
      %v1879 = vadd.f32 %v439, %v1878
      %v1880 = vpop.f32.mrf.mxu0
      %v1881 = vadd.f32 %v439, %v1880
      %1882 = vmatmul.bf16.gmra.mxu0 %v1335
      %v1883 = vpop.f32.mrf.mxu0
      %v1884 = vadd.f32 %v439, %v1883
      %v1885 = vpop.f32.mrf.mxu0
      %v1886 = vadd.f32 %v439, %v1885
      %1887 = vmatmul.bf16.gmra.mxu0 %v1338
      %v1888 = vpop.f32.mrf.mxu0
      %v1889 = vadd.f32 %v439, %v1888
      %v1890 = vpop.f32.mrf.mxu0
      %v1891 = vadd.f32 %v439, %v1890
      %1892 = vmatmul.bf16.gmra.mxu0 %v1341
      %v1893 = vpop.f32.mrf.mxu0
      %v1894 = vadd.f32 %v439, %v1893
      %v1895 = vpop.f32.mrf.mxu0
      %v1896 = vadd.f32 %v439, %v1895
      %1897 = vmatmul.bf16.gmra.mxu0 %v1344
      %v1898 = vpop.f32.mrf.mxu0
      %v1899 = vadd.f32 %v439, %v1898
      %v1900 = vpop.f32.mrf.mxu0
      %v1901 = vadd.f32 %v439, %v1900
      %1902 = vmatmul.bf16.gmra.mxu0 %v1347
      %v1903 = vpop.f32.mrf.mxu0
      %v1904 = vadd.f32 %v439, %v1903
      %v1905 = vpop.f32.mrf.mxu0
      %v1906 = vadd.f32 %v439, %v1905
      %1907 = vmatmul.bf16.gmra.mxu0 %v1350
      %v1908 = vpop.f32.mrf.mxu0
      %v1909 = vadd.f32 %v439, %v1908
      %v1910 = vpop.f32.mrf.mxu0
      %v1911 = vadd.f32 %v439, %v1910
      %1912 = vmatmul.bf16.gmra.mxu0 %v1353
      %v1913 = vpop.f32.mrf.mxu0
      %v1914 = vadd.f32 %v439, %v1913
      %v1915 = vpop.f32.mrf.mxu0
      %v1916 = vadd.f32 %v439, %v1915
      %1917 = vmatmul.bf16.gmra.mxu0 %v1356
      %v1918 = vpop.f32.mrf.mxu0
      %v1919 = vadd.f32 %v439, %v1918
      %v1920 = vpop.f32.mrf.mxu0
      %v1921 = vadd.f32 %v439, %v1920
      %1922 = vmatmul.bf16.gmra.mxu0 %v1359
      %v1923 = vpop.f32.mrf.mxu0
      %v1924 = vadd.f32 %v439, %v1923
      %v1925 = vpop.f32.mrf.mxu0
      %v1926 = vadd.f32 %v439, %v1925
      %1927 = vmatmul.bf16.gmra.mxu0 %v1362
      %v1928 = vpop.f32.mrf.mxu0
      %v1929 = vadd.f32 %v439, %v1928
      %v1930 = vpop.f32.mrf.mxu0
      %v1931 = vadd.f32 %v439, %v1930
      %1932 = vmatmul.bf16.gmra.mxu0 %v1365
      %v1933 = vpop.f32.mrf.mxu0
      %v1934 = vadd.f32 %v439, %v1933
      %v1935 = vpop.f32.mrf.mxu0
      %v1936 = vadd.f32 %v439, %v1935
      %1937 = vmatmul.bf16.gmra.mxu0 %v1368
      %v1938 = vpop.f32.mrf.mxu0
      %v1939 = vadd.f32 %v439, %v1938
      %v1940 = vpop.f32.mrf.mxu0
      %v1941 = vadd.f32 %v439, %v1940
      %1942 = vmatmul.bf16.gmra.mxu0 %v1371
      %v1943 = vpop.f32.mrf.mxu0
      %v1944 = vadd.f32 %v439, %v1943
      %v1945 = vpop.f32.mrf.mxu0
      %v1946 = vadd.f32 %v439, %v1945
      %1947 = vmatmul.bf16.gmra.mxu0 %v1374
      %v1948 = vpop.f32.mrf.mxu0
      %v1949 = vadd.f32 %v439, %v1948
      %v1950 = vpop.f32.mrf.mxu0
      %v1951 = vadd.f32 %v439, %v1950
      %1952 = vmatmul.bf16.gmra.mxu0 %v1377
      %v1953 = vpop.f32.mrf.mxu0
      %v1954 = vadd.f32 %v439, %v1953
      %v1955 = vpop.f32.mrf.mxu0
      %v1956 = vadd.f32 %v439, %v1955
      %1957 = vmatmul.bf16.gmra.mxu0 %v1380
      %v1958 = vpop.f32.mrf.mxu0
      %v1959 = vadd.f32 %v439, %v1958
      %v1960 = vpop.f32.mrf.mxu0
      %v1961 = vadd.f32 %v439, %v1960
      %1962 = vmatmul.bf16.gmra.mxu0 %v1383
      %v1963 = vpop.f32.mrf.mxu0
      %v1964 = vadd.f32 %v439, %v1963
      %v1965 = vpop.f32.mrf.mxu0
      %v1966 = vadd.f32 %v439, %v1965
      %1967 = vmatmul.bf16.gmra.mxu0 %v1386
      %v1968 = vpop.f32.mrf.mxu0
      %v1969 = vadd.f32 %v439, %v1968
      %v1970 = vpop.f32.mrf.mxu0
      %v1971 = vadd.f32 %v439, %v1970
      %1972 = vmatmul.bf16.gmra.mxu0 %v1389
      %v1973 = vpop.f32.mrf.mxu0
      %v1974 = vadd.f32 %v439, %v1973
      %v1975 = vpop.f32.mrf.mxu0
      %v1976 = vadd.f32 %v439, %v1975
      %1977 = vmatmul.bf16.gmra.mxu0 %v1392
      %v1978 = vpop.f32.mrf.mxu0
      %v1979 = vadd.f32 %v439, %v1978
      %v1980 = vpop.f32.mrf.mxu0
      %v1981 = vadd.f32 %v439, %v1980
      %1982 = vmatmul.bf16.gmra.mxu0 %v1395
      %v1983 = vpop.f32.mrf.mxu0
      %v1984 = vadd.f32 %v439, %v1983
      %v1985 = vpop.f32.mrf.mxu0
      %v1986 = vadd.f32 %v439, %v1985
      %1987 = vmatmul.bf16.gmra.mxu0 %v1398
      %v1988 = vpop.f32.mrf.mxu0
      %v1989 = vadd.f32 %v439, %v1988
      %v1990 = vpop.f32.mrf.mxu0
      %v1991 = vadd.f32 %v439, %v1990
      %1992 = vmatmul.bf16.gmra.mxu0 %v1401
      %v1993 = vpop.f32.mrf.mxu0
      %v1994 = vadd.f32 %v439, %v1993
      %v1995 = vpop.f32.mrf.mxu0
      %v1996 = vadd.f32 %v439, %v1995
      %1997 = vmatmul.bf16.gmra.mxu0 %v1404
      %v1998 = vpop.f32.mrf.mxu0
      %v1999 = vadd.f32 %v439, %v1998
      %v2000 = vpop.f32.mrf.mxu0
      %v2001 = vadd.f32 %v439, %v2000
      %2002 = vmatmul.bf16.gmra.mxu0 %v1407
      %v2003 = vpop.f32.mrf.mxu0
      %v2004 = vadd.f32 %v439, %v2003
      %v2005 = vpop.f32.mrf.mxu0
      %v2006 = vadd.f32 %v439, %v2005
      %2007 = vmatmul.bf16.gmra.mxu0 %v1410
      %v2008 = vpop.f32.mrf.mxu0
      %v2009 = vadd.f32 %v439, %v2008
      %v2010 = vpop.f32.mrf.mxu0
      %v2011 = vadd.f32 %v439, %v2010
      %2012 = vmatmul.bf16.gmra.mxu0 %v1413
      %v2013 = vpop.f32.mrf.mxu0
      %v2014 = vadd.f32 %v439, %v2013
      %v2015 = vpop.f32.mrf.mxu0
      %v2016 = vadd.f32 %v439, %v2015
      %2017 = vmatmul.bf16.gmra.mxu0 %v1416
      %v2018 = vpop.f32.mrf.mxu0
      %v2019 = vadd.f32 %v439, %v2018
      %v2020 = vpop.f32.mrf.mxu0
      %v2021 = vadd.f32 %v439, %v2020
      %2022 = vmatmul.bf16.gmra.mxu0 %v1419
      %v2023 = vpop.f32.mrf.mxu0
      %v2024 = vadd.f32 %v439, %v2023
      %v2025 = vpop.f32.mrf.mxu0
      %v2026 = vadd.f32 %v439, %v2025
      %2027 = vmatmul.bf16.gmra.mxu0 %v1422
      %v2028 = vpop.f32.mrf.mxu0
      %v2029 = vadd.f32 %v439, %v2028
      %v2030 = vpop.f32.mrf.mxu0
      %v2031 = vadd.f32 %v439, %v2030
      %2032 = vmatmul.bf16.gmra.mxu0 %v1425
      %v2033 = vpop.f32.mrf.mxu0
      %v2034 = vadd.f32 %v439, %v2033
      %v2035 = vpop.f32.mrf.mxu0
      %v2036 = vadd.f32 %v439, %v2035
      %2037 = vmatmul.bf16.gmra.mxu0 %v1428
      %v2038 = vpop.f32.mrf.mxu0
      %v2039 = vadd.f32 %v439, %v2038
      %v2040 = vpop.f32.mrf.mxu0
      %v2041 = vadd.f32 %v439, %v2040
      %2042 = vmatmul.bf16.gmra.mxu0 %v1431
      %v2043 = vpop.f32.mrf.mxu0
      %v2044 = vadd.f32 %v439, %v2043
      %v2045 = vpop.f32.mrf.mxu0
      %v2046 = vadd.f32 %v439, %v2045
      %2047 = vmatmul.bf16.gmra.mxu0 %v1434
      %v2048 = vpop.f32.mrf.mxu0
      %v2049 = vadd.f32 %v439, %v2048
      %v2050 = vpop.f32.mrf.mxu0
      %v2051 = vadd.f32 %v439, %v2050
      %2052 = vmatmul.bf16.gmra.mxu0 %v1437
      %v2053 = vpop.f32.mrf.mxu0
      %v2054 = vadd.f32 %v439, %v2053
      %v2055 = vpop.f32.mrf.mxu0
      %v2056 = vadd.f32 %v439, %v2055
      %2057 = vmatmul.bf16.gmra.mxu0 %v1440
      %v2058 = vpop.f32.mrf.mxu0
      %v2059 = vadd.f32 %v439, %v2058
      %v2060 = vpop.f32.mrf.mxu0
      %v2061 = vadd.f32 %v439, %v2060
      %2062 = vmatmul.bf16.gmra.mxu0 %v1443
      %v2063 = vpop.f32.mrf.mxu0
      %v2064 = vadd.f32 %v439, %v2063
      %v2065 = vpop.f32.mrf.mxu0
      %v2066 = vadd.f32 %v439, %v2065
      %2067 = vmatmul.bf16.gmra.mxu0 %v1446
      %v2068 = vpop.f32.mrf.mxu0
      %v2069 = vadd.f32 %v439, %v2068
      %v2070 = vpop.f32.mrf.mxu0
      %v2071 = vadd.f32 %v439, %v2070
      %2072 = vmatmul.bf16.gmra.mxu0 %v1449
      %v2073 = vpop.f32.mrf.mxu0
      %v2074 = vadd.f32 %v439, %v2073
      %v2075 = vpop.f32.mrf.mxu0
      %v2076 = vadd.f32 %v439, %v2075
      %2077 = vmatmul.bf16.gmra.mxu0 %v1452
      %v2078 = vpop.f32.mrf.mxu0
      %v2079 = vadd.f32 %v439, %v2078
      %v2080 = vpop.f32.mrf.mxu0
      %v2081 = vadd.f32 %v439, %v2080
      %2082 = vmatmul.bf16.gmra.mxu0 %v1455
      %v2083 = vpop.f32.mrf.mxu0
      %v2084 = vadd.f32 %v439, %v2083
      %v2085 = vpop.f32.mrf.mxu0
      %v2086 = vadd.f32 %v439, %v2085
      %2087 = vmatmul.bf16.gmra.mxu0 %v1458
      %v2088 = vpop.f32.mrf.mxu0
      %v2089 = vadd.f32 %v439, %v2088
      %v2090 = vpop.f32.mrf.mxu0
      %v2091 = vadd.f32 %v439, %v2090
      %2092 = vmatmul.bf16.gmra.mxu0 %v1461
      %v2093 = vpop.f32.mrf.mxu0
      %v2094 = vadd.f32 %v439, %v2093
      %v2095 = vpop.f32.mrf.mxu0
      %v2096 = vadd.f32 %v439, %v2095
      %2097 = vmatmul.bf16.gmra.mxu0 %v1464
      %v2098 = vpop.f32.mrf.mxu0
      %v2099 = vadd.f32 %v439, %v2098
      %v2100 = vpop.f32.mrf.mxu0
      %v2101 = vadd.f32 %v439, %v2100
      %2102 = vmatmul.bf16.gmra.mxu0 %v1467
      %v2103 = vpop.f32.mrf.mxu0
      %v2104 = vadd.f32 %v439, %v2103
      %v2105 = vpop.f32.mrf.mxu0
      %v2106 = vadd.f32 %v439, %v2105
      %2107 = vmatmul.bf16.gmra.mxu0 %v1470
      %v2108 = vpop.f32.mrf.mxu0
      %v2109 = vadd.f32 %v439, %v2108
      %v2110 = vpop.f32.mrf.mxu0
      %v2111 = vadd.f32 %v439, %v2110
      %2112 = vmatmul.bf16.gmra.mxu0 %v1473
      %v2113 = vpop.f32.mrf.mxu0
      %v2114 = vadd.f32 %v439, %v2113
      %v2115 = vpop.f32.mrf.mxu0
      %v2116 = vadd.f32 %v439, %v2115
      %2117 = vmatmul.bf16.gmra.mxu0 %v1476
      %v2118 = vpop.f32.mrf.mxu0
      %v2119 = vadd.f32 %v439, %v2118
      %v2120 = vpop.f32.mrf.mxu0
      %v2121 = vadd.f32 %v439, %v2120
      %2122 = vmatmul.bf16.gmra.mxu0 %v1479
      %v2123 = vpop.f32.mrf.mxu0
      %v2124 = vadd.f32 %v439, %v2123
      %v2125 = vpop.f32.mrf.mxu0
      %v2126 = vadd.f32 %v439, %v2125
      %2127 = vmatmul.bf16.gmra.mxu0 %v1482
      %v2128 = vpop.f32.mrf.mxu0
      %v2129 = vadd.f32 %v439, %v2128
      %v2130 = vpop.f32.mrf.mxu0
      %v2131 = vadd.f32 %v439, %v2130
      %2132 = vdwg.mxu0
      %v2133 = vmax.f32 %v1494, 0.0
      %v2134 = vmax.f32 %v1496, 0.0
      %v2135 = vmax.f32 %v1499, 0.0
      %v2136 = vmax.f32 %v1501, 0.0
      %v2137 = vmax.f32 %v1504, 0.0
      %v2138 = vmax.f32 %v1506, 0.0
      %v2139 = vmax.f32 %v1509, 0.0
      %v2140 = vmax.f32 %v1511, 0.0
      %v2141 = vmax.f32 %v1514, 0.0
      %v2142 = vmax.f32 %v1516, 0.0
      %v2143 = vmax.f32 %v1519, 0.0
      %v2144 = vmax.f32 %v1521, 0.0
      %v2145 = vmax.f32 %v1524, 0.0
      %v2146 = vmax.f32 %v1526, 0.0
      %v2147 = vmax.f32 %v1529, 0.0
      %v2148 = vmax.f32 %v1531, 0.0
      %v2149 = vmax.f32 %v1534, 0.0
      %v2150 = vmax.f32 %v1536, 0.0
      %v2151 = vmax.f32 %v1539, 0.0
      %v2152 = vmax.f32 %v1541, 0.0
      %v2153 = vmax.f32 %v1544, 0.0
      %v2154 = vmax.f32 %v1546, 0.0
      %v2155 = vmax.f32 %v1549, 0.0
      %v2156 = vmax.f32 %v1551, 0.0
      %v2157 = vmax.f32 %v1554, 0.0
      %v2158 = vmax.f32 %v1556, 0.0
      %v2159 = vmax.f32 %v1559, 0.0
      %v2160 = vmax.f32 %v1561, 0.0
      %v2161 = vmax.f32 %v1564, 0.0
      %v2162 = vmax.f32 %v1566, 0.0
      %v2163 = vmax.f32 %v1569, 0.0
      %v2164 = vmax.f32 %v1571, 0.0
      %v2165 = vmax.f32 %v1574, 0.0
      %v2166 = vmax.f32 %v1576, 0.0
      %v2167 = vmax.f32 %v1579, 0.0
      %v2168 = vmax.f32 %v1581, 0.0
      %v2169 = vmax.f32 %v1584, 0.0
      %v2170 = vmax.f32 %v1586, 0.0
      %v2171 = vmax.f32 %v1589, 0.0
      %v2172 = vmax.f32 %v1591, 0.0
      %v2173 = vmax.f32 %v1594, 0.0
      %v2174 = vmax.f32 %v1596, 0.0
      %v2175 = vmax.f32 %v1599, 0.0
      %v2176 = vmax.f32 %v1601, 0.0
      %v2177 = vmax.f32 %v1604, 0.0
      %v2178 = vmax.f32 %v1606, 0.0
      %v2179 = vmax.f32 %v1609, 0.0
      %v2180 = vmax.f32 %v1611, 0.0
      %v2181 = vmax.f32 %v1614, 0.0
      %v2182 = vmax.f32 %v1616, 0.0
      %v2183 = vmax.f32 %v1619, 0.0
      %v2184 = vmax.f32 %v1621, 0.0
      %v2185 = vmax.f32 %v1624, 0.0
      %v2186 = vmax.f32 %v1626, 0.0
      %v2187 = vmax.f32 %v1629, 0.0
      %v2188 = vmax.f32 %v1631, 0.0
      %v2189 = vmax.f32 %v1634, 0.0
      %v2190 = vmax.f32 %v1636, 0.0
      %v2191 = vmax.f32 %v1639, 0.0
      %v2192 = vmax.f32 %v1641, 0.0
      %v2193 = vmax.f32 %v1644, 0.0
      %v2194 = vmax.f32 %v1646, 0.0
      %v2195 = vmax.f32 %v1649, 0.0
      %v2196 = vmax.f32 %v1651, 0.0
      %v2197 = vmax.f32 %v1654, 0.0
      %v2198 = vmax.f32 %v1656, 0.0
      %v2199 = vmax.f32 %v1659, 0.0
      %v2200 = vmax.f32 %v1661, 0.0
      %v2201 = vmax.f32 %v1664, 0.0
      %v2202 = vmax.f32 %v1666, 0.0
      %v2203 = vmax.f32 %v1669, 0.0
      %v2204 = vmax.f32 %v1671, 0.0
      %v2205 = vmax.f32 %v1674, 0.0
      %v2206 = vmax.f32 %v1676, 0.0
      %v2207 = vmax.f32 %v1679, 0.0
      %v2208 = vmax.f32 %v1681, 0.0
      %v2209 = vmax.f32 %v1684, 0.0
      %v2210 = vmax.f32 %v1686, 0.0
      %v2211 = vmax.f32 %v1689, 0.0
      %v2212 = vmax.f32 %v1691, 0.0
      %v2213 = vmax.f32 %v1694, 0.0
      %v2214 = vmax.f32 %v1696, 0.0
      %v2215 = vmax.f32 %v1699, 0.0
      %v2216 = vmax.f32 %v1701, 0.0
      %v2217 = vmax.f32 %v1704, 0.0
      %v2218 = vmax.f32 %v1706, 0.0
      %v2219 = vmax.f32 %v1709, 0.0
      %v2220 = vmax.f32 %v1711, 0.0
      %v2221 = vmax.f32 %v1714, 0.0
      %v2222 = vmax.f32 %v1716, 0.0
      %v2223 = vmax.f32 %v1719, 0.0
      %v2224 = vmax.f32 %v1721, 0.0
      %v2225 = vmax.f32 %v1724, 0.0
      %v2226 = vmax.f32 %v1726, 0.0
      %v2227 = vmax.f32 %v1729, 0.0
      %v2228 = vmax.f32 %v1731, 0.0
      %v2229 = vmax.f32 %v1734, 0.0
      %v2230 = vmax.f32 %v1736, 0.0
      %v2231 = vmax.f32 %v1739, 0.0
      %v2232 = vmax.f32 %v1741, 0.0
      %v2233 = vmax.f32 %v1744, 0.0
      %v2234 = vmax.f32 %v1746, 0.0
      %v2235 = vmax.f32 %v1749, 0.0
      %v2236 = vmax.f32 %v1751, 0.0
      %v2237 = vmax.f32 %v1754, 0.0
      %v2238 = vmax.f32 %v1756, 0.0
      %v2239 = vmax.f32 %v1759, 0.0
      %v2240 = vmax.f32 %v1761, 0.0
      %v2241 = vmax.f32 %v1764, 0.0
      %v2242 = vmax.f32 %v1766, 0.0
      %v2243 = vmax.f32 %v1769, 0.0
      %v2244 = vmax.f32 %v1771, 0.0
      %v2245 = vmax.f32 %v1774, 0.0
      %v2246 = vmax.f32 %v1776, 0.0
      %v2247 = vmax.f32 %v1779, 0.0
      %v2248 = vmax.f32 %v1781, 0.0
      %v2249 = vmax.f32 %v1784, 0.0
      %v2250 = vmax.f32 %v1786, 0.0
      %v2251 = vmax.f32 %v1789, 0.0
      %v2252 = vmax.f32 %v1791, 0.0
      %v2253 = vmax.f32 %v1794, 0.0
      %v2254 = vmax.f32 %v1796, 0.0
      %v2255 = vmax.f32 %v1799, 0.0
      %v2256 = vmax.f32 %v1801, 0.0
      %v2257 = vmax.f32 %v1804, 0.0
      %v2258 = vmax.f32 %v1806, 0.0
      %v2259 = vmax.f32 %v1809, 0.0
      %v2260 = vmax.f32 %v1811, 0.0
      %v2261 = vmax.f32 %v1814, 0.0
      %v2262 = vmax.f32 %v1816, 0.0
      %v2263 = vmax.f32 %v1819, 0.0
      %v2264 = vmax.f32 %v1821, 0.0
      %v2265 = vmax.f32 %v1824, 0.0
      %v2266 = vmax.f32 %v1826, 0.0
      %v2267 = vmax.f32 %v1829, 0.0
      %v2268 = vmax.f32 %v1831, 0.0
      %v2269 = vmax.f32 %v1834, 0.0
      %v2270 = vmax.f32 %v1836, 0.0
      %v2271 = vmax.f32 %v1839, 0.0
      %v2272 = vmax.f32 %v1841, 0.0
      %v2273 = vmax.f32 %v1844, 0.0
      %v2274 = vmax.f32 %v1846, 0.0
      %v2275 = vmax.f32 %v1849, 0.0
      %v2276 = vmax.f32 %v1851, 0.0
      %v2277 = vmax.f32 %v1854, 0.0
      %v2278 = vmax.f32 %v1856, 0.0
      %v2279 = vmax.f32 %v1859, 0.0
      %v2280 = vmax.f32 %v1861, 0.0
      %v2281 = vmax.f32 %v1864, 0.0
      %v2282 = vmax.f32 %v1866, 0.0
      %v2283 = vmax.f32 %v1869, 0.0
      %v2284 = vmax.f32 %v1871, 0.0
      %v2285 = vmax.f32 %v1874, 0.0
      %v2286 = vmax.f32 %v1876, 0.0
      %v2287 = vmax.f32 %v1879, 0.0
      %v2288 = vmax.f32 %v1881, 0.0
      %v2289 = vmax.f32 %v1884, 0.0
      %v2290 = vmax.f32 %v1886, 0.0
      %v2291 = vmax.f32 %v1889, 0.0
      %v2292 = vmax.f32 %v1891, 0.0
      %v2293 = vmax.f32 %v1894, 0.0
      %v2294 = vmax.f32 %v1896, 0.0
      %v2295 = vmax.f32 %v1899, 0.0
      %v2296 = vmax.f32 %v1901, 0.0
      %v2297 = vmax.f32 %v1904, 0.0
      %v2298 = vmax.f32 %v1906, 0.0
      %v2299 = vmax.f32 %v1909, 0.0
      %v2300 = vmax.f32 %v1911, 0.0
      %v2301 = vmax.f32 %v1914, 0.0
      %v2302 = vmax.f32 %v1916, 0.0
      %v2303 = vmax.f32 %v1919, 0.0
      %v2304 = vmax.f32 %v1921, 0.0
      %v2305 = vmax.f32 %v1924, 0.0
      %v2306 = vmax.f32 %v1926, 0.0
      %v2307 = vmax.f32 %v1929, 0.0
      %v2308 = vmax.f32 %v1931, 0.0
      %v2309 = vmax.f32 %v1934, 0.0
      %v2310 = vmax.f32 %v1936, 0.0
      %v2311 = vmax.f32 %v1939, 0.0
      %v2312 = vmax.f32 %v1941, 0.0
      %v2313 = vmax.f32 %v1944, 0.0
      %v2314 = vmax.f32 %v1946, 0.0
      %v2315 = vmax.f32 %v1949, 0.0
      %v2316 = vmax.f32 %v1951, 0.0
      %v2317 = vmax.f32 %v1954, 0.0
      %v2318 = vmax.f32 %v1956, 0.0
      %v2319 = vmax.f32 %v1959, 0.0
      %v2320 = vmax.f32 %v1961, 0.0
      %v2321 = vmax.f32 %v1964, 0.0
      %v2322 = vmax.f32 %v1966, 0.0
      %v2323 = vmax.f32 %v1969, 0.0
      %v2324 = vmax.f32 %v1971, 0.0
      %v2325 = vmax.f32 %v1974, 0.0
      %v2326 = vmax.f32 %v1976, 0.0
      %v2327 = vmax.f32 %v1979, 0.0
      %v2328 = vmax.f32 %v1981, 0.0
      %v2329 = vmax.f32 %v1984, 0.0
      %v2330 = vmax.f32 %v1986, 0.0
      %v2331 = vmax.f32 %v1989, 0.0
      %v2332 = vmax.f32 %v1991, 0.0
      %v2333 = vmax.f32 %v1994, 0.0
      %v2334 = vmax.f32 %v1996, 0.0
      %v2335 = vmax.f32 %v1999, 0.0
      %v2336 = vmax.f32 %v2001, 0.0
      %v2337 = vmax.f32 %v2004, 0.0
      %v2338 = vmax.f32 %v2006, 0.0
      %v2339 = vmax.f32 %v2009, 0.0
      %v2340 = vmax.f32 %v2011, 0.0
      %v2341 = vmax.f32 %v2014, 0.0
      %v2342 = vmax.f32 %v2016, 0.0
      %v2343 = vmax.f32 %v2019, 0.0
      %v2344 = vmax.f32 %v2021, 0.0
      %v2345 = vmax.f32 %v2024, 0.0
      %v2346 = vmax.f32 %v2026, 0.0
      %v2347 = vmax.f32 %v2029, 0.0
      %v2348 = vmax.f32 %v2031, 0.0
      %v2349 = vmax.f32 %v2034, 0.0
      %v2350 = vmax.f32 %v2036, 0.0
      %v2351 = vmax.f32 %v2039, 0.0
      %v2352 = vmax.f32 %v2041, 0.0
      %v2353 = vmax.f32 %v2044, 0.0
      %v2354 = vmax.f32 %v2046, 0.0
      %v2355 = vmax.f32 %v2049, 0.0
      %v2356 = vmax.f32 %v2051, 0.0
      %v2357 = vmax.f32 %v2054, 0.0
      %v2358 = vmax.f32 %v2056, 0.0
      %v2359 = vmax.f32 %v2059, 0.0
      %v2360 = vmax.f32 %v2061, 0.0
      %v2361 = vmax.f32 %v2064, 0.0
      %v2362 = vmax.f32 %v2066, 0.0
      %v2363 = vmax.f32 %v2069, 0.0
      %v2364 = vmax.f32 %v2071, 0.0
      %v2365 = vmax.f32 %v2074, 0.0
      %v2366 = vmax.f32 %v2076, 0.0
      %v2367 = vmax.f32 %v2079, 0.0
      %v2368 = vmax.f32 %v2081, 0.0
      %v2369 = vmax.f32 %v2084, 0.0
      %v2370 = vmax.f32 %v2086, 0.0
      %v2371 = vmax.f32 %v2089, 0.0
      %v2372 = vmax.f32 %v2091, 0.0
      %v2373 = vmax.f32 %v2094, 0.0
      %v2374 = vmax.f32 %v2096, 0.0
      %v2375 = vmax.f32 %v2099, 0.0
      %v2376 = vmax.f32 %v2101, 0.0
      %v2377 = vmax.f32 %v2104, 0.0
      %v2378 = vmax.f32 %v2106, 0.0
      %v2379 = vmax.f32 %v2109, 0.0
      %v2380 = vmax.f32 %v2111, 0.0
      %v2381 = vmax.f32 %v2114, 0.0
      %v2382 = vmax.f32 %v2116, 0.0
      %v2383 = vmax.f32 %v2119, 0.0
      %v2384 = vmax.f32 %v2121, 0.0
      %v2385 = vmax.f32 %v2124, 0.0
      %v2386 = vmax.f32 %v2126, 0.0
      %v2387 = vmax.f32 %v2129, 0.0
      %v2388 = vmax.f32 %v2131, 0.0
      %v2389 = vpack.c.bf16 %v2133, %v2133
      %v2390 = vpack.c.bf16 %v2134, %v2134
      %v2391 = vpack.c.bf16 %v2135, %v2135
      %v2392 = vpack.c.bf16 %v2136, %v2136
      %v2393 = vpack.c.bf16 %v2137, %v2137
      %v2394 = vpack.c.bf16 %v2138, %v2138
      %v2395 = vpack.c.bf16 %v2139, %v2139
      %v2396 = vpack.c.bf16 %v2140, %v2140
      %v2397 = vpack.c.bf16 %v2141, %v2141
      %v2398 = vpack.c.bf16 %v2142, %v2142
      %v2399 = vpack.c.bf16 %v2143, %v2143
      %v2400 = vpack.c.bf16 %v2144, %v2144
      %v2401 = vpack.c.bf16 %v2145, %v2145
      %v2402 = vpack.c.bf16 %v2146, %v2146
      %v2403 = vpack.c.bf16 %v2147, %v2147
      %v2404 = vpack.c.bf16 %v2148, %v2148
      %v2405 = vpack.c.bf16 %v2149, %v2149
      %v2406 = vpack.c.bf16 %v2150, %v2150
      %v2407 = vpack.c.bf16 %v2151, %v2151
      %v2408 = vpack.c.bf16 %v2152, %v2152
      %v2409 = vpack.c.bf16 %v2153, %v2153
      %v2410 = vpack.c.bf16 %v2154, %v2154
      %v2411 = vpack.c.bf16 %v2155, %v2155
      %v2412 = vpack.c.bf16 %v2156, %v2156
      %v2413 = vpack.c.bf16 %v2157, %v2157
      %v2414 = vpack.c.bf16 %v2158, %v2158
      %v2415 = vpack.c.bf16 %v2159, %v2159
      %v2416 = vpack.c.bf16 %v2160, %v2160
      %v2417 = vpack.c.bf16 %v2161, %v2161
      %v2418 = vpack.c.bf16 %v2162, %v2162
      %v2419 = vpack.c.bf16 %v2163, %v2163
      %v2420 = vpack.c.bf16 %v2164, %v2164
      %v2421 = vpack.c.bf16 %v2165, %v2165
      %v2422 = vpack.c.bf16 %v2166, %v2166
      %v2423 = vpack.c.bf16 %v2167, %v2167
      %v2424 = vpack.c.bf16 %v2168, %v2168
      %v2425 = vpack.c.bf16 %v2169, %v2169
      %v2426 = vpack.c.bf16 %v2170, %v2170
      %v2427 = vpack.c.bf16 %v2171, %v2171
      %v2428 = vpack.c.bf16 %v2172, %v2172
      %v2429 = vpack.c.bf16 %v2173, %v2173
      %v2430 = vpack.c.bf16 %v2174, %v2174
      %v2431 = vpack.c.bf16 %v2175, %v2175
      %v2432 = vpack.c.bf16 %v2176, %v2176
      %v2433 = vpack.c.bf16 %v2177, %v2177
      %v2434 = vpack.c.bf16 %v2178, %v2178
      %v2435 = vpack.c.bf16 %v2179, %v2179
      %v2436 = vpack.c.bf16 %v2180, %v2180
      %v2437 = vpack.c.bf16 %v2181, %v2181
      %v2438 = vpack.c.bf16 %v2182, %v2182
      %v2439 = vpack.c.bf16 %v2183, %v2183
      %v2440 = vpack.c.bf16 %v2184, %v2184
      %v2441 = vpack.c.bf16 %v2185, %v2185
      %v2442 = vpack.c.bf16 %v2186, %v2186
      %v2443 = vpack.c.bf16 %v2187, %v2187
      %v2444 = vpack.c.bf16 %v2188, %v2188
      %v2445 = vpack.c.bf16 %v2189, %v2189
      %v2446 = vpack.c.bf16 %v2190, %v2190
      %v2447 = vpack.c.bf16 %v2191, %v2191
      %v2448 = vpack.c.bf16 %v2192, %v2192
      %v2449 = vpack.c.bf16 %v2193, %v2193
      %v2450 = vpack.c.bf16 %v2194, %v2194
      %v2451 = vpack.c.bf16 %v2195, %v2195
      %v2452 = vpack.c.bf16 %v2196, %v2196
      %v2453 = vpack.c.bf16 %v2197, %v2197
      %v2454 = vpack.c.bf16 %v2198, %v2198
      %v2455 = vpack.c.bf16 %v2199, %v2199
      %v2456 = vpack.c.bf16 %v2200, %v2200
      %v2457 = vpack.c.bf16 %v2201, %v2201
      %v2458 = vpack.c.bf16 %v2202, %v2202
      %v2459 = vpack.c.bf16 %v2203, %v2203
      %v2460 = vpack.c.bf16 %v2204, %v2204
      %v2461 = vpack.c.bf16 %v2205, %v2205
      %v2462 = vpack.c.bf16 %v2206, %v2206
      %v2463 = vpack.c.bf16 %v2207, %v2207
      %v2464 = vpack.c.bf16 %v2208, %v2208
      %v2465 = vpack.c.bf16 %v2209, %v2209
      %v2466 = vpack.c.bf16 %v2210, %v2210
      %v2467 = vpack.c.bf16 %v2211, %v2211
      %v2468 = vpack.c.bf16 %v2212, %v2212
      %v2469 = vpack.c.bf16 %v2213, %v2213
      %v2470 = vpack.c.bf16 %v2214, %v2214
      %v2471 = vpack.c.bf16 %v2215, %v2215
      %v2472 = vpack.c.bf16 %v2216, %v2216
      %v2473 = vpack.c.bf16 %v2217, %v2217
      %v2474 = vpack.c.bf16 %v2218, %v2218
      %v2475 = vpack.c.bf16 %v2219, %v2219
      %v2476 = vpack.c.bf16 %v2220, %v2220
      %v2477 = vpack.c.bf16 %v2221, %v2221
      %v2478 = vpack.c.bf16 %v2222, %v2222
      %v2479 = vpack.c.bf16 %v2223, %v2223
      %v2480 = vpack.c.bf16 %v2224, %v2224
      %v2481 = vpack.c.bf16 %v2225, %v2225
      %v2482 = vpack.c.bf16 %v2226, %v2226
      %v2483 = vpack.c.bf16 %v2227, %v2227
      %v2484 = vpack.c.bf16 %v2228, %v2228
      %v2485 = vpack.c.bf16 %v2229, %v2229
      %v2486 = vpack.c.bf16 %v2230, %v2230
      %v2487 = vpack.c.bf16 %v2231, %v2231
      %v2488 = vpack.c.bf16 %v2232, %v2232
      %v2489 = vpack.c.bf16 %v2233, %v2233
      %v2490 = vpack.c.bf16 %v2234, %v2234
      %v2491 = vpack.c.bf16 %v2235, %v2235
      %v2492 = vpack.c.bf16 %v2236, %v2236
      %v2493 = vpack.c.bf16 %v2237, %v2237
      %v2494 = vpack.c.bf16 %v2238, %v2238
      %v2495 = vpack.c.bf16 %v2239, %v2239
      %v2496 = vpack.c.bf16 %v2240, %v2240
      %v2497 = vpack.c.bf16 %v2241, %v2241
      %v2498 = vpack.c.bf16 %v2242, %v2242
      %v2499 = vpack.c.bf16 %v2243, %v2243
      %v2500 = vpack.c.bf16 %v2244, %v2244
      %v2501 = vpack.c.bf16 %v2245, %v2245
      %v2502 = vpack.c.bf16 %v2246, %v2246
      %v2503 = vpack.c.bf16 %v2247, %v2247
      %v2504 = vpack.c.bf16 %v2248, %v2248
      %v2505 = vpack.c.bf16 %v2249, %v2249
      %v2506 = vpack.c.bf16 %v2250, %v2250
      %v2507 = vpack.c.bf16 %v2251, %v2251
      %v2508 = vpack.c.bf16 %v2252, %v2252
      %v2509 = vpack.c.bf16 %v2253, %v2253
      %v2510 = vpack.c.bf16 %v2254, %v2254
      %v2511 = vpack.c.bf16 %v2255, %v2255
      %v2512 = vpack.c.bf16 %v2256, %v2256
      %v2513 = vpack.c.bf16 %v2257, %v2257
      %v2514 = vpack.c.bf16 %v2258, %v2258
      %v2515 = vpack.c.bf16 %v2259, %v2259
      %v2516 = vpack.c.bf16 %v2260, %v2260
      %v2517 = vpack.c.bf16 %v2261, %v2261
      %v2518 = vpack.c.bf16 %v2262, %v2262
      %v2519 = vpack.c.bf16 %v2263, %v2263
      %v2520 = vpack.c.bf16 %v2264, %v2264
      %v2521 = vpack.c.bf16 %v2265, %v2265
      %v2522 = vpack.c.bf16 %v2266, %v2266
      %v2523 = vpack.c.bf16 %v2267, %v2267
      %v2524 = vpack.c.bf16 %v2268, %v2268
      %v2525 = vpack.c.bf16 %v2269, %v2269
      %v2526 = vpack.c.bf16 %v2270, %v2270
      %v2527 = vpack.c.bf16 %v2271, %v2271
      %v2528 = vpack.c.bf16 %v2272, %v2272
      %v2529 = vpack.c.bf16 %v2273, %v2273
      %v2530 = vpack.c.bf16 %v2274, %v2274
      %v2531 = vpack.c.bf16 %v2275, %v2275
      %v2532 = vpack.c.bf16 %v2276, %v2276
      %v2533 = vpack.c.bf16 %v2277, %v2277
      %v2534 = vpack.c.bf16 %v2278, %v2278
      %v2535 = vpack.c.bf16 %v2279, %v2279
      %v2536 = vpack.c.bf16 %v2280, %v2280
      %v2537 = vpack.c.bf16 %v2281, %v2281
      %v2538 = vpack.c.bf16 %v2282, %v2282
      %v2539 = vpack.c.bf16 %v2283, %v2283
      %v2540 = vpack.c.bf16 %v2284, %v2284
      %v2541 = vpack.c.bf16 %v2285, %v2285
      %v2542 = vpack.c.bf16 %v2286, %v2286
      %v2543 = vpack.c.bf16 %v2287, %v2287
      %v2544 = vpack.c.bf16 %v2288, %v2288
      %v2545 = vpack.c.bf16 %v2289, %v2289
      %v2546 = vpack.c.bf16 %v2290, %v2290
      %v2547 = vpack.c.bf16 %v2291, %v2291
      %v2548 = vpack.c.bf16 %v2292, %v2292
      %v2549 = vpack.c.bf16 %v2293, %v2293
      %v2550 = vpack.c.bf16 %v2294, %v2294
      %v2551 = vpack.c.bf16 %v2295, %v2295
      %v2552 = vpack.c.bf16 %v2296, %v2296
      %v2553 = vpack.c.bf16 %v2297, %v2297
      %v2554 = vpack.c.bf16 %v2298, %v2298
      %v2555 = vpack.c.bf16 %v2299, %v2299
      %v2556 = vpack.c.bf16 %v2300, %v2300
      %v2557 = vpack.c.bf16 %v2301, %v2301
      %v2558 = vpack.c.bf16 %v2302, %v2302
      %v2559 = vpack.c.bf16 %v2303, %v2303
      %v2560 = vpack.c.bf16 %v2304, %v2304
      %v2561 = vpack.c.bf16 %v2305, %v2305
      %v2562 = vpack.c.bf16 %v2306, %v2306
      %v2563 = vpack.c.bf16 %v2307, %v2307
      %v2564 = vpack.c.bf16 %v2308, %v2308
      %v2565 = vpack.c.bf16 %v2309, %v2309
      %v2566 = vpack.c.bf16 %v2310, %v2310
      %v2567 = vpack.c.bf16 %v2311, %v2311
      %v2568 = vpack.c.bf16 %v2312, %v2312
      %v2569 = vpack.c.bf16 %v2313, %v2313
      %v2570 = vpack.c.bf16 %v2314, %v2314
      %v2571 = vpack.c.bf16 %v2315, %v2315
      %v2572 = vpack.c.bf16 %v2316, %v2316
      %v2573 = vpack.c.bf16 %v2317, %v2317
      %v2574 = vpack.c.bf16 %v2318, %v2318
      %v2575 = vpack.c.bf16 %v2319, %v2319
      %v2576 = vpack.c.bf16 %v2320, %v2320
      %v2577 = vpack.c.bf16 %v2321, %v2321
      %v2578 = vpack.c.bf16 %v2322, %v2322
      %v2579 = vpack.c.bf16 %v2323, %v2323
      %v2580 = vpack.c.bf16 %v2324, %v2324
      %v2581 = vpack.c.bf16 %v2325, %v2325
      %v2582 = vpack.c.bf16 %v2326, %v2326
      %v2583 = vpack.c.bf16 %v2327, %v2327
      %v2584 = vpack.c.bf16 %v2328, %v2328
      %v2585 = vpack.c.bf16 %v2329, %v2329
      %v2586 = vpack.c.bf16 %v2330, %v2330
      %v2587 = vpack.c.bf16 %v2331, %v2331
      %v2588 = vpack.c.bf16 %v2332, %v2332
      %v2589 = vpack.c.bf16 %v2333, %v2333
      %v2590 = vpack.c.bf16 %v2334, %v2334
      %v2591 = vpack.c.bf16 %v2335, %v2335
      %v2592 = vpack.c.bf16 %v2336, %v2336
      %v2593 = vpack.c.bf16 %v2337, %v2337
      %v2594 = vpack.c.bf16 %v2338, %v2338
      %v2595 = vpack.c.bf16 %v2339, %v2339
      %v2596 = vpack.c.bf16 %v2340, %v2340
      %v2597 = vpack.c.bf16 %v2341, %v2341
      %v2598 = vpack.c.bf16 %v2342, %v2342
      %v2599 = vpack.c.bf16 %v2343, %v2343
      %v2600 = vpack.c.bf16 %v2344, %v2344
      %v2601 = vpack.c.bf16 %v2345, %v2345
      %v2602 = vpack.c.bf16 %v2346, %v2346
      %v2603 = vpack.c.bf16 %v2347, %v2347
      %v2604 = vpack.c.bf16 %v2348, %v2348
      %v2605 = vpack.c.bf16 %v2349, %v2349
      %v2606 = vpack.c.bf16 %v2350, %v2350
      %v2607 = vpack.c.bf16 %v2351, %v2351
      %v2608 = vpack.c.bf16 %v2352, %v2352
      %v2609 = vpack.c.bf16 %v2353, %v2353
      %v2610 = vpack.c.bf16 %v2354, %v2354
      %v2611 = vpack.c.bf16 %v2355, %v2355
      %v2612 = vpack.c.bf16 %v2356, %v2356
      %v2613 = vpack.c.bf16 %v2357, %v2357
      %v2614 = vpack.c.bf16 %v2358, %v2358
      %v2615 = vpack.c.bf16 %v2359, %v2359
      %v2616 = vpack.c.bf16 %v2360, %v2360
      %v2617 = vpack.c.bf16 %v2361, %v2361
      %v2618 = vpack.c.bf16 %v2362, %v2362
      %v2619 = vpack.c.bf16 %v2363, %v2363
      %v2620 = vpack.c.bf16 %v2364, %v2364
      %v2621 = vpack.c.bf16 %v2365, %v2365
      %v2622 = vpack.c.bf16 %v2366, %v2366
      %v2623 = vpack.c.bf16 %v2367, %v2367
      %v2624 = vpack.c.bf16 %v2368, %v2368
      %v2625 = vpack.c.bf16 %v2369, %v2369
      %v2626 = vpack.c.bf16 %v2370, %v2370
      %v2627 = vpack.c.bf16 %v2371, %v2371
      %v2628 = vpack.c.bf16 %v2372, %v2372
      %v2629 = vpack.c.bf16 %v2373, %v2373
      %v2630 = vpack.c.bf16 %v2374, %v2374
      %v2631 = vpack.c.bf16 %v2375, %v2375
      %v2632 = vpack.c.bf16 %v2376, %v2376
      %v2633 = vpack.c.bf16 %v2377, %v2377
      %v2634 = vpack.c.bf16 %v2378, %v2378
      %v2635 = vpack.c.bf16 %v2379, %v2379
      %v2636 = vpack.c.bf16 %v2380, %v2380
      %v2637 = vpack.c.bf16 %v2381, %v2381
      %v2638 = vpack.c.bf16 %v2382, %v2382
      %v2639 = vpack.c.bf16 %v2383, %v2383
      %v2640 = vpack.c.bf16 %v2384, %v2384
      %v2641 = vpack.c.bf16 %v2385, %v2385
      %v2642 = vpack.c.bf16 %v2386, %v2386
      %v2643 = vpack.c.bf16 %v2387, %v2387
      %v2644 = vpack.c.bf16 %v2388, %v2388
      %vm2645 = vcmask 191488
      %2646 = vst.msk [vmem:[%s172] sm:$0xf] %vm2645, %v2389
      %2647 = vst.msk [vmem:[%s172 + $0x4] sm:$0xf] %vm2645, %v2390
      %2648 = vst.msk [vmem:[%s172 + $0x8] sm:$0xf] %vm2645, %v2391
      %2649 = vst.msk [vmem:[%s172 + $0xc] sm:$0xf] %vm2645, %v2392
      %2650 = vst.msk [vmem:[%s172 + $0x10] sm:$0xf] %vm2645, %v2393
      %2651 = vst.msk [vmem:[%s172 + $0x14] sm:$0xf] %vm2645, %v2394
      %2652 = vst.msk [vmem:[%s172 + $0x18] sm:$0xf] %vm2645, %v2395
      %2653 = vst.msk [vmem:[%s172 + $0x1c] sm:$0xf] %vm2645, %v2396
      %2654 = vst.msk [vmem:[%s172 + $0x20] sm:$0xf] %vm2645, %v2397
      %2655 = vst.msk [vmem:[%s172 + $0x24] sm:$0xf] %vm2645, %v2398
      %2656 = vst.msk [vmem:[%s172 + $0x28] sm:$0xf] %vm2645, %v2399
      %2657 = vst.msk [vmem:[%s172 + $0x2c] sm:$0xf] %vm2645, %v2400
      %2658 = vst.msk [vmem:[%s172 + $0x30] sm:$0xf] %vm2645, %v2401
      %2659 = vst.msk [vmem:[%s172 + $0x34] sm:$0xf] %vm2645, %v2402
      %2660 = vst.msk [vmem:[%s172 + $0x38] sm:$0xf] %vm2645, %v2403
      %2661 = vst.msk [vmem:[%s172 + $0x3c] sm:$0xf] %vm2645, %v2404
      %2662 = vst.msk [vmem:[%s172 + $0x40] sm:$0xf] %vm2645, %v2405
      %2663 = vst.msk [vmem:[%s172 + $0x44] sm:$0xf] %vm2645, %v2406
      %2664 = vst.msk [vmem:[%s172 + $0x48] sm:$0xf] %vm2645, %v2407
      %2665 = vst.msk [vmem:[%s172 + $0x4c] sm:$0xf] %vm2645, %v2408
      %2666 = vst.msk [vmem:[%s172 + $0x50] sm:$0xf] %vm2645, %v2409
      %2667 = vst.msk [vmem:[%s172 + $0x54] sm:$0xf] %vm2645, %v2410
      %2668 = vst.msk [vmem:[%s172 + $0x58] sm:$0xf] %vm2645, %v2411
      %2669 = vst.msk [vmem:[%s172 + $0x5c] sm:$0xf] %vm2645, %v2412
      %2670 = vst.msk [vmem:[%s172 + $0x60] sm:$0xf] %vm2645, %v2413
      %2671 = vst.msk [vmem:[%s172 + $0x64] sm:$0xf] %vm2645, %v2414
      %2672 = vst.msk [vmem:[%s172 + $0x68] sm:$0xf] %vm2645, %v2415
      %2673 = vst.msk [vmem:[%s172 + $0x6c] sm:$0xf] %vm2645, %v2416
      %2674 = vst.msk [vmem:[%s172 + $0x70] sm:$0xf] %vm2645, %v2417
      %2675 = vst.msk [vmem:[%s172 + $0x74] sm:$0xf] %vm2645, %v2418
      %2676 = vst.msk [vmem:[%s172 + $0x78] sm:$0xf] %vm2645, %v2419
      %2677 = vst.msk [vmem:[%s172 + $0x7c] sm:$0xf] %vm2645, %v2420
      %2678 = vst.msk [vmem:[%s172 + $0x80] sm:$0xf] %vm2645, %v2421
      %2679 = vst.msk [vmem:[%s172 + $0x84] sm:$0xf] %vm2645, %v2422
      %2680 = vst.msk [vmem:[%s172 + $0x88] sm:$0xf] %vm2645, %v2423
      %2681 = vst.msk [vmem:[%s172 + $0x8c] sm:$0xf] %vm2645, %v2424
      %2682 = vst.msk [vmem:[%s172 + $0x90] sm:$0xf] %vm2645, %v2425
      %2683 = vst.msk [vmem:[%s172 + $0x94] sm:$0xf] %vm2645, %v2426
      %2684 = vst.msk [vmem:[%s172 + $0x98] sm:$0xf] %vm2645, %v2427
      %2685 = vst.msk [vmem:[%s172 + $0x9c] sm:$0xf] %vm2645, %v2428
      %2686 = vst.msk [vmem:[%s172 + $0xa0] sm:$0xf] %vm2645, %v2429
      %2687 = vst.msk [vmem:[%s172 + $0xa4] sm:$0xf] %vm2645, %v2430
      %2688 = vst.msk [vmem:[%s172 + $0xa8] sm:$0xf] %vm2645, %v2431
      %2689 = vst.msk [vmem:[%s172 + $0xac] sm:$0xf] %vm2645, %v2432
      %2690 = vst.msk [vmem:[%s172 + $0xb0] sm:$0xf] %vm2645, %v2433
      %2691 = vst.msk [vmem:[%s172 + $0xb4] sm:$0xf] %vm2645, %v2434
      %2692 = vst.msk [vmem:[%s172 + $0xb8] sm:$0xf] %vm2645, %v2435
      %2693 = vst.msk [vmem:[%s172 + $0xbc] sm:$0xf] %vm2645, %v2436
      %2694 = vst.msk [vmem:[%s172 + $0xc0] sm:$0xf] %vm2645, %v2437
      %2695 = vst.msk [vmem:[%s172 + $0xc4] sm:$0xf] %vm2645, %v2438
      %2696 = vst.msk [vmem:[%s172 + $0xc8] sm:$0xf] %vm2645, %v2439
      %2697 = vst.msk [vmem:[%s172 + $0xcc] sm:$0xf] %vm2645, %v2440
      %2698 = vst.msk [vmem:[%s172 + $0xd0] sm:$0xf] %vm2645, %v2441
      %2699 = vst.msk [vmem:[%s172 + $0xd4] sm:$0xf] %vm2645, %v2442
      %2700 = vst.msk [vmem:[%s172 + $0xd8] sm:$0xf] %vm2645, %v2443
      %2701 = vst.msk [vmem:[%s172 + $0xdc] sm:$0xf] %vm2645, %v2444
      %2702 = vst.msk [vmem:[%s172 + $0xe0] sm:$0xf] %vm2645, %v2445
      %2703 = vst.msk [vmem:[%s172 + $0xe4] sm:$0xf] %vm2645, %v2446
      %2704 = vst.msk [vmem:[%s172 + $0xe8] sm:$0xf] %vm2645, %v2447
      %2705 = vst.msk [vmem:[%s172 + $0xec] sm:$0xf] %vm2645, %v2448
      %2706 = vst.msk [vmem:[%s172 + $0xf0] sm:$0xf] %vm2645, %v2449
      %2707 = vst.msk [vmem:[%s172 + $0xf4] sm:$0xf] %vm2645, %v2450
      %2708 = vst.msk [vmem:[%s172 + $0xf8] sm:$0xf] %vm2645, %v2451
      %2709 = vst.msk [vmem:[%s172 + $0xfc] sm:$0xf] %vm2645, %v2452
      %2710 = vst.msk [vmem:[%s172 + $0x100] sm:$0xf] %vm2645, %v2453
      %2711 = vst.msk [vmem:[%s172 + $0x104] sm:$0xf] %vm2645, %v2454
      %2712 = vst.msk [vmem:[%s172 + $0x108] sm:$0xf] %vm2645, %v2455
      %2713 = vst.msk [vmem:[%s172 + $0x10c] sm:$0xf] %vm2645, %v2456
      %2714 = vst.msk [vmem:[%s172 + $0x110] sm:$0xf] %vm2645, %v2457
      %2715 = vst.msk [vmem:[%s172 + $0x114] sm:$0xf] %vm2645, %v2458
      %2716 = vst.msk [vmem:[%s172 + $0x118] sm:$0xf] %vm2645, %v2459
      %2717 = vst.msk [vmem:[%s172 + $0x11c] sm:$0xf] %vm2645, %v2460
      %2718 = vst.msk [vmem:[%s172 + $0x120] sm:$0xf] %vm2645, %v2461
      %2719 = vst.msk [vmem:[%s172 + $0x124] sm:$0xf] %vm2645, %v2462
      %2720 = vst.msk [vmem:[%s172 + $0x128] sm:$0xf] %vm2645, %v2463
      %2721 = vst.msk [vmem:[%s172 + $0x12c] sm:$0xf] %vm2645, %v2464
      %2722 = vst.msk [vmem:[%s172 + $0x130] sm:$0xf] %vm2645, %v2465
      %2723 = vst.msk [vmem:[%s172 + $0x134] sm:$0xf] %vm2645, %v2466
      %2724 = vst.msk [vmem:[%s172 + $0x138] sm:$0xf] %vm2645, %v2467
      %2725 = vst.msk [vmem:[%s172 + $0x13c] sm:$0xf] %vm2645, %v2468
      %2726 = vst.msk [vmem:[%s172 + $0x140] sm:$0xf] %vm2645, %v2469
      %2727 = vst.msk [vmem:[%s172 + $0x144] sm:$0xf] %vm2645, %v2470
      %2728 = vst.msk [vmem:[%s172 + $0x148] sm:$0xf] %vm2645, %v2471
      %2729 = vst.msk [vmem:[%s172 + $0x14c] sm:$0xf] %vm2645, %v2472
      %2730 = vst.msk [vmem:[%s172 + $0x150] sm:$0xf] %vm2645, %v2473
      %2731 = vst.msk [vmem:[%s172 + $0x154] sm:$0xf] %vm2645, %v2474
      %2732 = vst.msk [vmem:[%s172 + $0x158] sm:$0xf] %vm2645, %v2475
      %2733 = vst.msk [vmem:[%s172 + $0x15c] sm:$0xf] %vm2645, %v2476
      %2734 = vst.msk [vmem:[%s172 + $0x160] sm:$0xf] %vm2645, %v2477
      %2735 = vst.msk [vmem:[%s172 + $0x164] sm:$0xf] %vm2645, %v2478
      %2736 = vst.msk [vmem:[%s172 + $0x168] sm:$0xf] %vm2645, %v2479
      %2737 = vst.msk [vmem:[%s172 + $0x16c] sm:$0xf] %vm2645, %v2480
      %2738 = vst.msk [vmem:[%s172 + $0x170] sm:$0xf] %vm2645, %v2481
      %2739 = vst.msk [vmem:[%s172 + $0x174] sm:$0xf] %vm2645, %v2482
      %2740 = vst.msk [vmem:[%s172 + $0x178] sm:$0xf] %vm2645, %v2483
      %2741 = vst.msk [vmem:[%s172 + $0x17c] sm:$0xf] %vm2645, %v2484
      %2742 = vst.msk [vmem:[%s172 + $0x180] sm:$0xf] %vm2645, %v2485
      %2743 = vst.msk [vmem:[%s172 + $0x184] sm:$0xf] %vm2645, %v2486
      %2744 = vst.msk [vmem:[%s172 + $0x188] sm:$0xf] %vm2645, %v2487
      %2745 = vst.msk [vmem:[%s172 + $0x18c] sm:$0xf] %vm2645, %v2488
      %2746 = vst.msk [vmem:[%s172 + $0x190] sm:$0xf] %vm2645, %v2489
      %2747 = vst.msk [vmem:[%s172 + $0x194] sm:$0xf] %vm2645, %v2490
      %2748 = vst.msk [vmem:[%s172 + $0x198] sm:$0xf] %vm2645, %v2491
      %2749 = vst.msk [vmem:[%s172 + $0x19c] sm:$0xf] %vm2645, %v2492
      %2750 = vst.msk [vmem:[%s172 + $0x1a0] sm:$0xf] %vm2645, %v2493
      %2751 = vst.msk [vmem:[%s172 + $0x1a4] sm:$0xf] %vm2645, %v2494
      %2752 = vst.msk [vmem:[%s172 + $0x1a8] sm:$0xf] %vm2645, %v2495
      %2753 = vst.msk [vmem:[%s172 + $0x1ac] sm:$0xf] %vm2645, %v2496
      %2754 = vst.msk [vmem:[%s172 + $0x1b0] sm:$0xf] %vm2645, %v2497
      %2755 = vst.msk [vmem:[%s172 + $0x1b4] sm:$0xf] %vm2645, %v2498
      %2756 = vst.msk [vmem:[%s172 + $0x1b8] sm:$0xf] %vm2645, %v2499
      %2757 = vst.msk [vmem:[%s172 + $0x1bc] sm:$0xf] %vm2645, %v2500
      %2758 = vst.msk [vmem:[%s172 + $0x1c0] sm:$0xf] %vm2645, %v2501
      %2759 = vst.msk [vmem:[%s172 + $0x1c4] sm:$0xf] %vm2645, %v2502
      %2760 = vst.msk [vmem:[%s172 + $0x1c8] sm:$0xf] %vm2645, %v2503
      %2761 = vst.msk [vmem:[%s172 + $0x1cc] sm:$0xf] %vm2645, %v2504
      %2762 = vst.msk [vmem:[%s172 + $0x1d0] sm:$0xf] %vm2645, %v2505
      %2763 = vst.msk [vmem:[%s172 + $0x1d4] sm:$0xf] %vm2645, %v2506
      %2764 = vst.msk [vmem:[%s172 + $0x1d8] sm:$0xf] %vm2645, %v2507
      %2765 = vst.msk [vmem:[%s172 + $0x1dc] sm:$0xf] %vm2645, %v2508
      %2766 = vst.msk [vmem:[%s172 + $0x1e0] sm:$0xf] %vm2645, %v2509
      %2767 = vst.msk [vmem:[%s172 + $0x1e4] sm:$0xf] %vm2645, %v2510
      %2768 = vst.msk [vmem:[%s172 + $0x1e8] sm:$0xf] %vm2645, %v2511
      %2769 = vst.msk [vmem:[%s172 + $0x1ec] sm:$0xf] %vm2645, %v2512
      %2770 = vst.msk [vmem:[%s172 + $0x1f0] sm:$0xf] %vm2645, %v2513
      %2771 = vst.msk [vmem:[%s172 + $0x1f4] sm:$0xf] %vm2645, %v2514
      %2772 = vst.msk [vmem:[%s172 + $0x1f8] sm:$0xf] %vm2645, %v2515
      %2773 = vst.msk [vmem:[%s172 + $0x1fc] sm:$0xf] %vm2645, %v2516
      %2774 = vst.msk [vmem:[%s172 + $0x200] sm:$0xf] %vm2645, %v2517
      %2775 = vst.msk [vmem:[%s172 + $0x204] sm:$0xf] %vm2645, %v2518
      %2776 = vst.msk [vmem:[%s172 + $0x208] sm:$0xf] %vm2645, %v2519
      %2777 = vst.msk [vmem:[%s172 + $0x20c] sm:$0xf] %vm2645, %v2520
      %2778 = vst.msk [vmem:[%s172 + $0x210] sm:$0xf] %vm2645, %v2521
      %2779 = vst.msk [vmem:[%s172 + $0x214] sm:$0xf] %vm2645, %v2522
      %2780 = vst.msk [vmem:[%s172 + $0x218] sm:$0xf] %vm2645, %v2523
      %2781 = vst.msk [vmem:[%s172 + $0x21c] sm:$0xf] %vm2645, %v2524
      %2782 = vst.msk [vmem:[%s172 + $0x220] sm:$0xf] %vm2645, %v2525
      %2783 = vst.msk [vmem:[%s172 + $0x224] sm:$0xf] %vm2645, %v2526
      %2784 = vst.msk [vmem:[%s172 + $0x228] sm:$0xf] %vm2645, %v2527
      %2785 = vst.msk [vmem:[%s172 + $0x22c] sm:$0xf] %vm2645, %v2528
      %2786 = vst.msk [vmem:[%s172 + $0x230] sm:$0xf] %vm2645, %v2529
      %2787 = vst.msk [vmem:[%s172 + $0x234] sm:$0xf] %vm2645, %v2530
      %2788 = vst.msk [vmem:[%s172 + $0x238] sm:$0xf] %vm2645, %v2531
      %2789 = vst.msk [vmem:[%s172 + $0x23c] sm:$0xf] %vm2645, %v2532
      %2790 = vst.msk [vmem:[%s172 + $0x240] sm:$0xf] %vm2645, %v2533
      %2791 = vst.msk [vmem:[%s172 + $0x244] sm:$0xf] %vm2645, %v2534
      %2792 = vst.msk [vmem:[%s172 + $0x248] sm:$0xf] %vm2645, %v2535
      %2793 = vst.msk [vmem:[%s172 + $0x24c] sm:$0xf] %vm2645, %v2536
      %2794 = vst.msk [vmem:[%s172 + $0x250] sm:$0xf] %vm2645, %v2537
      %2795 = vst.msk [vmem:[%s172 + $0x254] sm:$0xf] %vm2645, %v2538
      %2796 = vst.msk [vmem:[%s172 + $0x258] sm:$0xf] %vm2645, %v2539
      %2797 = vst.msk [vmem:[%s172 + $0x25c] sm:$0xf] %vm2645, %v2540
      %2798 = vst.msk [vmem:[%s172 + $0x260] sm:$0xf] %vm2645, %v2541
      %2799 = vst.msk [vmem:[%s172 + $0x264] sm:$0xf] %vm2645, %v2542
      %2800 = vst.msk [vmem:[%s172 + $0x268] sm:$0xf] %vm2645, %v2543
      %2801 = vst.msk [vmem:[%s172 + $0x26c] sm:$0xf] %vm2645, %v2544
      %2802 = vst.msk [vmem:[%s172 + $0x270] sm:$0xf] %vm2645, %v2545
      %2803 = vst.msk [vmem:[%s172 + $0x274] sm:$0xf] %vm2645, %v2546
      %2804 = vst.msk [vmem:[%s172 + $0x278] sm:$0xf] %vm2645, %v2547
      %2805 = vst.msk [vmem:[%s172 + $0x27c] sm:$0xf] %vm2645, %v2548
      %2806 = vst.msk [vmem:[%s172 + $0x280] sm:$0xf] %vm2645, %v2549
      %2807 = vst.msk [vmem:[%s172 + $0x284] sm:$0xf] %vm2645, %v2550
      %2808 = vst.msk [vmem:[%s172 + $0x288] sm:$0xf] %vm2645, %v2551
      %2809 = vst.msk [vmem:[%s172 + $0x28c] sm:$0xf] %vm2645, %v2552
      %2810 = vst.msk [vmem:[%s172 + $0x290] sm:$0xf] %vm2645, %v2553
      %2811 = vst.msk [vmem:[%s172 + $0x294] sm:$0xf] %vm2645, %v2554
      %2812 = vst.msk [vmem:[%s172 + $0x298] sm:$0xf] %vm2645, %v2555
      %2813 = vst.msk [vmem:[%s172 + $0x29c] sm:$0xf] %vm2645, %v2556
      %2814 = vst.msk [vmem:[%s172 + $0x2a0] sm:$0xf] %vm2645, %v2557
      %2815 = vst.msk [vmem:[%s172 + $0x2a4] sm:$0xf] %vm2645, %v2558
      %2816 = vst.msk [vmem:[%s172 + $0x2a8] sm:$0xf] %vm2645, %v2559
      %2817 = vst.msk [vmem:[%s172 + $0x2ac] sm:$0xf] %vm2645, %v2560
      %2818 = vst.msk [vmem:[%s172 + $0x2b0] sm:$0xf] %vm2645, %v2561
      %2819 = vst.msk [vmem:[%s172 + $0x2b4] sm:$0xf] %vm2645, %v2562
      %2820 = vst.msk [vmem:[%s172 + $0x2b8] sm:$0xf] %vm2645, %v2563
      %2821 = vst.msk [vmem:[%s172 + $0x2bc] sm:$0xf] %vm2645, %v2564
      %2822 = vst.msk [vmem:[%s172 + $0x2c0] sm:$0xf] %vm2645, %v2565
      %2823 = vst.msk [vmem:[%s172 + $0x2c4] sm:$0xf] %vm2645, %v2566
      %2824 = vst.msk [vmem:[%s172 + $0x2c8] sm:$0xf] %vm2645, %v2567
      %2825 = vst.msk [vmem:[%s172 + $0x2cc] sm:$0xf] %vm2645, %v2568
      %2826 = vst.msk [vmem:[%s172 + $0x2d0] sm:$0xf] %vm2645, %v2569
      %2827 = vst.msk [vmem:[%s172 + $0x2d4] sm:$0xf] %vm2645, %v2570
      %2828 = vst.msk [vmem:[%s172 + $0x2d8] sm:$0xf] %vm2645, %v2571
      %2829 = vst.msk [vmem:[%s172 + $0x2dc] sm:$0xf] %vm2645, %v2572
      %2830 = vst.msk [vmem:[%s172 + $0x2e0] sm:$0xf] %vm2645, %v2573
      %2831 = vst.msk [vmem:[%s172 + $0x2e4] sm:$0xf] %vm2645, %v2574
      %2832 = vst.msk [vmem:[%s172 + $0x2e8] sm:$0xf] %vm2645, %v2575
      %2833 = vst.msk [vmem:[%s172 + $0x2ec] sm:$0xf] %vm2645, %v2576
      %2834 = vst.msk [vmem:[%s172 + $0x2f0] sm:$0xf] %vm2645, %v2577
      %2835 = vst.msk [vmem:[%s172 + $0x2f4] sm:$0xf] %vm2645, %v2578
      %2836 = vst.msk [vmem:[%s172 + $0x2f8] sm:$0xf] %vm2645, %v2579
      %2837 = vst.msk [vmem:[%s172 + $0x2fc] sm:$0xf] %vm2645, %v2580
      %2838 = vst.msk [vmem:[%s172 + $0x300] sm:$0xf] %vm2645, %v2581
      %2839 = vst.msk [vmem:[%s172 + $0x304] sm:$0xf] %vm2645, %v2582
      %2840 = vst.msk [vmem:[%s172 + $0x308] sm:$0xf] %vm2645, %v2583
      %2841 = vst.msk [vmem:[%s172 + $0x30c] sm:$0xf] %vm2645, %v2584
      %2842 = vst.msk [vmem:[%s172 + $0x310] sm:$0xf] %vm2645, %v2585
      %2843 = vst.msk [vmem:[%s172 + $0x314] sm:$0xf] %vm2645, %v2586
      %2844 = vst.msk [vmem:[%s172 + $0x318] sm:$0xf] %vm2645, %v2587
      %2845 = vst.msk [vmem:[%s172 + $0x31c] sm:$0xf] %vm2645, %v2588
      %2846 = vst.msk [vmem:[%s172 + $0x320] sm:$0xf] %vm2645, %v2589
      %2847 = vst.msk [vmem:[%s172 + $0x324] sm:$0xf] %vm2645, %v2590
      %2848 = vst.msk [vmem:[%s172 + $0x328] sm:$0xf] %vm2645, %v2591
      %2849 = vst.msk [vmem:[%s172 + $0x32c] sm:$0xf] %vm2645, %v2592
      %2850 = vst.msk [vmem:[%s172 + $0x330] sm:$0xf] %vm2645, %v2593
      %2851 = vst.msk [vmem:[%s172 + $0x334] sm:$0xf] %vm2645, %v2594
      %2852 = vst.msk [vmem:[%s172 + $0x338] sm:$0xf] %vm2645, %v2595
      %2853 = vst.msk [vmem:[%s172 + $0x33c] sm:$0xf] %vm2645, %v2596
      %2854 = vst.msk [vmem:[%s172 + $0x340] sm:$0xf] %vm2645, %v2597
      %2855 = vst.msk [vmem:[%s172 + $0x344] sm:$0xf] %vm2645, %v2598
      %2856 = vst.msk [vmem:[%s172 + $0x348] sm:$0xf] %vm2645, %v2599
      %2857 = vst.msk [vmem:[%s172 + $0x34c] sm:$0xf] %vm2645, %v2600
      %2858 = vst.msk [vmem:[%s172 + $0x350] sm:$0xf] %vm2645, %v2601
      %2859 = vst.msk [vmem:[%s172 + $0x354] sm:$0xf] %vm2645, %v2602
      %2860 = vst.msk [vmem:[%s172 + $0x358] sm:$0xf] %vm2645, %v2603
      %2861 = vst.msk [vmem:[%s172 + $0x35c] sm:$0xf] %vm2645, %v2604
      %2862 = vst.msk [vmem:[%s172 + $0x360] sm:$0xf] %vm2645, %v2605
      %2863 = vst.msk [vmem:[%s172 + $0x364] sm:$0xf] %vm2645, %v2606
      %2864 = vst.msk [vmem:[%s172 + $0x368] sm:$0xf] %vm2645, %v2607
      %2865 = vst.msk [vmem:[%s172 + $0x36c] sm:$0xf] %vm2645, %v2608
      %2866 = vst.msk [vmem:[%s172 + $0x370] sm:$0xf] %vm2645, %v2609
      %2867 = vst.msk [vmem:[%s172 + $0x374] sm:$0xf] %vm2645, %v2610
      %2868 = vst.msk [vmem:[%s172 + $0x378] sm:$0xf] %vm2645, %v2611
      %2869 = vst.msk [vmem:[%s172 + $0x37c] sm:$0xf] %vm2645, %v2612
      %2870 = vst.msk [vmem:[%s172 + $0x380] sm:$0xf] %vm2645, %v2613
      %2871 = vst.msk [vmem:[%s172 + $0x384] sm:$0xf] %vm2645, %v2614
      %2872 = vst.msk [vmem:[%s172 + $0x388] sm:$0xf] %vm2645, %v2615
      %2873 = vst.msk [vmem:[%s172 + $0x38c] sm:$0xf] %vm2645, %v2616
      %2874 = vst.msk [vmem:[%s172 + $0x390] sm:$0xf] %vm2645, %v2617
      %2875 = vst.msk [vmem:[%s172 + $0x394] sm:$0xf] %vm2645, %v2618
      %2876 = vst.msk [vmem:[%s172 + $0x398] sm:$0xf] %vm2645, %v2619
      %2877 = vst.msk [vmem:[%s172 + $0x39c] sm:$0xf] %vm2645, %v2620
      %2878 = vst.msk [vmem:[%s172 + $0x3a0] sm:$0xf] %vm2645, %v2621
      %2879 = vst.msk [vmem:[%s172 + $0x3a4] sm:$0xf] %vm2645, %v2622
      %2880 = vst.msk [vmem:[%s172 + $0x3a8] sm:$0xf] %vm2645, %v2623
      %2881 = vst.msk [vmem:[%s172 + $0x3ac] sm:$0xf] %vm2645, %v2624
      %2882 = vst.msk [vmem:[%s172 + $0x3b0] sm:$0xf] %vm2645, %v2625
      %2883 = vst.msk [vmem:[%s172 + $0x3b4] sm:$0xf] %vm2645, %v2626
      %2884 = vst.msk [vmem:[%s172 + $0x3b8] sm:$0xf] %vm2645, %v2627
      %2885 = vst.msk [vmem:[%s172 + $0x3bc] sm:$0xf] %vm2645, %v2628
      %2886 = vst.msk [vmem:[%s172 + $0x3c0] sm:$0xf] %vm2645, %v2629
      %2887 = vst.msk [vmem:[%s172 + $0x3c4] sm:$0xf] %vm2645, %v2630
      %2888 = vst.msk [vmem:[%s172 + $0x3c8] sm:$0xf] %vm2645, %v2631
      %2889 = vst.msk [vmem:[%s172 + $0x3cc] sm:$0xf] %vm2645, %v2632
      %2890 = vst.msk [vmem:[%s172 + $0x3d0] sm:$0xf] %vm2645, %v2633
      %2891 = vst.msk [vmem:[%s172 + $0x3d4] sm:$0xf] %vm2645, %v2634
      %2892 = vst.msk [vmem:[%s172 + $0x3d8] sm:$0xf] %vm2645, %v2635
      %2893 = vst.msk [vmem:[%s172 + $0x3dc] sm:$0xf] %vm2645, %v2636
      %2894 = vst.msk [vmem:[%s172 + $0x3e0] sm:$0xf] %vm2645, %v2637
      %2895 = vst.msk [vmem:[%s172 + $0x3e4] sm:$0xf] %vm2645, %v2638
      %2896 = vst.msk [vmem:[%s172 + $0x3e8] sm:$0xf] %vm2645, %v2639
      %2897 = vst.msk [vmem:[%s172 + $0x3ec] sm:$0xf] %vm2645, %v2640
      %2898 = vst.msk [vmem:[%s172 + $0x3f0] sm:$0xf] %vm2645, %v2641
      %2899 = vst.msk [vmem:[%s172 + $0x3f4] sm:$0xf] %vm2645, %v2642
      %2900 = vst.msk [vmem:[%s172 + $0x3f8] sm:$0xf] %vm2645, %v2643
      %2901 = vst.msk [vmem:[%s172 + $0x3fc] sm:$0xf] %vm2645, %v2644
      %s2902 = smul.u32 256, %s14
      %p2903 = scmp.lt.s32.totalorder %s2902, 1023
      %s2904 = scalar_select %p2903, %s2902, 1023
      %s2905 = smul.addr %s2904, 4
      %s2906 = scalar_lea.vmem %s3, %s2905
      // Predicated region
      $region33: #{forward.5} parent=31 // pred_check
        %p2907 = pneg %p100
      $region34: #{forward.5} parent=31 // pred_check_branch
        %2909 = sbr.rel (%p2907) target = $region36
      $region35: #{forward.5} parent=31 // pred_region
        %s2910 = smul.u32 256, %s14
      $region36: #{forward.5} parent=31 // pred_fallthru
        _
    $region32: #{forward.5} parent=5 // pred_fallthru
      _
    %p2911 = scmp.le.s32.totalorder 2, %s9
    // Predicated region
    $region37: #{forward.5} parent=5 // pred_check
      %p2912 = pneg %p2911
    $region38: #{forward.5} parent=5 // pred_check_branch
      %2914 = sbr.rel (%p2912) target = $region40
    $region39: #{forward.5} parent=5 // pred_region
      %s2915 = ssub.s32 %s9, 2
      // Predicated region
      $region41: #{forward.5} parent=39 // pred_check
        %p2916 = pneg %p106
      $region42: #{forward.5} parent=39 // pred_check_branch
        %2918 = sbr.rel (%p2916) target = $region44
      $region43: #{forward.5} parent=39 // pred_region
        %s2919 = smul.u32 256, %s15
        %p2920 = scmp.lt.s32.totalorder %s2919, 1023
        %s2921 = scalar_select %p2920, %s2919, 1023
        %s2922 = smul.addr %s2921, 4
        %s2923 = scalar_lea.vmem %s3, %s2922
      $region44: #{forward.5} parent=39 // pred_fallthru
        _
    $region40: #{forward.5} parent=5 // pred_fallthru
      _
  $region6: #{forward.5} parent=0 // loop_footer
    %s13 = sadd.s32 1, %s9
  $region7: #{forward.5} parent=0 // loop_footer_branch
    %8 = sbr.rel target = $region3
  $region8: #{forward.5} parent=0 // loop_exit
    _

// kernel: forward.6
$region0: #{forward.6}
  #allocation0 [shape = 'u32[]', space=smem, size = 0x4, offset = 0x4, fixed_abs, tag = 'smem constant byte address 0x4 - core index']
  #allocation1 [shape = 'u32[72,128]{1,0:T(1,128)}', space=vmem, size = 0x9000, scoped, tag = 'internal scratch']
  %s0 = inlined_call_operand.vmem [shape: bf16[2048,384], index: 0, kind: input, shape index: {}]
  %s1 = inlined_call_operand.vmem [shape: bf16[384,36], index: 1, kind: input, shape index: {}]
  %s2 = inlined_call_operand.vmem [shape: f32[1,36], index: 2, kind: input, shape index: {}]
  %s3 = inlined_call_operand.vmem [shape: bf16[2048,36], index: 3, kind: output, shape index: {}]
  %s4 = sld [smem:[#allocation0]]
  $region45: #{forward.6} parent=0
    _
  %s6 = ssub.s32 1, %s4
  %s7 = scalar_select 0, %s6, %s4
  loop: start=0, step=1, limit=4
  $region2: #{forward.6} parent=0 // loop_pre_header
    _
  $region3: #{forward.6} parent=0 // loop_header
    %s9 = sphi 0, %s13
    %p10 = scmp.ge.s32.totalorder %s9, 4
    %s19 = sphi 0, %s21
    %s22 = sphi 0, %s19
    %s23 = sphi 0, %s22
    %s39 = sphi 0, %s23
    %s43 = sphi 0, %s43
    %s45 = sphi 0, %s43
    %s46 = sphi 0, %s45
    %s60 = sphi 0, %s46
    %s64 = sphi 0, %s64
    %s66 = sphi 0, %s64
    %s67 = sphi 0, %s66
    %s81 = sphi 0, %s67
    %s87 = sphi 0, %s89
    %s90 = sphi 0, %s87
    %s91 = sphi 0, %s90
    %s107 = sphi 0, %s91
  $region4: #{forward.6} parent=0 // loop_header_branch
    %12 = sbr.rel (%p10) target = $region8
  $region5: #{forward.6} parent=0 // loop_body
    %s14 = ssub.s32 %s9, 1
    %s15 = ssub.s32 %s9, 2
    %s16 = sadd.s32 %s9, 1
    %s17 = ssub.s32 %s9, %s16
    %p18 = scmp.eq.s32.totalorder %s17, 0
    %s20 = sadd.s32 %s19, 1
    %s21 = scalar_select %p18, %s19, %s20
    %p24 = pneg %p18
    %p25 = scmp.eq.s32.totalorder %s9, 1
    %p26 = por %p24, %p25
    %p27 = scmp.ne.s32.totalorder %s19, %s22
    %p28 = scmp.eq.s32.totalorder %s9, 0
    %p29 = por %p27, %p28
    %p30 = scmp.ne.s32.totalorder %s19, %s22
    %p31 = scmp.eq.s32.totalorder %s14, 1
    %p32 = por %p30, %p31
    %p33 = scmp.ne.s32.totalorder %s22, %s23
    %p34 = scmp.eq.s32.totalorder %s14, 0
    %p35 = por %p33, %p34
    %p36 = scmp.ne.s32.totalorder %s22, %s23
    %p37 = scmp.eq.s32.totalorder %s15, 1
    %p38 = por %p36, %p37
    %p40 = scmp.ne.s32.totalorder %s23, %s39
    %p41 = scmp.eq.s32.totalorder %s15, 0
    %p42 = por %p40, %p41
    %s44 = sadd.s32 %s43, 1
    %p47 = scmp.eq.s32.totalorder %s9, 1
    %p48 = scmp.ne.s32.totalorder %s43, %s45
    %p49 = scmp.eq.s32.totalorder %s9, 0
    %p50 = por %p48, %p49
    %p51 = scmp.ne.s32.totalorder %s43, %s45
    %p52 = scmp.eq.s32.totalorder %s14, 1
    %p53 = por %p51, %p52
    %p54 = scmp.ne.s32.totalorder %s45, %s46
    %p55 = scmp.eq.s32.totalorder %s14, 0
    %p56 = por %p54, %p55
    %p57 = scmp.ne.s32.totalorder %s45, %s46
    %p58 = scmp.eq.s32.totalorder %s15, 1
    %p59 = por %p57, %p58
    %p61 = scmp.ne.s32.totalorder %s46, %s60
    %p62 = scmp.eq.s32.totalorder %s15, 0
    %p63 = por %p61, %p62
    %s65 = sadd.s32 %s64, 1
    %p68 = scmp.eq.s32.totalorder %s9, 1
    %p69 = scmp.ne.s32.totalorder %s64, %s66
    %p70 = scmp.eq.s32.totalorder %s9, 0
    %p71 = por %p69, %p70
    %p72 = scmp.ne.s32.totalorder %s64, %s66
    %p73 = scmp.eq.s32.totalorder %s14, 1
    %p74 = por %p72, %p73
    %p75 = scmp.ne.s32.totalorder %s66, %s67
    %p76 = scmp.eq.s32.totalorder %s14, 0
    %p77 = por %p75, %p76
    %p78 = scmp.ne.s32.totalorder %s66, %s67
    %p79 = scmp.eq.s32.totalorder %s15, 1
    %p80 = por %p78, %p79
    %p82 = scmp.ne.s32.totalorder %s67, %s81
    %p83 = scmp.eq.s32.totalorder %s15, 0
    %p84 = por %p82, %p83
    %s85 = ssub.s32 %s9, %s16
    %p86 = scmp.eq.s32.totalorder %s85, 0
    %s88 = sadd.s32 %s87, 1
    %s89 = scalar_select %p86, %s87, %s88
    %p92 = pneg %p86
    %p93 = scmp.eq.s32.totalorder %s9, 1
    %p94 = por %p92, %p93
    %p95 = scmp.ne.s32.totalorder %s87, %s90
    %p96 = scmp.eq.s32.totalorder %s9, 0
    %p97 = por %p95, %p96
    %p98 = scmp.ne.s32.totalorder %s87, %s90
    %p99 = scmp.eq.s32.totalorder %s14, 1
    %p100 = por %p98, %p99
    %p101 = scmp.ne.s32.totalorder %s90, %s91
    %p102 = scmp.eq.s32.totalorder %s14, 0
    %p103 = por %p101, %p102
    %p104 = scmp.ne.s32.totalorder %s90, %s91
    %p105 = scmp.eq.s32.totalorder %s15, 1
    %p106 = por %p104, %p105
    %p108 = scmp.ne.s32.totalorder %s91, %s107
    %p109 = scmp.eq.s32.totalorder %s15, 0
    %p110 = por %p108, %p109
    %p111 = scmp.le.s32.totalorder 1, %s9
    %p112 = scmp.lt.s32.totalorder %s9, 3
    %p113 = pnand %p111, %p112
    %p114 = pneg %p113
    // Predicated region
    $region9: #{forward.6} parent=5 // pred_check
      _
    $region10: #{forward.6} parent=5 // pred_check_branch
      %116 = sbr.rel (%p113) target = $region12
    $region11: #{forward.6} parent=5 // pred_region
      %s117 = ssub.s32 %s9, 1
      // Predicated region
      $region13: #{forward.6} parent=11 // pred_check
        %p118 = pneg %p56
      $region14: #{forward.6} parent=11 // pred_check_branch
        %120 = sbr.rel (%p118) target = $region16
      $region15: #{forward.6} parent=11 // pred_region
        _
      $region16: #{forward.6} parent=11 // pred_fallthru
        _
      // Predicated region
      $region17: #{forward.6} parent=11 // pred_check
        %p121 = pneg %p77
      $region18: #{forward.6} parent=11 // pred_check_branch
        %123 = sbr.rel (%p121) target = $region20
      $region19: #{forward.6} parent=11 // pred_region
        _
      $region20: #{forward.6} parent=11 // pred_fallthru
        _
    $region12: #{forward.6} parent=5 // pred_fallthru
      _
    %p124 = scmp.lt.s32.totalorder %s9, 2
    // Predicated region
    $region21: #{forward.6} parent=5 // pred_check
      %p125 = pneg %p124
    $region22: #{forward.6} parent=5 // pred_check_branch
      %127 = sbr.rel (%p125) target = $region24
    $region23: #{forward.6} parent=5 // pred_region
      // Predicated region
      $region25: #{forward.6} parent=23 // pred_check
        %p128 = pneg %p29
      $region26: #{forward.6} parent=23 // pred_check_branch
        %130 = sbr.rel (%p128) target = $region28
      $region27: #{forward.6} parent=23 // pred_region
        %s131 = smul.u32 128, %s9
        %p132 = scmp.lt.s32.totalorder %s131, 255
        %s133 = scalar_select %p132, %s131, 255
        %s134 = smul.addr %s133, 3
        %s135 = smul.addr %s134, 4
        %s136 = scalar_lea.vmem %s0, %s135
        %s137 = smul.u32 128, %s9
      $region28: #{forward.6} parent=23 // pred_fallthru
        _
    $region24: #{forward.6} parent=5 // pred_fallthru
      _
    %p138 = scmp.le.s32.totalorder 1, %s9
    %p139 = scmp.lt.s32.totalorder %s9, 3
    %p140 = pnand %p138, %p139
    %p141 = pneg %p140
    // Predicated region
    $region29: #{forward.6} parent=5 // pred_check
      _
    $region30: #{forward.6} parent=5 // pred_check_branch
      %143 = sbr.rel (%p140) target = $region32
    $region31: #{forward.6} parent=5 // pred_region
      %s144 = ssub.s32 %s9, 1
      %s145 = smul.u32 128, %s14
      %p146 = scmp.lt.s32.totalorder %s145, 255
      %s147 = scalar_select %p146, %s145, 255
      %s148 = smul.addr %s147, 3
      %s149 = smul.addr %s148, 4
      %s150 = scalar_lea.vmem %s0, %s149
      %p151 = pneg %p35
      %p152 = pneg %p32
      %p153 = pneg %p56
      %p154 = pneg %p53
      %p155 = pneg %p77
      %p156 = pneg %p74
      %p157 = pneg %p103
      %p158 = pneg %p100
      %s159 = smul.u32 128, %s14
      %p160 = scmp.lt.s32.totalorder %s159, 255
      %s161 = scalar_select %p160, %s159, 255
      %s162 = smul.addr %s161, 4
      %s163 = scalar_lea.vmem %s3, %s162
      %s164 = smul.u32 128, %s14
      %p165 = scmp.lt.s32.totalorder %s164, 255
      %s166 = scalar_select %p165, %s164, 255
      %s167 = smul.addr %s166, 3
      %s168 = smul.addr %s167, 4
      %s169 = scalar_lea.vmem %s0, %s168
      %s170 = smul.u32 128, %s14
      %s171 = smul.u32 128, %s14
      %p172 = scmp.lt.s32.totalorder %s171, 255
      %s173 = scalar_select %p172, %s171, 255
      %s174 = smul.addr %s173, 4
      %s175 = scalar_lea.vmem %s3, %s174
      %s176 = smul.u32 128, %s14
      %v177 = vld [vmem:[%s169] sm:$0xff]
      %v178 = vld [vmem:[%s169 + $0x8] sm:$0xf]
      %v179 = vld [vmem:[%s169 + $0xc] sm:$0xff]
      %v180 = vld [vmem:[%s169 + $0x14] sm:$0xf]
      %v181 = vld [vmem:[%s169 + $0x18] sm:$0xff]
      %v182 = vld [vmem:[%s169 + $0x20] sm:$0xf]
      %v183 = vld [vmem:[%s169 + $0x24] sm:$0xff]
      %v184 = vld [vmem:[%s169 + $0x2c] sm:$0xf]
      %v185 = vld [vmem:[%s169 + $0x30] sm:$0xff]
      %v186 = vld [vmem:[%s169 + $0x38] sm:$0xf]
      %v187 = vld [vmem:[%s169 + $0x3c] sm:$0xff]
      %v188 = vld [vmem:[%s169 + $0x44] sm:$0xf]
      %v189 = vld [vmem:[%s169 + $0x48] sm:$0xff]
      %v190 = vld [vmem:[%s169 + $0x50] sm:$0xf]
      %v191 = vld [vmem:[%s169 + $0x54] sm:$0xff]
      %v192 = vld [vmem:[%s169 + $0x5c] sm:$0xf]
      %v193 = vld [vmem:[%s169 + $0x60] sm:$0xff]
      %v194 = vld [vmem:[%s169 + $0x68] sm:$0xf]
      %v195 = vld [vmem:[%s169 + $0x6c] sm:$0xff]
      %v196 = vld [vmem:[%s169 + $0x74] sm:$0xf]
      %v197 = vld [vmem:[%s169 + $0x78] sm:$0xff]
      %v198 = vld [vmem:[%s169 + $0x80] sm:$0xf]
      %v199 = vld [vmem:[%s169 + $0x84] sm:$0xff]
      %v200 = vld [vmem:[%s169 + $0x8c] sm:$0xf]
      %v201 = vld [vmem:[%s169 + $0x90] sm:$0xff]
      %v202 = vld [vmem:[%s169 + $0x98] sm:$0xf]
      %v203 = vld [vmem:[%s169 + $0x9c] sm:$0xff]
      %v204 = vld [vmem:[%s169 + $0xa4] sm:$0xf]
      %v205 = vld [vmem:[%s169 + $0xa8] sm:$0xff]
      %v206 = vld [vmem:[%s169 + $0xb0] sm:$0xf]
      %v207 = vld [vmem:[%s169 + $0xb4] sm:$0xff]
      %v208 = vld [vmem:[%s169 + $0xbc] sm:$0xf]
      %v209 = vld [vmem:[%s169 + $0xc0] sm:$0xff]
      %v210 = vld [vmem:[%s169 + $0xc8] sm:$0xf]
      %v211 = vld [vmem:[%s169 + $0xcc] sm:$0xff]
      %v212 = vld [vmem:[%s169 + $0xd4] sm:$0xf]
      %v213 = vld [vmem:[%s169 + $0xd8] sm:$0xff]
      %v214 = vld [vmem:[%s169 + $0xe0] sm:$0xf]
      %v215 = vld [vmem:[%s169 + $0xe4] sm:$0xff]
      %v216 = vld [vmem:[%s169 + $0xec] sm:$0xf]
      %v217 = vld [vmem:[%s169 + $0xf0] sm:$0xff]
      %v218 = vld [vmem:[%s169 + $0xf8] sm:$0xf]
      %v219 = vld [vmem:[%s169 + $0xfc] sm:$0xff]
      %v220 = vld [vmem:[%s169 + $0x104] sm:$0xf]
      %v221 = vld [vmem:[%s169 + $0x108] sm:$0xff]
      %v222 = vld [vmem:[%s169 + $0x110] sm:$0xf]
      %v223 = vld [vmem:[%s169 + $0x114] sm:$0xff]
      %v224 = vld [vmem:[%s169 + $0x11c] sm:$0xf]
      %v225 = vld [vmem:[%s169 + $0x120] sm:$0xff]
      %v226 = vld [vmem:[%s169 + $0x128] sm:$0xf]
      %v227 = vld [vmem:[%s169 + $0x12c] sm:$0xff]
      %v228 = vld [vmem:[%s169 + $0x134] sm:$0xf]
      %v229 = vld [vmem:[%s169 + $0x138] sm:$0xff]
      %v230 = vld [vmem:[%s169 + $0x140] sm:$0xf]
      %v231 = vld [vmem:[%s169 + $0x144] sm:$0xff]
      %v232 = vld [vmem:[%s169 + $0x14c] sm:$0xf]
      %v233 = vld [vmem:[%s169 + $0x150] sm:$0xff]
      %v234 = vld [vmem:[%s169 + $0x158] sm:$0xf]
      %v235 = vld [vmem:[%s169 + $0x15c] sm:$0xff]
      %v236 = vld [vmem:[%s169 + $0x164] sm:$0xf]
      %v237 = vld [vmem:[%s169 + $0x168] sm:$0xff]
      %v238 = vld [vmem:[%s169 + $0x170] sm:$0xf]
      %v239 = vld [vmem:[%s169 + $0x174] sm:$0xff]
      %v240 = vld [vmem:[%s169 + $0x17c] sm:$0xf]
      %v241 = vld [vmem:[%s169 + $0x180] sm:$0xff]
      %v242 = vld [vmem:[%s169 + $0x188] sm:$0xf]
      %v243 = vld [vmem:[%s169 + $0x18c] sm:$0xff]
      %v244 = vld [vmem:[%s169 + $0x194] sm:$0xf]
      %v245 = vld [vmem:[%s169 + $0x198] sm:$0xff]
      %v246 = vld [vmem:[%s169 + $0x1a0] sm:$0xf]
      %v247 = vld [vmem:[%s169 + $0x1a4] sm:$0xff]
      %v248 = vld [vmem:[%s169 + $0x1ac] sm:$0xf]
      %v249 = vld [vmem:[%s169 + $0x1b0] sm:$0xff]
      %v250 = vld [vmem:[%s169 + $0x1b8] sm:$0xf]
      %v251 = vld [vmem:[%s169 + $0x1bc] sm:$0xff]
      %v252 = vld [vmem:[%s169 + $0x1c4] sm:$0xf]
      %v253 = vld [vmem:[%s169 + $0x1c8] sm:$0xff]
      %v254 = vld [vmem:[%s169 + $0x1d0] sm:$0xf]
      %v255 = vld [vmem:[%s169 + $0x1d4] sm:$0xff]
      %v256 = vld [vmem:[%s169 + $0x1dc] sm:$0xf]
      %v257 = vld [vmem:[%s169 + $0x1e0] sm:$0xff]
      %v258 = vld [vmem:[%s169 + $0x1e8] sm:$0xf]
      %v259 = vld [vmem:[%s169 + $0x1ec] sm:$0xff]
      %v260 = vld [vmem:[%s169 + $0x1f4] sm:$0xf]
      %v261 = vld [vmem:[%s169 + $0x1f8] sm:$0xff]
      %v262 = vld [vmem:[%s169 + $0x200] sm:$0xf]
      %v263 = vld [vmem:[%s169 + $0x204] sm:$0xff]
      %v264 = vld [vmem:[%s169 + $0x20c] sm:$0xf]
      %v265 = vld [vmem:[%s169 + $0x210] sm:$0xff]
      %v266 = vld [vmem:[%s169 + $0x218] sm:$0xf]
      %v267 = vld [vmem:[%s169 + $0x21c] sm:$0xff]
      %v268 = vld [vmem:[%s169 + $0x224] sm:$0xf]
      %v269 = vld [vmem:[%s169 + $0x228] sm:$0xff]
      %v270 = vld [vmem:[%s169 + $0x230] sm:$0xf]
      %v271 = vld [vmem:[%s169 + $0x234] sm:$0xff]
      %v272 = vld [vmem:[%s169 + $0x23c] sm:$0xf]
      %v273 = vld [vmem:[%s169 + $0x240] sm:$0xff]
      %v274 = vld [vmem:[%s169 + $0x248] sm:$0xf]
      %v275 = vld [vmem:[%s169 + $0x24c] sm:$0xff]
      %v276 = vld [vmem:[%s169 + $0x254] sm:$0xf]
      %v277 = vld [vmem:[%s169 + $0x258] sm:$0xff]
      %v278 = vld [vmem:[%s169 + $0x260] sm:$0xf]
      %v279 = vld [vmem:[%s169 + $0x264] sm:$0xff]
      %v280 = vld [vmem:[%s169 + $0x26c] sm:$0xf]
      %v281 = vld [vmem:[%s169 + $0x270] sm:$0xff]
      %v282 = vld [vmem:[%s169 + $0x278] sm:$0xf]
      %v283 = vld [vmem:[%s169 + $0x27c] sm:$0xff]
      %v284 = vld [vmem:[%s169 + $0x284] sm:$0xf]
      %v285 = vld [vmem:[%s169 + $0x288] sm:$0xff]
      %v286 = vld [vmem:[%s169 + $0x290] sm:$0xf]
      %v287 = vld [vmem:[%s169 + $0x294] sm:$0xff]
      %v288 = vld [vmem:[%s169 + $0x29c] sm:$0xf]
      %v289 = vld [vmem:[%s169 + $0x2a0] sm:$0xff]
      %v290 = vld [vmem:[%s169 + $0x2a8] sm:$0xf]
      %v291 = vld [vmem:[%s169 + $0x2ac] sm:$0xff]
      %v292 = vld [vmem:[%s169 + $0x2b4] sm:$0xf]
      %v293 = vld [vmem:[%s169 + $0x2b8] sm:$0xff]
      %v294 = vld [vmem:[%s169 + $0x2c0] sm:$0xf]
      %v295 = vld [vmem:[%s169 + $0x2c4] sm:$0xff]
      %v296 = vld [vmem:[%s169 + $0x2cc] sm:$0xf]
      %v297 = vld [vmem:[%s169 + $0x2d0] sm:$0xff]
      %v298 = vld [vmem:[%s169 + $0x2d8] sm:$0xf]
      %v299 = vld [vmem:[%s169 + $0x2dc] sm:$0xff]
      %v300 = vld [vmem:[%s169 + $0x2e4] sm:$0xf]
      %v301 = vld [vmem:[%s169 + $0x2e8] sm:$0xff]
      %v302 = vld [vmem:[%s169 + $0x2f0] sm:$0xf]
      %v303 = vld [vmem:[%s169 + $0x2f4] sm:$0xff]
      %v304 = vld [vmem:[%s169 + $0x2fc] sm:$0xf]
      %v305 = vld [vmem:[%s169 + $0x300] sm:$0xff]
      %v306 = vld [vmem:[%s169 + $0x308] sm:$0xf]
      %v307 = vld [vmem:[%s169 + $0x30c] sm:$0xff]
      %v308 = vld [vmem:[%s169 + $0x314] sm:$0xf]
      %v309 = vld [vmem:[%s169 + $0x318] sm:$0xff]
      %v310 = vld [vmem:[%s169 + $0x320] sm:$0xf]
      %v311 = vld [vmem:[%s169 + $0x324] sm:$0xff]
      %v312 = vld [vmem:[%s169 + $0x32c] sm:$0xf]
      %v313 = vld [vmem:[%s169 + $0x330] sm:$0xff]
      %v314 = vld [vmem:[%s169 + $0x338] sm:$0xf]
      %v315 = vld [vmem:[%s169 + $0x33c] sm:$0xff]
      %v316 = vld [vmem:[%s169 + $0x344] sm:$0xf]
      %v317 = vld [vmem:[%s169 + $0x348] sm:$0xff]
      %v318 = vld [vmem:[%s169 + $0x350] sm:$0xf]
      %v319 = vld [vmem:[%s169 + $0x354] sm:$0xff]
      %v320 = vld [vmem:[%s169 + $0x35c] sm:$0xf]
      %v321 = vld [vmem:[%s169 + $0x360] sm:$0xff]
      %v322 = vld [vmem:[%s169 + $0x368] sm:$0xf]
      %v323 = vld [vmem:[%s169 + $0x36c] sm:$0xff]
      %v324 = vld [vmem:[%s169 + $0x374] sm:$0xf]
      %v325 = vld [vmem:[%s169 + $0x378] sm:$0xff]
      %v326 = vld [vmem:[%s169 + $0x380] sm:$0xf]
      %v327 = vld [vmem:[%s169 + $0x384] sm:$0xff]
      %v328 = vld [vmem:[%s169 + $0x38c] sm:$0xf]
      %v329 = vld [vmem:[%s169 + $0x390] sm:$0xff]
      %v330 = vld [vmem:[%s169 + $0x398] sm:$0xf]
      %v331 = vld [vmem:[%s169 + $0x39c] sm:$0xff]
      %v332 = vld [vmem:[%s169 + $0x3a4] sm:$0xf]
      %v333 = vld [vmem:[%s169 + $0x3a8] sm:$0xff]
      %v334 = vld [vmem:[%s169 + $0x3b0] sm:$0xf]
      %v335 = vld [vmem:[%s169 + $0x3b4] sm:$0xff]
      %v336 = vld [vmem:[%s169 + $0x3bc] sm:$0xf]
      %v337 = vld [vmem:[%s169 + $0x3c0] sm:$0xff]
      %v338 = vld [vmem:[%s169 + $0x3c8] sm:$0xf]
      %v339 = vld [vmem:[%s169 + $0x3cc] sm:$0xff]
      %v340 = vld [vmem:[%s169 + $0x3d4] sm:$0xf]
      %v341 = vld [vmem:[%s169 + $0x3d8] sm:$0xff]
      %v342 = vld [vmem:[%s169 + $0x3e0] sm:$0xf]
      %v343 = vld [vmem:[%s169 + $0x3e4] sm:$0xff]
      %v344 = vld [vmem:[%s169 + $0x3ec] sm:$0xf]
      %v345 = vld [vmem:[%s169 + $0x3f0] sm:$0xff]
      %v346 = vld [vmem:[%s169 + $0x3f8] sm:$0xf]
      %v347 = vld [vmem:[%s169 + $0x3fc] sm:$0xff]
      %v348 = vld [vmem:[%s169 + $0x404] sm:$0xf]
      %v349 = vld [vmem:[%s169 + $0x408] sm:$0xff]
      %v350 = vld [vmem:[%s169 + $0x410] sm:$0xf]
      %v351 = vld [vmem:[%s169 + $0x414] sm:$0xff]
      %v352 = vld [vmem:[%s169 + $0x41c] sm:$0xf]
      %v353 = vld [vmem:[%s169 + $0x420] sm:$0xff]
      %v354 = vld [vmem:[%s169 + $0x428] sm:$0xf]
      %v355 = vld [vmem:[%s169 + $0x42c] sm:$0xff]
      %v356 = vld [vmem:[%s169 + $0x434] sm:$0xf]
      %v357 = vld [vmem:[%s169 + $0x438] sm:$0xff]
      %v358 = vld [vmem:[%s169 + $0x440] sm:$0xf]
      %v359 = vld [vmem:[%s169 + $0x444] sm:$0xff]
      %v360 = vld [vmem:[%s169 + $0x44c] sm:$0xf]
      %v361 = vld [vmem:[%s169 + $0x450] sm:$0xff]
      %v362 = vld [vmem:[%s169 + $0x458] sm:$0xf]
      %v363 = vld [vmem:[%s169 + $0x45c] sm:$0xff]
      %v364 = vld [vmem:[%s169 + $0x464] sm:$0xf]
      %v365 = vld [vmem:[%s169 + $0x468] sm:$0xff]
      %v366 = vld [vmem:[%s169 + $0x470] sm:$0xf]
      %v367 = vld [vmem:[%s169 + $0x474] sm:$0xff]
      %v368 = vld [vmem:[%s169 + $0x47c] sm:$0xf]
      %v369 = vld [vmem:[%s169 + $0x480] sm:$0xff]
      %v370 = vld [vmem:[%s169 + $0x488] sm:$0xf]
      %v371 = vld [vmem:[%s169 + $0x48c] sm:$0xff]
      %v372 = vld [vmem:[%s169 + $0x494] sm:$0xf]
      %v373 = vld [vmem:[%s169 + $0x498] sm:$0xff]
      %v374 = vld [vmem:[%s169 + $0x4a0] sm:$0xf]
      %v375 = vld [vmem:[%s169 + $0x4a4] sm:$0xff]
      %v376 = vld [vmem:[%s169 + $0x4ac] sm:$0xf]
      %v377 = vld [vmem:[%s169 + $0x4b0] sm:$0xff]
      %v378 = vld [vmem:[%s169 + $0x4b8] sm:$0xf]
      %v379 = vld [vmem:[%s169 + $0x4bc] sm:$0xff]
      %v380 = vld [vmem:[%s169 + $0x4c4] sm:$0xf]
      %v381 = vld [vmem:[%s169 + $0x4c8] sm:$0xff]
      %v382 = vld [vmem:[%s169 + $0x4d0] sm:$0xf]
      %v383 = vld [vmem:[%s169 + $0x4d4] sm:$0xff]
      %v384 = vld [vmem:[%s169 + $0x4dc] sm:$0xf]
      %v385 = vld [vmem:[%s169 + $0x4e0] sm:$0xff]
      %v386 = vld [vmem:[%s169 + $0x4e8] sm:$0xf]
      %v387 = vld [vmem:[%s169 + $0x4ec] sm:$0xff]
      %v388 = vld [vmem:[%s169 + $0x4f4] sm:$0xf]
      %v389 = vld [vmem:[%s169 + $0x4f8] sm:$0xff]
      %v390 = vld [vmem:[%s169 + $0x500] sm:$0xf]
      %v391 = vld [vmem:[%s169 + $0x504] sm:$0xff]
      %v392 = vld [vmem:[%s169 + $0x50c] sm:$0xf]
      %v393 = vld [vmem:[%s169 + $0x510] sm:$0xff]
      %v394 = vld [vmem:[%s169 + $0x518] sm:$0xf]
      %v395 = vld [vmem:[%s169 + $0x51c] sm:$0xff]
      %v396 = vld [vmem:[%s169 + $0x524] sm:$0xf]
      %v397 = vld [vmem:[%s169 + $0x528] sm:$0xff]
      %v398 = vld [vmem:[%s169 + $0x530] sm:$0xf]
      %v399 = vld [vmem:[%s169 + $0x534] sm:$0xff]
      %v400 = vld [vmem:[%s169 + $0x53c] sm:$0xf]
      %v401 = vld [vmem:[%s169 + $0x540] sm:$0xff]
      %v402 = vld [vmem:[%s169 + $0x548] sm:$0xf]
      %v403 = vld [vmem:[%s169 + $0x54c] sm:$0xff]
      %v404 = vld [vmem:[%s169 + $0x554] sm:$0xf]
      %v405 = vld [vmem:[%s169 + $0x558] sm:$0xff]
      %v406 = vld [vmem:[%s169 + $0x560] sm:$0xf]
      %v407 = vld [vmem:[%s169 + $0x564] sm:$0xff]
      %v408 = vld [vmem:[%s169 + $0x56c] sm:$0xf]
      %v409 = vld [vmem:[%s169 + $0x570] sm:$0xff]
      %v410 = vld [vmem:[%s169 + $0x578] sm:$0xf]
      %v411 = vld [vmem:[%s169 + $0x57c] sm:$0xff]
      %v412 = vld [vmem:[%s169 + $0x584] sm:$0xf]
      %v413 = vld [vmem:[%s169 + $0x588] sm:$0xff]
      %v414 = vld [vmem:[%s169 + $0x590] sm:$0xf]
      %v415 = vld [vmem:[%s169 + $0x594] sm:$0xff]
      %v416 = vld [vmem:[%s169 + $0x59c] sm:$0xf]
      %v417 = vld [vmem:[%s169 + $0x5a0] sm:$0xff]
      %v418 = vld [vmem:[%s169 + $0x5a8] sm:$0xf]
      %v419 = vld [vmem:[%s169 + $0x5ac] sm:$0xff]
      %v420 = vld [vmem:[%s169 + $0x5b4] sm:$0xf]
      %v421 = vld [vmem:[%s169 + $0x5b8] sm:$0xff]
      %v422 = vld [vmem:[%s169 + $0x5c0] sm:$0xf]
      %v423 = vld [vmem:[%s169 + $0x5c4] sm:$0xff]
      %v424 = vld [vmem:[%s169 + $0x5cc] sm:$0xf]
      %v425 = vld [vmem:[%s169 + $0x5d0] sm:$0xff]
      %v426 = vld [vmem:[%s169 + $0x5d8] sm:$0xf]
      %v427 = vld [vmem:[%s169 + $0x5dc] sm:$0xff]
      %v428 = vld [vmem:[%s169 + $0x5e4] sm:$0xf]
      %v429 = vld [vmem:[%s169 + $0x5e8] sm:$0xff]
      %v430 = vld [vmem:[%s169 + $0x5f0] sm:$0xf]
      %v431 = vld [vmem:[%s169 + $0x5f4] sm:$0xff]
      %v432 = vld [vmem:[%s169 + $0x5fc] sm:$0xf]
      %v433 = vld [vmem:[%s1] sm:$0xf]
      %v434 = vld [vmem:[%s1 + $0x4] sm:$0xf]
      %v435 = vld [vmem:[%s1 + $0x8] sm:$0xf]
      %v436 = vld [vmem:[%s1 + $0xc] sm:$0xf]
      %v437 = vld [vmem:[%s1 + $0x10] sm:$0xf]
      %v438 = vld [vmem:[%s1 + $0x14] sm:$0xf]
      %v439 = vld [vmem:[%s1 + $0x18] sm:$0xf]
      %v440 = vld [vmem:[%s1 + $0x1c] sm:$0xf]
      %v441 = vld [vmem:[%s1 + $0x20] sm:$0xf]
      %v442 = vld [vmem:[%s1 + $0x24] sm:$0xf]
      %v443 = vld [vmem:[%s1 + $0x28] sm:$0xf]
      %v444 = vld [vmem:[%s1 + $0x2c] sm:$0xf]
      %v445 = vld [vmem:[%s1 + $0x30] sm:$0xf]
      %v446 = vld [vmem:[%s1 + $0x34] sm:$0xf]
      %v447 = vld [vmem:[%s1 + $0x38] sm:$0xf]
      %v448 = vld [vmem:[%s1 + $0x3c] sm:$0xf]
      %v449 = vld [vmem:[%s1 + $0x40] sm:$0xf]
      %v450 = vld [vmem:[%s1 + $0x44] sm:$0xf]
      %v451 = vld [vmem:[%s1 + $0x48] sm:$0xf]
      %v452 = vld [vmem:[%s1 + $0x4c] sm:$0xf]
      %v453 = vld [vmem:[%s1 + $0x50] sm:$0xf]
      %v454 = vld [vmem:[%s1 + $0x54] sm:$0xf]
      %v455 = vld [vmem:[%s1 + $0x58] sm:$0xf]
      %v456 = vld [vmem:[%s1 + $0x5c] sm:$0xf]
      %v457 = vld [vmem:[%s1 + $0x60] sm:$0xf]
      %v458 = vld [vmem:[%s1 + $0x64] sm:$0xf]
      %v459 = vld [vmem:[%s1 + $0x68] sm:$0xf]
      %v460 = vld [vmem:[%s1 + $0x6c] sm:$0xf]
      %v461 = vld [vmem:[%s1 + $0x70] sm:$0xf]
      %v462 = vld [vmem:[%s1 + $0x74] sm:$0xf]
      %v463 = vld [vmem:[%s1 + $0x78] sm:$0xf]
      %v464 = vld [vmem:[%s1 + $0x7c] sm:$0xf]
      %v465 = vld [vmem:[%s1 + $0x80] sm:$0xf]
      %v466 = vld [vmem:[%s1 + $0x84] sm:$0xf]
      %v467 = vld [vmem:[%s1 + $0x88] sm:$0xf]
      %v468 = vld [vmem:[%s1 + $0x8c] sm:$0xf]
      %v469 = vld [vmem:[%s1 + $0x90] sm:$0xf]
      %v470 = vld [vmem:[%s1 + $0x94] sm:$0xf]
      %v471 = vld [vmem:[%s1 + $0x98] sm:$0xf]
      %v472 = vld [vmem:[%s1 + $0x9c] sm:$0xf]
      %v473 = vld [vmem:[%s1 + $0xa0] sm:$0xf]
      %v474 = vld [vmem:[%s1 + $0xa4] sm:$0xf]
      %v475 = vld [vmem:[%s1 + $0xa8] sm:$0xf]
      %v476 = vld [vmem:[%s1 + $0xac] sm:$0xf]
      %v477 = vld [vmem:[%s1 + $0xb0] sm:$0xf]
      %v478 = vld [vmem:[%s1 + $0xb4] sm:$0xf]
      %v479 = vld [vmem:[%s1 + $0xb8] sm:$0xf]
      %v480 = vld [vmem:[%s1 + $0xbc] sm:$0xf]
      %v481 = vld [vmem:[%s2] sm:$0x1]
      %v483 = vperm.slane %v481, 0
      %v741 = vunpack.c.l.b16 %v177
      %v742 = vunpack.c.h.b16 %v177
      %v743 = vunpack.c.l.b16 %v178
      %v744 = vunpack.c.l.b16 %v179
      %v745 = vunpack.c.h.b16 %v179
      %v746 = vunpack.c.l.b16 %v180
      %v747 = vunpack.c.l.b16 %v181
      %v748 = vunpack.c.h.b16 %v181
      %v749 = vunpack.c.l.b16 %v182
      %v750 = vunpack.c.l.b16 %v183
      %v751 = vunpack.c.h.b16 %v183
      %v752 = vunpack.c.l.b16 %v184
      %v753 = vunpack.c.l.b16 %v185
      %v754 = vunpack.c.h.b16 %v185
      %v755 = vunpack.c.l.b16 %v186
      %v756 = vunpack.c.l.b16 %v187
      %v757 = vunpack.c.h.b16 %v187
      %v758 = vunpack.c.l.b16 %v188
      %v759 = vunpack.c.l.b16 %v189
      %v760 = vunpack.c.h.b16 %v189
      %v761 = vunpack.c.l.b16 %v190
      %v762 = vunpack.c.l.b16 %v191
      %v763 = vunpack.c.h.b16 %v191
      %v764 = vunpack.c.l.b16 %v192
      %v765 = vunpack.c.l.b16 %v193
      %v766 = vunpack.c.h.b16 %v193
      %v767 = vunpack.c.l.b16 %v194
      %v768 = vunpack.c.l.b16 %v195
      %v769 = vunpack.c.h.b16 %v195
      %v770 = vunpack.c.l.b16 %v196
      %v771 = vunpack.c.l.b16 %v197
      %v772 = vunpack.c.h.b16 %v197
      %v773 = vunpack.c.l.b16 %v198
      %v774 = vunpack.c.l.b16 %v199
      %v775 = vunpack.c.h.b16 %v199
      %v776 = vunpack.c.l.b16 %v200
      %v777 = vunpack.c.l.b16 %v201
      %v778 = vunpack.c.h.b16 %v201
      %v779 = vunpack.c.l.b16 %v202
      %v780 = vunpack.c.l.b16 %v203
      %v781 = vunpack.c.h.b16 %v203
      %v782 = vunpack.c.l.b16 %v204
      %v783 = vunpack.c.l.b16 %v205
      %v784 = vunpack.c.h.b16 %v205
      %v785 = vunpack.c.l.b16 %v206
      %v786 = vunpack.c.l.b16 %v207
      %v787 = vunpack.c.h.b16 %v207
      %v788 = vunpack.c.l.b16 %v208
      %v789 = vunpack.c.l.b16 %v209
      %v790 = vunpack.c.h.b16 %v209
      %v791 = vunpack.c.l.b16 %v210
      %v792 = vunpack.c.l.b16 %v211
      %v793 = vunpack.c.h.b16 %v211
      %v794 = vunpack.c.l.b16 %v212
      %v795 = vunpack.c.l.b16 %v213
      %v796 = vunpack.c.h.b16 %v213
      %v797 = vunpack.c.l.b16 %v214
      %v798 = vunpack.c.l.b16 %v215
      %v799 = vunpack.c.h.b16 %v215
      %v800 = vunpack.c.l.b16 %v216
      %v801 = vunpack.c.l.b16 %v217
      %v802 = vunpack.c.h.b16 %v217
      %v803 = vunpack.c.l.b16 %v218
      %v804 = vunpack.c.l.b16 %v219
      %v805 = vunpack.c.h.b16 %v219
      %v806 = vunpack.c.l.b16 %v220
      %v807 = vunpack.c.l.b16 %v221
      %v808 = vunpack.c.h.b16 %v221
      %v809 = vunpack.c.l.b16 %v222
      %v810 = vunpack.c.l.b16 %v223
      %v811 = vunpack.c.h.b16 %v223
      %v812 = vunpack.c.l.b16 %v224
      %v813 = vunpack.c.l.b16 %v225
      %v814 = vunpack.c.h.b16 %v225
      %v815 = vunpack.c.l.b16 %v226
      %v816 = vunpack.c.l.b16 %v227
      %v817 = vunpack.c.h.b16 %v227
      %v818 = vunpack.c.l.b16 %v228
      %v819 = vunpack.c.l.b16 %v229
      %v820 = vunpack.c.h.b16 %v229
      %v821 = vunpack.c.l.b16 %v230
      %v822 = vunpack.c.l.b16 %v231
      %v823 = vunpack.c.h.b16 %v231
      %v824 = vunpack.c.l.b16 %v232
      %v825 = vunpack.c.l.b16 %v233
      %v826 = vunpack.c.h.b16 %v233
      %v827 = vunpack.c.l.b16 %v234
      %v828 = vunpack.c.l.b16 %v235
      %v829 = vunpack.c.h.b16 %v235
      %v830 = vunpack.c.l.b16 %v236
      %v831 = vunpack.c.l.b16 %v237
      %v832 = vunpack.c.h.b16 %v237
      %v833 = vunpack.c.l.b16 %v238
      %v834 = vunpack.c.l.b16 %v239
      %v835 = vunpack.c.h.b16 %v239
      %v836 = vunpack.c.l.b16 %v240
      %v837 = vunpack.c.l.b16 %v241
      %v838 = vunpack.c.h.b16 %v241
      %v839 = vunpack.c.l.b16 %v242
      %v840 = vunpack.c.l.b16 %v243
      %v841 = vunpack.c.h.b16 %v243
      %v842 = vunpack.c.l.b16 %v244
      %v843 = vunpack.c.l.b16 %v245
      %v844 = vunpack.c.h.b16 %v245
      %v845 = vunpack.c.l.b16 %v246
      %v846 = vunpack.c.l.b16 %v247
      %v847 = vunpack.c.h.b16 %v247
      %v848 = vunpack.c.l.b16 %v248
      %v849 = vunpack.c.l.b16 %v249
      %v850 = vunpack.c.h.b16 %v249
      %v851 = vunpack.c.l.b16 %v250
      %v852 = vunpack.c.l.b16 %v251
      %v853 = vunpack.c.h.b16 %v251
      %v854 = vunpack.c.l.b16 %v252
      %v855 = vunpack.c.l.b16 %v253
      %v856 = vunpack.c.h.b16 %v253
      %v857 = vunpack.c.l.b16 %v254
      %v858 = vunpack.c.l.b16 %v255
      %v859 = vunpack.c.h.b16 %v255
      %v860 = vunpack.c.l.b16 %v256
      %v861 = vunpack.c.l.b16 %v257
      %v862 = vunpack.c.h.b16 %v257
      %v863 = vunpack.c.l.b16 %v258
      %v864 = vunpack.c.l.b16 %v259
      %v865 = vunpack.c.h.b16 %v259
      %v866 = vunpack.c.l.b16 %v260
      %v867 = vunpack.c.l.b16 %v261
      %v868 = vunpack.c.h.b16 %v261
      %v869 = vunpack.c.l.b16 %v262
      %v870 = vunpack.c.l.b16 %v263
      %v871 = vunpack.c.h.b16 %v263
      %v872 = vunpack.c.l.b16 %v264
      %v873 = vunpack.c.l.b16 %v265
      %v874 = vunpack.c.h.b16 %v265
      %v875 = vunpack.c.l.b16 %v266
      %v876 = vunpack.c.l.b16 %v267
      %v877 = vunpack.c.h.b16 %v267
      %v878 = vunpack.c.l.b16 %v268
      %v879 = vunpack.c.l.b16 %v269
      %v880 = vunpack.c.h.b16 %v269
      %v881 = vunpack.c.l.b16 %v270
      %v882 = vunpack.c.l.b16 %v271
      %v883 = vunpack.c.h.b16 %v271
      %v884 = vunpack.c.l.b16 %v272
      %v885 = vunpack.c.l.b16 %v273
      %v886 = vunpack.c.h.b16 %v273
      %v887 = vunpack.c.l.b16 %v274
      %v888 = vunpack.c.l.b16 %v275
      %v889 = vunpack.c.h.b16 %v275
      %v890 = vunpack.c.l.b16 %v276
      %v891 = vunpack.c.l.b16 %v277
      %v892 = vunpack.c.h.b16 %v277
      %v893 = vunpack.c.l.b16 %v278
      %v894 = vunpack.c.l.b16 %v279
      %v895 = vunpack.c.h.b16 %v279
      %v896 = vunpack.c.l.b16 %v280
      %v897 = vunpack.c.l.b16 %v281
      %v898 = vunpack.c.h.b16 %v281
      %v899 = vunpack.c.l.b16 %v282
      %v900 = vunpack.c.l.b16 %v283
      %v901 = vunpack.c.h.b16 %v283
      %v902 = vunpack.c.l.b16 %v284
      %v903 = vunpack.c.l.b16 %v285
      %v904 = vunpack.c.h.b16 %v285
      %v905 = vunpack.c.l.b16 %v286
      %v906 = vunpack.c.l.b16 %v287
      %v907 = vunpack.c.h.b16 %v287
      %v908 = vunpack.c.l.b16 %v288
      %v909 = vunpack.c.l.b16 %v289
      %v910 = vunpack.c.h.b16 %v289
      %v911 = vunpack.c.l.b16 %v290
      %v912 = vunpack.c.l.b16 %v291
      %v913 = vunpack.c.h.b16 %v291
      %v914 = vunpack.c.l.b16 %v292
      %v915 = vunpack.c.l.b16 %v293
      %v916 = vunpack.c.h.b16 %v293
      %v917 = vunpack.c.l.b16 %v294
      %v918 = vunpack.c.l.b16 %v295
      %v919 = vunpack.c.h.b16 %v295
      %v920 = vunpack.c.l.b16 %v296
      %v921 = vunpack.c.l.b16 %v297
      %v922 = vunpack.c.h.b16 %v297
      %v923 = vunpack.c.l.b16 %v298
      %v924 = vunpack.c.l.b16 %v299
      %v925 = vunpack.c.h.b16 %v299
      %v926 = vunpack.c.l.b16 %v300
      %v927 = vunpack.c.l.b16 %v301
      %v928 = vunpack.c.h.b16 %v301
      %v929 = vunpack.c.l.b16 %v302
      %v930 = vunpack.c.l.b16 %v303
      %v931 = vunpack.c.h.b16 %v303
      %v932 = vunpack.c.l.b16 %v304
      %v933 = vunpack.c.l.b16 %v305
      %v934 = vunpack.c.h.b16 %v305
      %v935 = vunpack.c.l.b16 %v306
      %v936 = vunpack.c.l.b16 %v307
      %v937 = vunpack.c.h.b16 %v307
      %v938 = vunpack.c.l.b16 %v308
      %v939 = vunpack.c.l.b16 %v309
      %v940 = vunpack.c.h.b16 %v309
      %v941 = vunpack.c.l.b16 %v310
      %v942 = vunpack.c.l.b16 %v311
      %v943 = vunpack.c.h.b16 %v311
      %v944 = vunpack.c.l.b16 %v312
      %v945 = vunpack.c.l.b16 %v313
      %v946 = vunpack.c.h.b16 %v313
      %v947 = vunpack.c.l.b16 %v314
      %v948 = vunpack.c.l.b16 %v315
      %v949 = vunpack.c.h.b16 %v315
      %v950 = vunpack.c.l.b16 %v316
      %v951 = vunpack.c.l.b16 %v317
      %v952 = vunpack.c.h.b16 %v317
      %v953 = vunpack.c.l.b16 %v318
      %v954 = vunpack.c.l.b16 %v319
      %v955 = vunpack.c.h.b16 %v319
      %v956 = vunpack.c.l.b16 %v320
      %v957 = vunpack.c.l.b16 %v321
      %v958 = vunpack.c.h.b16 %v321
      %v959 = vunpack.c.l.b16 %v322
      %v960 = vunpack.c.l.b16 %v323
      %v961 = vunpack.c.h.b16 %v323
      %v962 = vunpack.c.l.b16 %v324
      %v963 = vunpack.c.l.b16 %v325
      %v964 = vunpack.c.h.b16 %v325
      %v965 = vunpack.c.l.b16 %v326
      %v966 = vunpack.c.l.b16 %v327
      %v967 = vunpack.c.h.b16 %v327
      %v968 = vunpack.c.l.b16 %v328
      %v969 = vunpack.c.l.b16 %v329
      %v970 = vunpack.c.h.b16 %v329
      %v971 = vunpack.c.l.b16 %v330
      %v972 = vunpack.c.l.b16 %v331
      %v973 = vunpack.c.h.b16 %v331
      %v974 = vunpack.c.l.b16 %v332
      %v975 = vunpack.c.l.b16 %v333
      %v976 = vunpack.c.h.b16 %v333
      %v977 = vunpack.c.l.b16 %v334
      %v978 = vunpack.c.l.b16 %v335
      %v979 = vunpack.c.h.b16 %v335
      %v980 = vunpack.c.l.b16 %v336
      %v981 = vunpack.c.l.b16 %v337
      %v982 = vunpack.c.h.b16 %v337
      %v983 = vunpack.c.l.b16 %v338
      %v984 = vunpack.c.l.b16 %v339
      %v985 = vunpack.c.h.b16 %v339
      %v986 = vunpack.c.l.b16 %v340
      %v987 = vunpack.c.l.b16 %v341
      %v988 = vunpack.c.h.b16 %v341
      %v989 = vunpack.c.l.b16 %v342
      %v990 = vunpack.c.l.b16 %v343
      %v991 = vunpack.c.h.b16 %v343
      %v992 = vunpack.c.l.b16 %v344
      %v993 = vunpack.c.l.b16 %v345
      %v994 = vunpack.c.h.b16 %v345
      %v995 = vunpack.c.l.b16 %v346
      %v996 = vunpack.c.l.b16 %v347
      %v997 = vunpack.c.h.b16 %v347
      %v998 = vunpack.c.l.b16 %v348
      %v999 = vunpack.c.l.b16 %v349
      %v1000 = vunpack.c.h.b16 %v349
      %v1001 = vunpack.c.l.b16 %v350
      %v1002 = vunpack.c.l.b16 %v351
      %v1003 = vunpack.c.h.b16 %v351
      %v1004 = vunpack.c.l.b16 %v352
      %v1005 = vunpack.c.l.b16 %v353
      %v1006 = vunpack.c.h.b16 %v353
      %v1007 = vunpack.c.l.b16 %v354
      %v1008 = vunpack.c.l.b16 %v355
      %v1009 = vunpack.c.h.b16 %v355
      %v1010 = vunpack.c.l.b16 %v356
      %v1011 = vunpack.c.l.b16 %v357
      %v1012 = vunpack.c.h.b16 %v357
      %v1013 = vunpack.c.l.b16 %v358
      %v1014 = vunpack.c.l.b16 %v359
      %v1015 = vunpack.c.h.b16 %v359
      %v1016 = vunpack.c.l.b16 %v360
      %v1017 = vunpack.c.l.b16 %v361
      %v1018 = vunpack.c.h.b16 %v361
      %v1019 = vunpack.c.l.b16 %v362
      %v1020 = vunpack.c.l.b16 %v363
      %v1021 = vunpack.c.h.b16 %v363
      %v1022 = vunpack.c.l.b16 %v364
      %v1023 = vunpack.c.l.b16 %v365
      %v1024 = vunpack.c.h.b16 %v365
      %v1025 = vunpack.c.l.b16 %v366
      %v1026 = vunpack.c.l.b16 %v367
      %v1027 = vunpack.c.h.b16 %v367
      %v1028 = vunpack.c.l.b16 %v368
      %v1029 = vunpack.c.l.b16 %v369
      %v1030 = vunpack.c.h.b16 %v369
      %v1031 = vunpack.c.l.b16 %v370
      %v1032 = vunpack.c.l.b16 %v371
      %v1033 = vunpack.c.h.b16 %v371
      %v1034 = vunpack.c.l.b16 %v372
      %v1035 = vunpack.c.l.b16 %v373
      %v1036 = vunpack.c.h.b16 %v373
      %v1037 = vunpack.c.l.b16 %v374
      %v1038 = vunpack.c.l.b16 %v375
      %v1039 = vunpack.c.h.b16 %v375
      %v1040 = vunpack.c.l.b16 %v376
      %v1041 = vunpack.c.l.b16 %v377
      %v1042 = vunpack.c.h.b16 %v377
      %v1043 = vunpack.c.l.b16 %v378
      %v1044 = vunpack.c.l.b16 %v379
      %v1045 = vunpack.c.h.b16 %v379
      %v1046 = vunpack.c.l.b16 %v380
      %v1047 = vunpack.c.l.b16 %v381
      %v1048 = vunpack.c.h.b16 %v381
      %v1049 = vunpack.c.l.b16 %v382
      %v1050 = vunpack.c.l.b16 %v383
      %v1051 = vunpack.c.h.b16 %v383
      %v1052 = vunpack.c.l.b16 %v384
      %v1053 = vunpack.c.l.b16 %v385
      %v1054 = vunpack.c.h.b16 %v385
      %v1055 = vunpack.c.l.b16 %v386
      %v1056 = vunpack.c.l.b16 %v387
      %v1057 = vunpack.c.h.b16 %v387
      %v1058 = vunpack.c.l.b16 %v388
      %v1059 = vunpack.c.l.b16 %v389
      %v1060 = vunpack.c.h.b16 %v389
      %v1061 = vunpack.c.l.b16 %v390
      %v1062 = vunpack.c.l.b16 %v391
      %v1063 = vunpack.c.h.b16 %v391
      %v1064 = vunpack.c.l.b16 %v392
      %v1065 = vunpack.c.l.b16 %v393
      %v1066 = vunpack.c.h.b16 %v393
      %v1067 = vunpack.c.l.b16 %v394
      %v1068 = vunpack.c.l.b16 %v395
      %v1069 = vunpack.c.h.b16 %v395
      %v1070 = vunpack.c.l.b16 %v396
      %v1071 = vunpack.c.l.b16 %v397
      %v1072 = vunpack.c.h.b16 %v397
      %v1073 = vunpack.c.l.b16 %v398
      %v1074 = vunpack.c.l.b16 %v399
      %v1075 = vunpack.c.h.b16 %v399
      %v1076 = vunpack.c.l.b16 %v400
      %v1077 = vunpack.c.l.b16 %v401
      %v1078 = vunpack.c.h.b16 %v401
      %v1079 = vunpack.c.l.b16 %v402
      %v1080 = vunpack.c.l.b16 %v403
      %v1081 = vunpack.c.h.b16 %v403
      %v1082 = vunpack.c.l.b16 %v404
      %v1083 = vunpack.c.l.b16 %v405
      %v1084 = vunpack.c.h.b16 %v405
      %v1085 = vunpack.c.l.b16 %v406
      %v1086 = vunpack.c.l.b16 %v407
      %v1087 = vunpack.c.h.b16 %v407
      %v1088 = vunpack.c.l.b16 %v408
      %v1089 = vunpack.c.l.b16 %v409
      %v1090 = vunpack.c.h.b16 %v409
      %v1091 = vunpack.c.l.b16 %v410
      %v1092 = vunpack.c.l.b16 %v411
      %v1093 = vunpack.c.h.b16 %v411
      %v1094 = vunpack.c.l.b16 %v412
      %v1095 = vunpack.c.l.b16 %v413
      %v1096 = vunpack.c.h.b16 %v413
      %v1097 = vunpack.c.l.b16 %v414
      %v1098 = vunpack.c.l.b16 %v415
      %v1099 = vunpack.c.h.b16 %v415
      %v1100 = vunpack.c.l.b16 %v416
      %v1101 = vunpack.c.l.b16 %v417
      %v1102 = vunpack.c.h.b16 %v417
      %v1103 = vunpack.c.l.b16 %v418
      %v1104 = vunpack.c.l.b16 %v419
      %v1105 = vunpack.c.h.b16 %v419
      %v1106 = vunpack.c.l.b16 %v420
      %v1107 = vunpack.c.l.b16 %v421
      %v1108 = vunpack.c.h.b16 %v421
      %v1109 = vunpack.c.l.b16 %v422
      %v1110 = vunpack.c.l.b16 %v423
      %v1111 = vunpack.c.h.b16 %v423
      %v1112 = vunpack.c.l.b16 %v424
      %v1113 = vunpack.c.l.b16 %v425
      %v1114 = vunpack.c.h.b16 %v425
      %v1115 = vunpack.c.l.b16 %v426
      %v1116 = vunpack.c.l.b16 %v427
      %v1117 = vunpack.c.h.b16 %v427
      %v1118 = vunpack.c.l.b16 %v428
      %v1119 = vunpack.c.l.b16 %v429
      %v1120 = vunpack.c.h.b16 %v429
      %v1121 = vunpack.c.l.b16 %v430
      %v1122 = vunpack.c.l.b16 %v431
      %v1123 = vunpack.c.h.b16 %v431
      %v1124 = vunpack.c.l.b16 %v432
      %v1125 = vpack.c.b16 %v744, %v741
      %v1126 = vpack.c.b16 %v745, %v742
      %v1127 = vpack.c.b16 %v746, %v743
      %v1128 = vpack.c.b16 %v750, %v747
      %v1129 = vpack.c.b16 %v751, %v748
      %v1130 = vpack.c.b16 %v752, %v749
      %v1131 = vpack.c.b16 %v756, %v753
      %v1132 = vpack.c.b16 %v757, %v754
      %v1133 = vpack.c.b16 %v758, %v755
      %v1134 = vpack.c.b16 %v762, %v759
      %v1135 = vpack.c.b16 %v763, %v760
      %v1136 = vpack.c.b16 %v764, %v761
      %v1137 = vpack.c.b16 %v768, %v765
      %v1138 = vpack.c.b16 %v769, %v766
      %v1139 = vpack.c.b16 %v770, %v767
      %v1140 = vpack.c.b16 %v774, %v771
      %v1141 = vpack.c.b16 %v775, %v772
      %v1142 = vpack.c.b16 %v776, %v773
      %v1143 = vpack.c.b16 %v780, %v777
      %v1144 = vpack.c.b16 %v781, %v778
      %v1145 = vpack.c.b16 %v782, %v779
      %v1146 = vpack.c.b16 %v786, %v783
      %v1147 = vpack.c.b16 %v787, %v784
      %v1148 = vpack.c.b16 %v788, %v785
      %v1149 = vpack.c.b16 %v792, %v789
      %v1150 = vpack.c.b16 %v793, %v790
      %v1151 = vpack.c.b16 %v794, %v791
      %v1152 = vpack.c.b16 %v798, %v795
      %v1153 = vpack.c.b16 %v799, %v796
      %v1154 = vpack.c.b16 %v800, %v797
      %v1155 = vpack.c.b16 %v804, %v801
      %v1156 = vpack.c.b16 %v805, %v802
      %v1157 = vpack.c.b16 %v806, %v803
      %v1158 = vpack.c.b16 %v810, %v807
      %v1159 = vpack.c.b16 %v811, %v808
      %v1160 = vpack.c.b16 %v812, %v809
      %v1161 = vpack.c.b16 %v816, %v813
      %v1162 = vpack.c.b16 %v817, %v814
      %v1163 = vpack.c.b16 %v818, %v815
      %v1164 = vpack.c.b16 %v822, %v819
      %v1165 = vpack.c.b16 %v823, %v820
      %v1166 = vpack.c.b16 %v824, %v821
      %v1167 = vpack.c.b16 %v828, %v825
      %v1168 = vpack.c.b16 %v829, %v826
      %v1169 = vpack.c.b16 %v830, %v827
      %v1170 = vpack.c.b16 %v834, %v831
      %v1171 = vpack.c.b16 %v835, %v832
      %v1172 = vpack.c.b16 %v836, %v833
      %v1173 = vpack.c.b16 %v840, %v837
      %v1174 = vpack.c.b16 %v841, %v838
      %v1175 = vpack.c.b16 %v842, %v839
      %v1176 = vpack.c.b16 %v846, %v843
      %v1177 = vpack.c.b16 %v847, %v844
      %v1178 = vpack.c.b16 %v848, %v845
      %v1179 = vpack.c.b16 %v852, %v849
      %v1180 = vpack.c.b16 %v853, %v850
      %v1181 = vpack.c.b16 %v854, %v851
      %v1182 = vpack.c.b16 %v858, %v855
      %v1183 = vpack.c.b16 %v859, %v856
      %v1184 = vpack.c.b16 %v860, %v857
      %v1185 = vpack.c.b16 %v864, %v861
      %v1186 = vpack.c.b16 %v865, %v862
      %v1187 = vpack.c.b16 %v866, %v863
      %v1188 = vpack.c.b16 %v870, %v867
      %v1189 = vpack.c.b16 %v871, %v868
      %v1190 = vpack.c.b16 %v872, %v869
      %v1191 = vpack.c.b16 %v876, %v873
      %v1192 = vpack.c.b16 %v877, %v874
      %v1193 = vpack.c.b16 %v878, %v875
      %v1194 = vpack.c.b16 %v882, %v879
      %v1195 = vpack.c.b16 %v883, %v880
      %v1196 = vpack.c.b16 %v884, %v881
      %v1197 = vpack.c.b16 %v888, %v885
      %v1198 = vpack.c.b16 %v889, %v886
      %v1199 = vpack.c.b16 %v890, %v887
      %v1200 = vpack.c.b16 %v894, %v891
      %v1201 = vpack.c.b16 %v895, %v892
      %v1202 = vpack.c.b16 %v896, %v893
      %v1203 = vpack.c.b16 %v900, %v897
      %v1204 = vpack.c.b16 %v901, %v898
      %v1205 = vpack.c.b16 %v902, %v899
      %v1206 = vpack.c.b16 %v906, %v903
      %v1207 = vpack.c.b16 %v907, %v904
      %v1208 = vpack.c.b16 %v908, %v905
      %v1209 = vpack.c.b16 %v912, %v909
      %v1210 = vpack.c.b16 %v913, %v910
      %v1211 = vpack.c.b16 %v914, %v911
      %v1212 = vpack.c.b16 %v918, %v915
      %v1213 = vpack.c.b16 %v919, %v916
      %v1214 = vpack.c.b16 %v920, %v917
      %v1215 = vpack.c.b16 %v924, %v921
      %v1216 = vpack.c.b16 %v925, %v922
      %v1217 = vpack.c.b16 %v926, %v923
      %v1218 = vpack.c.b16 %v930, %v927
      %v1219 = vpack.c.b16 %v931, %v928
      %v1220 = vpack.c.b16 %v932, %v929
      %v1221 = vpack.c.b16 %v936, %v933
      %v1222 = vpack.c.b16 %v937, %v934
      %v1223 = vpack.c.b16 %v938, %v935
      %v1224 = vpack.c.b16 %v942, %v939
      %v1225 = vpack.c.b16 %v943, %v940
      %v1226 = vpack.c.b16 %v944, %v941
      %v1227 = vpack.c.b16 %v948, %v945
      %v1228 = vpack.c.b16 %v949, %v946
      %v1229 = vpack.c.b16 %v950, %v947
      %v1230 = vpack.c.b16 %v954, %v951
      %v1231 = vpack.c.b16 %v955, %v952
      %v1232 = vpack.c.b16 %v956, %v953
      %v1233 = vpack.c.b16 %v960, %v957
      %v1234 = vpack.c.b16 %v961, %v958
      %v1235 = vpack.c.b16 %v962, %v959
      %v1236 = vpack.c.b16 %v966, %v963
      %v1237 = vpack.c.b16 %v967, %v964
      %v1238 = vpack.c.b16 %v968, %v965
      %v1239 = vpack.c.b16 %v972, %v969
      %v1240 = vpack.c.b16 %v973, %v970
      %v1241 = vpack.c.b16 %v974, %v971
      %v1242 = vpack.c.b16 %v978, %v975
      %v1243 = vpack.c.b16 %v979, %v976
      %v1244 = vpack.c.b16 %v980, %v977
      %v1245 = vpack.c.b16 %v984, %v981
      %v1246 = vpack.c.b16 %v985, %v982
      %v1247 = vpack.c.b16 %v986, %v983
      %v1248 = vpack.c.b16 %v990, %v987
      %v1249 = vpack.c.b16 %v991, %v988
      %v1250 = vpack.c.b16 %v992, %v989
      %v1251 = vpack.c.b16 %v996, %v993
      %v1252 = vpack.c.b16 %v997, %v994
      %v1253 = vpack.c.b16 %v998, %v995
      %v1254 = vpack.c.b16 %v1002, %v999
      %v1255 = vpack.c.b16 %v1003, %v1000
      %v1256 = vpack.c.b16 %v1004, %v1001
      %v1257 = vpack.c.b16 %v1008, %v1005
      %v1258 = vpack.c.b16 %v1009, %v1006
      %v1259 = vpack.c.b16 %v1010, %v1007
      %v1260 = vpack.c.b16 %v1014, %v1011
      %v1261 = vpack.c.b16 %v1015, %v1012
      %v1262 = vpack.c.b16 %v1016, %v1013
      %v1263 = vpack.c.b16 %v1020, %v1017
      %v1264 = vpack.c.b16 %v1021, %v1018
      %v1265 = vpack.c.b16 %v1022, %v1019
      %v1266 = vpack.c.b16 %v1026, %v1023
      %v1267 = vpack.c.b16 %v1027, %v1024
      %v1268 = vpack.c.b16 %v1028, %v1025
      %v1269 = vpack.c.b16 %v1032, %v1029
      %v1270 = vpack.c.b16 %v1033, %v1030
      %v1271 = vpack.c.b16 %v1034, %v1031
      %v1272 = vpack.c.b16 %v1038, %v1035
      %v1273 = vpack.c.b16 %v1039, %v1036
      %v1274 = vpack.c.b16 %v1040, %v1037
      %v1275 = vpack.c.b16 %v1044, %v1041
      %v1276 = vpack.c.b16 %v1045, %v1042
      %v1277 = vpack.c.b16 %v1046, %v1043
      %v1278 = vpack.c.b16 %v1050, %v1047
      %v1279 = vpack.c.b16 %v1051, %v1048
      %v1280 = vpack.c.b16 %v1052, %v1049
      %v1281 = vpack.c.b16 %v1056, %v1053
      %v1282 = vpack.c.b16 %v1057, %v1054
      %v1283 = vpack.c.b16 %v1058, %v1055
      %v1284 = vpack.c.b16 %v1062, %v1059
      %v1285 = vpack.c.b16 %v1063, %v1060
      %v1286 = vpack.c.b16 %v1064, %v1061
      %v1287 = vpack.c.b16 %v1068, %v1065
      %v1288 = vpack.c.b16 %v1069, %v1066
      %v1289 = vpack.c.b16 %v1070, %v1067
      %v1290 = vpack.c.b16 %v1074, %v1071
      %v1291 = vpack.c.b16 %v1075, %v1072
      %v1292 = vpack.c.b16 %v1076, %v1073
      %v1293 = vpack.c.b16 %v1080, %v1077
      %v1294 = vpack.c.b16 %v1081, %v1078
      %v1295 = vpack.c.b16 %v1082, %v1079
      %v1296 = vpack.c.b16 %v1086, %v1083
      %v1297 = vpack.c.b16 %v1087, %v1084
      %v1298 = vpack.c.b16 %v1088, %v1085
      %v1299 = vpack.c.b16 %v1092, %v1089
      %v1300 = vpack.c.b16 %v1093, %v1090
      %v1301 = vpack.c.b16 %v1094, %v1091
      %v1302 = vpack.c.b16 %v1098, %v1095
      %v1303 = vpack.c.b16 %v1099, %v1096
      %v1304 = vpack.c.b16 %v1100, %v1097
      %v1305 = vpack.c.b16 %v1104, %v1101
      %v1306 = vpack.c.b16 %v1105, %v1102
      %v1307 = vpack.c.b16 %v1106, %v1103
      %v1308 = vpack.c.b16 %v1110, %v1107
      %v1309 = vpack.c.b16 %v1111, %v1108
      %v1310 = vpack.c.b16 %v1112, %v1109
      %v1311 = vpack.c.b16 %v1116, %v1113
      %v1312 = vpack.c.b16 %v1117, %v1114
      %v1313 = vpack.c.b16 %v1118, %v1115
      %v1314 = vpack.c.b16 %v1122, %v1119
      %v1315 = vpack.c.b16 %v1123, %v1120
      %v1316 = vpack.c.b16 %v1124, %v1121
      %v1557 = vunpack.c.l.b16 %v433
      %v1558 = vunpack.c.l.b16 %v434
      %v1559 = vunpack.c.l.b16 %v435
      %v1560 = vunpack.c.l.b16 %v436
      %v1561 = vunpack.c.l.b16 %v437
      %v1562 = vunpack.c.l.b16 %v438
      %v1563 = vunpack.c.l.b16 %v439
      %v1564 = vunpack.c.l.b16 %v440
      %v1565 = vunpack.c.l.b16 %v441
      %v1566 = vunpack.c.l.b16 %v442
      %v1567 = vunpack.c.l.b16 %v443
      %v1568 = vunpack.c.l.b16 %v444
      %v1569 = vunpack.c.l.b16 %v445
      %v1570 = vunpack.c.l.b16 %v446
      %v1571 = vunpack.c.l.b16 %v447
      %v1572 = vunpack.c.l.b16 %v448
      %v1573 = vunpack.c.l.b16 %v449
      %v1574 = vunpack.c.l.b16 %v450
      %v1575 = vunpack.c.l.b16 %v451
      %v1576 = vunpack.c.l.b16 %v452
      %v1577 = vunpack.c.l.b16 %v453
      %v1578 = vunpack.c.l.b16 %v454
      %v1579 = vunpack.c.l.b16 %v455
      %v1580 = vunpack.c.l.b16 %v456
      %v1581 = vunpack.c.l.b16 %v457
      %v1582 = vunpack.c.l.b16 %v458
      %v1583 = vunpack.c.l.b16 %v459
      %v1584 = vunpack.c.l.b16 %v460
      %v1585 = vunpack.c.l.b16 %v461
      %v1586 = vunpack.c.l.b16 %v462
      %v1587 = vunpack.c.l.b16 %v463
      %v1588 = vunpack.c.l.b16 %v464
      %v1589 = vunpack.c.l.b16 %v465
      %v1590 = vunpack.c.l.b16 %v466
      %v1591 = vunpack.c.l.b16 %v467
      %v1592 = vunpack.c.l.b16 %v468
      %v1593 = vunpack.c.l.b16 %v469
      %v1594 = vunpack.c.l.b16 %v470
      %v1595 = vunpack.c.l.b16 %v471
      %v1596 = vunpack.c.l.b16 %v472
      %v1597 = vunpack.c.l.b16 %v473
      %v1598 = vunpack.c.l.b16 %v474
      %v1599 = vunpack.c.l.b16 %v475
      %v1600 = vunpack.c.l.b16 %v476
      %v1601 = vunpack.c.l.b16 %v477
      %v1602 = vunpack.c.l.b16 %v478
      %v1603 = vunpack.c.l.b16 %v479
      %v1604 = vunpack.c.l.b16 %v480
      %v1605 = vpack.c.b16 %v1558, %v1557
      %v1606 = vpack.c.b16 %v1560, %v1559
      %v1607 = vpack.c.b16 %v1562, %v1561
      %v1608 = vpack.c.b16 %v1564, %v1563
      %v1609 = vpack.c.b16 %v1566, %v1565
      %v1610 = vpack.c.b16 %v1568, %v1567
      %v1611 = vpack.c.b16 %v1570, %v1569
      %v1612 = vpack.c.b16 %v1572, %v1571
      %v1613 = vpack.c.b16 %v1574, %v1573
      %v1614 = vpack.c.b16 %v1576, %v1575
      %v1615 = vpack.c.b16 %v1578, %v1577
      %v1616 = vpack.c.b16 %v1580, %v1579
      %v1617 = vpack.c.b16 %v1582, %v1581
      %v1618 = vpack.c.b16 %v1584, %v1583
      %v1619 = vpack.c.b16 %v1586, %v1585
      %v1620 = vpack.c.b16 %v1588, %v1587
      %v1621 = vpack.c.b16 %v1590, %v1589
      %v1622 = vpack.c.b16 %v1592, %v1591
      %v1623 = vpack.c.b16 %v1594, %v1593
      %v1624 = vpack.c.b16 %v1596, %v1595
      %v1625 = vpack.c.b16 %v1598, %v1597
      %v1626 = vpack.c.b16 %v1600, %v1599
      %v1627 = vpack.c.b16 %v1602, %v1601
      %v1628 = vpack.c.b16 %v1604, %v1603
      %1653 = vmatpush.bf16.msra.mxu0 %v1612
      %1654 = vmatpush.bf16.msra.mxu0 %v1611
      %1655 = vmatpush.bf16.msra.mxu0 %v1610
      %1656 = vmatpush.bf16.msra.mxu0 %v1609
      %1657 = vmatpush.bf16.msra.mxu0 %v1608
      %1658 = vmatpush.bf16.msra.mxu0 %v1607
      %1659 = vmatpush.bf16.msra.mxu0 %v1606
      %1660 = vmatpush.bf16.msra.mxu0 %v1605
      %1661 = vmatmul.bf16.gmra.mxu0 %v1125
      %v1662 = vpop.f32.mrf.mxu0
      %v1663 = vadd.f32 %v483, %v1662
      %v1664 = vpop.f32.mrf.mxu0
      %v1665 = vadd.f32 %v483, %v1664
      %1666 = vmatmul.bf16.gmra.mxu0 %v1128
      %v1667 = vpop.f32.mrf.mxu0
      %v1668 = vadd.f32 %v483, %v1667
      %v1669 = vpop.f32.mrf.mxu0
      %v1670 = vadd.f32 %v483, %v1669
      %1671 = vmatmul.bf16.gmra.mxu0 %v1131
      %v1672 = vpop.f32.mrf.mxu0
      %v1673 = vadd.f32 %v483, %v1672
      %v1674 = vpop.f32.mrf.mxu0
      %v1675 = vadd.f32 %v483, %v1674
      %1676 = vmatmul.bf16.gmra.mxu0 %v1134
      %v1677 = vpop.f32.mrf.mxu0
      %v1678 = vadd.f32 %v483, %v1677
      %v1679 = vpop.f32.mrf.mxu0
      %v1680 = vadd.f32 %v483, %v1679
      %1681 = vmatmul.bf16.gmra.mxu0 %v1137
      %v1682 = vpop.f32.mrf.mxu0
      %v1683 = vadd.f32 %v483, %v1682
      %v1684 = vpop.f32.mrf.mxu0
      %v1685 = vadd.f32 %v483, %v1684
      %1686 = vmatmul.bf16.gmra.mxu0 %v1140
      %v1687 = vpop.f32.mrf.mxu0
      %v1688 = vadd.f32 %v483, %v1687
      %v1689 = vpop.f32.mrf.mxu0
      %v1690 = vadd.f32 %v483, %v1689
      %1691 = vmatmul.bf16.gmra.mxu0 %v1143
      %v1692 = vpop.f32.mrf.mxu0
      %v1693 = vadd.f32 %v483, %v1692
      %v1694 = vpop.f32.mrf.mxu0
      %v1695 = vadd.f32 %v483, %v1694
      %1696 = vmatmul.bf16.gmra.mxu0 %v1146
      %v1697 = vpop.f32.mrf.mxu0
      %v1698 = vadd.f32 %v483, %v1697
      %v1699 = vpop.f32.mrf.mxu0
      %v1700 = vadd.f32 %v483, %v1699
      %1701 = vmatmul.bf16.gmra.mxu0 %v1149
      %v1702 = vpop.f32.mrf.mxu0
      %v1703 = vadd.f32 %v483, %v1702
      %v1704 = vpop.f32.mrf.mxu0
      %v1705 = vadd.f32 %v483, %v1704
      %1706 = vmatmul.bf16.gmra.mxu0 %v1152
      %v1707 = vpop.f32.mrf.mxu0
      %v1708 = vadd.f32 %v483, %v1707
      %v1709 = vpop.f32.mrf.mxu0
      %v1710 = vadd.f32 %v483, %v1709
      %1711 = vmatmul.bf16.gmra.mxu0 %v1155
      %v1712 = vpop.f32.mrf.mxu0
      %v1713 = vadd.f32 %v483, %v1712
      %v1714 = vpop.f32.mrf.mxu0
      %v1715 = vadd.f32 %v483, %v1714
      %1716 = vmatmul.bf16.gmra.mxu0 %v1158
      %v1717 = vpop.f32.mrf.mxu0
      %v1718 = vadd.f32 %v483, %v1717
      %v1719 = vpop.f32.mrf.mxu0
      %v1720 = vadd.f32 %v483, %v1719
      %1721 = vmatmul.bf16.gmra.mxu0 %v1161
      %v1722 = vpop.f32.mrf.mxu0
      %v1723 = vadd.f32 %v483, %v1722
      %v1724 = vpop.f32.mrf.mxu0
      %v1725 = vadd.f32 %v483, %v1724
      %1726 = vmatmul.bf16.gmra.mxu0 %v1164
      %v1727 = vpop.f32.mrf.mxu0
      %v1728 = vadd.f32 %v483, %v1727
      %v1729 = vpop.f32.mrf.mxu0
      %v1730 = vadd.f32 %v483, %v1729
      %1731 = vmatmul.bf16.gmra.mxu0 %v1167
      %v1732 = vpop.f32.mrf.mxu0
      %v1733 = vadd.f32 %v483, %v1732
      %v1734 = vpop.f32.mrf.mxu0
      %v1735 = vadd.f32 %v483, %v1734
      %1736 = vmatmul.bf16.gmra.mxu0 %v1170
      %v1737 = vpop.f32.mrf.mxu0
      %v1738 = vadd.f32 %v483, %v1737
      %v1739 = vpop.f32.mrf.mxu0
      %v1740 = vadd.f32 %v483, %v1739
      %1741 = vmatmul.bf16.gmra.mxu0 %v1173
      %v1742 = vpop.f32.mrf.mxu0
      %v1743 = vadd.f32 %v483, %v1742
      %v1744 = vpop.f32.mrf.mxu0
      %v1745 = vadd.f32 %v483, %v1744
      %1746 = vmatmul.bf16.gmra.mxu0 %v1176
      %v1747 = vpop.f32.mrf.mxu0
      %v1748 = vadd.f32 %v483, %v1747
      %v1749 = vpop.f32.mrf.mxu0
      %v1750 = vadd.f32 %v483, %v1749
      %1751 = vmatmul.bf16.gmra.mxu0 %v1179
      %v1752 = vpop.f32.mrf.mxu0
      %v1753 = vadd.f32 %v483, %v1752
      %v1754 = vpop.f32.mrf.mxu0
      %v1755 = vadd.f32 %v483, %v1754
      %1756 = vmatmul.bf16.gmra.mxu0 %v1182
      %v1757 = vpop.f32.mrf.mxu0
      %v1758 = vadd.f32 %v483, %v1757
      %v1759 = vpop.f32.mrf.mxu0
      %v1760 = vadd.f32 %v483, %v1759
      %1761 = vmatmul.bf16.gmra.mxu0 %v1185
      %v1762 = vpop.f32.mrf.mxu0
      %v1763 = vadd.f32 %v483, %v1762
      %v1764 = vpop.f32.mrf.mxu0
      %v1765 = vadd.f32 %v483, %v1764
      %1766 = vmatmul.bf16.gmra.mxu0 %v1188
      %v1767 = vpop.f32.mrf.mxu0
      %v1768 = vadd.f32 %v483, %v1767
      %v1769 = vpop.f32.mrf.mxu0
      %v1770 = vadd.f32 %v483, %v1769
      %1771 = vmatmul.bf16.gmra.mxu0 %v1191
      %v1772 = vpop.f32.mrf.mxu0
      %v1773 = vadd.f32 %v483, %v1772
      %v1774 = vpop.f32.mrf.mxu0
      %v1775 = vadd.f32 %v483, %v1774
      %1776 = vmatmul.bf16.gmra.mxu0 %v1194
      %v1777 = vpop.f32.mrf.mxu0
      %v1778 = vadd.f32 %v483, %v1777
      %v1779 = vpop.f32.mrf.mxu0
      %v1780 = vadd.f32 %v483, %v1779
      %1781 = vmatmul.bf16.gmra.mxu0 %v1197
      %v1782 = vpop.f32.mrf.mxu0
      %v1783 = vadd.f32 %v483, %v1782
      %v1784 = vpop.f32.mrf.mxu0
      %v1785 = vadd.f32 %v483, %v1784
      %1786 = vmatmul.bf16.gmra.mxu0 %v1200
      %v1787 = vpop.f32.mrf.mxu0
      %v1788 = vadd.f32 %v483, %v1787
      %v1789 = vpop.f32.mrf.mxu0
      %v1790 = vadd.f32 %v483, %v1789
      %1791 = vmatmul.bf16.gmra.mxu0 %v1203
      %v1792 = vpop.f32.mrf.mxu0
      %v1793 = vadd.f32 %v483, %v1792
      %v1794 = vpop.f32.mrf.mxu0
      %v1795 = vadd.f32 %v483, %v1794
      %1796 = vmatmul.bf16.gmra.mxu0 %v1206
      %v1797 = vpop.f32.mrf.mxu0
      %v1798 = vadd.f32 %v483, %v1797
      %v1799 = vpop.f32.mrf.mxu0
      %v1800 = vadd.f32 %v483, %v1799
      %1801 = vmatmul.bf16.gmra.mxu0 %v1209
      %v1802 = vpop.f32.mrf.mxu0
      %v1803 = vadd.f32 %v483, %v1802
      %v1804 = vpop.f32.mrf.mxu0
      %v1805 = vadd.f32 %v483, %v1804
      %1806 = vmatmul.bf16.gmra.mxu0 %v1212
      %v1807 = vpop.f32.mrf.mxu0
      %v1808 = vadd.f32 %v483, %v1807
      %v1809 = vpop.f32.mrf.mxu0
      %v1810 = vadd.f32 %v483, %v1809
      %1811 = vmatmul.bf16.gmra.mxu0 %v1215
      %v1812 = vpop.f32.mrf.mxu0
      %v1813 = vadd.f32 %v483, %v1812
      %v1814 = vpop.f32.mrf.mxu0
      %v1815 = vadd.f32 %v483, %v1814
      %1816 = vmatmul.bf16.gmra.mxu0 %v1218
      %v1817 = vpop.f32.mrf.mxu0
      %v1818 = vadd.f32 %v483, %v1817
      %v1819 = vpop.f32.mrf.mxu0
      %v1820 = vadd.f32 %v483, %v1819
      %1821 = vmatmul.bf16.gmra.mxu0 %v1221
      %v1822 = vpop.f32.mrf.mxu0
      %v1823 = vadd.f32 %v483, %v1822
      %v1824 = vpop.f32.mrf.mxu0
      %v1825 = vadd.f32 %v483, %v1824
      %1826 = vmatmul.bf16.gmra.mxu0 %v1224
      %v1827 = vpop.f32.mrf.mxu0
      %v1828 = vadd.f32 %v483, %v1827
      %v1829 = vpop.f32.mrf.mxu0
      %v1830 = vadd.f32 %v483, %v1829
      %1831 = vmatmul.bf16.gmra.mxu0 %v1227
      %v1832 = vpop.f32.mrf.mxu0
      %v1833 = vadd.f32 %v483, %v1832
      %v1834 = vpop.f32.mrf.mxu0
      %v1835 = vadd.f32 %v483, %v1834
      %1836 = vmatmul.bf16.gmra.mxu0 %v1230
      %v1837 = vpop.f32.mrf.mxu0
      %v1838 = vadd.f32 %v483, %v1837
      %v1839 = vpop.f32.mrf.mxu0
      %v1840 = vadd.f32 %v483, %v1839
      %1841 = vmatmul.bf16.gmra.mxu0 %v1233
      %v1842 = vpop.f32.mrf.mxu0
      %v1843 = vadd.f32 %v483, %v1842
      %v1844 = vpop.f32.mrf.mxu0
      %v1845 = vadd.f32 %v483, %v1844
      %1846 = vmatmul.bf16.gmra.mxu0 %v1236
      %v1847 = vpop.f32.mrf.mxu0
      %v1848 = vadd.f32 %v483, %v1847
      %v1849 = vpop.f32.mrf.mxu0
      %v1850 = vadd.f32 %v483, %v1849
      %1851 = vmatmul.bf16.gmra.mxu0 %v1239
      %v1852 = vpop.f32.mrf.mxu0
      %v1853 = vadd.f32 %v483, %v1852
      %v1854 = vpop.f32.mrf.mxu0
      %v1855 = vadd.f32 %v483, %v1854
      %1856 = vmatmul.bf16.gmra.mxu0 %v1242
      %v1857 = vpop.f32.mrf.mxu0
      %v1858 = vadd.f32 %v483, %v1857
      %v1859 = vpop.f32.mrf.mxu0
      %v1860 = vadd.f32 %v483, %v1859
      %1861 = vmatmul.bf16.gmra.mxu0 %v1245
      %v1862 = vpop.f32.mrf.mxu0
      %v1863 = vadd.f32 %v483, %v1862
      %v1864 = vpop.f32.mrf.mxu0
      %v1865 = vadd.f32 %v483, %v1864
      %1866 = vmatmul.bf16.gmra.mxu0 %v1248
      %v1867 = vpop.f32.mrf.mxu0
      %v1868 = vadd.f32 %v483, %v1867
      %v1869 = vpop.f32.mrf.mxu0
      %v1870 = vadd.f32 %v483, %v1869
      %1871 = vmatmul.bf16.gmra.mxu0 %v1251
      %v1872 = vpop.f32.mrf.mxu0
      %v1873 = vadd.f32 %v483, %v1872
      %v1874 = vpop.f32.mrf.mxu0
      %v1875 = vadd.f32 %v483, %v1874
      %1876 = vmatmul.bf16.gmra.mxu0 %v1254
      %v1877 = vpop.f32.mrf.mxu0
      %v1878 = vadd.f32 %v483, %v1877
      %v1879 = vpop.f32.mrf.mxu0
      %v1880 = vadd.f32 %v483, %v1879
      %1881 = vmatmul.bf16.gmra.mxu0 %v1257
      %v1882 = vpop.f32.mrf.mxu0
      %v1883 = vadd.f32 %v483, %v1882
      %v1884 = vpop.f32.mrf.mxu0
      %v1885 = vadd.f32 %v483, %v1884
      %1886 = vmatmul.bf16.gmra.mxu0 %v1260
      %v1887 = vpop.f32.mrf.mxu0
      %v1888 = vadd.f32 %v483, %v1887
      %v1889 = vpop.f32.mrf.mxu0
      %v1890 = vadd.f32 %v483, %v1889
      %1891 = vmatmul.bf16.gmra.mxu0 %v1263
      %v1892 = vpop.f32.mrf.mxu0
      %v1893 = vadd.f32 %v483, %v1892
      %v1894 = vpop.f32.mrf.mxu0
      %v1895 = vadd.f32 %v483, %v1894
      %1896 = vmatmul.bf16.gmra.mxu0 %v1266
      %v1897 = vpop.f32.mrf.mxu0
      %v1898 = vadd.f32 %v483, %v1897
      %v1899 = vpop.f32.mrf.mxu0
      %v1900 = vadd.f32 %v483, %v1899
      %1901 = vmatmul.bf16.gmra.mxu0 %v1269
      %v1902 = vpop.f32.mrf.mxu0
      %v1903 = vadd.f32 %v483, %v1902
      %v1904 = vpop.f32.mrf.mxu0
      %v1905 = vadd.f32 %v483, %v1904
      %1906 = vmatmul.bf16.gmra.mxu0 %v1272
      %v1907 = vpop.f32.mrf.mxu0
      %v1908 = vadd.f32 %v483, %v1907
      %v1909 = vpop.f32.mrf.mxu0
      %v1910 = vadd.f32 %v483, %v1909
      %1911 = vmatmul.bf16.gmra.mxu0 %v1275
      %v1912 = vpop.f32.mrf.mxu0
      %v1913 = vadd.f32 %v483, %v1912
      %v1914 = vpop.f32.mrf.mxu0
      %v1915 = vadd.f32 %v483, %v1914
      %1916 = vmatmul.bf16.gmra.mxu0 %v1278
      %v1917 = vpop.f32.mrf.mxu0
      %v1918 = vadd.f32 %v483, %v1917
      %v1919 = vpop.f32.mrf.mxu0
      %v1920 = vadd.f32 %v483, %v1919
      %1921 = vmatmul.bf16.gmra.mxu0 %v1281
      %v1922 = vpop.f32.mrf.mxu0
      %v1923 = vadd.f32 %v483, %v1922
      %v1924 = vpop.f32.mrf.mxu0
      %v1925 = vadd.f32 %v483, %v1924
      %1926 = vmatmul.bf16.gmra.mxu0 %v1284
      %v1927 = vpop.f32.mrf.mxu0
      %v1928 = vadd.f32 %v483, %v1927
      %v1929 = vpop.f32.mrf.mxu0
      %v1930 = vadd.f32 %v483, %v1929
      %1931 = vmatmul.bf16.gmra.mxu0 %v1287
      %v1932 = vpop.f32.mrf.mxu0
      %v1933 = vadd.f32 %v483, %v1932
      %v1934 = vpop.f32.mrf.mxu0
      %v1935 = vadd.f32 %v483, %v1934
      %1936 = vmatmul.bf16.gmra.mxu0 %v1290
      %v1937 = vpop.f32.mrf.mxu0
      %v1938 = vadd.f32 %v483, %v1937
      %v1939 = vpop.f32.mrf.mxu0
      %v1940 = vadd.f32 %v483, %v1939
      %1941 = vmatmul.bf16.gmra.mxu0 %v1293
      %v1942 = vpop.f32.mrf.mxu0
      %v1943 = vadd.f32 %v483, %v1942
      %v1944 = vpop.f32.mrf.mxu0
      %v1945 = vadd.f32 %v483, %v1944
      %1946 = vmatmul.bf16.gmra.mxu0 %v1296
      %v1947 = vpop.f32.mrf.mxu0
      %v1948 = vadd.f32 %v483, %v1947
      %v1949 = vpop.f32.mrf.mxu0
      %v1950 = vadd.f32 %v483, %v1949
      %1951 = vmatmul.bf16.gmra.mxu0 %v1299
      %v1952 = vpop.f32.mrf.mxu0
      %v1953 = vadd.f32 %v483, %v1952
      %v1954 = vpop.f32.mrf.mxu0
      %v1955 = vadd.f32 %v483, %v1954
      %1956 = vmatmul.bf16.gmra.mxu0 %v1302
      %v1957 = vpop.f32.mrf.mxu0
      %v1958 = vadd.f32 %v483, %v1957
      %v1959 = vpop.f32.mrf.mxu0
      %v1960 = vadd.f32 %v483, %v1959
      %1961 = vmatmul.bf16.gmra.mxu0 %v1305
      %v1962 = vpop.f32.mrf.mxu0
      %v1963 = vadd.f32 %v483, %v1962
      %v1964 = vpop.f32.mrf.mxu0
      %v1965 = vadd.f32 %v483, %v1964
      %1966 = vmatmul.bf16.gmra.mxu0 %v1308
      %v1967 = vpop.f32.mrf.mxu0
      %v1968 = vadd.f32 %v483, %v1967
      %v1969 = vpop.f32.mrf.mxu0
      %v1970 = vadd.f32 %v483, %v1969
      %1971 = vmatmul.bf16.gmra.mxu0 %v1311
      %v1972 = vpop.f32.mrf.mxu0
      %v1973 = vadd.f32 %v483, %v1972
      %v1974 = vpop.f32.mrf.mxu0
      %v1975 = vadd.f32 %v483, %v1974
      %1976 = vmatmul.bf16.gmra.mxu0 %v1314
      %v1977 = vpop.f32.mrf.mxu0
      %v1978 = vadd.f32 %v483, %v1977
      %v1979 = vpop.f32.mrf.mxu0
      %v1980 = vadd.f32 %v483, %v1979
      %1981 = vdwg.mxu0
      %1982 = vmatpush.bf16.msra.mxu0 %v1620
      %1983 = vmatpush.bf16.msra.mxu0 %v1619
      %1984 = vmatpush.bf16.msra.mxu0 %v1618
      %1985 = vmatpush.bf16.msra.mxu0 %v1617
      %1986 = vmatpush.bf16.msra.mxu0 %v1616
      %1987 = vmatpush.bf16.msra.mxu0 %v1615
      %1988 = vmatpush.bf16.msra.mxu0 %v1614
      %1989 = vmatpush.bf16.msra.mxu0 %v1613
      %1990 = vmatmul.bf16.gmra.mxu0 %v1126
      %v1991 = vpop.f32.mrf.mxu0
      %v1992 = vadd.f32 %v1663, %v1991
      %v1993 = vpop.f32.mrf.mxu0
      %v1994 = vadd.f32 %v1665, %v1993
      %1995 = vmatmul.bf16.gmra.mxu0 %v1129
      %v1996 = vpop.f32.mrf.mxu0
      %v1997 = vadd.f32 %v1668, %v1996
      %v1998 = vpop.f32.mrf.mxu0
      %v1999 = vadd.f32 %v1670, %v1998
      %2000 = vmatmul.bf16.gmra.mxu0 %v1132
      %v2001 = vpop.f32.mrf.mxu0
      %v2002 = vadd.f32 %v1673, %v2001
      %v2003 = vpop.f32.mrf.mxu0
      %v2004 = vadd.f32 %v1675, %v2003
      %2005 = vmatmul.bf16.gmra.mxu0 %v1135
      %v2006 = vpop.f32.mrf.mxu0
      %v2007 = vadd.f32 %v1678, %v2006
      %v2008 = vpop.f32.mrf.mxu0
      %v2009 = vadd.f32 %v1680, %v2008
      %2010 = vmatmul.bf16.gmra.mxu0 %v1138
      %v2011 = vpop.f32.mrf.mxu0
      %v2012 = vadd.f32 %v1683, %v2011
      %v2013 = vpop.f32.mrf.mxu0
      %v2014 = vadd.f32 %v1685, %v2013
      %2015 = vmatmul.bf16.gmra.mxu0 %v1141
      %v2016 = vpop.f32.mrf.mxu0
      %v2017 = vadd.f32 %v1688, %v2016
      %v2018 = vpop.f32.mrf.mxu0
      %v2019 = vadd.f32 %v1690, %v2018
      %2020 = vmatmul.bf16.gmra.mxu0 %v1144
      %v2021 = vpop.f32.mrf.mxu0
      %v2022 = vadd.f32 %v1693, %v2021
      %v2023 = vpop.f32.mrf.mxu0
      %v2024 = vadd.f32 %v1695, %v2023
      %2025 = vmatmul.bf16.gmra.mxu0 %v1147
      %v2026 = vpop.f32.mrf.mxu0
      %v2027 = vadd.f32 %v1698, %v2026
      %v2028 = vpop.f32.mrf.mxu0
      %v2029 = vadd.f32 %v1700, %v2028
      %2030 = vmatmul.bf16.gmra.mxu0 %v1150
      %v2031 = vpop.f32.mrf.mxu0
      %v2032 = vadd.f32 %v1703, %v2031
      %v2033 = vpop.f32.mrf.mxu0
      %v2034 = vadd.f32 %v1705, %v2033
      %2035 = vmatmul.bf16.gmra.mxu0 %v1153
      %v2036 = vpop.f32.mrf.mxu0
      %v2037 = vadd.f32 %v1708, %v2036
      %v2038 = vpop.f32.mrf.mxu0
      %v2039 = vadd.f32 %v1710, %v2038
      %2040 = vmatmul.bf16.gmra.mxu0 %v1156
      %v2041 = vpop.f32.mrf.mxu0
      %v2042 = vadd.f32 %v1713, %v2041
      %v2043 = vpop.f32.mrf.mxu0
      %v2044 = vadd.f32 %v1715, %v2043
      %2045 = vmatmul.bf16.gmra.mxu0 %v1159
      %v2046 = vpop.f32.mrf.mxu0
      %v2047 = vadd.f32 %v1718, %v2046
      %v2048 = vpop.f32.mrf.mxu0
      %v2049 = vadd.f32 %v1720, %v2048
      %2050 = vmatmul.bf16.gmra.mxu0 %v1162
      %v2051 = vpop.f32.mrf.mxu0
      %v2052 = vadd.f32 %v1723, %v2051
      %v2053 = vpop.f32.mrf.mxu0
      %v2054 = vadd.f32 %v1725, %v2053
      %2055 = vmatmul.bf16.gmra.mxu0 %v1165
      %v2056 = vpop.f32.mrf.mxu0
      %v2057 = vadd.f32 %v1728, %v2056
      %v2058 = vpop.f32.mrf.mxu0
      %v2059 = vadd.f32 %v1730, %v2058
      %2060 = vmatmul.bf16.gmra.mxu0 %v1168
      %v2061 = vpop.f32.mrf.mxu0
      %v2062 = vadd.f32 %v1733, %v2061
      %v2063 = vpop.f32.mrf.mxu0
      %v2064 = vadd.f32 %v1735, %v2063
      %2065 = vmatmul.bf16.gmra.mxu0 %v1171
      %v2066 = vpop.f32.mrf.mxu0
      %v2067 = vadd.f32 %v1738, %v2066
      %v2068 = vpop.f32.mrf.mxu0
      %v2069 = vadd.f32 %v1740, %v2068
      %2070 = vmatmul.bf16.gmra.mxu0 %v1174
      %v2071 = vpop.f32.mrf.mxu0
      %v2072 = vadd.f32 %v1743, %v2071
      %v2073 = vpop.f32.mrf.mxu0
      %v2074 = vadd.f32 %v1745, %v2073
      %2075 = vmatmul.bf16.gmra.mxu0 %v1177
      %v2076 = vpop.f32.mrf.mxu0
      %v2077 = vadd.f32 %v1748, %v2076
      %v2078 = vpop.f32.mrf.mxu0
      %v2079 = vadd.f32 %v1750, %v2078
      %2080 = vmatmul.bf16.gmra.mxu0 %v1180
      %v2081 = vpop.f32.mrf.mxu0
      %v2082 = vadd.f32 %v1753, %v2081
      %v2083 = vpop.f32.mrf.mxu0
      %v2084 = vadd.f32 %v1755, %v2083
      %2085 = vmatmul.bf16.gmra.mxu0 %v1183
      %v2086 = vpop.f32.mrf.mxu0
      %v2087 = vadd.f32 %v1758, %v2086
      %v2088 = vpop.f32.mrf.mxu0
      %v2089 = vadd.f32 %v1760, %v2088
      %2090 = vmatmul.bf16.gmra.mxu0 %v1186
      %v2091 = vpop.f32.mrf.mxu0
      %v2092 = vadd.f32 %v1763, %v2091
      %v2093 = vpop.f32.mrf.mxu0
      %v2094 = vadd.f32 %v1765, %v2093
      %2095 = vmatmul.bf16.gmra.mxu0 %v1189
      %v2096 = vpop.f32.mrf.mxu0
      %v2097 = vadd.f32 %v1768, %v2096
      %v2098 = vpop.f32.mrf.mxu0
      %v2099 = vadd.f32 %v1770, %v2098
      %2100 = vmatmul.bf16.gmra.mxu0 %v1192
      %v2101 = vpop.f32.mrf.mxu0
      %v2102 = vadd.f32 %v1773, %v2101
      %v2103 = vpop.f32.mrf.mxu0
      %v2104 = vadd.f32 %v1775, %v2103
      %2105 = vmatmul.bf16.gmra.mxu0 %v1195
      %v2106 = vpop.f32.mrf.mxu0
      %v2107 = vadd.f32 %v1778, %v2106
      %v2108 = vpop.f32.mrf.mxu0
      %v2109 = vadd.f32 %v1780, %v2108
      %2110 = vmatmul.bf16.gmra.mxu0 %v1198
      %v2111 = vpop.f32.mrf.mxu0
      %v2112 = vadd.f32 %v1783, %v2111
      %v2113 = vpop.f32.mrf.mxu0
      %v2114 = vadd.f32 %v1785, %v2113
      %2115 = vmatmul.bf16.gmra.mxu0 %v1201
      %v2116 = vpop.f32.mrf.mxu0
      %v2117 = vadd.f32 %v1788, %v2116
      %v2118 = vpop.f32.mrf.mxu0
      %v2119 = vadd.f32 %v1790, %v2118
      %2120 = vmatmul.bf16.gmra.mxu0 %v1204
      %v2121 = vpop.f32.mrf.mxu0
      %v2122 = vadd.f32 %v1793, %v2121
      %v2123 = vpop.f32.mrf.mxu0
      %v2124 = vadd.f32 %v1795, %v2123
      %2125 = vmatmul.bf16.gmra.mxu0 %v1207
      %v2126 = vpop.f32.mrf.mxu0
      %v2127 = vadd.f32 %v1798, %v2126
      %v2128 = vpop.f32.mrf.mxu0
      %v2129 = vadd.f32 %v1800, %v2128
      %2130 = vmatmul.bf16.gmra.mxu0 %v1210
      %v2131 = vpop.f32.mrf.mxu0
      %v2132 = vadd.f32 %v1803, %v2131
      %v2133 = vpop.f32.mrf.mxu0
      %v2134 = vadd.f32 %v1805, %v2133
      %2135 = vmatmul.bf16.gmra.mxu0 %v1213
      %v2136 = vpop.f32.mrf.mxu0
      %v2137 = vadd.f32 %v1808, %v2136
      %v2138 = vpop.f32.mrf.mxu0
      %v2139 = vadd.f32 %v1810, %v2138
      %2140 = vmatmul.bf16.gmra.mxu0 %v1216
      %v2141 = vpop.f32.mrf.mxu0
      %v2142 = vadd.f32 %v1813, %v2141
      %v2143 = vpop.f32.mrf.mxu0
      %v2144 = vadd.f32 %v1815, %v2143
      %2145 = vmatmul.bf16.gmra.mxu0 %v1219
      %v2146 = vpop.f32.mrf.mxu0
      %v2147 = vadd.f32 %v1818, %v2146
      %v2148 = vpop.f32.mrf.mxu0
      %v2149 = vadd.f32 %v1820, %v2148
      %2150 = vmatmul.bf16.gmra.mxu0 %v1222
      %v2151 = vpop.f32.mrf.mxu0
      %v2152 = vadd.f32 %v1823, %v2151
      %v2153 = vpop.f32.mrf.mxu0
      %v2154 = vadd.f32 %v1825, %v2153
      %2155 = vmatmul.bf16.gmra.mxu0 %v1225
      %v2156 = vpop.f32.mrf.mxu0
      %v2157 = vadd.f32 %v1828, %v2156
      %v2158 = vpop.f32.mrf.mxu0
      %v2159 = vadd.f32 %v1830, %v2158
      %2160 = vmatmul.bf16.gmra.mxu0 %v1228
      %v2161 = vpop.f32.mrf.mxu0
      %v2162 = vadd.f32 %v1833, %v2161
      %v2163 = vpop.f32.mrf.mxu0
      %v2164 = vadd.f32 %v1835, %v2163
      %2165 = vmatmul.bf16.gmra.mxu0 %v1231
      %v2166 = vpop.f32.mrf.mxu0
      %v2167 = vadd.f32 %v1838, %v2166
      %v2168 = vpop.f32.mrf.mxu0
      %v2169 = vadd.f32 %v1840, %v2168
      %2170 = vmatmul.bf16.gmra.mxu0 %v1234
      %v2171 = vpop.f32.mrf.mxu0
      %v2172 = vadd.f32 %v1843, %v2171
      %v2173 = vpop.f32.mrf.mxu0
      %v2174 = vadd.f32 %v1845, %v2173
      %2175 = vmatmul.bf16.gmra.mxu0 %v1237
      %v2176 = vpop.f32.mrf.mxu0
      %v2177 = vadd.f32 %v1848, %v2176
      %v2178 = vpop.f32.mrf.mxu0
      %v2179 = vadd.f32 %v1850, %v2178
      %2180 = vmatmul.bf16.gmra.mxu0 %v1240
      %v2181 = vpop.f32.mrf.mxu0
      %v2182 = vadd.f32 %v1853, %v2181
      %v2183 = vpop.f32.mrf.mxu0
      %v2184 = vadd.f32 %v1855, %v2183
      %2185 = vmatmul.bf16.gmra.mxu0 %v1243
      %v2186 = vpop.f32.mrf.mxu0
      %v2187 = vadd.f32 %v1858, %v2186
      %v2188 = vpop.f32.mrf.mxu0
      %v2189 = vadd.f32 %v1860, %v2188
      %2190 = vmatmul.bf16.gmra.mxu0 %v1246
      %v2191 = vpop.f32.mrf.mxu0
      %v2192 = vadd.f32 %v1863, %v2191
      %v2193 = vpop.f32.mrf.mxu0
      %v2194 = vadd.f32 %v1865, %v2193
      %2195 = vmatmul.bf16.gmra.mxu0 %v1249
      %v2196 = vpop.f32.mrf.mxu0
      %v2197 = vadd.f32 %v1868, %v2196
      %v2198 = vpop.f32.mrf.mxu0
      %v2199 = vadd.f32 %v1870, %v2198
      %2200 = vmatmul.bf16.gmra.mxu0 %v1252
      %v2201 = vpop.f32.mrf.mxu0
      %v2202 = vadd.f32 %v1873, %v2201
      %v2203 = vpop.f32.mrf.mxu0
      %v2204 = vadd.f32 %v1875, %v2203
      %2205 = vmatmul.bf16.gmra.mxu0 %v1255
      %v2206 = vpop.f32.mrf.mxu0
      %v2207 = vadd.f32 %v1878, %v2206
      %v2208 = vpop.f32.mrf.mxu0
      %v2209 = vadd.f32 %v1880, %v2208
      %2210 = vmatmul.bf16.gmra.mxu0 %v1258
      %v2211 = vpop.f32.mrf.mxu0
      %v2212 = vadd.f32 %v1883, %v2211
      %v2213 = vpop.f32.mrf.mxu0
      %v2214 = vadd.f32 %v1885, %v2213
      %2215 = vmatmul.bf16.gmra.mxu0 %v1261
      %v2216 = vpop.f32.mrf.mxu0
      %v2217 = vadd.f32 %v1888, %v2216
      %v2218 = vpop.f32.mrf.mxu0
      %v2219 = vadd.f32 %v1890, %v2218
      %2220 = vmatmul.bf16.gmra.mxu0 %v1264
      %v2221 = vpop.f32.mrf.mxu0
      %v2222 = vadd.f32 %v1893, %v2221
      %v2223 = vpop.f32.mrf.mxu0
      %v2224 = vadd.f32 %v1895, %v2223
      %2225 = vmatmul.bf16.gmra.mxu0 %v1267
      %v2226 = vpop.f32.mrf.mxu0
      %v2227 = vadd.f32 %v1898, %v2226
      %v2228 = vpop.f32.mrf.mxu0
      %v2229 = vadd.f32 %v1900, %v2228
      %2230 = vmatmul.bf16.gmra.mxu0 %v1270
      %v2231 = vpop.f32.mrf.mxu0
      %v2232 = vadd.f32 %v1903, %v2231
      %v2233 = vpop.f32.mrf.mxu0
      %v2234 = vadd.f32 %v1905, %v2233
      %2235 = vmatmul.bf16.gmra.mxu0 %v1273
      %v2236 = vpop.f32.mrf.mxu0
      %v2237 = vadd.f32 %v1908, %v2236
      %v2238 = vpop.f32.mrf.mxu0
      %v2239 = vadd.f32 %v1910, %v2238
      %2240 = vmatmul.bf16.gmra.mxu0 %v1276
      %v2241 = vpop.f32.mrf.mxu0
      %v2242 = vadd.f32 %v1913, %v2241
      %v2243 = vpop.f32.mrf.mxu0
      %v2244 = vadd.f32 %v1915, %v2243
      %2245 = vmatmul.bf16.gmra.mxu0 %v1279
      %v2246 = vpop.f32.mrf.mxu0
      %v2247 = vadd.f32 %v1918, %v2246
      %v2248 = vpop.f32.mrf.mxu0
      %v2249 = vadd.f32 %v1920, %v2248
      %2250 = vmatmul.bf16.gmra.mxu0 %v1282
      %v2251 = vpop.f32.mrf.mxu0
      %v2252 = vadd.f32 %v1923, %v2251
      %v2253 = vpop.f32.mrf.mxu0
      %v2254 = vadd.f32 %v1925, %v2253
      %2255 = vmatmul.bf16.gmra.mxu0 %v1285
      %v2256 = vpop.f32.mrf.mxu0
      %v2257 = vadd.f32 %v1928, %v2256
      %v2258 = vpop.f32.mrf.mxu0
      %v2259 = vadd.f32 %v1930, %v2258
      %2260 = vmatmul.bf16.gmra.mxu0 %v1288
      %v2261 = vpop.f32.mrf.mxu0
      %v2262 = vadd.f32 %v1933, %v2261
      %v2263 = vpop.f32.mrf.mxu0
      %v2264 = vadd.f32 %v1935, %v2263
      %2265 = vmatmul.bf16.gmra.mxu0 %v1291
      %v2266 = vpop.f32.mrf.mxu0
      %v2267 = vadd.f32 %v1938, %v2266
      %v2268 = vpop.f32.mrf.mxu0
      %v2269 = vadd.f32 %v1940, %v2268
      %2270 = vmatmul.bf16.gmra.mxu0 %v1294
      %v2271 = vpop.f32.mrf.mxu0
      %v2272 = vadd.f32 %v1943, %v2271
      %v2273 = vpop.f32.mrf.mxu0
      %v2274 = vadd.f32 %v1945, %v2273
      %2275 = vmatmul.bf16.gmra.mxu0 %v1297
      %v2276 = vpop.f32.mrf.mxu0
      %v2277 = vadd.f32 %v1948, %v2276
      %v2278 = vpop.f32.mrf.mxu0
      %v2279 = vadd.f32 %v1950, %v2278
      %2280 = vmatmul.bf16.gmra.mxu0 %v1300
      %v2281 = vpop.f32.mrf.mxu0
      %v2282 = vadd.f32 %v1953, %v2281
      %v2283 = vpop.f32.mrf.mxu0
      %v2284 = vadd.f32 %v1955, %v2283
      %2285 = vmatmul.bf16.gmra.mxu0 %v1303
      %v2286 = vpop.f32.mrf.mxu0
      %v2287 = vadd.f32 %v1958, %v2286
      %v2288 = vpop.f32.mrf.mxu0
      %v2289 = vadd.f32 %v1960, %v2288
      %2290 = vmatmul.bf16.gmra.mxu0 %v1306
      %v2291 = vpop.f32.mrf.mxu0
      %v2292 = vadd.f32 %v1963, %v2291
      %v2293 = vpop.f32.mrf.mxu0
      %v2294 = vadd.f32 %v1965, %v2293
      %2295 = vmatmul.bf16.gmra.mxu0 %v1309
      %v2296 = vpop.f32.mrf.mxu0
      %v2297 = vadd.f32 %v1968, %v2296
      %v2298 = vpop.f32.mrf.mxu0
      %v2299 = vadd.f32 %v1970, %v2298
      %2300 = vmatmul.bf16.gmra.mxu0 %v1312
      %v2301 = vpop.f32.mrf.mxu0
      %v2302 = vadd.f32 %v1973, %v2301
      %v2303 = vpop.f32.mrf.mxu0
      %v2304 = vadd.f32 %v1975, %v2303
      %2305 = vmatmul.bf16.gmra.mxu0 %v1315
      %v2306 = vpop.f32.mrf.mxu0
      %v2307 = vadd.f32 %v1978, %v2306
      %v2308 = vpop.f32.mrf.mxu0
      %v2309 = vadd.f32 %v1980, %v2308
      %2310 = vdwg.mxu0
      %2311 = vmatpush.bf16.msra.mxu0 %v1628
      %2312 = vmatpush.bf16.msra.mxu0 %v1627
      %2313 = vmatpush.bf16.msra.mxu0 %v1626
      %2314 = vmatpush.bf16.msra.mxu0 %v1625
      %2315 = vmatpush.bf16.msra.mxu0 %v1624
      %2316 = vmatpush.bf16.msra.mxu0 %v1623
      %2317 = vmatpush.bf16.msra.mxu0 %v1622
      %2318 = vmatpush.bf16.msra.mxu0 %v1621
      %2319 = vmatmul.bf16.gmra.mxu0 %v1127
      %v2320 = vpop.f32.mrf.mxu0
      %v2321 = vadd.f32 %v1992, %v2320
      %v2322 = vpop.f32.mrf.mxu0
      %v2323 = vadd.f32 %v1994, %v2322
      %2324 = vmatmul.bf16.gmra.mxu0 %v1130
      %v2325 = vpop.f32.mrf.mxu0
      %v2326 = vadd.f32 %v1997, %v2325
      %v2327 = vpop.f32.mrf.mxu0
      %v2328 = vadd.f32 %v1999, %v2327
      %2329 = vmatmul.bf16.gmra.mxu0 %v1133
      %v2330 = vpop.f32.mrf.mxu0
      %v2331 = vadd.f32 %v2002, %v2330
      %v2332 = vpop.f32.mrf.mxu0
      %v2333 = vadd.f32 %v2004, %v2332
      %2334 = vmatmul.bf16.gmra.mxu0 %v1136
      %v2335 = vpop.f32.mrf.mxu0
      %v2336 = vadd.f32 %v2007, %v2335
      %v2337 = vpop.f32.mrf.mxu0
      %v2338 = vadd.f32 %v2009, %v2337
      %2339 = vmatmul.bf16.gmra.mxu0 %v1139
      %v2340 = vpop.f32.mrf.mxu0
      %v2341 = vadd.f32 %v2012, %v2340
      %v2342 = vpop.f32.mrf.mxu0
      %v2343 = vadd.f32 %v2014, %v2342
      %2344 = vmatmul.bf16.gmra.mxu0 %v1142
      %v2345 = vpop.f32.mrf.mxu0
      %v2346 = vadd.f32 %v2017, %v2345
      %v2347 = vpop.f32.mrf.mxu0
      %v2348 = vadd.f32 %v2019, %v2347
      %2349 = vmatmul.bf16.gmra.mxu0 %v1145
      %v2350 = vpop.f32.mrf.mxu0
      %v2351 = vadd.f32 %v2022, %v2350
      %v2352 = vpop.f32.mrf.mxu0
      %v2353 = vadd.f32 %v2024, %v2352
      %2354 = vmatmul.bf16.gmra.mxu0 %v1148
      %v2355 = vpop.f32.mrf.mxu0
      %v2356 = vadd.f32 %v2027, %v2355
      %v2357 = vpop.f32.mrf.mxu0
      %v2358 = vadd.f32 %v2029, %v2357
      %2359 = vmatmul.bf16.gmra.mxu0 %v1151
      %v2360 = vpop.f32.mrf.mxu0
      %v2361 = vadd.f32 %v2032, %v2360
      %v2362 = vpop.f32.mrf.mxu0
      %v2363 = vadd.f32 %v2034, %v2362
      %2364 = vmatmul.bf16.gmra.mxu0 %v1154
      %v2365 = vpop.f32.mrf.mxu0
      %v2366 = vadd.f32 %v2037, %v2365
      %v2367 = vpop.f32.mrf.mxu0
      %v2368 = vadd.f32 %v2039, %v2367
      %2369 = vmatmul.bf16.gmra.mxu0 %v1157
      %v2370 = vpop.f32.mrf.mxu0
      %v2371 = vadd.f32 %v2042, %v2370
      %v2372 = vpop.f32.mrf.mxu0
      %v2373 = vadd.f32 %v2044, %v2372
      %2374 = vmatmul.bf16.gmra.mxu0 %v1160
      %v2375 = vpop.f32.mrf.mxu0
      %v2376 = vadd.f32 %v2047, %v2375
      %v2377 = vpop.f32.mrf.mxu0
      %v2378 = vadd.f32 %v2049, %v2377
      %2379 = vmatmul.bf16.gmra.mxu0 %v1163
      %v2380 = vpop.f32.mrf.mxu0
      %v2381 = vadd.f32 %v2052, %v2380
      %v2382 = vpop.f32.mrf.mxu0
      %v2383 = vadd.f32 %v2054, %v2382
      %2384 = vmatmul.bf16.gmra.mxu0 %v1166
      %v2385 = vpop.f32.mrf.mxu0
      %v2386 = vadd.f32 %v2057, %v2385
      %v2387 = vpop.f32.mrf.mxu0
      %v2388 = vadd.f32 %v2059, %v2387
      %2389 = vmatmul.bf16.gmra.mxu0 %v1169
      %v2390 = vpop.f32.mrf.mxu0
      %v2391 = vadd.f32 %v2062, %v2390
      %v2392 = vpop.f32.mrf.mxu0
      %v2393 = vadd.f32 %v2064, %v2392
      %2394 = vmatmul.bf16.gmra.mxu0 %v1172
      %v2395 = vpop.f32.mrf.mxu0
      %v2396 = vadd.f32 %v2067, %v2395
      %v2397 = vpop.f32.mrf.mxu0
      %v2398 = vadd.f32 %v2069, %v2397
      %2399 = vmatmul.bf16.gmra.mxu0 %v1175
      %v2400 = vpop.f32.mrf.mxu0
      %v2401 = vadd.f32 %v2072, %v2400
      %v2402 = vpop.f32.mrf.mxu0
      %v2403 = vadd.f32 %v2074, %v2402
      %2404 = vmatmul.bf16.gmra.mxu0 %v1178
      %v2405 = vpop.f32.mrf.mxu0
      %v2406 = vadd.f32 %v2077, %v2405
      %v2407 = vpop.f32.mrf.mxu0
      %v2408 = vadd.f32 %v2079, %v2407
      %2409 = vmatmul.bf16.gmra.mxu0 %v1181
      %v2410 = vpop.f32.mrf.mxu0
      %v2411 = vadd.f32 %v2082, %v2410
      %v2412 = vpop.f32.mrf.mxu0
      %v2413 = vadd.f32 %v2084, %v2412
      %2414 = vmatmul.bf16.gmra.mxu0 %v1184
      %v2415 = vpop.f32.mrf.mxu0
      %v2416 = vadd.f32 %v2087, %v2415
      %v2417 = vpop.f32.mrf.mxu0
      %v2418 = vadd.f32 %v2089, %v2417
      %2419 = vmatmul.bf16.gmra.mxu0 %v1187
      %v2420 = vpop.f32.mrf.mxu0
      %v2421 = vadd.f32 %v2092, %v2420
      %v2422 = vpop.f32.mrf.mxu0
      %v2423 = vadd.f32 %v2094, %v2422
      %2424 = vmatmul.bf16.gmra.mxu0 %v1190
      %v2425 = vpop.f32.mrf.mxu0
      %v2426 = vadd.f32 %v2097, %v2425
      %v2427 = vpop.f32.mrf.mxu0
      %v2428 = vadd.f32 %v2099, %v2427
      %2429 = vmatmul.bf16.gmra.mxu0 %v1193
      %v2430 = vpop.f32.mrf.mxu0
      %v2431 = vadd.f32 %v2102, %v2430
      %v2432 = vpop.f32.mrf.mxu0
      %v2433 = vadd.f32 %v2104, %v2432
      %2434 = vmatmul.bf16.gmra.mxu0 %v1196
      %v2435 = vpop.f32.mrf.mxu0
      %v2436 = vadd.f32 %v2107, %v2435
      %v2437 = vpop.f32.mrf.mxu0
      %v2438 = vadd.f32 %v2109, %v2437
      %2439 = vmatmul.bf16.gmra.mxu0 %v1199
      %v2440 = vpop.f32.mrf.mxu0
      %v2441 = vadd.f32 %v2112, %v2440
      %v2442 = vpop.f32.mrf.mxu0
      %v2443 = vadd.f32 %v2114, %v2442
      %2444 = vmatmul.bf16.gmra.mxu0 %v1202
      %v2445 = vpop.f32.mrf.mxu0
      %v2446 = vadd.f32 %v2117, %v2445
      %v2447 = vpop.f32.mrf.mxu0
      %v2448 = vadd.f32 %v2119, %v2447
      %2449 = vmatmul.bf16.gmra.mxu0 %v1205
      %v2450 = vpop.f32.mrf.mxu0
      %v2451 = vadd.f32 %v2122, %v2450
      %v2452 = vpop.f32.mrf.mxu0
      %v2453 = vadd.f32 %v2124, %v2452
      %2454 = vmatmul.bf16.gmra.mxu0 %v1208
      %v2455 = vpop.f32.mrf.mxu0
      %v2456 = vadd.f32 %v2127, %v2455
      %v2457 = vpop.f32.mrf.mxu0
      %v2458 = vadd.f32 %v2129, %v2457
      %2459 = vmatmul.bf16.gmra.mxu0 %v1211
      %v2460 = vpop.f32.mrf.mxu0
      %v2461 = vadd.f32 %v2132, %v2460
      %v2462 = vpop.f32.mrf.mxu0
      %v2463 = vadd.f32 %v2134, %v2462
      %2464 = vmatmul.bf16.gmra.mxu0 %v1214
      %v2465 = vpop.f32.mrf.mxu0
      %v2466 = vadd.f32 %v2137, %v2465
      %v2467 = vpop.f32.mrf.mxu0
      %v2468 = vadd.f32 %v2139, %v2467
      %2469 = vmatmul.bf16.gmra.mxu0 %v1217
      %v2470 = vpop.f32.mrf.mxu0
      %v2471 = vadd.f32 %v2142, %v2470
      %v2472 = vpop.f32.mrf.mxu0
      %v2473 = vadd.f32 %v2144, %v2472
      %2474 = vmatmul.bf16.gmra.mxu0 %v1220
      %v2475 = vpop.f32.mrf.mxu0
      %v2476 = vadd.f32 %v2147, %v2475
      %v2477 = vpop.f32.mrf.mxu0
      %v2478 = vadd.f32 %v2149, %v2477
      %2479 = vmatmul.bf16.gmra.mxu0 %v1223
      %v2480 = vpop.f32.mrf.mxu0
      %v2481 = vadd.f32 %v2152, %v2480
      %v2482 = vpop.f32.mrf.mxu0
      %v2483 = vadd.f32 %v2154, %v2482
      %2484 = vmatmul.bf16.gmra.mxu0 %v1226
      %v2485 = vpop.f32.mrf.mxu0
      %v2486 = vadd.f32 %v2157, %v2485
      %v2487 = vpop.f32.mrf.mxu0
      %v2488 = vadd.f32 %v2159, %v2487
      %2489 = vmatmul.bf16.gmra.mxu0 %v1229
      %v2490 = vpop.f32.mrf.mxu0
      %v2491 = vadd.f32 %v2162, %v2490
      %v2492 = vpop.f32.mrf.mxu0
      %v2493 = vadd.f32 %v2164, %v2492
      %2494 = vmatmul.bf16.gmra.mxu0 %v1232
      %v2495 = vpop.f32.mrf.mxu0
      %v2496 = vadd.f32 %v2167, %v2495
      %v2497 = vpop.f32.mrf.mxu0
      %v2498 = vadd.f32 %v2169, %v2497
      %2499 = vmatmul.bf16.gmra.mxu0 %v1235
      %v2500 = vpop.f32.mrf.mxu0
      %v2501 = vadd.f32 %v2172, %v2500
      %v2502 = vpop.f32.mrf.mxu0
      %v2503 = vadd.f32 %v2174, %v2502
      %2504 = vmatmul.bf16.gmra.mxu0 %v1238
      %v2505 = vpop.f32.mrf.mxu0
      %v2506 = vadd.f32 %v2177, %v2505
      %v2507 = vpop.f32.mrf.mxu0
      %v2508 = vadd.f32 %v2179, %v2507
      %2509 = vmatmul.bf16.gmra.mxu0 %v1241
      %v2510 = vpop.f32.mrf.mxu0
      %v2511 = vadd.f32 %v2182, %v2510
      %v2512 = vpop.f32.mrf.mxu0
      %v2513 = vadd.f32 %v2184, %v2512
      %2514 = vmatmul.bf16.gmra.mxu0 %v1244
      %v2515 = vpop.f32.mrf.mxu0
      %v2516 = vadd.f32 %v2187, %v2515
      %v2517 = vpop.f32.mrf.mxu0
      %v2518 = vadd.f32 %v2189, %v2517
      %2519 = vmatmul.bf16.gmra.mxu0 %v1247
      %v2520 = vpop.f32.mrf.mxu0
      %v2521 = vadd.f32 %v2192, %v2520
      %v2522 = vpop.f32.mrf.mxu0
      %v2523 = vadd.f32 %v2194, %v2522
      %2524 = vmatmul.bf16.gmra.mxu0 %v1250
      %v2525 = vpop.f32.mrf.mxu0
      %v2526 = vadd.f32 %v2197, %v2525
      %v2527 = vpop.f32.mrf.mxu0
      %v2528 = vadd.f32 %v2199, %v2527
      %2529 = vmatmul.bf16.gmra.mxu0 %v1253
      %v2530 = vpop.f32.mrf.mxu0
      %v2531 = vadd.f32 %v2202, %v2530
      %v2532 = vpop.f32.mrf.mxu0
      %v2533 = vadd.f32 %v2204, %v2532
      %2534 = vmatmul.bf16.gmra.mxu0 %v1256
      %v2535 = vpop.f32.mrf.mxu0
      %v2536 = vadd.f32 %v2207, %v2535
      %v2537 = vpop.f32.mrf.mxu0
      %v2538 = vadd.f32 %v2209, %v2537
      %2539 = vmatmul.bf16.gmra.mxu0 %v1259
      %v2540 = vpop.f32.mrf.mxu0
      %v2541 = vadd.f32 %v2212, %v2540
      %v2542 = vpop.f32.mrf.mxu0
      %v2543 = vadd.f32 %v2214, %v2542
      %2544 = vmatmul.bf16.gmra.mxu0 %v1262
      %v2545 = vpop.f32.mrf.mxu0
      %v2546 = vadd.f32 %v2217, %v2545
      %v2547 = vpop.f32.mrf.mxu0
      %v2548 = vadd.f32 %v2219, %v2547
      %2549 = vmatmul.bf16.gmra.mxu0 %v1265
      %v2550 = vpop.f32.mrf.mxu0
      %v2551 = vadd.f32 %v2222, %v2550
      %v2552 = vpop.f32.mrf.mxu0
      %v2553 = vadd.f32 %v2224, %v2552
      %2554 = vmatmul.bf16.gmra.mxu0 %v1268
      %v2555 = vpop.f32.mrf.mxu0
      %v2556 = vadd.f32 %v2227, %v2555
      %v2557 = vpop.f32.mrf.mxu0
      %v2558 = vadd.f32 %v2229, %v2557
      %2559 = vmatmul.bf16.gmra.mxu0 %v1271
      %v2560 = vpop.f32.mrf.mxu0
      %v2561 = vadd.f32 %v2232, %v2560
      %v2562 = vpop.f32.mrf.mxu0
      %v2563 = vadd.f32 %v2234, %v2562
      %2564 = vmatmul.bf16.gmra.mxu0 %v1274
      %v2565 = vpop.f32.mrf.mxu0
      %v2566 = vadd.f32 %v2237, %v2565
      %v2567 = vpop.f32.mrf.mxu0
      %v2568 = vadd.f32 %v2239, %v2567
      %2569 = vmatmul.bf16.gmra.mxu0 %v1277
      %v2570 = vpop.f32.mrf.mxu0
      %v2571 = vadd.f32 %v2242, %v2570
      %v2572 = vpop.f32.mrf.mxu0
      %v2573 = vadd.f32 %v2244, %v2572
      %2574 = vmatmul.bf16.gmra.mxu0 %v1280
      %v2575 = vpop.f32.mrf.mxu0
      %v2576 = vadd.f32 %v2247, %v2575
      %v2577 = vpop.f32.mrf.mxu0
      %v2578 = vadd.f32 %v2249, %v2577
      %2579 = vmatmul.bf16.gmra.mxu0 %v1283
      %v2580 = vpop.f32.mrf.mxu0
      %v2581 = vadd.f32 %v2252, %v2580
      %v2582 = vpop.f32.mrf.mxu0
      %v2583 = vadd.f32 %v2254, %v2582
      %2584 = vmatmul.bf16.gmra.mxu0 %v1286
      %v2585 = vpop.f32.mrf.mxu0
      %v2586 = vadd.f32 %v2257, %v2585
      %v2587 = vpop.f32.mrf.mxu0
      %v2588 = vadd.f32 %v2259, %v2587
      %2589 = vmatmul.bf16.gmra.mxu0 %v1289
      %v2590 = vpop.f32.mrf.mxu0
      %v2591 = vadd.f32 %v2262, %v2590
      %v2592 = vpop.f32.mrf.mxu0
      %v2593 = vadd.f32 %v2264, %v2592
      %2594 = vmatmul.bf16.gmra.mxu0 %v1292
      %v2595 = vpop.f32.mrf.mxu0
      %v2596 = vadd.f32 %v2267, %v2595
      %v2597 = vpop.f32.mrf.mxu0
      %v2598 = vadd.f32 %v2269, %v2597
      %2599 = vmatmul.bf16.gmra.mxu0 %v1295
      %v2600 = vpop.f32.mrf.mxu0
      %v2601 = vadd.f32 %v2272, %v2600
      %v2602 = vpop.f32.mrf.mxu0
      %v2603 = vadd.f32 %v2274, %v2602
      %2604 = vmatmul.bf16.gmra.mxu0 %v1298
      %v2605 = vpop.f32.mrf.mxu0
      %v2606 = vadd.f32 %v2277, %v2605
      %v2607 = vpop.f32.mrf.mxu0
      %v2608 = vadd.f32 %v2279, %v2607
      %2609 = vmatmul.bf16.gmra.mxu0 %v1301
      %v2610 = vpop.f32.mrf.mxu0
      %v2611 = vadd.f32 %v2282, %v2610
      %v2612 = vpop.f32.mrf.mxu0
      %v2613 = vadd.f32 %v2284, %v2612
      %2614 = vmatmul.bf16.gmra.mxu0 %v1304
      %v2615 = vpop.f32.mrf.mxu0
      %v2616 = vadd.f32 %v2287, %v2615
      %v2617 = vpop.f32.mrf.mxu0
      %v2618 = vadd.f32 %v2289, %v2617
      %2619 = vmatmul.bf16.gmra.mxu0 %v1307
      %v2620 = vpop.f32.mrf.mxu0
      %v2621 = vadd.f32 %v2292, %v2620
      %v2622 = vpop.f32.mrf.mxu0
      %v2623 = vadd.f32 %v2294, %v2622
      %2624 = vmatmul.bf16.gmra.mxu0 %v1310
      %v2625 = vpop.f32.mrf.mxu0
      %v2626 = vadd.f32 %v2297, %v2625
      %v2627 = vpop.f32.mrf.mxu0
      %v2628 = vadd.f32 %v2299, %v2627
      %2629 = vmatmul.bf16.gmra.mxu0 %v1313
      %v2630 = vpop.f32.mrf.mxu0
      %v2631 = vadd.f32 %v2302, %v2630
      %v2632 = vpop.f32.mrf.mxu0
      %v2633 = vadd.f32 %v2304, %v2632
      %2634 = vmatmul.bf16.gmra.mxu0 %v1316
      %v2635 = vpop.f32.mrf.mxu0
      %v2636 = vadd.f32 %v2307, %v2635
      %v2637 = vpop.f32.mrf.mxu0
      %v2638 = vadd.f32 %v2309, %v2637
      %2639 = vdwg.mxu0
      %v2640 = vmax.f32 %v2321, 0.0
      %v2641 = vmax.f32 %v2323, 0.0
      %v2642 = vmax.f32 %v2326, 0.0
      %v2643 = vmax.f32 %v2328, 0.0
      %v2644 = vmax.f32 %v2331, 0.0
      %v2645 = vmax.f32 %v2333, 0.0
      %v2646 = vmax.f32 %v2336, 0.0
      %v2647 = vmax.f32 %v2338, 0.0
      %v2648 = vmax.f32 %v2341, 0.0
      %v2649 = vmax.f32 %v2343, 0.0
      %v2650 = vmax.f32 %v2346, 0.0
      %v2651 = vmax.f32 %v2348, 0.0
      %v2652 = vmax.f32 %v2351, 0.0
      %v2653 = vmax.f32 %v2353, 0.0
      %v2654 = vmax.f32 %v2356, 0.0
      %v2655 = vmax.f32 %v2358, 0.0
      %v2656 = vmax.f32 %v2361, 0.0
      %v2657 = vmax.f32 %v2363, 0.0
      %v2658 = vmax.f32 %v2366, 0.0
      %v2659 = vmax.f32 %v2368, 0.0
      %v2660 = vmax.f32 %v2371, 0.0
      %v2661 = vmax.f32 %v2373, 0.0
      %v2662 = vmax.f32 %v2376, 0.0
      %v2663 = vmax.f32 %v2378, 0.0
      %v2664 = vmax.f32 %v2381, 0.0
      %v2665 = vmax.f32 %v2383, 0.0
      %v2666 = vmax.f32 %v2386, 0.0
      %v2667 = vmax.f32 %v2388, 0.0
      %v2668 = vmax.f32 %v2391, 0.0
      %v2669 = vmax.f32 %v2393, 0.0
      %v2670 = vmax.f32 %v2396, 0.0
      %v2671 = vmax.f32 %v2398, 0.0
      %v2672 = vmax.f32 %v2401, 0.0
      %v2673 = vmax.f32 %v2403, 0.0
      %v2674 = vmax.f32 %v2406, 0.0
      %v2675 = vmax.f32 %v2408, 0.0
      %v2676 = vmax.f32 %v2411, 0.0
      %v2677 = vmax.f32 %v2413, 0.0
      %v2678 = vmax.f32 %v2416, 0.0
      %v2679 = vmax.f32 %v2418, 0.0
      %v2680 = vmax.f32 %v2421, 0.0
      %v2681 = vmax.f32 %v2423, 0.0
      %v2682 = vmax.f32 %v2426, 0.0
      %v2683 = vmax.f32 %v2428, 0.0
      %v2684 = vmax.f32 %v2431, 0.0
      %v2685 = vmax.f32 %v2433, 0.0
      %v2686 = vmax.f32 %v2436, 0.0
      %v2687 = vmax.f32 %v2438, 0.0
      %v2688 = vmax.f32 %v2441, 0.0
      %v2689 = vmax.f32 %v2443, 0.0
      %v2690 = vmax.f32 %v2446, 0.0
      %v2691 = vmax.f32 %v2448, 0.0
      %v2692 = vmax.f32 %v2451, 0.0
      %v2693 = vmax.f32 %v2453, 0.0
      %v2694 = vmax.f32 %v2456, 0.0
      %v2695 = vmax.f32 %v2458, 0.0
      %v2696 = vmax.f32 %v2461, 0.0
      %v2697 = vmax.f32 %v2463, 0.0
      %v2698 = vmax.f32 %v2466, 0.0
      %v2699 = vmax.f32 %v2468, 0.0
      %v2700 = vmax.f32 %v2471, 0.0
      %v2701 = vmax.f32 %v2473, 0.0
      %v2702 = vmax.f32 %v2476, 0.0
      %v2703 = vmax.f32 %v2478, 0.0
      %v2704 = vmax.f32 %v2481, 0.0
      %v2705 = vmax.f32 %v2483, 0.0
      %v2706 = vmax.f32 %v2486, 0.0
      %v2707 = vmax.f32 %v2488, 0.0
      %v2708 = vmax.f32 %v2491, 0.0
      %v2709 = vmax.f32 %v2493, 0.0
      %v2710 = vmax.f32 %v2496, 0.0
      %v2711 = vmax.f32 %v2498, 0.0
      %v2712 = vmax.f32 %v2501, 0.0
      %v2713 = vmax.f32 %v2503, 0.0
      %v2714 = vmax.f32 %v2506, 0.0
      %v2715 = vmax.f32 %v2508, 0.0
      %v2716 = vmax.f32 %v2511, 0.0
      %v2717 = vmax.f32 %v2513, 0.0
      %v2718 = vmax.f32 %v2516, 0.0
      %v2719 = vmax.f32 %v2518, 0.0
      %v2720 = vmax.f32 %v2521, 0.0
      %v2721 = vmax.f32 %v2523, 0.0
      %v2722 = vmax.f32 %v2526, 0.0
      %v2723 = vmax.f32 %v2528, 0.0
      %v2724 = vmax.f32 %v2531, 0.0
      %v2725 = vmax.f32 %v2533, 0.0
      %v2726 = vmax.f32 %v2536, 0.0
      %v2727 = vmax.f32 %v2538, 0.0
      %v2728 = vmax.f32 %v2541, 0.0
      %v2729 = vmax.f32 %v2543, 0.0
      %v2730 = vmax.f32 %v2546, 0.0
      %v2731 = vmax.f32 %v2548, 0.0
      %v2732 = vmax.f32 %v2551, 0.0
      %v2733 = vmax.f32 %v2553, 0.0
      %v2734 = vmax.f32 %v2556, 0.0
      %v2735 = vmax.f32 %v2558, 0.0
      %v2736 = vmax.f32 %v2561, 0.0
      %v2737 = vmax.f32 %v2563, 0.0
      %v2738 = vmax.f32 %v2566, 0.0
      %v2739 = vmax.f32 %v2568, 0.0
      %v2740 = vmax.f32 %v2571, 0.0
      %v2741 = vmax.f32 %v2573, 0.0
      %v2742 = vmax.f32 %v2576, 0.0
      %v2743 = vmax.f32 %v2578, 0.0
      %v2744 = vmax.f32 %v2581, 0.0
      %v2745 = vmax.f32 %v2583, 0.0
      %v2746 = vmax.f32 %v2586, 0.0
      %v2747 = vmax.f32 %v2588, 0.0
      %v2748 = vmax.f32 %v2591, 0.0
      %v2749 = vmax.f32 %v2593, 0.0
      %v2750 = vmax.f32 %v2596, 0.0
      %v2751 = vmax.f32 %v2598, 0.0
      %v2752 = vmax.f32 %v2601, 0.0
      %v2753 = vmax.f32 %v2603, 0.0
      %v2754 = vmax.f32 %v2606, 0.0
      %v2755 = vmax.f32 %v2608, 0.0
      %v2756 = vmax.f32 %v2611, 0.0
      %v2757 = vmax.f32 %v2613, 0.0
      %v2758 = vmax.f32 %v2616, 0.0
      %v2759 = vmax.f32 %v2618, 0.0
      %v2760 = vmax.f32 %v2621, 0.0
      %v2761 = vmax.f32 %v2623, 0.0
      %v2762 = vmax.f32 %v2626, 0.0
      %v2763 = vmax.f32 %v2628, 0.0
      %v2764 = vmax.f32 %v2631, 0.0
      %v2765 = vmax.f32 %v2633, 0.0
      %v2766 = vmax.f32 %v2636, 0.0
      %v2767 = vmax.f32 %v2638, 0.0
      %v2768 = vpack.c.bf16 %v2640, %v2640
      %v2769 = vpack.c.bf16 %v2641, %v2641
      %v2770 = vpack.c.bf16 %v2642, %v2642
      %v2771 = vpack.c.bf16 %v2643, %v2643
      %v2772 = vpack.c.bf16 %v2644, %v2644
      %v2773 = vpack.c.bf16 %v2645, %v2645
      %v2774 = vpack.c.bf16 %v2646, %v2646
      %v2775 = vpack.c.bf16 %v2647, %v2647
      %v2776 = vpack.c.bf16 %v2648, %v2648
      %v2777 = vpack.c.bf16 %v2649, %v2649
      %v2778 = vpack.c.bf16 %v2650, %v2650
      %v2779 = vpack.c.bf16 %v2651, %v2651
      %v2780 = vpack.c.bf16 %v2652, %v2652
      %v2781 = vpack.c.bf16 %v2653, %v2653
      %v2782 = vpack.c.bf16 %v2654, %v2654
      %v2783 = vpack.c.bf16 %v2655, %v2655
      %v2784 = vpack.c.bf16 %v2656, %v2656
      %v2785 = vpack.c.bf16 %v2657, %v2657
      %v2786 = vpack.c.bf16 %v2658, %v2658
      %v2787 = vpack.c.bf16 %v2659, %v2659
      %v2788 = vpack.c.bf16 %v2660, %v2660
      %v2789 = vpack.c.bf16 %v2661, %v2661
      %v2790 = vpack.c.bf16 %v2662, %v2662
      %v2791 = vpack.c.bf16 %v2663, %v2663
      %v2792 = vpack.c.bf16 %v2664, %v2664
      %v2793 = vpack.c.bf16 %v2665, %v2665
      %v2794 = vpack.c.bf16 %v2666, %v2666
      %v2795 = vpack.c.bf16 %v2667, %v2667
      %v2796 = vpack.c.bf16 %v2668, %v2668
      %v2797 = vpack.c.bf16 %v2669, %v2669
      %v2798 = vpack.c.bf16 %v2670, %v2670
      %v2799 = vpack.c.bf16 %v2671, %v2671
      %v2800 = vpack.c.bf16 %v2672, %v2672
      %v2801 = vpack.c.bf16 %v2673, %v2673
      %v2802 = vpack.c.bf16 %v2674, %v2674
      %v2803 = vpack.c.bf16 %v2675, %v2675
      %v2804 = vpack.c.bf16 %v2676, %v2676
      %v2805 = vpack.c.bf16 %v2677, %v2677
      %v2806 = vpack.c.bf16 %v2678, %v2678
      %v2807 = vpack.c.bf16 %v2679, %v2679
      %v2808 = vpack.c.bf16 %v2680, %v2680
      %v2809 = vpack.c.bf16 %v2681, %v2681
      %v2810 = vpack.c.bf16 %v2682, %v2682
      %v2811 = vpack.c.bf16 %v2683, %v2683
      %v2812 = vpack.c.bf16 %v2684, %v2684
      %v2813 = vpack.c.bf16 %v2685, %v2685
      %v2814 = vpack.c.bf16 %v2686, %v2686
      %v2815 = vpack.c.bf16 %v2687, %v2687
      %v2816 = vpack.c.bf16 %v2688, %v2688
      %v2817 = vpack.c.bf16 %v2689, %v2689
      %v2818 = vpack.c.bf16 %v2690, %v2690
      %v2819 = vpack.c.bf16 %v2691, %v2691
      %v2820 = vpack.c.bf16 %v2692, %v2692
      %v2821 = vpack.c.bf16 %v2693, %v2693
      %v2822 = vpack.c.bf16 %v2694, %v2694
      %v2823 = vpack.c.bf16 %v2695, %v2695
      %v2824 = vpack.c.bf16 %v2696, %v2696
      %v2825 = vpack.c.bf16 %v2697, %v2697
      %v2826 = vpack.c.bf16 %v2698, %v2698
      %v2827 = vpack.c.bf16 %v2699, %v2699
      %v2828 = vpack.c.bf16 %v2700, %v2700
      %v2829 = vpack.c.bf16 %v2701, %v2701
      %v2830 = vpack.c.bf16 %v2702, %v2702
      %v2831 = vpack.c.bf16 %v2703, %v2703
      %v2832 = vpack.c.bf16 %v2704, %v2704
      %v2833 = vpack.c.bf16 %v2705, %v2705
      %v2834 = vpack.c.bf16 %v2706, %v2706
      %v2835 = vpack.c.bf16 %v2707, %v2707
      %v2836 = vpack.c.bf16 %v2708, %v2708
      %v2837 = vpack.c.bf16 %v2709, %v2709
      %v2838 = vpack.c.bf16 %v2710, %v2710
      %v2839 = vpack.c.bf16 %v2711, %v2711
      %v2840 = vpack.c.bf16 %v2712, %v2712
      %v2841 = vpack.c.bf16 %v2713, %v2713
      %v2842 = vpack.c.bf16 %v2714, %v2714
      %v2843 = vpack.c.bf16 %v2715, %v2715
      %v2844 = vpack.c.bf16 %v2716, %v2716
      %v2845 = vpack.c.bf16 %v2717, %v2717
      %v2846 = vpack.c.bf16 %v2718, %v2718
      %v2847 = vpack.c.bf16 %v2719, %v2719
      %v2848 = vpack.c.bf16 %v2720, %v2720
      %v2849 = vpack.c.bf16 %v2721, %v2721
      %v2850 = vpack.c.bf16 %v2722, %v2722
      %v2851 = vpack.c.bf16 %v2723, %v2723
      %v2852 = vpack.c.bf16 %v2724, %v2724
      %v2853 = vpack.c.bf16 %v2725, %v2725
      %v2854 = vpack.c.bf16 %v2726, %v2726
      %v2855 = vpack.c.bf16 %v2727, %v2727
      %v2856 = vpack.c.bf16 %v2728, %v2728
      %v2857 = vpack.c.bf16 %v2729, %v2729
      %v2858 = vpack.c.bf16 %v2730, %v2730
      %v2859 = vpack.c.bf16 %v2731, %v2731
      %v2860 = vpack.c.bf16 %v2732, %v2732
      %v2861 = vpack.c.bf16 %v2733, %v2733
      %v2862 = vpack.c.bf16 %v2734, %v2734
      %v2863 = vpack.c.bf16 %v2735, %v2735
      %v2864 = vpack.c.bf16 %v2736, %v2736
      %v2865 = vpack.c.bf16 %v2737, %v2737
      %v2866 = vpack.c.bf16 %v2738, %v2738
      %v2867 = vpack.c.bf16 %v2739, %v2739
      %v2868 = vpack.c.bf16 %v2740, %v2740
      %v2869 = vpack.c.bf16 %v2741, %v2741
      %v2870 = vpack.c.bf16 %v2742, %v2742
      %v2871 = vpack.c.bf16 %v2743, %v2743
      %v2872 = vpack.c.bf16 %v2744, %v2744
      %v2873 = vpack.c.bf16 %v2745, %v2745
      %v2874 = vpack.c.bf16 %v2746, %v2746
      %v2875 = vpack.c.bf16 %v2747, %v2747
      %v2876 = vpack.c.bf16 %v2748, %v2748
      %v2877 = vpack.c.bf16 %v2749, %v2749
      %v2878 = vpack.c.bf16 %v2750, %v2750
      %v2879 = vpack.c.bf16 %v2751, %v2751
      %v2880 = vpack.c.bf16 %v2752, %v2752
      %v2881 = vpack.c.bf16 %v2753, %v2753
      %v2882 = vpack.c.bf16 %v2754, %v2754
      %v2883 = vpack.c.bf16 %v2755, %v2755
      %v2884 = vpack.c.bf16 %v2756, %v2756
      %v2885 = vpack.c.bf16 %v2757, %v2757
      %v2886 = vpack.c.bf16 %v2758, %v2758
      %v2887 = vpack.c.bf16 %v2759, %v2759
      %v2888 = vpack.c.bf16 %v2760, %v2760
      %v2889 = vpack.c.bf16 %v2761, %v2761
      %v2890 = vpack.c.bf16 %v2762, %v2762
      %v2891 = vpack.c.bf16 %v2763, %v2763
      %v2892 = vpack.c.bf16 %v2764, %v2764
      %v2893 = vpack.c.bf16 %v2765, %v2765
      %v2894 = vpack.c.bf16 %v2766, %v2766
      %v2895 = vpack.c.bf16 %v2767, %v2767
      %vm2896 = vcmask 289792
      %2897 = vst.msk [vmem:[%s175] sm:$0xf] %vm2896, %v2768
      %2898 = vst.msk [vmem:[%s175 + $0x4] sm:$0xf] %vm2896, %v2769
      %2899 = vst.msk [vmem:[%s175 + $0x8] sm:$0xf] %vm2896, %v2770
      %2900 = vst.msk [vmem:[%s175 + $0xc] sm:$0xf] %vm2896, %v2771
      %2901 = vst.msk [vmem:[%s175 + $0x10] sm:$0xf] %vm2896, %v2772
      %2902 = vst.msk [vmem:[%s175 + $0x14] sm:$0xf] %vm2896, %v2773
      %2903 = vst.msk [vmem:[%s175 + $0x18] sm:$0xf] %vm2896, %v2774
      %2904 = vst.msk [vmem:[%s175 + $0x1c] sm:$0xf] %vm2896, %v2775
      %2905 = vst.msk [vmem:[%s175 + $0x20] sm:$0xf] %vm2896, %v2776
      %2906 = vst.msk [vmem:[%s175 + $0x24] sm:$0xf] %vm2896, %v2777
      %2907 = vst.msk [vmem:[%s175 + $0x28] sm:$0xf] %vm2896, %v2778
      %2908 = vst.msk [vmem:[%s175 + $0x2c] sm:$0xf] %vm2896, %v2779
      %2909 = vst.msk [vmem:[%s175 + $0x30] sm:$0xf] %vm2896, %v2780
      %2910 = vst.msk [vmem:[%s175 + $0x34] sm:$0xf] %vm2896, %v2781
      %2911 = vst.msk [vmem:[%s175 + $0x38] sm:$0xf] %vm2896, %v2782
      %2912 = vst.msk [vmem:[%s175 + $0x3c] sm:$0xf] %vm2896, %v2783
      %2913 = vst.msk [vmem:[%s175 + $0x40] sm:$0xf] %vm2896, %v2784
      %2914 = vst.msk [vmem:[%s175 + $0x44] sm:$0xf] %vm2896, %v2785
      %2915 = vst.msk [vmem:[%s175 + $0x48] sm:$0xf] %vm2896, %v2786
      %2916 = vst.msk [vmem:[%s175 + $0x4c] sm:$0xf] %vm2896, %v2787
      %2917 = vst.msk [vmem:[%s175 + $0x50] sm:$0xf] %vm2896, %v2788
      %2918 = vst.msk [vmem:[%s175 + $0x54] sm:$0xf] %vm2896, %v2789
      %2919 = vst.msk [vmem:[%s175 + $0x58] sm:$0xf] %vm2896, %v2790
      %2920 = vst.msk [vmem:[%s175 + $0x5c] sm:$0xf] %vm2896, %v2791
      %2921 = vst.msk [vmem:[%s175 + $0x60] sm:$0xf] %vm2896, %v2792
      %2922 = vst.msk [vmem:[%s175 + $0x64] sm:$0xf] %vm2896, %v2793
      %2923 = vst.msk [vmem:[%s175 + $0x68] sm:$0xf] %vm2896, %v2794
      %2924 = vst.msk [vmem:[%s175 + $0x6c] sm:$0xf] %vm2896, %v2795
      %2925 = vst.msk [vmem:[%s175 + $0x70] sm:$0xf] %vm2896, %v2796
      %2926 = vst.msk [vmem:[%s175 + $0x74] sm:$0xf] %vm2896, %v2797
      %2927 = vst.msk [vmem:[%s175 + $0x78] sm:$0xf] %vm2896, %v2798
      %2928 = vst.msk [vmem:[%s175 + $0x7c] sm:$0xf] %vm2896, %v2799
      %2929 = vst.msk [vmem:[%s175 + $0x80] sm:$0xf] %vm2896, %v2800
      %2930 = vst.msk [vmem:[%s175 + $0x84] sm:$0xf] %vm2896, %v2801
      %2931 = vst.msk [vmem:[%s175 + $0x88] sm:$0xf] %vm2896, %v2802
      %2932 = vst.msk [vmem:[%s175 + $0x8c] sm:$0xf] %vm2896, %v2803
      %2933 = vst.msk [vmem:[%s175 + $0x90] sm:$0xf] %vm2896, %v2804
      %2934 = vst.msk [vmem:[%s175 + $0x94] sm:$0xf] %vm2896, %v2805
      %2935 = vst.msk [vmem:[%s175 + $0x98] sm:$0xf] %vm2896, %v2806
      %2936 = vst.msk [vmem:[%s175 + $0x9c] sm:$0xf] %vm2896, %v2807
      %2937 = vst.msk [vmem:[%s175 + $0xa0] sm:$0xf] %vm2896, %v2808
      %2938 = vst.msk [vmem:[%s175 + $0xa4] sm:$0xf] %vm2896, %v2809
      %2939 = vst.msk [vmem:[%s175 + $0xa8] sm:$0xf] %vm2896, %v2810
      %2940 = vst.msk [vmem:[%s175 + $0xac] sm:$0xf] %vm2896, %v2811
      %2941 = vst.msk [vmem:[%s175 + $0xb0] sm:$0xf] %vm2896, %v2812
      %2942 = vst.msk [vmem:[%s175 + $0xb4] sm:$0xf] %vm2896, %v2813
      %2943 = vst.msk [vmem:[%s175 + $0xb8] sm:$0xf] %vm2896, %v2814
      %2944 = vst.msk [vmem:[%s175 + $0xbc] sm:$0xf] %vm2896, %v2815
      %2945 = vst.msk [vmem:[%s175 + $0xc0] sm:$0xf] %vm2896, %v2816
      %2946 = vst.msk [vmem:[%s175 + $0xc4] sm:$0xf] %vm2896, %v2817
      %2947 = vst.msk [vmem:[%s175 + $0xc8] sm:$0xf] %vm2896, %v2818
      %2948 = vst.msk [vmem:[%s175 + $0xcc] sm:$0xf] %vm2896, %v2819
      %2949 = vst.msk [vmem:[%s175 + $0xd0] sm:$0xf] %vm2896, %v2820
      %2950 = vst.msk [vmem:[%s175 + $0xd4] sm:$0xf] %vm2896, %v2821
      %2951 = vst.msk [vmem:[%s175 + $0xd8] sm:$0xf] %vm2896, %v2822
      %2952 = vst.msk [vmem:[%s175 + $0xdc] sm:$0xf] %vm2896, %v2823
      %2953 = vst.msk [vmem:[%s175 + $0xe0] sm:$0xf] %vm2896, %v2824
      %2954 = vst.msk [vmem:[%s175 + $0xe4] sm:$0xf] %vm2896, %v2825
      %2955 = vst.msk [vmem:[%s175 + $0xe8] sm:$0xf] %vm2896, %v2826
      %2956 = vst.msk [vmem:[%s175 + $0xec] sm:$0xf] %vm2896, %v2827
      %2957 = vst.msk [vmem:[%s175 + $0xf0] sm:$0xf] %vm2896, %v2828
      %2958 = vst.msk [vmem:[%s175 + $0xf4] sm:$0xf] %vm2896, %v2829
      %2959 = vst.msk [vmem:[%s175 + $0xf8] sm:$0xf] %vm2896, %v2830
      %2960 = vst.msk [vmem:[%s175 + $0xfc] sm:$0xf] %vm2896, %v2831
      %2961 = vst.msk [vmem:[%s175 + $0x100] sm:$0xf] %vm2896, %v2832
      %2962 = vst.msk [vmem:[%s175 + $0x104] sm:$0xf] %vm2896, %v2833
      %2963 = vst.msk [vmem:[%s175 + $0x108] sm:$0xf] %vm2896, %v2834
      %2964 = vst.msk [vmem:[%s175 + $0x10c] sm:$0xf] %vm2896, %v2835
      %2965 = vst.msk [vmem:[%s175 + $0x110] sm:$0xf] %vm2896, %v2836
      %2966 = vst.msk [vmem:[%s175 + $0x114] sm:$0xf] %vm2896, %v2837
      %2967 = vst.msk [vmem:[%s175 + $0x118] sm:$0xf] %vm2896, %v2838
      %2968 = vst.msk [vmem:[%s175 + $0x11c] sm:$0xf] %vm2896, %v2839
      %2969 = vst.msk [vmem:[%s175 + $0x120] sm:$0xf] %vm2896, %v2840
      %2970 = vst.msk [vmem:[%s175 + $0x124] sm:$0xf] %vm2896, %v2841
      %2971 = vst.msk [vmem:[%s175 + $0x128] sm:$0xf] %vm2896, %v2842
      %2972 = vst.msk [vmem:[%s175 + $0x12c] sm:$0xf] %vm2896, %v2843
      %2973 = vst.msk [vmem:[%s175 + $0x130] sm:$0xf] %vm2896, %v2844
      %2974 = vst.msk [vmem:[%s175 + $0x134] sm:$0xf] %vm2896, %v2845
      %2975 = vst.msk [vmem:[%s175 + $0x138] sm:$0xf] %vm2896, %v2846
      %2976 = vst.msk [vmem:[%s175 + $0x13c] sm:$0xf] %vm2896, %v2847
      %2977 = vst.msk [vmem:[%s175 + $0x140] sm:$0xf] %vm2896, %v2848
      %2978 = vst.msk [vmem:[%s175 + $0x144] sm:$0xf] %vm2896, %v2849
      %2979 = vst.msk [vmem:[%s175 + $0x148] sm:$0xf] %vm2896, %v2850
      %2980 = vst.msk [vmem:[%s175 + $0x14c] sm:$0xf] %vm2896, %v2851
      %2981 = vst.msk [vmem:[%s175 + $0x150] sm:$0xf] %vm2896, %v2852
      %2982 = vst.msk [vmem:[%s175 + $0x154] sm:$0xf] %vm2896, %v2853
      %2983 = vst.msk [vmem:[%s175 + $0x158] sm:$0xf] %vm2896, %v2854
      %2984 = vst.msk [vmem:[%s175 + $0x15c] sm:$0xf] %vm2896, %v2855
      %2985 = vst.msk [vmem:[%s175 + $0x160] sm:$0xf] %vm2896, %v2856
      %2986 = vst.msk [vmem:[%s175 + $0x164] sm:$0xf] %vm2896, %v2857
      %2987 = vst.msk [vmem:[%s175 + $0x168] sm:$0xf] %vm2896, %v2858
      %2988 = vst.msk [vmem:[%s175 + $0x16c] sm:$0xf] %vm2896, %v2859
      %2989 = vst.msk [vmem:[%s175 + $0x170] sm:$0xf] %vm2896, %v2860
      %2990 = vst.msk [vmem:[%s175 + $0x174] sm:$0xf] %vm2896, %v2861
      %2991 = vst.msk [vmem:[%s175 + $0x178] sm:$0xf] %vm2896, %v2862
      %2992 = vst.msk [vmem:[%s175 + $0x17c] sm:$0xf] %vm2896, %v2863
      %2993 = vst.msk [vmem:[%s175 + $0x180] sm:$0xf] %vm2896, %v2864
      %2994 = vst.msk [vmem:[%s175 + $0x184] sm:$0xf] %vm2896, %v2865
      %2995 = vst.msk [vmem:[%s175 + $0x188] sm:$0xf] %vm2896, %v2866
      %2996 = vst.msk [vmem:[%s175 + $0x18c] sm:$0xf] %vm2896, %v2867
      %2997 = vst.msk [vmem:[%s175 + $0x190] sm:$0xf] %vm2896, %v2868
      %2998 = vst.msk [vmem:[%s175 + $0x194] sm:$0xf] %vm2896, %v2869
      %2999 = vst.msk [vmem:[%s175 + $0x198] sm:$0xf] %vm2896, %v2870
      %3000 = vst.msk [vmem:[%s175 + $0x19c] sm:$0xf] %vm2896, %v2871
      %3001 = vst.msk [vmem:[%s175 + $0x1a0] sm:$0xf] %vm2896, %v2872
      %3002 = vst.msk [vmem:[%s175 + $0x1a4] sm:$0xf] %vm2896, %v2873
      %3003 = vst.msk [vmem:[%s175 + $0x1a8] sm:$0xf] %vm2896, %v2874
      %3004 = vst.msk [vmem:[%s175 + $0x1ac] sm:$0xf] %vm2896, %v2875
      %3005 = vst.msk [vmem:[%s175 + $0x1b0] sm:$0xf] %vm2896, %v2876
      %3006 = vst.msk [vmem:[%s175 + $0x1b4] sm:$0xf] %vm2896, %v2877
      %3007 = vst.msk [vmem:[%s175 + $0x1b8] sm:$0xf] %vm2896, %v2878
      %3008 = vst.msk [vmem:[%s175 + $0x1bc] sm:$0xf] %vm2896, %v2879
      %3009 = vst.msk [vmem:[%s175 + $0x1c0] sm:$0xf] %vm2896, %v2880
      %3010 = vst.msk [vmem:[%s175 + $0x1c4] sm:$0xf] %vm2896, %v2881
      %3011 = vst.msk [vmem:[%s175 + $0x1c8] sm:$0xf] %vm2896, %v2882
      %3012 = vst.msk [vmem:[%s175 + $0x1cc] sm:$0xf] %vm2896, %v2883
      %3013 = vst.msk [vmem:[%s175 + $0x1d0] sm:$0xf] %vm2896, %v2884
      %3014 = vst.msk [vmem:[%s175 + $0x1d4] sm:$0xf] %vm2896, %v2885
      %3015 = vst.msk [vmem:[%s175 + $0x1d8] sm:$0xf] %vm2896, %v2886
      %3016 = vst.msk [vmem:[%s175 + $0x1dc] sm:$0xf] %vm2896, %v2887
      %3017 = vst.msk [vmem:[%s175 + $0x1e0] sm:$0xf] %vm2896, %v2888
      %3018 = vst.msk [vmem:[%s175 + $0x1e4] sm:$0xf] %vm2896, %v2889
      %3019 = vst.msk [vmem:[%s175 + $0x1e8] sm:$0xf] %vm2896, %v2890
      %3020 = vst.msk [vmem:[%s175 + $0x1ec] sm:$0xf] %vm2896, %v2891
      %3021 = vst.msk [vmem:[%s175 + $0x1f0] sm:$0xf] %vm2896, %v2892
      %3022 = vst.msk [vmem:[%s175 + $0x1f4] sm:$0xf] %vm2896, %v2893
      %3023 = vst.msk [vmem:[%s175 + $0x1f8] sm:$0xf] %vm2896, %v2894
      %3024 = vst.msk [vmem:[%s175 + $0x1fc] sm:$0xf] %vm2896, %v2895
      %s3025 = smul.u32 128, %s14
      %p3026 = scmp.lt.s32.totalorder %s3025, 255
      %s3027 = scalar_select %p3026, %s3025, 255
      %s3028 = smul.addr %s3027, 4
      %s3029 = scalar_lea.vmem %s3, %s3028
      // Predicated region
      $region33: #{forward.6} parent=31 // pred_check
        %p3030 = pneg %p100
      $region34: #{forward.6} parent=31 // pred_check_branch
        %3032 = sbr.rel (%p3030) target = $region36
      $region35: #{forward.6} parent=31 // pred_region
        %s3033 = smul.u32 128, %s14
      $region36: #{forward.6} parent=31 // pred_fallthru
        _
    $region32: #{forward.6} parent=5 // pred_fallthru
      _
    %p3034 = scmp.le.s32.totalorder 2, %s9
    // Predicated region
    $region37: #{forward.6} parent=5 // pred_check
      %p3035 = pneg %p3034
    $region38: #{forward.6} parent=5 // pred_check_branch
      %3037 = sbr.rel (%p3035) target = $region40
    $region39: #{forward.6} parent=5 // pred_region
      %s3038 = ssub.s32 %s9, 2
      // Predicated region
      $region41: #{forward.6} parent=39 // pred_check
        %p3039 = pneg %p106
      $region42: #{forward.6} parent=39 // pred_check_branch
        %3041 = sbr.rel (%p3039) target = $region44
      $region43: #{forward.6} parent=39 // pred_region
        %s3042 = smul.u32 128, %s15
        %p3043 = scmp.lt.s32.totalorder %s3042, 255
        %s3044 = scalar_select %p3043, %s3042, 255
        %s3045 = smul.addr %s3044, 4
        %s3046 = scalar_lea.vmem %s3, %s3045
      $region44: #{forward.6} parent=39 // pred_fallthru
        _
    $region40: #{forward.6} parent=5 // pred_fallthru
      _
  $region6: #{forward.6} parent=0 // loop_footer
    %s13 = sadd.s32 1, %s9
  $region7: #{forward.6} parent=0 // loop_footer_branch
    %8 = sbr.rel target = $region3
  $region8: #{forward.6} parent=0 // loop_exit
    _

// kernel: forward.7
$region0: #{forward.7}
  #allocation0 [shape = 'u32[]', space=smem, size = 0x4, offset = 0x4, fixed_abs, tag = 'smem constant byte address 0x4 - core index']
  #allocation1 [shape = 'u32[72,128]{1,0:T(1,128)}', space=vmem, size = 0x9000, scoped, tag = 'internal scratch']
  %s0 = inlined_call_operand.vmem [shape: bf16[512,576], index: 0, kind: input, shape index: {}]
  %s1 = inlined_call_operand.vmem [shape: bf16[576,48], index: 1, kind: input, shape index: {}]
  %s2 = inlined_call_operand.vmem [shape: f32[1,48], index: 2, kind: input, shape index: {}]
  %s3 = inlined_call_operand.vmem [shape: bf16[512,48], index: 3, kind: output, shape index: {}]
  %s4 = sld [smem:[#allocation0]]
  $region45: #{forward.7} parent=0
    _
  %s6 = ssub.s32 1, %s4
  %s7 = scalar_select 0, %s6, %s4
  loop: start=0, step=1, limit=4
  $region2: #{forward.7} parent=0 // loop_pre_header
    _
  $region3: #{forward.7} parent=0 // loop_header
    %s9 = sphi 0, %s13
    %p10 = scmp.ge.s32.totalorder %s9, 4
    %s19 = sphi 0, %s21
    %s22 = sphi 0, %s19
    %s23 = sphi 0, %s22
    %s39 = sphi 0, %s23
    %s43 = sphi 0, %s43
    %s45 = sphi 0, %s43
    %s46 = sphi 0, %s45
    %s60 = sphi 0, %s46
    %s64 = sphi 0, %s64
    %s66 = sphi 0, %s64
    %s67 = sphi 0, %s66
    %s81 = sphi 0, %s67
    %s87 = sphi 0, %s89
    %s90 = sphi 0, %s87
    %s91 = sphi 0, %s90
    %s107 = sphi 0, %s91
  $region4: #{forward.7} parent=0 // loop_header_branch
    %12 = sbr.rel (%p10) target = $region8
  $region5: #{forward.7} parent=0 // loop_body
    %s14 = ssub.s32 %s9, 1
    %s15 = ssub.s32 %s9, 2
    %s16 = sadd.s32 %s9, 1
    %s17 = ssub.s32 %s9, %s16
    %p18 = scmp.eq.s32.totalorder %s17, 0
    %s20 = sadd.s32 %s19, 1
    %s21 = scalar_select %p18, %s19, %s20
    %p24 = pneg %p18
    %p25 = scmp.eq.s32.totalorder %s9, 1
    %p26 = por %p24, %p25
    %p27 = scmp.ne.s32.totalorder %s19, %s22
    %p28 = scmp.eq.s32.totalorder %s9, 0
    %p29 = por %p27, %p28
    %p30 = scmp.ne.s32.totalorder %s19, %s22
    %p31 = scmp.eq.s32.totalorder %s14, 1
    %p32 = por %p30, %p31
    %p33 = scmp.ne.s32.totalorder %s22, %s23
    %p34 = scmp.eq.s32.totalorder %s14, 0
    %p35 = por %p33, %p34
    %p36 = scmp.ne.s32.totalorder %s22, %s23
    %p37 = scmp.eq.s32.totalorder %s15, 1
    %p38 = por %p36, %p37
    %p40 = scmp.ne.s32.totalorder %s23, %s39
    %p41 = scmp.eq.s32.totalorder %s15, 0
    %p42 = por %p40, %p41
    %s44 = sadd.s32 %s43, 1
    %p47 = scmp.eq.s32.totalorder %s9, 1
    %p48 = scmp.ne.s32.totalorder %s43, %s45
    %p49 = scmp.eq.s32.totalorder %s9, 0
    %p50 = por %p48, %p49
    %p51 = scmp.ne.s32.totalorder %s43, %s45
    %p52 = scmp.eq.s32.totalorder %s14, 1
    %p53 = por %p51, %p52
    %p54 = scmp.ne.s32.totalorder %s45, %s46
    %p55 = scmp.eq.s32.totalorder %s14, 0
    %p56 = por %p54, %p55
    %p57 = scmp.ne.s32.totalorder %s45, %s46
    %p58 = scmp.eq.s32.totalorder %s15, 1
    %p59 = por %p57, %p58
    %p61 = scmp.ne.s32.totalorder %s46, %s60
    %p62 = scmp.eq.s32.totalorder %s15, 0
    %p63 = por %p61, %p62
    %s65 = sadd.s32 %s64, 1
    %p68 = scmp.eq.s32.totalorder %s9, 1
    %p69 = scmp.ne.s32.totalorder %s64, %s66
    %p70 = scmp.eq.s32.totalorder %s9, 0
    %p71 = por %p69, %p70
    %p72 = scmp.ne.s32.totalorder %s64, %s66
    %p73 = scmp.eq.s32.totalorder %s14, 1
    %p74 = por %p72, %p73
    %p75 = scmp.ne.s32.totalorder %s66, %s67
    %p76 = scmp.eq.s32.totalorder %s14, 0
    %p77 = por %p75, %p76
    %p78 = scmp.ne.s32.totalorder %s66, %s67
    %p79 = scmp.eq.s32.totalorder %s15, 1
    %p80 = por %p78, %p79
    %p82 = scmp.ne.s32.totalorder %s67, %s81
    %p83 = scmp.eq.s32.totalorder %s15, 0
    %p84 = por %p82, %p83
    %s85 = ssub.s32 %s9, %s16
    %p86 = scmp.eq.s32.totalorder %s85, 0
    %s88 = sadd.s32 %s87, 1
    %s89 = scalar_select %p86, %s87, %s88
    %p92 = pneg %p86
    %p93 = scmp.eq.s32.totalorder %s9, 1
    %p94 = por %p92, %p93
    %p95 = scmp.ne.s32.totalorder %s87, %s90
    %p96 = scmp.eq.s32.totalorder %s9, 0
    %p97 = por %p95, %p96
    %p98 = scmp.ne.s32.totalorder %s87, %s90
    %p99 = scmp.eq.s32.totalorder %s14, 1
    %p100 = por %p98, %p99
    %p101 = scmp.ne.s32.totalorder %s90, %s91
    %p102 = scmp.eq.s32.totalorder %s14, 0
    %p103 = por %p101, %p102
    %p104 = scmp.ne.s32.totalorder %s90, %s91
    %p105 = scmp.eq.s32.totalorder %s15, 1
    %p106 = por %p104, %p105
    %p108 = scmp.ne.s32.totalorder %s91, %s107
    %p109 = scmp.eq.s32.totalorder %s15, 0
    %p110 = por %p108, %p109
    %p111 = scmp.le.s32.totalorder 1, %s9
    %p112 = scmp.lt.s32.totalorder %s9, 3
    %p113 = pnand %p111, %p112
    %p114 = pneg %p113
    // Predicated region
    $region9: #{forward.7} parent=5 // pred_check
      _
    $region10: #{forward.7} parent=5 // pred_check_branch
      %116 = sbr.rel (%p113) target = $region12
    $region11: #{forward.7} parent=5 // pred_region
      %s117 = ssub.s32 %s9, 1
      // Predicated region
      $region13: #{forward.7} parent=11 // pred_check
        %p118 = pneg %p56
      $region14: #{forward.7} parent=11 // pred_check_branch
        %120 = sbr.rel (%p118) target = $region16
      $region15: #{forward.7} parent=11 // pred_region
        _
      $region16: #{forward.7} parent=11 // pred_fallthru
        _
      // Predicated region
      $region17: #{forward.7} parent=11 // pred_check
        %p121 = pneg %p77
      $region18: #{forward.7} parent=11 // pred_check_branch
        %123 = sbr.rel (%p121) target = $region20
      $region19: #{forward.7} parent=11 // pred_region
        _
      $region20: #{forward.7} parent=11 // pred_fallthru
        _
    $region12: #{forward.7} parent=5 // pred_fallthru
      _
    %p124 = scmp.lt.s32.totalorder %s9, 2
    // Predicated region
    $region21: #{forward.7} parent=5 // pred_check
      %p125 = pneg %p124
    $region22: #{forward.7} parent=5 // pred_check_branch
      %127 = sbr.rel (%p125) target = $region24
    $region23: #{forward.7} parent=5 // pred_region
      // Predicated region
      $region25: #{forward.7} parent=23 // pred_check
        %p128 = pneg %p29
      $region26: #{forward.7} parent=23 // pred_check_branch
        %130 = sbr.rel (%p128) target = $region28
      $region27: #{forward.7} parent=23 // pred_region
        %s131 = smul.u32 32, %s9
        %p132 = scmp.lt.s32.totalorder %s131, 63
        %s133 = scalar_select %p132, %s131, 63
        %s134 = smul.addr %s133, 5
        %s135 = smul.addr %s134, 4
        %s136 = scalar_lea.vmem %s0, %s135
        %s137 = smul.u32 32, %s9
      $region28: #{forward.7} parent=23 // pred_fallthru
        _
    $region24: #{forward.7} parent=5 // pred_fallthru
      _
    %p138 = scmp.le.s32.totalorder 1, %s9
    %p139 = scmp.lt.s32.totalorder %s9, 3
    %p140 = pnand %p138, %p139
    %p141 = pneg %p140
    // Predicated region
    $region29: #{forward.7} parent=5 // pred_check
      _
    $region30: #{forward.7} parent=5 // pred_check_branch
      %143 = sbr.rel (%p140) target = $region32
    $region31: #{forward.7} parent=5 // pred_region
      %s144 = ssub.s32 %s9, 1
      %s145 = smul.u32 32, %s14
      %p146 = scmp.lt.s32.totalorder %s145, 63
      %s147 = scalar_select %p146, %s145, 63
      %s148 = smul.addr %s147, 5
      %s149 = smul.addr %s148, 4
      %s150 = scalar_lea.vmem %s0, %s149
      %p151 = pneg %p35
      %p152 = pneg %p32
      %p153 = pneg %p56
      %p154 = pneg %p53
      %p155 = pneg %p77
      %p156 = pneg %p74
      %p157 = pneg %p103
      %p158 = pneg %p100
      %s159 = smul.u32 32, %s14
      %p160 = scmp.lt.s32.totalorder %s159, 63
      %s161 = scalar_select %p160, %s159, 63
      %s162 = smul.addr %s161, 4
      %s163 = scalar_lea.vmem %s3, %s162
      %s164 = smul.u32 32, %s14
      %p165 = scmp.lt.s32.totalorder %s164, 63
      %s166 = scalar_select %p165, %s164, 63
      %s167 = smul.addr %s166, 5
      %s168 = smul.addr %s167, 4
      %s169 = scalar_lea.vmem %s0, %s168
      %s170 = smul.u32 32, %s14
      %s171 = smul.u32 32, %s14
      %p172 = scmp.lt.s32.totalorder %s171, 63
      %s173 = scalar_select %p172, %s171, 63
      %s174 = smul.addr %s173, 4
      %s175 = scalar_lea.vmem %s3, %s174
      %s176 = smul.u32 32, %s14
      %v178 = vld [vmem:[%s169] sm:$0xff]
      %v179 = vld [vmem:[%s169 + $0x8] sm:$0xff]
      %v180 = vld [vmem:[%s169 + $0x10] sm:$0xf]
      %v181 = vld [vmem:[%s169 + $0x14] sm:$0xff]
      %v182 = vld [vmem:[%s169 + $0x1c] sm:$0xff]
      %v183 = vld [vmem:[%s169 + $0x24] sm:$0xf]
      %v184 = vld [vmem:[%s169 + $0x28] sm:$0xff]
      %v185 = vld [vmem:[%s169 + $0x30] sm:$0xff]
      %v186 = vld [vmem:[%s169 + $0x38] sm:$0xf]
      %v187 = vld [vmem:[%s169 + $0x3c] sm:$0xff]
      %v188 = vld [vmem:[%s169 + $0x44] sm:$0xff]
      %v189 = vld [vmem:[%s169 + $0x4c] sm:$0xf]
      %v190 = vld [vmem:[%s169 + $0x50] sm:$0xff]
      %v191 = vld [vmem:[%s169 + $0x58] sm:$0xff]
      %v192 = vld [vmem:[%s169 + $0x60] sm:$0xf]
      %v193 = vld [vmem:[%s169 + $0x64] sm:$0xff]
      %v194 = vld [vmem:[%s169 + $0x6c] sm:$0xff]
      %v195 = vld [vmem:[%s169 + $0x74] sm:$0xf]
      %v196 = vld [vmem:[%s169 + $0x78] sm:$0xff]
      %v197 = vld [vmem:[%s169 + $0x80] sm:$0xff]
      %v198 = vld [vmem:[%s169 + $0x88] sm:$0xf]
      %v199 = vld [vmem:[%s169 + $0x8c] sm:$0xff]
      %v200 = vld [vmem:[%s169 + $0x94] sm:$0xff]
      %v201 = vld [vmem:[%s169 + $0x9c] sm:$0xf]
      %v202 = vld [vmem:[%s169 + $0xa0] sm:$0xff]
      %v203 = vld [vmem:[%s169 + $0xa8] sm:$0xff]
      %v204 = vld [vmem:[%s169 + $0xb0] sm:$0xf]
      %v205 = vld [vmem:[%s169 + $0xb4] sm:$0xff]
      %v206 = vld [vmem:[%s169 + $0xbc] sm:$0xff]
      %v207 = vld [vmem:[%s169 + $0xc4] sm:$0xf]
      %v208 = vld [vmem:[%s169 + $0xc8] sm:$0xff]
      %v209 = vld [vmem:[%s169 + $0xd0] sm:$0xff]
      %v210 = vld [vmem:[%s169 + $0xd8] sm:$0xf]
      %v211 = vld [vmem:[%s169 + $0xdc] sm:$0xff]
      %v212 = vld [vmem:[%s169 + $0xe4] sm:$0xff]
      %v213 = vld [vmem:[%s169 + $0xec] sm:$0xf]
      %v214 = vld [vmem:[%s169 + $0xf0] sm:$0xff]
      %v215 = vld [vmem:[%s169 + $0xf8] sm:$0xff]
      %v216 = vld [vmem:[%s169 + $0x100] sm:$0xf]
      %v217 = vld [vmem:[%s169 + $0x104] sm:$0xff]
      %v218 = vld [vmem:[%s169 + $0x10c] sm:$0xff]
      %v219 = vld [vmem:[%s169 + $0x114] sm:$0xf]
      %v220 = vld [vmem:[%s169 + $0x118] sm:$0xff]
      %v221 = vld [vmem:[%s169 + $0x120] sm:$0xff]
      %v222 = vld [vmem:[%s169 + $0x128] sm:$0xf]
      %v223 = vld [vmem:[%s169 + $0x12c] sm:$0xff]
      %v224 = vld [vmem:[%s169 + $0x134] sm:$0xff]
      %v225 = vld [vmem:[%s169 + $0x13c] sm:$0xf]
      %v226 = vld [vmem:[%s169 + $0x140] sm:$0xff]
      %v227 = vld [vmem:[%s169 + $0x148] sm:$0xff]
      %v228 = vld [vmem:[%s169 + $0x150] sm:$0xf]
      %v229 = vld [vmem:[%s169 + $0x154] sm:$0xff]
      %v230 = vld [vmem:[%s169 + $0x15c] sm:$0xff]
      %v231 = vld [vmem:[%s169 + $0x164] sm:$0xf]
      %v232 = vld [vmem:[%s169 + $0x168] sm:$0xff]
      %v233 = vld [vmem:[%s169 + $0x170] sm:$0xff]
      %v234 = vld [vmem:[%s169 + $0x178] sm:$0xf]
      %v235 = vld [vmem:[%s169 + $0x17c] sm:$0xff]
      %v236 = vld [vmem:[%s169 + $0x184] sm:$0xff]
      %v237 = vld [vmem:[%s169 + $0x18c] sm:$0xf]
      %v238 = vld [vmem:[%s169 + $0x190] sm:$0xff]
      %v239 = vld [vmem:[%s169 + $0x198] sm:$0xff]
      %v240 = vld [vmem:[%s169 + $0x1a0] sm:$0xf]
      %v241 = vld [vmem:[%s169 + $0x1a4] sm:$0xff]
      %v242 = vld [vmem:[%s169 + $0x1ac] sm:$0xff]
      %v243 = vld [vmem:[%s169 + $0x1b4] sm:$0xf]
      %v244 = vld [vmem:[%s169 + $0x1b8] sm:$0xff]
      %v245 = vld [vmem:[%s169 + $0x1c0] sm:$0xff]
      %v246 = vld [vmem:[%s169 + $0x1c8] sm:$0xf]
      %v247 = vld [vmem:[%s169 + $0x1cc] sm:$0xff]
      %v248 = vld [vmem:[%s169 + $0x1d4] sm:$0xff]
      %v249 = vld [vmem:[%s169 + $0x1dc] sm:$0xf]
      %v250 = vld [vmem:[%s169 + $0x1e0] sm:$0xff]
      %v251 = vld [vmem:[%s169 + $0x1e8] sm:$0xff]
      %v252 = vld [vmem:[%s169 + $0x1f0] sm:$0xf]
      %v253 = vld [vmem:[%s169 + $0x1f4] sm:$0xff]
      %v254 = vld [vmem:[%s169 + $0x1fc] sm:$0xff]
      %v255 = vld [vmem:[%s169 + $0x204] sm:$0xf]
      %v256 = vld [vmem:[%s169 + $0x208] sm:$0xff]
      %v257 = vld [vmem:[%s169 + $0x210] sm:$0xff]
      %v258 = vld [vmem:[%s169 + $0x218] sm:$0xf]
      %v259 = vld [vmem:[%s169 + $0x21c] sm:$0xff]
      %v260 = vld [vmem:[%s169 + $0x224] sm:$0xff]
      %v261 = vld [vmem:[%s169 + $0x22c] sm:$0xf]
      %v262 = vld [vmem:[%s169 + $0x230] sm:$0xff]
      %v263 = vld [vmem:[%s169 + $0x238] sm:$0xff]
      %v264 = vld [vmem:[%s169 + $0x240] sm:$0xf]
      %v265 = vld [vmem:[%s169 + $0x244] sm:$0xff]
      %v266 = vld [vmem:[%s169 + $0x24c] sm:$0xff]
      %v267 = vld [vmem:[%s169 + $0x254] sm:$0xf]
      %v268 = vld [vmem:[%s169 + $0x258] sm:$0xff]
      %v269 = vld [vmem:[%s169 + $0x260] sm:$0xff]
      %v270 = vld [vmem:[%s169 + $0x268] sm:$0xf]
      %v271 = vld [vmem:[%s169 + $0x26c] sm:$0xff]
      %v272 = vld [vmem:[%s169 + $0x274] sm:$0xff]
      %v273 = vld [vmem:[%s169 + $0x27c] sm:$0xf]
      %v274 = vld [vmem:[%s1] sm:$0xf]
      %v275 = vld [vmem:[%s1 + $0x4] sm:$0xf]
      %v276 = vld [vmem:[%s1 + $0x8] sm:$0xf]
      %v277 = vld [vmem:[%s1 + $0xc] sm:$0xf]
      %v278 = vld [vmem:[%s1 + $0x10] sm:$0xf]
      %v279 = vld [vmem:[%s1 + $0x14] sm:$0xf]
      %v280 = vld [vmem:[%s1 + $0x18] sm:$0xf]
      %v281 = vld [vmem:[%s1 + $0x1c] sm:$0xf]
      %v282 = vld [vmem:[%s1 + $0x20] sm:$0xf]
      %v283 = vld [vmem:[%s1 + $0x24] sm:$0xf]
      %v284 = vld [vmem:[%s1 + $0x28] sm:$0xf]
      %v285 = vld [vmem:[%s1 + $0x2c] sm:$0xf]
      %v286 = vld [vmem:[%s1 + $0x30] sm:$0xf]
      %v287 = vld [vmem:[%s1 + $0x34] sm:$0xf]
      %v288 = vld [vmem:[%s1 + $0x38] sm:$0xf]
      %v289 = vld [vmem:[%s1 + $0x3c] sm:$0xf]
      %v290 = vld [vmem:[%s1 + $0x40] sm:$0xf]
      %v291 = vld [vmem:[%s1 + $0x44] sm:$0xf]
      %v292 = vld [vmem:[%s1 + $0x48] sm:$0xf]
      %v293 = vld [vmem:[%s1 + $0x4c] sm:$0xf]
      %v294 = vld [vmem:[%s1 + $0x50] sm:$0xf]
      %v295 = vld [vmem:[%s1 + $0x54] sm:$0xf]
      %v296 = vld [vmem:[%s1 + $0x58] sm:$0xf]
      %v297 = vld [vmem:[%s1 + $0x5c] sm:$0xf]
      %v298 = vld [vmem:[%s1 + $0x60] sm:$0xf]
      %v299 = vld [vmem:[%s1 + $0x64] sm:$0xf]
      %v300 = vld [vmem:[%s1 + $0x68] sm:$0xf]
      %v301 = vld [vmem:[%s1 + $0x6c] sm:$0xf]
      %v302 = vld [vmem:[%s1 + $0x70] sm:$0xf]
      %v303 = vld [vmem:[%s1 + $0x74] sm:$0xf]
      %v304 = vld [vmem:[%s1 + $0x78] sm:$0xf]
      %v305 = vld [vmem:[%s1 + $0x7c] sm:$0xf]
      %v306 = vld [vmem:[%s1 + $0x80] sm:$0xf]
      %v307 = vld [vmem:[%s1 + $0x84] sm:$0xf]
      %v308 = vld [vmem:[%s1 + $0x88] sm:$0xf]
      %v309 = vld [vmem:[%s1 + $0x8c] sm:$0xf]
      %v310 = vld [vmem:[%s1 + $0x90] sm:$0xf]
      %v311 = vld [vmem:[%s1 + $0x94] sm:$0xf]
      %v312 = vld [vmem:[%s1 + $0x98] sm:$0xf]
      %v313 = vld [vmem:[%s1 + $0x9c] sm:$0xf]
      %v314 = vld [vmem:[%s1 + $0xa0] sm:$0xf]
      %v315 = vld [vmem:[%s1 + $0xa4] sm:$0xf]
      %v316 = vld [vmem:[%s1 + $0xa8] sm:$0xf]
      %v317 = vld [vmem:[%s1 + $0xac] sm:$0xf]
      %v318 = vld [vmem:[%s1 + $0xb0] sm:$0xf]
      %v319 = vld [vmem:[%s1 + $0xb4] sm:$0xf]
      %v320 = vld [vmem:[%s1 + $0xb8] sm:$0xf]
      %v321 = vld [vmem:[%s1 + $0xbc] sm:$0xf]
      %v322 = vld [vmem:[%s1 + $0xc0] sm:$0xf]
      %v323 = vld [vmem:[%s1 + $0xc4] sm:$0xf]
      %v324 = vld [vmem:[%s1 + $0xc8] sm:$0xf]
      %v325 = vld [vmem:[%s1 + $0xcc] sm:$0xf]
      %v326 = vld [vmem:[%s1 + $0xd0] sm:$0xf]
      %v327 = vld [vmem:[%s1 + $0xd4] sm:$0xf]
      %v328 = vld [vmem:[%s1 + $0xd8] sm:$0xf]
      %v329 = vld [vmem:[%s1 + $0xdc] sm:$0xf]
      %v330 = vld [vmem:[%s1 + $0xe0] sm:$0xf]
      %v331 = vld [vmem:[%s1 + $0xe4] sm:$0xf]
      %v332 = vld [vmem:[%s1 + $0xe8] sm:$0xf]
      %v333 = vld [vmem:[%s1 + $0xec] sm:$0xf]
      %v334 = vld [vmem:[%s1 + $0xf0] sm:$0xf]
      %v335 = vld [vmem:[%s1 + $0xf4] sm:$0xf]
      %v336 = vld [vmem:[%s1 + $0xf8] sm:$0xf]
      %v337 = vld [vmem:[%s1 + $0xfc] sm:$0xf]
      %v338 = vld [vmem:[%s1 + $0x100] sm:$0xf]
      %v339 = vld [vmem:[%s1 + $0x104] sm:$0xf]
      %v340 = vld [vmem:[%s1 + $0x108] sm:$0xf]
      %v341 = vld [vmem:[%s1 + $0x10c] sm:$0xf]
      %v342 = vld [vmem:[%s1 + $0x110] sm:$0xf]
      %v343 = vld [vmem:[%s1 + $0x114] sm:$0xf]
      %v344 = vld [vmem:[%s1 + $0x118] sm:$0xf]
      %v345 = vld [vmem:[%s1 + $0x11c] sm:$0xf]
      %v346 = vld [vmem:[%s2] sm:$0x1]
      %v348 = vperm.slane %v346, 0
      %v446 = vunpack.c.l.b16 %v178
      %v447 = vunpack.c.h.b16 %v178
      %v448 = vunpack.c.l.b16 %v179
      %v449 = vunpack.c.h.b16 %v179
      %v450 = vunpack.c.l.b16 %v180
      %v451 = vunpack.c.l.b16 %v181
      %v452 = vunpack.c.h.b16 %v181
      %v453 = vunpack.c.l.b16 %v182
      %v454 = vunpack.c.h.b16 %v182
      %v455 = vunpack.c.l.b16 %v183
      %v456 = vunpack.c.l.b16 %v184
      %v457 = vunpack.c.h.b16 %v184
      %v458 = vunpack.c.l.b16 %v185
      %v459 = vunpack.c.h.b16 %v185
      %v460 = vunpack.c.l.b16 %v186
      %v461 = vunpack.c.l.b16 %v187
      %v462 = vunpack.c.h.b16 %v187
      %v463 = vunpack.c.l.b16 %v188
      %v464 = vunpack.c.h.b16 %v188
      %v465 = vunpack.c.l.b16 %v189
      %v466 = vunpack.c.l.b16 %v190
      %v467 = vunpack.c.h.b16 %v190
      %v468 = vunpack.c.l.b16 %v191
      %v469 = vunpack.c.h.b16 %v191
      %v470 = vunpack.c.l.b16 %v192
      %v471 = vunpack.c.l.b16 %v193
      %v472 = vunpack.c.h.b16 %v193
      %v473 = vunpack.c.l.b16 %v194
      %v474 = vunpack.c.h.b16 %v194
      %v475 = vunpack.c.l.b16 %v195
      %v476 = vunpack.c.l.b16 %v196
      %v477 = vunpack.c.h.b16 %v196
      %v478 = vunpack.c.l.b16 %v197
      %v479 = vunpack.c.h.b16 %v197
      %v480 = vunpack.c.l.b16 %v198
      %v481 = vunpack.c.l.b16 %v199
      %v482 = vunpack.c.h.b16 %v199
      %v483 = vunpack.c.l.b16 %v200
      %v484 = vunpack.c.h.b16 %v200
      %v485 = vunpack.c.l.b16 %v201
      %v486 = vunpack.c.l.b16 %v202
      %v487 = vunpack.c.h.b16 %v202
      %v488 = vunpack.c.l.b16 %v203
      %v489 = vunpack.c.h.b16 %v203
      %v490 = vunpack.c.l.b16 %v204
      %v491 = vunpack.c.l.b16 %v205
      %v492 = vunpack.c.h.b16 %v205
      %v493 = vunpack.c.l.b16 %v206
      %v494 = vunpack.c.h.b16 %v206
      %v495 = vunpack.c.l.b16 %v207
      %v496 = vunpack.c.l.b16 %v208
      %v497 = vunpack.c.h.b16 %v208
      %v498 = vunpack.c.l.b16 %v209
      %v499 = vunpack.c.h.b16 %v209
      %v500 = vunpack.c.l.b16 %v210
      %v501 = vunpack.c.l.b16 %v211
      %v502 = vunpack.c.h.b16 %v211
      %v503 = vunpack.c.l.b16 %v212
      %v504 = vunpack.c.h.b16 %v212
      %v505 = vunpack.c.l.b16 %v213
      %v506 = vunpack.c.l.b16 %v214
      %v507 = vunpack.c.h.b16 %v214
      %v508 = vunpack.c.l.b16 %v215
      %v509 = vunpack.c.h.b16 %v215
      %v510 = vunpack.c.l.b16 %v216
      %v511 = vunpack.c.l.b16 %v217
      %v512 = vunpack.c.h.b16 %v217
      %v513 = vunpack.c.l.b16 %v218
      %v514 = vunpack.c.h.b16 %v218
      %v515 = vunpack.c.l.b16 %v219
      %v516 = vunpack.c.l.b16 %v220
      %v517 = vunpack.c.h.b16 %v220
      %v518 = vunpack.c.l.b16 %v221
      %v519 = vunpack.c.h.b16 %v221
      %v520 = vunpack.c.l.b16 %v222
      %v521 = vunpack.c.l.b16 %v223
      %v522 = vunpack.c.h.b16 %v223
      %v523 = vunpack.c.l.b16 %v224
      %v524 = vunpack.c.h.b16 %v224
      %v525 = vunpack.c.l.b16 %v225
      %v526 = vunpack.c.l.b16 %v226
      %v527 = vunpack.c.h.b16 %v226
      %v528 = vunpack.c.l.b16 %v227
      %v529 = vunpack.c.h.b16 %v227
      %v530 = vunpack.c.l.b16 %v228
      %v531 = vunpack.c.l.b16 %v229
      %v532 = vunpack.c.h.b16 %v229
      %v533 = vunpack.c.l.b16 %v230
      %v534 = vunpack.c.h.b16 %v230
      %v535 = vunpack.c.l.b16 %v231
      %v536 = vunpack.c.l.b16 %v232
      %v537 = vunpack.c.h.b16 %v232
      %v538 = vunpack.c.l.b16 %v233
      %v539 = vunpack.c.h.b16 %v233
      %v540 = vunpack.c.l.b16 %v234
      %v541 = vunpack.c.l.b16 %v235
      %v542 = vunpack.c.h.b16 %v235
      %v543 = vunpack.c.l.b16 %v236
      %v544 = vunpack.c.h.b16 %v236
      %v545 = vunpack.c.l.b16 %v237
      %v546 = vunpack.c.l.b16 %v238
      %v547 = vunpack.c.h.b16 %v238
      %v548 = vunpack.c.l.b16 %v239
      %v549 = vunpack.c.h.b16 %v239
      %v550 = vunpack.c.l.b16 %v240
      %v551 = vunpack.c.l.b16 %v241
      %v552 = vunpack.c.h.b16 %v241
      %v553 = vunpack.c.l.b16 %v242
      %v554 = vunpack.c.h.b16 %v242
      %v555 = vunpack.c.l.b16 %v243
      %v556 = vunpack.c.l.b16 %v244
      %v557 = vunpack.c.h.b16 %v244
      %v558 = vunpack.c.l.b16 %v245
      %v559 = vunpack.c.h.b16 %v245
      %v560 = vunpack.c.l.b16 %v246
      %v561 = vunpack.c.l.b16 %v247
      %v562 = vunpack.c.h.b16 %v247
      %v563 = vunpack.c.l.b16 %v248
      %v564 = vunpack.c.h.b16 %v248
      %v565 = vunpack.c.l.b16 %v249
      %v566 = vunpack.c.l.b16 %v250
      %v567 = vunpack.c.h.b16 %v250
      %v568 = vunpack.c.l.b16 %v251
      %v569 = vunpack.c.h.b16 %v251
      %v570 = vunpack.c.l.b16 %v252
      %v571 = vunpack.c.l.b16 %v253
      %v572 = vunpack.c.h.b16 %v253
      %v573 = vunpack.c.l.b16 %v254
      %v574 = vunpack.c.h.b16 %v254
      %v575 = vunpack.c.l.b16 %v255
      %v576 = vunpack.c.l.b16 %v256
      %v577 = vunpack.c.h.b16 %v256
      %v578 = vunpack.c.l.b16 %v257
      %v579 = vunpack.c.h.b16 %v257
      %v580 = vunpack.c.l.b16 %v258
      %v581 = vunpack.c.l.b16 %v259
      %v582 = vunpack.c.h.b16 %v259
      %v583 = vunpack.c.l.b16 %v260
      %v584 = vunpack.c.h.b16 %v260
      %v585 = vunpack.c.l.b16 %v261
      %v586 = vunpack.c.l.b16 %v262
      %v587 = vunpack.c.h.b16 %v262
      %v588 = vunpack.c.l.b16 %v263
      %v589 = vunpack.c.h.b16 %v263
      %v590 = vunpack.c.l.b16 %v264
      %v591 = vunpack.c.l.b16 %v265
      %v592 = vunpack.c.h.b16 %v265
      %v593 = vunpack.c.l.b16 %v266
      %v594 = vunpack.c.h.b16 %v266
      %v595 = vunpack.c.l.b16 %v267
      %v596 = vunpack.c.l.b16 %v268
      %v597 = vunpack.c.h.b16 %v268
      %v598 = vunpack.c.l.b16 %v269
      %v599 = vunpack.c.h.b16 %v269
      %v600 = vunpack.c.l.b16 %v270
      %v601 = vunpack.c.l.b16 %v271
      %v602 = vunpack.c.h.b16 %v271
      %v603 = vunpack.c.l.b16 %v272
      %v604 = vunpack.c.h.b16 %v272
      %v605 = vunpack.c.l.b16 %v273
      %v606 = vpack.c.b16 %v451, %v446
      %v607 = vpack.c.b16 %v452, %v447
      %v608 = vpack.c.b16 %v453, %v448
      %v609 = vpack.c.b16 %v454, %v449
      %v610 = vpack.c.b16 %v455, %v450
      %v611 = vpack.c.b16 %v461, %v456
      %v612 = vpack.c.b16 %v462, %v457
      %v613 = vpack.c.b16 %v463, %v458
      %v614 = vpack.c.b16 %v464, %v459
      %v615 = vpack.c.b16 %v465, %v460
      %v616 = vpack.c.b16 %v471, %v466
      %v617 = vpack.c.b16 %v472, %v467
      %v618 = vpack.c.b16 %v473, %v468
      %v619 = vpack.c.b16 %v474, %v469
      %v620 = vpack.c.b16 %v475, %v470
      %v621 = vpack.c.b16 %v481, %v476
      %v622 = vpack.c.b16 %v482, %v477
      %v623 = vpack.c.b16 %v483, %v478
      %v624 = vpack.c.b16 %v484, %v479
      %v625 = vpack.c.b16 %v485, %v480
      %v626 = vpack.c.b16 %v491, %v486
      %v627 = vpack.c.b16 %v492, %v487
      %v628 = vpack.c.b16 %v493, %v488
      %v629 = vpack.c.b16 %v494, %v489
      %v630 = vpack.c.b16 %v495, %v490
      %v631 = vpack.c.b16 %v501, %v496
      %v632 = vpack.c.b16 %v502, %v497
      %v633 = vpack.c.b16 %v503, %v498
      %v634 = vpack.c.b16 %v504, %v499
      %v635 = vpack.c.b16 %v505, %v500
      %v636 = vpack.c.b16 %v511, %v506
      %v637 = vpack.c.b16 %v512, %v507
      %v638 = vpack.c.b16 %v513, %v508
      %v639 = vpack.c.b16 %v514, %v509
      %v640 = vpack.c.b16 %v515, %v510
      %v641 = vpack.c.b16 %v521, %v516
      %v642 = vpack.c.b16 %v522, %v517
      %v643 = vpack.c.b16 %v523, %v518
      %v644 = vpack.c.b16 %v524, %v519
      %v645 = vpack.c.b16 %v525, %v520
      %v646 = vpack.c.b16 %v531, %v526
      %v647 = vpack.c.b16 %v532, %v527
      %v648 = vpack.c.b16 %v533, %v528
      %v649 = vpack.c.b16 %v534, %v529
      %v650 = vpack.c.b16 %v535, %v530
      %v651 = vpack.c.b16 %v541, %v536
      %v652 = vpack.c.b16 %v542, %v537
      %v653 = vpack.c.b16 %v543, %v538
      %v654 = vpack.c.b16 %v544, %v539
      %v655 = vpack.c.b16 %v545, %v540
      %v656 = vpack.c.b16 %v551, %v546
      %v657 = vpack.c.b16 %v552, %v547
      %v658 = vpack.c.b16 %v553, %v548
      %v659 = vpack.c.b16 %v554, %v549
      %v660 = vpack.c.b16 %v555, %v550
      %v661 = vpack.c.b16 %v561, %v556
      %v662 = vpack.c.b16 %v562, %v557
      %v663 = vpack.c.b16 %v563, %v558
      %v664 = vpack.c.b16 %v564, %v559
      %v665 = vpack.c.b16 %v565, %v560
      %v666 = vpack.c.b16 %v571, %v566
      %v667 = vpack.c.b16 %v572, %v567
      %v668 = vpack.c.b16 %v573, %v568
      %v669 = vpack.c.b16 %v574, %v569
      %v670 = vpack.c.b16 %v575, %v570
      %v671 = vpack.c.b16 %v581, %v576
      %v672 = vpack.c.b16 %v582, %v577
      %v673 = vpack.c.b16 %v583, %v578
      %v674 = vpack.c.b16 %v584, %v579
      %v675 = vpack.c.b16 %v585, %v580
      %v676 = vpack.c.b16 %v591, %v586
      %v677 = vpack.c.b16 %v592, %v587
      %v678 = vpack.c.b16 %v593, %v588
      %v679 = vpack.c.b16 %v594, %v589
      %v680 = vpack.c.b16 %v595, %v590
      %v681 = vpack.c.b16 %v601, %v596
      %v682 = vpack.c.b16 %v602, %v597
      %v683 = vpack.c.b16 %v603, %v598
      %v684 = vpack.c.b16 %v604, %v599
      %v685 = vpack.c.b16 %v605, %v600
      %v822 = vunpack.c.l.b16 %v274
      %v823 = vunpack.c.l.b16 %v275
      %v824 = vunpack.c.l.b16 %v276
      %v825 = vunpack.c.l.b16 %v277
      %v826 = vunpack.c.l.b16 %v278
      %v827 = vunpack.c.l.b16 %v279
      %v828 = vunpack.c.l.b16 %v280
      %v829 = vunpack.c.l.b16 %v281
      %v830 = vunpack.c.l.b16 %v282
      %v831 = vunpack.c.l.b16 %v283
      %v832 = vunpack.c.l.b16 %v284
      %v833 = vunpack.c.l.b16 %v285
      %v834 = vunpack.c.l.b16 %v286
      %v835 = vunpack.c.l.b16 %v287
      %v836 = vunpack.c.l.b16 %v288
      %v837 = vunpack.c.l.b16 %v289
      %v838 = vunpack.c.l.b16 %v290
      %v839 = vunpack.c.l.b16 %v291
      %v840 = vunpack.c.l.b16 %v292
      %v841 = vunpack.c.l.b16 %v293
      %v842 = vunpack.c.l.b16 %v294
      %v843 = vunpack.c.l.b16 %v295
      %v844 = vunpack.c.l.b16 %v296
      %v845 = vunpack.c.l.b16 %v297
      %v846 = vunpack.c.l.b16 %v298
      %v847 = vunpack.c.l.b16 %v299
      %v848 = vunpack.c.l.b16 %v300
      %v849 = vunpack.c.l.b16 %v301
      %v850 = vunpack.c.l.b16 %v302
      %v851 = vunpack.c.l.b16 %v303
      %v852 = vunpack.c.l.b16 %v304
      %v853 = vunpack.c.l.b16 %v305
      %v854 = vunpack.c.l.b16 %v306
      %v855 = vunpack.c.l.b16 %v307
      %v856 = vunpack.c.l.b16 %v308
      %v857 = vunpack.c.l.b16 %v309
      %v858 = vunpack.c.l.b16 %v310
      %v859 = vunpack.c.l.b16 %v311
      %v860 = vunpack.c.l.b16 %v312
      %v861 = vunpack.c.l.b16 %v313
      %v862 = vunpack.c.l.b16 %v314
      %v863 = vunpack.c.l.b16 %v315
      %v864 = vunpack.c.l.b16 %v316
      %v865 = vunpack.c.l.b16 %v317
      %v866 = vunpack.c.l.b16 %v318
      %v867 = vunpack.c.l.b16 %v319
      %v868 = vunpack.c.l.b16 %v320
      %v869 = vunpack.c.l.b16 %v321
      %v870 = vunpack.c.l.b16 %v322
      %v871 = vunpack.c.l.b16 %v323
      %v872 = vunpack.c.l.b16 %v324
      %v873 = vunpack.c.l.b16 %v325
      %v874 = vunpack.c.l.b16 %v326
      %v875 = vunpack.c.l.b16 %v327
      %v876 = vunpack.c.l.b16 %v328
      %v877 = vunpack.c.l.b16 %v329
      %v878 = vunpack.c.l.b16 %v330
      %v879 = vunpack.c.l.b16 %v331
      %v880 = vunpack.c.l.b16 %v332
      %v881 = vunpack.c.l.b16 %v333
      %v882 = vunpack.c.l.b16 %v334
      %v883 = vunpack.c.l.b16 %v335
      %v884 = vunpack.c.l.b16 %v336
      %v885 = vunpack.c.l.b16 %v337
      %v886 = vunpack.c.l.b16 %v338
      %v887 = vunpack.c.l.b16 %v339
      %v888 = vunpack.c.l.b16 %v340
      %v889 = vunpack.c.l.b16 %v341
      %v890 = vunpack.c.l.b16 %v342
      %v891 = vunpack.c.l.b16 %v343
      %v892 = vunpack.c.l.b16 %v344
      %v893 = vunpack.c.l.b16 %v345
      %v894 = vpack.c.b16 %v823, %v822
      %v895 = vpack.c.b16 %v825, %v824
      %v896 = vpack.c.b16 %v827, %v826
      %v897 = vpack.c.b16 %v829, %v828
      %v898 = vpack.c.b16 %v831, %v830
      %v899 = vpack.c.b16 %v833, %v832
      %v900 = vpack.c.b16 %v835, %v834
      %v901 = vpack.c.b16 %v837, %v836
      %v902 = vpack.c.b16 %v839, %v838
      %v903 = vpack.c.b16 %v841, %v840
      %v904 = vpack.c.b16 %v843, %v842
      %v905 = vpack.c.b16 %v845, %v844
      %v906 = vpack.c.b16 %v847, %v846
      %v907 = vpack.c.b16 %v849, %v848
      %v908 = vpack.c.b16 %v851, %v850
      %v909 = vpack.c.b16 %v853, %v852
      %v910 = vpack.c.b16 %v855, %v854
      %v911 = vpack.c.b16 %v857, %v856
      %v912 = vpack.c.b16 %v859, %v858
      %v913 = vpack.c.b16 %v861, %v860
      %v914 = vpack.c.b16 %v863, %v862
      %v915 = vpack.c.b16 %v865, %v864
      %v916 = vpack.c.b16 %v867, %v866
      %v917 = vpack.c.b16 %v869, %v868
      %v918 = vpack.c.b16 %v871, %v870
      %v919 = vpack.c.b16 %v873, %v872
      %v920 = vpack.c.b16 %v875, %v874
      %v921 = vpack.c.b16 %v877, %v876
      %v922 = vpack.c.b16 %v879, %v878
      %v923 = vpack.c.b16 %v881, %v880
      %v924 = vpack.c.b16 %v883, %v882
      %v925 = vpack.c.b16 %v885, %v884
      %v926 = vpack.c.b16 %v887, %v886
      %v927 = vpack.c.b16 %v889, %v888
      %v928 = vpack.c.b16 %v891, %v890
      %v929 = vpack.c.b16 %v893, %v892
      %vm966 = vcmask 523264
      %v968 = vsel %vm966, %v610, 0
      %v971 = vsel %vm966, %v615, 0
      %v974 = vsel %vm966, %v620, 0
      %v977 = vsel %vm966, %v625, 0
      %v980 = vsel %vm966, %v630, 0
      %v983 = vsel %vm966, %v635, 0
      %v986 = vsel %vm966, %v640, 0
      %v989 = vsel %vm966, %v645, 0
      %v992 = vsel %vm966, %v650, 0
      %v995 = vsel %vm966, %v655, 0
      %v998 = vsel %vm966, %v660, 0
      %v1001 = vsel %vm966, %v665, 0
      %v1004 = vsel %vm966, %v670, 0
      %v1007 = vsel %vm966, %v675, 0
      %v1010 = vsel %vm966, %v680, 0
      %v1013 = vsel %vm966, %v685, 0
      %1015 = vmatpush.bf16.msra.mxu0 %v901
      %1016 = vmatpush.bf16.msra.mxu0 %v900
      %1017 = vmatpush.bf16.msra.mxu0 %v899
      %1018 = vmatpush.bf16.msra.mxu0 %v898
      %1019 = vmatpush.bf16.msra.mxu0 %v897
      %1020 = vmatpush.bf16.msra.mxu0 %v896
      %1021 = vmatpush.bf16.msra.mxu0 %v895
      %1022 = vmatpush.bf16.msra.mxu0 %v894
      %1023 = vmatmul.bf16.gmra.mxu0 %v606
      %v1024 = vpop.f32.mrf.mxu0
      %v1025 = vadd.f32 %v348, %v1024
      %v1026 = vpop.f32.mrf.mxu0
      %v1027 = vadd.f32 %v348, %v1026
      %1028 = vmatmul.bf16.gmra.mxu0 %v611
      %v1029 = vpop.f32.mrf.mxu0
      %v1030 = vadd.f32 %v348, %v1029
      %v1031 = vpop.f32.mrf.mxu0
      %v1032 = vadd.f32 %v348, %v1031
      %1033 = vmatmul.bf16.gmra.mxu0 %v616
      %v1034 = vpop.f32.mrf.mxu0
      %v1035 = vadd.f32 %v348, %v1034
      %v1036 = vpop.f32.mrf.mxu0
      %v1037 = vadd.f32 %v348, %v1036
      %1038 = vmatmul.bf16.gmra.mxu0 %v621
      %v1039 = vpop.f32.mrf.mxu0
      %v1040 = vadd.f32 %v348, %v1039
      %v1041 = vpop.f32.mrf.mxu0
      %v1042 = vadd.f32 %v348, %v1041
      %1043 = vmatmul.bf16.gmra.mxu0 %v626
      %v1044 = vpop.f32.mrf.mxu0
      %v1045 = vadd.f32 %v348, %v1044
      %v1046 = vpop.f32.mrf.mxu0
      %v1047 = vadd.f32 %v348, %v1046
      %1048 = vmatmul.bf16.gmra.mxu0 %v631
      %v1049 = vpop.f32.mrf.mxu0
      %v1050 = vadd.f32 %v348, %v1049
      %v1051 = vpop.f32.mrf.mxu0
      %v1052 = vadd.f32 %v348, %v1051
      %1053 = vmatmul.bf16.gmra.mxu0 %v636
      %v1054 = vpop.f32.mrf.mxu0
      %v1055 = vadd.f32 %v348, %v1054
      %v1056 = vpop.f32.mrf.mxu0
      %v1057 = vadd.f32 %v348, %v1056
      %1058 = vmatmul.bf16.gmra.mxu0 %v641
      %v1059 = vpop.f32.mrf.mxu0
      %v1060 = vadd.f32 %v348, %v1059
      %v1061 = vpop.f32.mrf.mxu0
      %v1062 = vadd.f32 %v348, %v1061
      %1063 = vmatmul.bf16.gmra.mxu0 %v646
      %v1064 = vpop.f32.mrf.mxu0
      %v1065 = vadd.f32 %v348, %v1064
      %v1066 = vpop.f32.mrf.mxu0
      %v1067 = vadd.f32 %v348, %v1066
      %1068 = vmatmul.bf16.gmra.mxu0 %v651
      %v1069 = vpop.f32.mrf.mxu0
      %v1070 = vadd.f32 %v348, %v1069
      %v1071 = vpop.f32.mrf.mxu0
      %v1072 = vadd.f32 %v348, %v1071
      %1073 = vmatmul.bf16.gmra.mxu0 %v656
      %v1074 = vpop.f32.mrf.mxu0
      %v1075 = vadd.f32 %v348, %v1074
      %v1076 = vpop.f32.mrf.mxu0
      %v1077 = vadd.f32 %v348, %v1076
      %1078 = vmatmul.bf16.gmra.mxu0 %v661
      %v1079 = vpop.f32.mrf.mxu0
      %v1080 = vadd.f32 %v348, %v1079
      %v1081 = vpop.f32.mrf.mxu0
      %v1082 = vadd.f32 %v348, %v1081
      %1083 = vmatmul.bf16.gmra.mxu0 %v666
      %v1084 = vpop.f32.mrf.mxu0
      %v1085 = vadd.f32 %v348, %v1084
      %v1086 = vpop.f32.mrf.mxu0
      %v1087 = vadd.f32 %v348, %v1086
      %1088 = vmatmul.bf16.gmra.mxu0 %v671
      %v1089 = vpop.f32.mrf.mxu0
      %v1090 = vadd.f32 %v348, %v1089
      %v1091 = vpop.f32.mrf.mxu0
      %v1092 = vadd.f32 %v348, %v1091
      %1093 = vmatmul.bf16.gmra.mxu0 %v676
      %v1094 = vpop.f32.mrf.mxu0
      %v1095 = vadd.f32 %v348, %v1094
      %v1096 = vpop.f32.mrf.mxu0
      %v1097 = vadd.f32 %v348, %v1096
      %1098 = vmatmul.bf16.gmra.mxu0 %v681
      %v1099 = vpop.f32.mrf.mxu0
      %v1100 = vadd.f32 %v348, %v1099
      %v1101 = vpop.f32.mrf.mxu0
      %v1102 = vadd.f32 %v348, %v1101
      %1103 = vdwg.mxu0
      %1104 = vmatpush.bf16.msra.mxu0 %v909
      %1105 = vmatpush.bf16.msra.mxu0 %v908
      %1106 = vmatpush.bf16.msra.mxu0 %v907
      %1107 = vmatpush.bf16.msra.mxu0 %v906
      %1108 = vmatpush.bf16.msra.mxu0 %v905
      %1109 = vmatpush.bf16.msra.mxu0 %v904
      %1110 = vmatpush.bf16.msra.mxu0 %v903
      %1111 = vmatpush.bf16.msra.mxu0 %v902
      %1112 = vmatmul.bf16.gmra.mxu0 %v607
      %v1113 = vpop.f32.mrf.mxu0
      %v1114 = vadd.f32 %v1025, %v1113
      %v1115 = vpop.f32.mrf.mxu0
      %v1116 = vadd.f32 %v1027, %v1115
      %1117 = vmatmul.bf16.gmra.mxu0 %v612
      %v1118 = vpop.f32.mrf.mxu0
      %v1119 = vadd.f32 %v1030, %v1118
      %v1120 = vpop.f32.mrf.mxu0
      %v1121 = vadd.f32 %v1032, %v1120
      %1122 = vmatmul.bf16.gmra.mxu0 %v617
      %v1123 = vpop.f32.mrf.mxu0
      %v1124 = vadd.f32 %v1035, %v1123
      %v1125 = vpop.f32.mrf.mxu0
      %v1126 = vadd.f32 %v1037, %v1125
      %1127 = vmatmul.bf16.gmra.mxu0 %v622
      %v1128 = vpop.f32.mrf.mxu0
      %v1129 = vadd.f32 %v1040, %v1128
      %v1130 = vpop.f32.mrf.mxu0
      %v1131 = vadd.f32 %v1042, %v1130
      %1132 = vmatmul.bf16.gmra.mxu0 %v627
      %v1133 = vpop.f32.mrf.mxu0
      %v1134 = vadd.f32 %v1045, %v1133
      %v1135 = vpop.f32.mrf.mxu0
      %v1136 = vadd.f32 %v1047, %v1135
      %1137 = vmatmul.bf16.gmra.mxu0 %v632
      %v1138 = vpop.f32.mrf.mxu0
      %v1139 = vadd.f32 %v1050, %v1138
      %v1140 = vpop.f32.mrf.mxu0
      %v1141 = vadd.f32 %v1052, %v1140
      %1142 = vmatmul.bf16.gmra.mxu0 %v637
      %v1143 = vpop.f32.mrf.mxu0
      %v1144 = vadd.f32 %v1055, %v1143
      %v1145 = vpop.f32.mrf.mxu0
      %v1146 = vadd.f32 %v1057, %v1145
      %1147 = vmatmul.bf16.gmra.mxu0 %v642
      %v1148 = vpop.f32.mrf.mxu0
      %v1149 = vadd.f32 %v1060, %v1148
      %v1150 = vpop.f32.mrf.mxu0
      %v1151 = vadd.f32 %v1062, %v1150
      %1152 = vmatmul.bf16.gmra.mxu0 %v647
      %v1153 = vpop.f32.mrf.mxu0
      %v1154 = vadd.f32 %v1065, %v1153
      %v1155 = vpop.f32.mrf.mxu0
      %v1156 = vadd.f32 %v1067, %v1155
      %1157 = vmatmul.bf16.gmra.mxu0 %v652
      %v1158 = vpop.f32.mrf.mxu0
      %v1159 = vadd.f32 %v1070, %v1158
      %v1160 = vpop.f32.mrf.mxu0
      %v1161 = vadd.f32 %v1072, %v1160
      %1162 = vmatmul.bf16.gmra.mxu0 %v657
      %v1163 = vpop.f32.mrf.mxu0
      %v1164 = vadd.f32 %v1075, %v1163
      %v1165 = vpop.f32.mrf.mxu0
      %v1166 = vadd.f32 %v1077, %v1165
      %1167 = vmatmul.bf16.gmra.mxu0 %v662
      %v1168 = vpop.f32.mrf.mxu0
      %v1169 = vadd.f32 %v1080, %v1168
      %v1170 = vpop.f32.mrf.mxu0
      %v1171 = vadd.f32 %v1082, %v1170
      %1172 = vmatmul.bf16.gmra.mxu0 %v667
      %v1173 = vpop.f32.mrf.mxu0
      %v1174 = vadd.f32 %v1085, %v1173
      %v1175 = vpop.f32.mrf.mxu0
      %v1176 = vadd.f32 %v1087, %v1175
      %1177 = vmatmul.bf16.gmra.mxu0 %v672
      %v1178 = vpop.f32.mrf.mxu0
      %v1179 = vadd.f32 %v1090, %v1178
      %v1180 = vpop.f32.mrf.mxu0
      %v1181 = vadd.f32 %v1092, %v1180
      %1182 = vmatmul.bf16.gmra.mxu0 %v677
      %v1183 = vpop.f32.mrf.mxu0
      %v1184 = vadd.f32 %v1095, %v1183
      %v1185 = vpop.f32.mrf.mxu0
      %v1186 = vadd.f32 %v1097, %v1185
      %1187 = vmatmul.bf16.gmra.mxu0 %v682
      %v1188 = vpop.f32.mrf.mxu0
      %v1189 = vadd.f32 %v1100, %v1188
      %v1190 = vpop.f32.mrf.mxu0
      %v1191 = vadd.f32 %v1102, %v1190
      %1192 = vdwg.mxu0
      %1193 = vmatpush.bf16.msra.mxu0 %v917
      %1194 = vmatpush.bf16.msra.mxu0 %v916
      %1195 = vmatpush.bf16.msra.mxu0 %v915
      %1196 = vmatpush.bf16.msra.mxu0 %v914
      %1197 = vmatpush.bf16.msra.mxu0 %v913
      %1198 = vmatpush.bf16.msra.mxu0 %v912
      %1199 = vmatpush.bf16.msra.mxu0 %v911
      %1200 = vmatpush.bf16.msra.mxu0 %v910
      %1201 = vmatmul.bf16.gmra.mxu0 %v608
      %v1202 = vpop.f32.mrf.mxu0
      %v1203 = vadd.f32 %v1114, %v1202
      %v1204 = vpop.f32.mrf.mxu0
      %v1205 = vadd.f32 %v1116, %v1204
      %1206 = vmatmul.bf16.gmra.mxu0 %v613
      %v1207 = vpop.f32.mrf.mxu0
      %v1208 = vadd.f32 %v1119, %v1207
      %v1209 = vpop.f32.mrf.mxu0
      %v1210 = vadd.f32 %v1121, %v1209
      %1211 = vmatmul.bf16.gmra.mxu0 %v618
      %v1212 = vpop.f32.mrf.mxu0
      %v1213 = vadd.f32 %v1124, %v1212
      %v1214 = vpop.f32.mrf.mxu0
      %v1215 = vadd.f32 %v1126, %v1214
      %1216 = vmatmul.bf16.gmra.mxu0 %v623
      %v1217 = vpop.f32.mrf.mxu0
      %v1218 = vadd.f32 %v1129, %v1217
      %v1219 = vpop.f32.mrf.mxu0
      %v1220 = vadd.f32 %v1131, %v1219
      %1221 = vmatmul.bf16.gmra.mxu0 %v628
      %v1222 = vpop.f32.mrf.mxu0
      %v1223 = vadd.f32 %v1134, %v1222
      %v1224 = vpop.f32.mrf.mxu0
      %v1225 = vadd.f32 %v1136, %v1224
      %1226 = vmatmul.bf16.gmra.mxu0 %v633
      %v1227 = vpop.f32.mrf.mxu0
      %v1228 = vadd.f32 %v1139, %v1227
      %v1229 = vpop.f32.mrf.mxu0
      %v1230 = vadd.f32 %v1141, %v1229
      %1231 = vmatmul.bf16.gmra.mxu0 %v638
      %v1232 = vpop.f32.mrf.mxu0
      %v1233 = vadd.f32 %v1144, %v1232
      %v1234 = vpop.f32.mrf.mxu0
      %v1235 = vadd.f32 %v1146, %v1234
      %1236 = vmatmul.bf16.gmra.mxu0 %v643
      %v1237 = vpop.f32.mrf.mxu0
      %v1238 = vadd.f32 %v1149, %v1237
      %v1239 = vpop.f32.mrf.mxu0
      %v1240 = vadd.f32 %v1151, %v1239
      %1241 = vmatmul.bf16.gmra.mxu0 %v648
      %v1242 = vpop.f32.mrf.mxu0
      %v1243 = vadd.f32 %v1154, %v1242
      %v1244 = vpop.f32.mrf.mxu0
      %v1245 = vadd.f32 %v1156, %v1244
      %1246 = vmatmul.bf16.gmra.mxu0 %v653
      %v1247 = vpop.f32.mrf.mxu0
      %v1248 = vadd.f32 %v1159, %v1247
      %v1249 = vpop.f32.mrf.mxu0
      %v1250 = vadd.f32 %v1161, %v1249
      %1251 = vmatmul.bf16.gmra.mxu0 %v658
      %v1252 = vpop.f32.mrf.mxu0
      %v1253 = vadd.f32 %v1164, %v1252
      %v1254 = vpop.f32.mrf.mxu0
      %v1255 = vadd.f32 %v1166, %v1254
      %1256 = vmatmul.bf16.gmra.mxu0 %v663
      %v1257 = vpop.f32.mrf.mxu0
      %v1258 = vadd.f32 %v1169, %v1257
      %v1259 = vpop.f32.mrf.mxu0
      %v1260 = vadd.f32 %v1171, %v1259
      %1261 = vmatmul.bf16.gmra.mxu0 %v668
      %v1262 = vpop.f32.mrf.mxu0
      %v1263 = vadd.f32 %v1174, %v1262
      %v1264 = vpop.f32.mrf.mxu0
      %v1265 = vadd.f32 %v1176, %v1264
      %1266 = vmatmul.bf16.gmra.mxu0 %v673
      %v1267 = vpop.f32.mrf.mxu0
      %v1268 = vadd.f32 %v1179, %v1267
      %v1269 = vpop.f32.mrf.mxu0
      %v1270 = vadd.f32 %v1181, %v1269
      %1271 = vmatmul.bf16.gmra.mxu0 %v678
      %v1272 = vpop.f32.mrf.mxu0
      %v1273 = vadd.f32 %v1184, %v1272
      %v1274 = vpop.f32.mrf.mxu0
      %v1275 = vadd.f32 %v1186, %v1274
      %1276 = vmatmul.bf16.gmra.mxu0 %v683
      %v1277 = vpop.f32.mrf.mxu0
      %v1278 = vadd.f32 %v1189, %v1277
      %v1279 = vpop.f32.mrf.mxu0
      %v1280 = vadd.f32 %v1191, %v1279
      %1281 = vdwg.mxu0
      %1282 = vmatpush.bf16.msra.mxu0 %v925
      %1283 = vmatpush.bf16.msra.mxu0 %v924
      %1284 = vmatpush.bf16.msra.mxu0 %v923
      %1285 = vmatpush.bf16.msra.mxu0 %v922
      %1286 = vmatpush.bf16.msra.mxu0 %v921
      %1287 = vmatpush.bf16.msra.mxu0 %v920
      %1288 = vmatpush.bf16.msra.mxu0 %v919
      %1289 = vmatpush.bf16.msra.mxu0 %v918
      %1290 = vmatmul.bf16.gmra.mxu0 %v609
      %v1291 = vpop.f32.mrf.mxu0
      %v1292 = vadd.f32 %v1203, %v1291
      %v1293 = vpop.f32.mrf.mxu0
      %v1294 = vadd.f32 %v1205, %v1293
      %1295 = vmatmul.bf16.gmra.mxu0 %v614
      %v1296 = vpop.f32.mrf.mxu0
      %v1297 = vadd.f32 %v1208, %v1296
      %v1298 = vpop.f32.mrf.mxu0
      %v1299 = vadd.f32 %v1210, %v1298
      %1300 = vmatmul.bf16.gmra.mxu0 %v619
      %v1301 = vpop.f32.mrf.mxu0
      %v1302 = vadd.f32 %v1213, %v1301
      %v1303 = vpop.f32.mrf.mxu0
      %v1304 = vadd.f32 %v1215, %v1303
      %1305 = vmatmul.bf16.gmra.mxu0 %v624
      %v1306 = vpop.f32.mrf.mxu0
      %v1307 = vadd.f32 %v1218, %v1306
      %v1308 = vpop.f32.mrf.mxu0
      %v1309 = vadd.f32 %v1220, %v1308
      %1310 = vmatmul.bf16.gmra.mxu0 %v629
      %v1311 = vpop.f32.mrf.mxu0
      %v1312 = vadd.f32 %v1223, %v1311
      %v1313 = vpop.f32.mrf.mxu0
      %v1314 = vadd.f32 %v1225, %v1313
      %1315 = vmatmul.bf16.gmra.mxu0 %v634
      %v1316 = vpop.f32.mrf.mxu0
      %v1317 = vadd.f32 %v1228, %v1316
      %v1318 = vpop.f32.mrf.mxu0
      %v1319 = vadd.f32 %v1230, %v1318
      %1320 = vmatmul.bf16.gmra.mxu0 %v639
      %v1321 = vpop.f32.mrf.mxu0
      %v1322 = vadd.f32 %v1233, %v1321
      %v1323 = vpop.f32.mrf.mxu0
      %v1324 = vadd.f32 %v1235, %v1323
      %1325 = vmatmul.bf16.gmra.mxu0 %v644
      %v1326 = vpop.f32.mrf.mxu0
      %v1327 = vadd.f32 %v1238, %v1326
      %v1328 = vpop.f32.mrf.mxu0
      %v1329 = vadd.f32 %v1240, %v1328
      %1330 = vmatmul.bf16.gmra.mxu0 %v649
      %v1331 = vpop.f32.mrf.mxu0
      %v1332 = vadd.f32 %v1243, %v1331
      %v1333 = vpop.f32.mrf.mxu0
      %v1334 = vadd.f32 %v1245, %v1333
      %1335 = vmatmul.bf16.gmra.mxu0 %v654
      %v1336 = vpop.f32.mrf.mxu0
      %v1337 = vadd.f32 %v1248, %v1336
      %v1338 = vpop.f32.mrf.mxu0
      %v1339 = vadd.f32 %v1250, %v1338
      %1340 = vmatmul.bf16.gmra.mxu0 %v659
      %v1341 = vpop.f32.mrf.mxu0
      %v1342 = vadd.f32 %v1253, %v1341
      %v1343 = vpop.f32.mrf.mxu0
      %v1344 = vadd.f32 %v1255, %v1343
      %1345 = vmatmul.bf16.gmra.mxu0 %v664
      %v1346 = vpop.f32.mrf.mxu0
      %v1347 = vadd.f32 %v1258, %v1346
      %v1348 = vpop.f32.mrf.mxu0
      %v1349 = vadd.f32 %v1260, %v1348
      %1350 = vmatmul.bf16.gmra.mxu0 %v669
      %v1351 = vpop.f32.mrf.mxu0
      %v1352 = vadd.f32 %v1263, %v1351
      %v1353 = vpop.f32.mrf.mxu0
      %v1354 = vadd.f32 %v1265, %v1353
      %1355 = vmatmul.bf16.gmra.mxu0 %v674
      %v1356 = vpop.f32.mrf.mxu0
      %v1357 = vadd.f32 %v1268, %v1356
      %v1358 = vpop.f32.mrf.mxu0
      %v1359 = vadd.f32 %v1270, %v1358
      %1360 = vmatmul.bf16.gmra.mxu0 %v679
      %v1361 = vpop.f32.mrf.mxu0
      %v1362 = vadd.f32 %v1273, %v1361
      %v1363 = vpop.f32.mrf.mxu0
      %v1364 = vadd.f32 %v1275, %v1363
      %1365 = vmatmul.bf16.gmra.mxu0 %v684
      %v1366 = vpop.f32.mrf.mxu0
      %v1367 = vadd.f32 %v1278, %v1366
      %v1368 = vpop.f32.mrf.mxu0
      %v1369 = vadd.f32 %v1280, %v1368
      %1370 = vdwg.mxu0
      %1371 = vmatpush.bf16.msra.mxu0 0
      %1372 = vmatpush.bf16.msra.mxu0 0
      %1373 = vmatpush.bf16.msra.mxu0 0
      %1374 = vmatpush.bf16.msra.mxu0 0
      %1375 = vmatpush.bf16.msra.mxu0 %v929
      %1376 = vmatpush.bf16.msra.mxu0 %v928
      %1377 = vmatpush.bf16.msra.mxu0 %v927
      %1378 = vmatpush.bf16.msra.mxu0 %v926
      %1379 = vmatmul.bf16.gmra.mxu0 %v968
      %v1380 = vpop.f32.mrf.mxu0
      %v1381 = vadd.f32 %v1292, %v1380
      %v1382 = vpop.f32.mrf.mxu0
      %v1383 = vadd.f32 %v1294, %v1382
      %1384 = vmatmul.bf16.gmra.mxu0 %v971
      %v1385 = vpop.f32.mrf.mxu0
      %v1386 = vadd.f32 %v1297, %v1385
      %v1387 = vpop.f32.mrf.mxu0
      %v1388 = vadd.f32 %v1299, %v1387
      %1389 = vmatmul.bf16.gmra.mxu0 %v974
      %v1390 = vpop.f32.mrf.mxu0
      %v1391 = vadd.f32 %v1302, %v1390
      %v1392 = vpop.f32.mrf.mxu0
      %v1393 = vadd.f32 %v1304, %v1392
      %1394 = vmatmul.bf16.gmra.mxu0 %v977
      %v1395 = vpop.f32.mrf.mxu0
      %v1396 = vadd.f32 %v1307, %v1395
      %v1397 = vpop.f32.mrf.mxu0
      %v1398 = vadd.f32 %v1309, %v1397
      %1399 = vmatmul.bf16.gmra.mxu0 %v980
      %v1400 = vpop.f32.mrf.mxu0
      %v1401 = vadd.f32 %v1312, %v1400
      %v1402 = vpop.f32.mrf.mxu0
      %v1403 = vadd.f32 %v1314, %v1402
      %1404 = vmatmul.bf16.gmra.mxu0 %v983
      %v1405 = vpop.f32.mrf.mxu0
      %v1406 = vadd.f32 %v1317, %v1405
      %v1407 = vpop.f32.mrf.mxu0
      %v1408 = vadd.f32 %v1319, %v1407
      %1409 = vmatmul.bf16.gmra.mxu0 %v986
      %v1410 = vpop.f32.mrf.mxu0
      %v1411 = vadd.f32 %v1322, %v1410
      %v1412 = vpop.f32.mrf.mxu0
      %v1413 = vadd.f32 %v1324, %v1412
      %1414 = vmatmul.bf16.gmra.mxu0 %v989
      %v1415 = vpop.f32.mrf.mxu0
      %v1416 = vadd.f32 %v1327, %v1415
      %v1417 = vpop.f32.mrf.mxu0
      %v1418 = vadd.f32 %v1329, %v1417
      %1419 = vmatmul.bf16.gmra.mxu0 %v992
      %v1420 = vpop.f32.mrf.mxu0
      %v1421 = vadd.f32 %v1332, %v1420
      %v1422 = vpop.f32.mrf.mxu0
      %v1423 = vadd.f32 %v1334, %v1422
      %1424 = vmatmul.bf16.gmra.mxu0 %v995
      %v1425 = vpop.f32.mrf.mxu0
      %v1426 = vadd.f32 %v1337, %v1425
      %v1427 = vpop.f32.mrf.mxu0
      %v1428 = vadd.f32 %v1339, %v1427
      %1429 = vmatmul.bf16.gmra.mxu0 %v998
      %v1430 = vpop.f32.mrf.mxu0
      %v1431 = vadd.f32 %v1342, %v1430
      %v1432 = vpop.f32.mrf.mxu0
      %v1433 = vadd.f32 %v1344, %v1432
      %1434 = vmatmul.bf16.gmra.mxu0 %v1001
      %v1435 = vpop.f32.mrf.mxu0
      %v1436 = vadd.f32 %v1347, %v1435
      %v1437 = vpop.f32.mrf.mxu0
      %v1438 = vadd.f32 %v1349, %v1437
      %1439 = vmatmul.bf16.gmra.mxu0 %v1004
      %v1440 = vpop.f32.mrf.mxu0
      %v1441 = vadd.f32 %v1352, %v1440
      %v1442 = vpop.f32.mrf.mxu0
      %v1443 = vadd.f32 %v1354, %v1442
      %1444 = vmatmul.bf16.gmra.mxu0 %v1007
      %v1445 = vpop.f32.mrf.mxu0
      %v1446 = vadd.f32 %v1357, %v1445
      %v1447 = vpop.f32.mrf.mxu0
      %v1448 = vadd.f32 %v1359, %v1447
      %1449 = vmatmul.bf16.gmra.mxu0 %v1010
      %v1450 = vpop.f32.mrf.mxu0
      %v1451 = vadd.f32 %v1362, %v1450
      %v1452 = vpop.f32.mrf.mxu0
      %v1453 = vadd.f32 %v1364, %v1452
      %1454 = vmatmul.bf16.gmra.mxu0 %v1013
      %v1455 = vpop.f32.mrf.mxu0
      %v1456 = vadd.f32 %v1367, %v1455
      %v1457 = vpop.f32.mrf.mxu0
      %v1458 = vadd.f32 %v1369, %v1457
      %1459 = vdwg.mxu0
      %v1460 = vmax.f32 %v1381, 0.0
      %v1461 = vmax.f32 %v1383, 0.0
      %v1462 = vmax.f32 %v1386, 0.0
      %v1463 = vmax.f32 %v1388, 0.0
      %v1464 = vmax.f32 %v1391, 0.0
      %v1465 = vmax.f32 %v1393, 0.0
      %v1466 = vmax.f32 %v1396, 0.0
      %v1467 = vmax.f32 %v1398, 0.0
      %v1468 = vmax.f32 %v1401, 0.0
      %v1469 = vmax.f32 %v1403, 0.0
      %v1470 = vmax.f32 %v1406, 0.0
      %v1471 = vmax.f32 %v1408, 0.0
      %v1472 = vmax.f32 %v1411, 0.0
      %v1473 = vmax.f32 %v1413, 0.0
      %v1474 = vmax.f32 %v1416, 0.0
      %v1475 = vmax.f32 %v1418, 0.0
      %v1476 = vmax.f32 %v1421, 0.0
      %v1477 = vmax.f32 %v1423, 0.0
      %v1478 = vmax.f32 %v1426, 0.0
      %v1479 = vmax.f32 %v1428, 0.0
      %v1480 = vmax.f32 %v1431, 0.0
      %v1481 = vmax.f32 %v1433, 0.0
      %v1482 = vmax.f32 %v1436, 0.0
      %v1483 = vmax.f32 %v1438, 0.0
      %v1484 = vmax.f32 %v1441, 0.0
      %v1485 = vmax.f32 %v1443, 0.0
      %v1486 = vmax.f32 %v1446, 0.0
      %v1487 = vmax.f32 %v1448, 0.0
      %v1488 = vmax.f32 %v1451, 0.0
      %v1489 = vmax.f32 %v1453, 0.0
      %v1490 = vmax.f32 %v1456, 0.0
      %v1491 = vmax.f32 %v1458, 0.0
      %v1492 = vpack.c.bf16 %v1460, %v1460
      %v1493 = vpack.c.bf16 %v1461, %v1461
      %v1494 = vpack.c.bf16 %v1462, %v1462
      %v1495 = vpack.c.bf16 %v1463, %v1463
      %v1496 = vpack.c.bf16 %v1464, %v1464
      %v1497 = vpack.c.bf16 %v1465, %v1465
      %v1498 = vpack.c.bf16 %v1466, %v1466
      %v1499 = vpack.c.bf16 %v1467, %v1467
      %v1500 = vpack.c.bf16 %v1468, %v1468
      %v1501 = vpack.c.bf16 %v1469, %v1469
      %v1502 = vpack.c.bf16 %v1470, %v1470
      %v1503 = vpack.c.bf16 %v1471, %v1471
      %v1504 = vpack.c.bf16 %v1472, %v1472
      %v1505 = vpack.c.bf16 %v1473, %v1473
      %v1506 = vpack.c.bf16 %v1474, %v1474
      %v1507 = vpack.c.bf16 %v1475, %v1475
      %v1508 = vpack.c.bf16 %v1476, %v1476
      %v1509 = vpack.c.bf16 %v1477, %v1477
      %v1510 = vpack.c.bf16 %v1478, %v1478
      %v1511 = vpack.c.bf16 %v1479, %v1479
      %v1512 = vpack.c.bf16 %v1480, %v1480
      %v1513 = vpack.c.bf16 %v1481, %v1481
      %v1514 = vpack.c.bf16 %v1482, %v1482
      %v1515 = vpack.c.bf16 %v1483, %v1483
      %v1516 = vpack.c.bf16 %v1484, %v1484
      %v1517 = vpack.c.bf16 %v1485, %v1485
      %v1518 = vpack.c.bf16 %v1486, %v1486
      %v1519 = vpack.c.bf16 %v1487, %v1487
      %v1520 = vpack.c.bf16 %v1488, %v1488
      %v1521 = vpack.c.bf16 %v1489, %v1489
      %v1522 = vpack.c.bf16 %v1490, %v1490
      %v1523 = vpack.c.bf16 %v1491, %v1491
      %vm1524 = vcmask 388096
      %1525 = vst.msk [vmem:[%s175] sm:$0xf] %vm1524, %v1492
      %1526 = vst.msk [vmem:[%s175 + $0x4] sm:$0xf] %vm1524, %v1493
      %1527 = vst.msk [vmem:[%s175 + $0x8] sm:$0xf] %vm1524, %v1494
      %1528 = vst.msk [vmem:[%s175 + $0xc] sm:$0xf] %vm1524, %v1495
      %1529 = vst.msk [vmem:[%s175 + $0x10] sm:$0xf] %vm1524, %v1496
      %1530 = vst.msk [vmem:[%s175 + $0x14] sm:$0xf] %vm1524, %v1497
      %1531 = vst.msk [vmem:[%s175 + $0x18] sm:$0xf] %vm1524, %v1498
      %1532 = vst.msk [vmem:[%s175 + $0x1c] sm:$0xf] %vm1524, %v1499
      %1533 = vst.msk [vmem:[%s175 + $0x20] sm:$0xf] %vm1524, %v1500
      %1534 = vst.msk [vmem:[%s175 + $0x24] sm:$0xf] %vm1524, %v1501
      %1535 = vst.msk [vmem:[%s175 + $0x28] sm:$0xf] %vm1524, %v1502
      %1536 = vst.msk [vmem:[%s175 + $0x2c] sm:$0xf] %vm1524, %v1503
      %1537 = vst.msk [vmem:[%s175 + $0x30] sm:$0xf] %vm1524, %v1504
      %1538 = vst.msk [vmem:[%s175 + $0x34] sm:$0xf] %vm1524, %v1505
      %1539 = vst.msk [vmem:[%s175 + $0x38] sm:$0xf] %vm1524, %v1506
      %1540 = vst.msk [vmem:[%s175 + $0x3c] sm:$0xf] %vm1524, %v1507
      %1541 = vst.msk [vmem:[%s175 + $0x40] sm:$0xf] %vm1524, %v1508
      %1542 = vst.msk [vmem:[%s175 + $0x44] sm:$0xf] %vm1524, %v1509
      %1543 = vst.msk [vmem:[%s175 + $0x48] sm:$0xf] %vm1524, %v1510
      %1544 = vst.msk [vmem:[%s175 + $0x4c] sm:$0xf] %vm1524, %v1511
      %1545 = vst.msk [vmem:[%s175 + $0x50] sm:$0xf] %vm1524, %v1512
      %1546 = vst.msk [vmem:[%s175 + $0x54] sm:$0xf] %vm1524, %v1513
      %1547 = vst.msk [vmem:[%s175 + $0x58] sm:$0xf] %vm1524, %v1514
      %1548 = vst.msk [vmem:[%s175 + $0x5c] sm:$0xf] %vm1524, %v1515
      %1549 = vst.msk [vmem:[%s175 + $0x60] sm:$0xf] %vm1524, %v1516
      %1550 = vst.msk [vmem:[%s175 + $0x64] sm:$0xf] %vm1524, %v1517
      %1551 = vst.msk [vmem:[%s175 + $0x68] sm:$0xf] %vm1524, %v1518
      %1552 = vst.msk [vmem:[%s175 + $0x6c] sm:$0xf] %vm1524, %v1519
      %1553 = vst.msk [vmem:[%s175 + $0x70] sm:$0xf] %vm1524, %v1520
      %1554 = vst.msk [vmem:[%s175 + $0x74] sm:$0xf] %vm1524, %v1521
      %1555 = vst.msk [vmem:[%s175 + $0x78] sm:$0xf] %vm1524, %v1522
      %1556 = vst.msk [vmem:[%s175 + $0x7c] sm:$0xf] %vm1524, %v1523
      %s1557 = smul.u32 32, %s14
      %p1558 = scmp.lt.s32.totalorder %s1557, 63
      %s1559 = scalar_select %p1558, %s1557, 63
      %s1560 = smul.addr %s1559, 4
      %s1561 = scalar_lea.vmem %s3, %s1560
      // Predicated region
      $region33: #{forward.7} parent=31 // pred_check
        %p1562 = pneg %p100
      $region34: #{forward.7} parent=31 // pred_check_branch
        %1564 = sbr.rel (%p1562) target = $region36
      $region35: #{forward.7} parent=31 // pred_region
        %s1565 = smul.u32 32, %s14
      $region36: #{forward.7} parent=31 // pred_fallthru
        _
    $region32: #{forward.7} parent=5 // pred_fallthru
      _
    %p1566 = scmp.le.s32.totalorder 2, %s9
    // Predicated region
    $region37: #{forward.7} parent=5 // pred_check
      %p1567 = pneg %p1566
    $region38: #{forward.7} parent=5 // pred_check_branch
      %1569 = sbr.rel (%p1567) target = $region40
    $region39: #{forward.7} parent=5 // pred_region
      %s1570 = ssub.s32 %s9, 2
      // Predicated region
      $region41: #{forward.7} parent=39 // pred_check
        %p1571 = pneg %p106
      $region42: #{forward.7} parent=39 // pred_check_branch
        %1573 = sbr.rel (%p1571) target = $region44
      $region43: #{forward.7} parent=39 // pred_region
        %s1574 = smul.u32 32, %s15
        %p1575 = scmp.lt.s32.totalorder %s1574, 63
        %s1576 = scalar_select %p1575, %s1574, 63
        %s1577 = smul.addr %s1576, 4
        %s1578 = scalar_lea.vmem %s3, %s1577
      $region44: #{forward.7} parent=39 // pred_fallthru
        _
    $region40: #{forward.7} parent=5 // pred_fallthru
      _
  $region6: #{forward.7} parent=0 // loop_footer
    %s13 = sadd.s32 1, %s9
  $region7: #{forward.7} parent=0 // loop_footer_branch
    %8 = sbr.rel target = $region3
  $region8: #{forward.7} parent=0 // loop_exit
    _

// kernel: forward.8
$region0: #{forward.8}
  #allocation0 [shape = 'u32[]', space=smem, size = 0x4, offset = 0x4, fixed_abs, tag = 'smem constant byte address 0x4 - core index']
  #allocation1 [shape = 'u32[72,128]{1,0:T(1,128)}', space=vmem, size = 0x9000, scoped, tag = 'internal scratch']
  %s0 = inlined_call_operand.vmem [shape: bf16[128,768], index: 0, kind: input, shape index: {}]
  %s1 = inlined_call_operand.vmem [shape: bf16[768,64], index: 1, kind: input, shape index: {}]
  %s2 = inlined_call_operand.vmem [shape: f32[1,64], index: 2, kind: input, shape index: {}]
  %s3 = inlined_call_operand.vmem [shape: bf16[128,64], index: 3, kind: output, shape index: {}]
  %s4 = sld [smem:[#allocation0]]
  $region45: #{forward.8} parent=0
    _
  %s6 = ssub.s32 1, %s4
  %s7 = scalar_select 0, %s6, %s4
  loop: start=0, step=1, limit=4
  $region2: #{forward.8} parent=0 // loop_pre_header
    _
  $region3: #{forward.8} parent=0 // loop_header
    %s9 = sphi 0, %s13
    %p10 = scmp.ge.s32.totalorder %s9, 4
    %s19 = sphi 0, %s21
    %s22 = sphi 0, %s19
    %s23 = sphi 0, %s22
    %s39 = sphi 0, %s23
    %s43 = sphi 0, %s43
    %s45 = sphi 0, %s43
    %s46 = sphi 0, %s45
    %s60 = sphi 0, %s46
    %s64 = sphi 0, %s64
    %s66 = sphi 0, %s64
    %s67 = sphi 0, %s66
    %s81 = sphi 0, %s67
    %s87 = sphi 0, %s89
    %s90 = sphi 0, %s87
    %s91 = sphi 0, %s90
    %s107 = sphi 0, %s91
  $region4: #{forward.8} parent=0 // loop_header_branch
    %12 = sbr.rel (%p10) target = $region8
  $region5: #{forward.8} parent=0 // loop_body
    %s14 = ssub.s32 %s9, 1
    %s15 = ssub.s32 %s9, 2
    %s16 = sadd.s32 %s9, 1
    %s17 = ssub.s32 %s9, %s16
    %p18 = scmp.eq.s32.totalorder %s17, 0
    %s20 = sadd.s32 %s19, 1
    %s21 = scalar_select %p18, %s19, %s20
    %p24 = pneg %p18
    %p25 = scmp.eq.s32.totalorder %s9, 1
    %p26 = por %p24, %p25
    %p27 = scmp.ne.s32.totalorder %s19, %s22
    %p28 = scmp.eq.s32.totalorder %s9, 0
    %p29 = por %p27, %p28
    %p30 = scmp.ne.s32.totalorder %s19, %s22
    %p31 = scmp.eq.s32.totalorder %s14, 1
    %p32 = por %p30, %p31
    %p33 = scmp.ne.s32.totalorder %s22, %s23
    %p34 = scmp.eq.s32.totalorder %s14, 0
    %p35 = por %p33, %p34
    %p36 = scmp.ne.s32.totalorder %s22, %s23
    %p37 = scmp.eq.s32.totalorder %s15, 1
    %p38 = por %p36, %p37
    %p40 = scmp.ne.s32.totalorder %s23, %s39
    %p41 = scmp.eq.s32.totalorder %s15, 0
    %p42 = por %p40, %p41
    %s44 = sadd.s32 %s43, 1
    %p47 = scmp.eq.s32.totalorder %s9, 1
    %p48 = scmp.ne.s32.totalorder %s43, %s45
    %p49 = scmp.eq.s32.totalorder %s9, 0
    %p50 = por %p48, %p49
    %p51 = scmp.ne.s32.totalorder %s43, %s45
    %p52 = scmp.eq.s32.totalorder %s14, 1
    %p53 = por %p51, %p52
    %p54 = scmp.ne.s32.totalorder %s45, %s46
    %p55 = scmp.eq.s32.totalorder %s14, 0
    %p56 = por %p54, %p55
    %p57 = scmp.ne.s32.totalorder %s45, %s46
    %p58 = scmp.eq.s32.totalorder %s15, 1
    %p59 = por %p57, %p58
    %p61 = scmp.ne.s32.totalorder %s46, %s60
    %p62 = scmp.eq.s32.totalorder %s15, 0
    %p63 = por %p61, %p62
    %s65 = sadd.s32 %s64, 1
    %p68 = scmp.eq.s32.totalorder %s9, 1
    %p69 = scmp.ne.s32.totalorder %s64, %s66
    %p70 = scmp.eq.s32.totalorder %s9, 0
    %p71 = por %p69, %p70
    %p72 = scmp.ne.s32.totalorder %s64, %s66
    %p73 = scmp.eq.s32.totalorder %s14, 1
    %p74 = por %p72, %p73
    %p75 = scmp.ne.s32.totalorder %s66, %s67
    %p76 = scmp.eq.s32.totalorder %s14, 0
    %p77 = por %p75, %p76
    %p78 = scmp.ne.s32.totalorder %s66, %s67
    %p79 = scmp.eq.s32.totalorder %s15, 1
    %p80 = por %p78, %p79
    %p82 = scmp.ne.s32.totalorder %s67, %s81
    %p83 = scmp.eq.s32.totalorder %s15, 0
    %p84 = por %p82, %p83
    %s85 = ssub.s32 %s9, %s16
    %p86 = scmp.eq.s32.totalorder %s85, 0
    %s88 = sadd.s32 %s87, 1
    %s89 = scalar_select %p86, %s87, %s88
    %p92 = pneg %p86
    %p93 = scmp.eq.s32.totalorder %s9, 1
    %p94 = por %p92, %p93
    %p95 = scmp.ne.s32.totalorder %s87, %s90
    %p96 = scmp.eq.s32.totalorder %s9, 0
    %p97 = por %p95, %p96
    %p98 = scmp.ne.s32.totalorder %s87, %s90
    %p99 = scmp.eq.s32.totalorder %s14, 1
    %p100 = por %p98, %p99
    %p101 = scmp.ne.s32.totalorder %s90, %s91
    %p102 = scmp.eq.s32.totalorder %s14, 0
    %p103 = por %p101, %p102
    %p104 = scmp.ne.s32.totalorder %s90, %s91
    %p105 = scmp.eq.s32.totalorder %s15, 1
    %p106 = por %p104, %p105
    %p108 = scmp.ne.s32.totalorder %s91, %s107
    %p109 = scmp.eq.s32.totalorder %s15, 0
    %p110 = por %p108, %p109
    %p111 = scmp.le.s32.totalorder 1, %s9
    %p112 = scmp.lt.s32.totalorder %s9, 3
    %p113 = pnand %p111, %p112
    %p114 = pneg %p113
    // Predicated region
    $region9: #{forward.8} parent=5 // pred_check
      _
    $region10: #{forward.8} parent=5 // pred_check_branch
      %116 = sbr.rel (%p113) target = $region12
    $region11: #{forward.8} parent=5 // pred_region
      %s117 = ssub.s32 %s9, 1
      // Predicated region
      $region13: #{forward.8} parent=11 // pred_check
        %p118 = pneg %p56
      $region14: #{forward.8} parent=11 // pred_check_branch
        %120 = sbr.rel (%p118) target = $region16
      $region15: #{forward.8} parent=11 // pred_region
        _
      $region16: #{forward.8} parent=11 // pred_fallthru
        _
      // Predicated region
      $region17: #{forward.8} parent=11 // pred_check
        %p121 = pneg %p77
      $region18: #{forward.8} parent=11 // pred_check_branch
        %123 = sbr.rel (%p121) target = $region20
      $region19: #{forward.8} parent=11 // pred_region
        _
      $region20: #{forward.8} parent=11 // pred_fallthru
        _
    $region12: #{forward.8} parent=5 // pred_fallthru
      _
    %p124 = scmp.lt.s32.totalorder %s9, 2
    // Predicated region
    $region21: #{forward.8} parent=5 // pred_check
      %p125 = pneg %p124
    $region22: #{forward.8} parent=5 // pred_check_branch
      %127 = sbr.rel (%p125) target = $region24
    $region23: #{forward.8} parent=5 // pred_region
      // Predicated region
      $region25: #{forward.8} parent=23 // pred_check
        %p128 = pneg %p29
      $region26: #{forward.8} parent=23 // pred_check_branch
        %130 = sbr.rel (%p128) target = $region28
      $region27: #{forward.8} parent=23 // pred_region
        %s131 = smul.u32 8, %s9
        %p132 = scmp.lt.s32.totalorder %s131, 15
        %s133 = scalar_select %p132, %s131, 15
        %s134 = smul.addr %s133, 6
        %s135 = smul.addr %s134, 4
        %s136 = scalar_lea.vmem %s0, %s135
        %s137 = smul.u32 8, %s9
      $region28: #{forward.8} parent=23 // pred_fallthru
        _
    $region24: #{forward.8} parent=5 // pred_fallthru
      _
    %p138 = scmp.le.s32.totalorder 1, %s9
    %p139 = scmp.lt.s32.totalorder %s9, 3
    %p140 = pnand %p138, %p139
    %p141 = pneg %p140
    // Predicated region
    $region29: #{forward.8} parent=5 // pred_check
      _
    $region30: #{forward.8} parent=5 // pred_check_branch
      %143 = sbr.rel (%p140) target = $region32
    $region31: #{forward.8} parent=5 // pred_region
      %s144 = ssub.s32 %s9, 1
      %s145 = smul.u32 8, %s14
      %p146 = scmp.lt.s32.totalorder %s145, 15
      %s147 = scalar_select %p146, %s145, 15
      %s148 = smul.addr %s147, 6
      %s149 = smul.addr %s148, 4
      %s150 = scalar_lea.vmem %s0, %s149
      %p151 = pneg %p35
      %p152 = pneg %p32
      %p153 = pneg %p56
      %p154 = pneg %p53
      %p155 = pneg %p77
      %p156 = pneg %p74
      %p157 = pneg %p103
      %p158 = pneg %p100
      %s159 = smul.u32 8, %s14
      %p160 = scmp.lt.s32.totalorder %s159, 15
      %s161 = scalar_select %p160, %s159, 15
      %s162 = smul.addr %s161, 4
      %s163 = scalar_lea.vmem %s3, %s162
      %s164 = smul.u32 8, %s14
      %p165 = scmp.lt.s32.totalorder %s164, 15
      %s166 = scalar_select %p165, %s164, 15
      %s167 = smul.addr %s166, 6
      %s168 = smul.addr %s167, 4
      %s169 = scalar_lea.vmem %s0, %s168
      %s170 = smul.u32 8, %s14
      %s171 = smul.u32 8, %s14
      %p172 = scmp.lt.s32.totalorder %s171, 15
      %s173 = scalar_select %p172, %s171, 15
      %s174 = smul.addr %s173, 4
      %s175 = scalar_lea.vmem %s3, %s174
      %s176 = smul.u32 8, %s14
      %v177 = vld [vmem:[%s169] sm:$0xff]
      %v178 = vld [vmem:[%s169 + $0x8] sm:$0xff]
      %v179 = vld [vmem:[%s169 + $0x10] sm:$0xff]
      %v180 = vld [vmem:[%s169 + $0x18] sm:$0xff]
      %v181 = vld [vmem:[%s169 + $0x20] sm:$0xff]
      %v182 = vld [vmem:[%s169 + $0x28] sm:$0xff]
      %v183 = vld [vmem:[%s169 + $0x30] sm:$0xff]
      %v184 = vld [vmem:[%s169 + $0x38] sm:$0xff]
      %v185 = vld [vmem:[%s169 + $0x40] sm:$0xff]
      %v186 = vld [vmem:[%s169 + $0x48] sm:$0xff]
      %v187 = vld [vmem:[%s169 + $0x50] sm:$0xff]
      %v188 = vld [vmem:[%s169 + $0x58] sm:$0xff]
      %v189 = vld [vmem:[%s169 + $0x60] sm:$0xff]
      %v190 = vld [vmem:[%s169 + $0x68] sm:$0xff]
      %v191 = vld [vmem:[%s169 + $0x70] sm:$0xff]
      %v192 = vld [vmem:[%s169 + $0x78] sm:$0xff]
      %v193 = vld [vmem:[%s169 + $0x80] sm:$0xff]
      %v194 = vld [vmem:[%s169 + $0x88] sm:$0xff]
      %v195 = vld [vmem:[%s169 + $0x90] sm:$0xff]
      %v196 = vld [vmem:[%s169 + $0x98] sm:$0xff]
      %v197 = vld [vmem:[%s169 + $0xa0] sm:$0xff]
      %v198 = vld [vmem:[%s169 + $0xa8] sm:$0xff]
      %v199 = vld [vmem:[%s169 + $0xb0] sm:$0xff]
      %v200 = vld [vmem:[%s169 + $0xb8] sm:$0xff]
      %v201 = vld [vmem:[%s1] sm:$0xf]
      %v202 = vld [vmem:[%s1 + $0x4] sm:$0xf]
      %v203 = vld [vmem:[%s1 + $0x8] sm:$0xf]
      %v204 = vld [vmem:[%s1 + $0xc] sm:$0xf]
      %v205 = vld [vmem:[%s1 + $0x10] sm:$0xf]
      %v206 = vld [vmem:[%s1 + $0x14] sm:$0xf]
      %v207 = vld [vmem:[%s1 + $0x18] sm:$0xf]
      %v208 = vld [vmem:[%s1 + $0x1c] sm:$0xf]
      %v209 = vld [vmem:[%s1 + $0x20] sm:$0xf]
      %v210 = vld [vmem:[%s1 + $0x24] sm:$0xf]
      %v211 = vld [vmem:[%s1 + $0x28] sm:$0xf]
      %v212 = vld [vmem:[%s1 + $0x2c] sm:$0xf]
      %v213 = vld [vmem:[%s1 + $0x30] sm:$0xf]
      %v214 = vld [vmem:[%s1 + $0x34] sm:$0xf]
      %v215 = vld [vmem:[%s1 + $0x38] sm:$0xf]
      %v216 = vld [vmem:[%s1 + $0x3c] sm:$0xf]
      %v217 = vld [vmem:[%s1 + $0x40] sm:$0xf]
      %v218 = vld [vmem:[%s1 + $0x44] sm:$0xf]
      %v219 = vld [vmem:[%s1 + $0x48] sm:$0xf]
      %v220 = vld [vmem:[%s1 + $0x4c] sm:$0xf]
      %v221 = vld [vmem:[%s1 + $0x50] sm:$0xf]
      %v222 = vld [vmem:[%s1 + $0x54] sm:$0xf]
      %v223 = vld [vmem:[%s1 + $0x58] sm:$0xf]
      %v224 = vld [vmem:[%s1 + $0x5c] sm:$0xf]
      %v225 = vld [vmem:[%s1 + $0x60] sm:$0xf]
      %v226 = vld [vmem:[%s1 + $0x64] sm:$0xf]
      %v227 = vld [vmem:[%s1 + $0x68] sm:$0xf]
      %v228 = vld [vmem:[%s1 + $0x6c] sm:$0xf]
      %v229 = vld [vmem:[%s1 + $0x70] sm:$0xf]
      %v230 = vld [vmem:[%s1 + $0x74] sm:$0xf]
      %v231 = vld [vmem:[%s1 + $0x78] sm:$0xf]
      %v232 = vld [vmem:[%s1 + $0x7c] sm:$0xf]
      %v233 = vld [vmem:[%s1 + $0x80] sm:$0xf]
      %v234 = vld [vmem:[%s1 + $0x84] sm:$0xf]
      %v235 = vld [vmem:[%s1 + $0x88] sm:$0xf]
      %v236 = vld [vmem:[%s1 + $0x8c] sm:$0xf]
      %v237 = vld [vmem:[%s1 + $0x90] sm:$0xf]
      %v238 = vld [vmem:[%s1 + $0x94] sm:$0xf]
      %v239 = vld [vmem:[%s1 + $0x98] sm:$0xf]
      %v240 = vld [vmem:[%s1 + $0x9c] sm:$0xf]
      %v241 = vld [vmem:[%s1 + $0xa0] sm:$0xf]
      %v242 = vld [vmem:[%s1 + $0xa4] sm:$0xf]
      %v243 = vld [vmem:[%s1 + $0xa8] sm:$0xf]
      %v244 = vld [vmem:[%s1 + $0xac] sm:$0xf]
      %v245 = vld [vmem:[%s1 + $0xb0] sm:$0xf]
      %v246 = vld [vmem:[%s1 + $0xb4] sm:$0xf]
      %v247 = vld [vmem:[%s1 + $0xb8] sm:$0xf]
      %v248 = vld [vmem:[%s1 + $0xbc] sm:$0xf]
      %v249 = vld [vmem:[%s1 + $0xc0] sm:$0xf]
      %v250 = vld [vmem:[%s1 + $0xc4] sm:$0xf]
      %v251 = vld [vmem:[%s1 + $0xc8] sm:$0xf]
      %v252 = vld [vmem:[%s1 + $0xcc] sm:$0xf]
      %v253 = vld [vmem:[%s1 + $0xd0] sm:$0xf]
      %v254 = vld [vmem:[%s1 + $0xd4] sm:$0xf]
      %v255 = vld [vmem:[%s1 + $0xd8] sm:$0xf]
      %v256 = vld [vmem:[%s1 + $0xdc] sm:$0xf]
      %v257 = vld [vmem:[%s1 + $0xe0] sm:$0xf]
      %v258 = vld [vmem:[%s1 + $0xe4] sm:$0xf]
      %v259 = vld [vmem:[%s1 + $0xe8] sm:$0xf]
      %v260 = vld [vmem:[%s1 + $0xec] sm:$0xf]
      %v261 = vld [vmem:[%s1 + $0xf0] sm:$0xf]
      %v262 = vld [vmem:[%s1 + $0xf4] sm:$0xf]
      %v263 = vld [vmem:[%s1 + $0xf8] sm:$0xf]
      %v264 = vld [vmem:[%s1 + $0xfc] sm:$0xf]
      %v265 = vld [vmem:[%s1 + $0x100] sm:$0xf]
      %v266 = vld [vmem:[%s1 + $0x104] sm:$0xf]
      %v267 = vld [vmem:[%s1 + $0x108] sm:$0xf]
      %v268 = vld [vmem:[%s1 + $0x10c] sm:$0xf]
      %v269 = vld [vmem:[%s1 + $0x110] sm:$0xf]
      %v270 = vld [vmem:[%s1 + $0x114] sm:$0xf]
      %v271 = vld [vmem:[%s1 + $0x118] sm:$0xf]
      %v272 = vld [vmem:[%s1 + $0x11c] sm:$0xf]
      %v273 = vld [vmem:[%s1 + $0x120] sm:$0xf]
      %v274 = vld [vmem:[%s1 + $0x124] sm:$0xf]
      %v275 = vld [vmem:[%s1 + $0x128] sm:$0xf]
      %v276 = vld [vmem:[%s1 + $0x12c] sm:$0xf]
      %v277 = vld [vmem:[%s1 + $0x130] sm:$0xf]
      %v278 = vld [vmem:[%s1 + $0x134] sm:$0xf]
      %v279 = vld [vmem:[%s1 + $0x138] sm:$0xf]
      %v280 = vld [vmem:[%s1 + $0x13c] sm:$0xf]
      %v281 = vld [vmem:[%s1 + $0x140] sm:$0xf]
      %v282 = vld [vmem:[%s1 + $0x144] sm:$0xf]
      %v283 = vld [vmem:[%s1 + $0x148] sm:$0xf]
      %v284 = vld [vmem:[%s1 + $0x14c] sm:$0xf]
      %v285 = vld [vmem:[%s1 + $0x150] sm:$0xf]
      %v286 = vld [vmem:[%s1 + $0x154] sm:$0xf]
      %v287 = vld [vmem:[%s1 + $0x158] sm:$0xf]
      %v288 = vld [vmem:[%s1 + $0x15c] sm:$0xf]
      %v289 = vld [vmem:[%s1 + $0x160] sm:$0xf]
      %v290 = vld [vmem:[%s1 + $0x164] sm:$0xf]
      %v291 = vld [vmem:[%s1 + $0x168] sm:$0xf]
      %v292 = vld [vmem:[%s1 + $0x16c] sm:$0xf]
      %v293 = vld [vmem:[%s1 + $0x170] sm:$0xf]
      %v294 = vld [vmem:[%s1 + $0x174] sm:$0xf]
      %v295 = vld [vmem:[%s1 + $0x178] sm:$0xf]
      %v296 = vld [vmem:[%s1 + $0x17c] sm:$0xf]
      %v297 = vld [vmem:[%s2] sm:$0x1]
      %v299 = vperm.slane %v297, 0
      %v325 = vunpack.c.l.b16 %v177
      %v326 = vunpack.c.h.b16 %v177
      %v327 = vunpack.c.l.b16 %v178
      %v328 = vunpack.c.h.b16 %v178
      %v329 = vunpack.c.l.b16 %v179
      %v330 = vunpack.c.h.b16 %v179
      %v331 = vunpack.c.l.b16 %v180
      %v332 = vunpack.c.h.b16 %v180
      %v333 = vunpack.c.l.b16 %v181
      %v334 = vunpack.c.h.b16 %v181
      %v335 = vunpack.c.l.b16 %v182
      %v336 = vunpack.c.h.b16 %v182
      %v337 = vunpack.c.l.b16 %v183
      %v338 = vunpack.c.h.b16 %v183
      %v339 = vunpack.c.l.b16 %v184
      %v340 = vunpack.c.h.b16 %v184
      %v341 = vunpack.c.l.b16 %v185
      %v342 = vunpack.c.h.b16 %v185
      %v343 = vunpack.c.l.b16 %v186
      %v344 = vunpack.c.h.b16 %v186
      %v345 = vunpack.c.l.b16 %v187
      %v346 = vunpack.c.h.b16 %v187
      %v347 = vunpack.c.l.b16 %v188
      %v348 = vunpack.c.h.b16 %v188
      %v349 = vunpack.c.l.b16 %v189
      %v350 = vunpack.c.h.b16 %v189
      %v351 = vunpack.c.l.b16 %v190
      %v352 = vunpack.c.h.b16 %v190
      %v353 = vunpack.c.l.b16 %v191
      %v354 = vunpack.c.h.b16 %v191
      %v355 = vunpack.c.l.b16 %v192
      %v356 = vunpack.c.h.b16 %v192
      %v357 = vunpack.c.l.b16 %v193
      %v358 = vunpack.c.h.b16 %v193
      %v359 = vunpack.c.l.b16 %v194
      %v360 = vunpack.c.h.b16 %v194
      %v361 = vunpack.c.l.b16 %v195
      %v362 = vunpack.c.h.b16 %v195
      %v363 = vunpack.c.l.b16 %v196
      %v364 = vunpack.c.h.b16 %v196
      %v365 = vunpack.c.l.b16 %v197
      %v366 = vunpack.c.h.b16 %v197
      %v367 = vunpack.c.l.b16 %v198
      %v368 = vunpack.c.h.b16 %v198
      %v369 = vunpack.c.l.b16 %v199
      %v370 = vunpack.c.h.b16 %v199
      %v371 = vunpack.c.l.b16 %v200
      %v372 = vunpack.c.h.b16 %v200
      %v373 = vpack.c.b16 %v331, %v325
      %v374 = vpack.c.b16 %v332, %v326
      %v375 = vpack.c.b16 %v333, %v327
      %v376 = vpack.c.b16 %v334, %v328
      %v377 = vpack.c.b16 %v335, %v329
      %v378 = vpack.c.b16 %v336, %v330
      %v379 = vpack.c.b16 %v343, %v337
      %v380 = vpack.c.b16 %v344, %v338
      %v381 = vpack.c.b16 %v345, %v339
      %v382 = vpack.c.b16 %v346, %v340
      %v383 = vpack.c.b16 %v347, %v341
      %v384 = vpack.c.b16 %v348, %v342
      %v385 = vpack.c.b16 %v355, %v349
      %v386 = vpack.c.b16 %v356, %v350
      %v387 = vpack.c.b16 %v357, %v351
      %v388 = vpack.c.b16 %v358, %v352
      %v389 = vpack.c.b16 %v359, %v353
      %v390 = vpack.c.b16 %v360, %v354
      %v391 = vpack.c.b16 %v367, %v361
      %v392 = vpack.c.b16 %v368, %v362
      %v393 = vpack.c.b16 %v369, %v363
      %v394 = vpack.c.b16 %v370, %v364
      %v395 = vpack.c.b16 %v371, %v365
      %v396 = vpack.c.b16 %v372, %v366
      %v517 = vunpack.c.l.b16 %v201
      %v518 = vunpack.c.l.b16 %v202
      %v519 = vunpack.c.l.b16 %v203
      %v520 = vunpack.c.l.b16 %v204
      %v521 = vunpack.c.l.b16 %v205
      %v522 = vunpack.c.l.b16 %v206
      %v523 = vunpack.c.l.b16 %v207
      %v524 = vunpack.c.l.b16 %v208
      %v525 = vunpack.c.l.b16 %v209
      %v526 = vunpack.c.l.b16 %v210
      %v527 = vunpack.c.l.b16 %v211
      %v528 = vunpack.c.l.b16 %v212
      %v529 = vunpack.c.l.b16 %v213
      %v530 = vunpack.c.l.b16 %v214
      %v531 = vunpack.c.l.b16 %v215
      %v532 = vunpack.c.l.b16 %v216
      %v533 = vunpack.c.l.b16 %v217
      %v534 = vunpack.c.l.b16 %v218
      %v535 = vunpack.c.l.b16 %v219
      %v536 = vunpack.c.l.b16 %v220
      %v537 = vunpack.c.l.b16 %v221
      %v538 = vunpack.c.l.b16 %v222
      %v539 = vunpack.c.l.b16 %v223
      %v540 = vunpack.c.l.b16 %v224
      %v541 = vunpack.c.l.b16 %v225
      %v542 = vunpack.c.l.b16 %v226
      %v543 = vunpack.c.l.b16 %v227
      %v544 = vunpack.c.l.b16 %v228
      %v545 = vunpack.c.l.b16 %v229
      %v546 = vunpack.c.l.b16 %v230
      %v547 = vunpack.c.l.b16 %v231
      %v548 = vunpack.c.l.b16 %v232
      %v549 = vunpack.c.l.b16 %v233
      %v550 = vunpack.c.l.b16 %v234
      %v551 = vunpack.c.l.b16 %v235
      %v552 = vunpack.c.l.b16 %v236
      %v553 = vunpack.c.l.b16 %v237
      %v554 = vunpack.c.l.b16 %v238
      %v555 = vunpack.c.l.b16 %v239
      %v556 = vunpack.c.l.b16 %v240
      %v557 = vunpack.c.l.b16 %v241
      %v558 = vunpack.c.l.b16 %v242
      %v559 = vunpack.c.l.b16 %v243
      %v560 = vunpack.c.l.b16 %v244
      %v561 = vunpack.c.l.b16 %v245
      %v562 = vunpack.c.l.b16 %v246
      %v563 = vunpack.c.l.b16 %v247
      %v564 = vunpack.c.l.b16 %v248
      %v565 = vunpack.c.l.b16 %v249
      %v566 = vunpack.c.l.b16 %v250
      %v567 = vunpack.c.l.b16 %v251
      %v568 = vunpack.c.l.b16 %v252
      %v569 = vunpack.c.l.b16 %v253
      %v570 = vunpack.c.l.b16 %v254
      %v571 = vunpack.c.l.b16 %v255
      %v572 = vunpack.c.l.b16 %v256
      %v573 = vunpack.c.l.b16 %v257
      %v574 = vunpack.c.l.b16 %v258
      %v575 = vunpack.c.l.b16 %v259
      %v576 = vunpack.c.l.b16 %v260
      %v577 = vunpack.c.l.b16 %v261
      %v578 = vunpack.c.l.b16 %v262
      %v579 = vunpack.c.l.b16 %v263
      %v580 = vunpack.c.l.b16 %v264
      %v581 = vunpack.c.l.b16 %v265
      %v582 = vunpack.c.l.b16 %v266
      %v583 = vunpack.c.l.b16 %v267
      %v584 = vunpack.c.l.b16 %v268
      %v585 = vunpack.c.l.b16 %v269
      %v586 = vunpack.c.l.b16 %v270
      %v587 = vunpack.c.l.b16 %v271
      %v588 = vunpack.c.l.b16 %v272
      %v589 = vunpack.c.l.b16 %v273
      %v590 = vunpack.c.l.b16 %v274
      %v591 = vunpack.c.l.b16 %v275
      %v592 = vunpack.c.l.b16 %v276
      %v593 = vunpack.c.l.b16 %v277
      %v594 = vunpack.c.l.b16 %v278
      %v595 = vunpack.c.l.b16 %v279
      %v596 = vunpack.c.l.b16 %v280
      %v597 = vunpack.c.l.b16 %v281
      %v598 = vunpack.c.l.b16 %v282
      %v599 = vunpack.c.l.b16 %v283
      %v600 = vunpack.c.l.b16 %v284
      %v601 = vunpack.c.l.b16 %v285
      %v602 = vunpack.c.l.b16 %v286
      %v603 = vunpack.c.l.b16 %v287
      %v604 = vunpack.c.l.b16 %v288
      %v605 = vunpack.c.l.b16 %v289
      %v606 = vunpack.c.l.b16 %v290
      %v607 = vunpack.c.l.b16 %v291
      %v608 = vunpack.c.l.b16 %v292
      %v609 = vunpack.c.l.b16 %v293
      %v610 = vunpack.c.l.b16 %v294
      %v611 = vunpack.c.l.b16 %v295
      %v612 = vunpack.c.l.b16 %v296
      %v613 = vpack.c.b16 %v518, %v517
      %v614 = vpack.c.b16 %v520, %v519
      %v615 = vpack.c.b16 %v522, %v521
      %v616 = vpack.c.b16 %v524, %v523
      %v617 = vpack.c.b16 %v526, %v525
      %v618 = vpack.c.b16 %v528, %v527
      %v619 = vpack.c.b16 %v530, %v529
      %v620 = vpack.c.b16 %v532, %v531
      %v621 = vpack.c.b16 %v534, %v533
      %v622 = vpack.c.b16 %v536, %v535
      %v623 = vpack.c.b16 %v538, %v537
      %v624 = vpack.c.b16 %v540, %v539
      %v625 = vpack.c.b16 %v542, %v541
      %v626 = vpack.c.b16 %v544, %v543
      %v627 = vpack.c.b16 %v546, %v545
      %v628 = vpack.c.b16 %v548, %v547
      %v629 = vpack.c.b16 %v550, %v549
      %v630 = vpack.c.b16 %v552, %v551
      %v631 = vpack.c.b16 %v554, %v553
      %v632 = vpack.c.b16 %v556, %v555
      %v633 = vpack.c.b16 %v558, %v557
      %v634 = vpack.c.b16 %v560, %v559
      %v635 = vpack.c.b16 %v562, %v561
      %v636 = vpack.c.b16 %v564, %v563
      %v637 = vpack.c.b16 %v566, %v565
      %v638 = vpack.c.b16 %v568, %v567
      %v639 = vpack.c.b16 %v570, %v569
      %v640 = vpack.c.b16 %v572, %v571
      %v641 = vpack.c.b16 %v574, %v573
      %v642 = vpack.c.b16 %v576, %v575
      %v643 = vpack.c.b16 %v578, %v577
      %v644 = vpack.c.b16 %v580, %v579
      %v645 = vpack.c.b16 %v582, %v581
      %v646 = vpack.c.b16 %v584, %v583
      %v647 = vpack.c.b16 %v586, %v585
      %v648 = vpack.c.b16 %v588, %v587
      %v649 = vpack.c.b16 %v590, %v589
      %v650 = vpack.c.b16 %v592, %v591
      %v651 = vpack.c.b16 %v594, %v593
      %v652 = vpack.c.b16 %v596, %v595
      %v653 = vpack.c.b16 %v598, %v597
      %v654 = vpack.c.b16 %v600, %v599
      %v655 = vpack.c.b16 %v602, %v601
      %v656 = vpack.c.b16 %v604, %v603
      %v657 = vpack.c.b16 %v606, %v605
      %v658 = vpack.c.b16 %v608, %v607
      %v659 = vpack.c.b16 %v610, %v609
      %v660 = vpack.c.b16 %v612, %v611
      %709 = vmatpush.bf16.msra.mxu0 %v620
      %710 = vmatpush.bf16.msra.mxu0 %v619
      %711 = vmatpush.bf16.msra.mxu0 %v618
      %712 = vmatpush.bf16.msra.mxu0 %v617
      %713 = vmatpush.bf16.msra.mxu0 %v616
      %714 = vmatpush.bf16.msra.mxu0 %v615
      %715 = vmatpush.bf16.msra.mxu0 %v614
      %716 = vmatpush.bf16.msra.mxu0 %v613
      %717 = vmatmul.bf16.gmra.mxu0 %v373
      %v718 = vpop.f32.mrf.mxu0
      %v719 = vadd.f32 %v299, %v718
      %v720 = vpop.f32.mrf.mxu0
      %v721 = vadd.f32 %v299, %v720
      %722 = vmatmul.bf16.gmra.mxu0 %v379
      %v723 = vpop.f32.mrf.mxu0
      %v724 = vadd.f32 %v299, %v723
      %v725 = vpop.f32.mrf.mxu0
      %v726 = vadd.f32 %v299, %v725
      %727 = vmatmul.bf16.gmra.mxu0 %v385
      %v728 = vpop.f32.mrf.mxu0
      %v729 = vadd.f32 %v299, %v728
      %v730 = vpop.f32.mrf.mxu0
      %v731 = vadd.f32 %v299, %v730
      %732 = vmatmul.bf16.gmra.mxu0 %v391
      %v733 = vpop.f32.mrf.mxu0
      %v734 = vadd.f32 %v299, %v733
      %v735 = vpop.f32.mrf.mxu0
      %v736 = vadd.f32 %v299, %v735
      %737 = vdwg.mxu0
      %738 = vmatpush.bf16.msra.mxu0 %v628
      %739 = vmatpush.bf16.msra.mxu0 %v627
      %740 = vmatpush.bf16.msra.mxu0 %v626
      %741 = vmatpush.bf16.msra.mxu0 %v625
      %742 = vmatpush.bf16.msra.mxu0 %v624
      %743 = vmatpush.bf16.msra.mxu0 %v623
      %744 = vmatpush.bf16.msra.mxu0 %v622
      %745 = vmatpush.bf16.msra.mxu0 %v621
      %746 = vmatmul.bf16.gmra.mxu0 %v374
      %v747 = vpop.f32.mrf.mxu0
      %v748 = vadd.f32 %v719, %v747
      %v749 = vpop.f32.mrf.mxu0
      %v750 = vadd.f32 %v721, %v749
      %751 = vmatmul.bf16.gmra.mxu0 %v380
      %v752 = vpop.f32.mrf.mxu0
      %v753 = vadd.f32 %v724, %v752
      %v754 = vpop.f32.mrf.mxu0
      %v755 = vadd.f32 %v726, %v754
      %756 = vmatmul.bf16.gmra.mxu0 %v386
      %v757 = vpop.f32.mrf.mxu0
      %v758 = vadd.f32 %v729, %v757
      %v759 = vpop.f32.mrf.mxu0
      %v760 = vadd.f32 %v731, %v759
      %761 = vmatmul.bf16.gmra.mxu0 %v392
      %v762 = vpop.f32.mrf.mxu0
      %v763 = vadd.f32 %v734, %v762
      %v764 = vpop.f32.mrf.mxu0
      %v765 = vadd.f32 %v736, %v764
      %766 = vdwg.mxu0
      %767 = vmatpush.bf16.msra.mxu0 %v636
      %768 = vmatpush.bf16.msra.mxu0 %v635
      %769 = vmatpush.bf16.msra.mxu0 %v634
      %770 = vmatpush.bf16.msra.mxu0 %v633
      %771 = vmatpush.bf16.msra.mxu0 %v632
      %772 = vmatpush.bf16.msra.mxu0 %v631
      %773 = vmatpush.bf16.msra.mxu0 %v630
      %774 = vmatpush.bf16.msra.mxu0 %v629
      %775 = vmatmul.bf16.gmra.mxu0 %v375
      %v776 = vpop.f32.mrf.mxu0
      %v777 = vadd.f32 %v748, %v776
      %v778 = vpop.f32.mrf.mxu0
      %v779 = vadd.f32 %v750, %v778
      %780 = vmatmul.bf16.gmra.mxu0 %v381
      %v781 = vpop.f32.mrf.mxu0
      %v782 = vadd.f32 %v753, %v781
      %v783 = vpop.f32.mrf.mxu0
      %v784 = vadd.f32 %v755, %v783
      %785 = vmatmul.bf16.gmra.mxu0 %v387
      %v786 = vpop.f32.mrf.mxu0
      %v787 = vadd.f32 %v758, %v786
      %v788 = vpop.f32.mrf.mxu0
      %v789 = vadd.f32 %v760, %v788
      %790 = vmatmul.bf16.gmra.mxu0 %v393
      %v791 = vpop.f32.mrf.mxu0
      %v792 = vadd.f32 %v763, %v791
      %v793 = vpop.f32.mrf.mxu0
      %v794 = vadd.f32 %v765, %v793
      %795 = vdwg.mxu0
      %796 = vmatpush.bf16.msra.mxu0 %v644
      %797 = vmatpush.bf16.msra.mxu0 %v643
      %798 = vmatpush.bf16.msra.mxu0 %v642
      %799 = vmatpush.bf16.msra.mxu0 %v641
      %800 = vmatpush.bf16.msra.mxu0 %v640
      %801 = vmatpush.bf16.msra.mxu0 %v639
      %802 = vmatpush.bf16.msra.mxu0 %v638
      %803 = vmatpush.bf16.msra.mxu0 %v637
      %804 = vmatmul.bf16.gmra.mxu0 %v376
      %v805 = vpop.f32.mrf.mxu0
      %v806 = vadd.f32 %v777, %v805
      %v807 = vpop.f32.mrf.mxu0
      %v808 = vadd.f32 %v779, %v807
      %809 = vmatmul.bf16.gmra.mxu0 %v382
      %v810 = vpop.f32.mrf.mxu0
      %v811 = vadd.f32 %v782, %v810
      %v812 = vpop.f32.mrf.mxu0
      %v813 = vadd.f32 %v784, %v812
      %814 = vmatmul.bf16.gmra.mxu0 %v388
      %v815 = vpop.f32.mrf.mxu0
      %v816 = vadd.f32 %v787, %v815
      %v817 = vpop.f32.mrf.mxu0
      %v818 = vadd.f32 %v789, %v817
      %819 = vmatmul.bf16.gmra.mxu0 %v394
      %v820 = vpop.f32.mrf.mxu0
      %v821 = vadd.f32 %v792, %v820
      %v822 = vpop.f32.mrf.mxu0
      %v823 = vadd.f32 %v794, %v822
      %824 = vdwg.mxu0
      %825 = vmatpush.bf16.msra.mxu0 %v652
      %826 = vmatpush.bf16.msra.mxu0 %v651
      %827 = vmatpush.bf16.msra.mxu0 %v650
      %828 = vmatpush.bf16.msra.mxu0 %v649
      %829 = vmatpush.bf16.msra.mxu0 %v648
      %830 = vmatpush.bf16.msra.mxu0 %v647
      %831 = vmatpush.bf16.msra.mxu0 %v646
      %832 = vmatpush.bf16.msra.mxu0 %v645
      %833 = vmatmul.bf16.gmra.mxu0 %v377
      %v834 = vpop.f32.mrf.mxu0
      %v835 = vadd.f32 %v806, %v834
      %v836 = vpop.f32.mrf.mxu0
      %v837 = vadd.f32 %v808, %v836
      %838 = vmatmul.bf16.gmra.mxu0 %v383
      %v839 = vpop.f32.mrf.mxu0
      %v840 = vadd.f32 %v811, %v839
      %v841 = vpop.f32.mrf.mxu0
      %v842 = vadd.f32 %v813, %v841
      %843 = vmatmul.bf16.gmra.mxu0 %v389
      %v844 = vpop.f32.mrf.mxu0
      %v845 = vadd.f32 %v816, %v844
      %v846 = vpop.f32.mrf.mxu0
      %v847 = vadd.f32 %v818, %v846
      %848 = vmatmul.bf16.gmra.mxu0 %v395
      %v849 = vpop.f32.mrf.mxu0
      %v850 = vadd.f32 %v821, %v849
      %v851 = vpop.f32.mrf.mxu0
      %v852 = vadd.f32 %v823, %v851
      %853 = vdwg.mxu0
      %854 = vmatpush.bf16.msra.mxu0 %v660
      %855 = vmatpush.bf16.msra.mxu0 %v659
      %856 = vmatpush.bf16.msra.mxu0 %v658
      %857 = vmatpush.bf16.msra.mxu0 %v657
      %858 = vmatpush.bf16.msra.mxu0 %v656
      %859 = vmatpush.bf16.msra.mxu0 %v655
      %860 = vmatpush.bf16.msra.mxu0 %v654
      %861 = vmatpush.bf16.msra.mxu0 %v653
      %862 = vmatmul.bf16.gmra.mxu0 %v378
      %v863 = vpop.f32.mrf.mxu0
      %v864 = vadd.f32 %v835, %v863
      %v865 = vpop.f32.mrf.mxu0
      %v866 = vadd.f32 %v837, %v865
      %867 = vmatmul.bf16.gmra.mxu0 %v384
      %v868 = vpop.f32.mrf.mxu0
      %v869 = vadd.f32 %v840, %v868
      %v870 = vpop.f32.mrf.mxu0
      %v871 = vadd.f32 %v842, %v870
      %872 = vmatmul.bf16.gmra.mxu0 %v390
      %v873 = vpop.f32.mrf.mxu0
      %v874 = vadd.f32 %v845, %v873
      %v875 = vpop.f32.mrf.mxu0
      %v876 = vadd.f32 %v847, %v875
      %877 = vmatmul.bf16.gmra.mxu0 %v396
      %v878 = vpop.f32.mrf.mxu0
      %v879 = vadd.f32 %v850, %v878
      %v880 = vpop.f32.mrf.mxu0
      %v881 = vadd.f32 %v852, %v880
      %882 = vdwg.mxu0
      %v883 = vmax.f32 %v864, 0.0
      %v884 = vmax.f32 %v866, 0.0
      %v885 = vmax.f32 %v869, 0.0
      %v886 = vmax.f32 %v871, 0.0
      %v887 = vmax.f32 %v874, 0.0
      %v888 = vmax.f32 %v876, 0.0
      %v889 = vmax.f32 %v879, 0.0
      %v890 = vmax.f32 %v881, 0.0
      %v891 = vpack.c.bf16 %v883, %v883
      %v892 = vpack.c.bf16 %v884, %v884
      %v893 = vpack.c.bf16 %v885, %v885
      %v894 = vpack.c.bf16 %v886, %v886
      %v895 = vpack.c.bf16 %v887, %v887
      %v896 = vpack.c.bf16 %v888, %v888
      %v897 = vpack.c.bf16 %v889, %v889
      %v898 = vpack.c.bf16 %v890, %v890
      %vm899 = vcmask 519168
      %900 = vst.msk [vmem:[%s175] sm:$0xf] %vm899, %v891
      %901 = vst.msk [vmem:[%s175 + $0x4] sm:$0xf] %vm899, %v892
      %902 = vst.msk [vmem:[%s175 + $0x8] sm:$0xf] %vm899, %v893
      %903 = vst.msk [vmem:[%s175 + $0xc] sm:$0xf] %vm899, %v894
      %904 = vst.msk [vmem:[%s175 + $0x10] sm:$0xf] %vm899, %v895
      %905 = vst.msk [vmem:[%s175 + $0x14] sm:$0xf] %vm899, %v896
      %906 = vst.msk [vmem:[%s175 + $0x18] sm:$0xf] %vm899, %v897
      %907 = vst.msk [vmem:[%s175 + $0x1c] sm:$0xf] %vm899, %v898
      %s908 = smul.u32 8, %s14
      %p909 = scmp.lt.s32.totalorder %s908, 15
      %s910 = scalar_select %p909, %s908, 15
      %s911 = smul.addr %s910, 4
      %s912 = scalar_lea.vmem %s3, %s911
      // Predicated region
      $region33: #{forward.8} parent=31 // pred_check
        %p913 = pneg %p100
      $region34: #{forward.8} parent=31 // pred_check_branch
        %915 = sbr.rel (%p913) target = $region36
      $region35: #{forward.8} parent=31 // pred_region
        %s916 = smul.u32 8, %s14
      $region36: #{forward.8} parent=31 // pred_fallthru
        _
    $region32: #{forward.8} parent=5 // pred_fallthru
      _
    %p917 = scmp.le.s32.totalorder 2, %s9
    // Predicated region
    $region37: #{forward.8} parent=5 // pred_check
      %p918 = pneg %p917
    $region38: #{forward.8} parent=5 // pred_check_branch
      %920 = sbr.rel (%p918) target = $region40
    $region39: #{forward.8} parent=5 // pred_region
      %s921 = ssub.s32 %s9, 2
      // Predicated region
      $region41: #{forward.8} parent=39 // pred_check
        %p922 = pneg %p106
      $region42: #{forward.8} parent=39 // pred_check_branch
        %924 = sbr.rel (%p922) target = $region44
      $region43: #{forward.8} parent=39 // pred_region
        %s925 = smul.u32 8, %s15
        %p926 = scmp.lt.s32.totalorder %s925, 15
        %s927 = scalar_select %p926, %s925, 15
        %s928 = smul.addr %s927, 4
        %s929 = scalar_lea.vmem %s3, %s928
      $region44: #{forward.8} parent=39 // pred_fallthru
        _
    $region40: #{forward.8} parent=5 // pred_fallthru
      _
  $region6: #{forward.8} parent=0 // loop_footer
    %s13 = sadd.s32 1, %s9
  $region7: #{forward.8} parent=0 // loop_footer_branch
    %8 = sbr.rel target = $region3
  $region8: #{forward.8} parent=0 // loop_exit
    _

// kernel: forward.9
$region0: #{forward.9}
  #allocation0 [shape = 'u32[]', space=smem, size = 0x4, offset = 0x4, fixed_abs, tag = 'smem constant byte address 0x4 - core index']
  #allocation1 [shape = 'u32[72,128]{1,0:T(1,128)}', space=vmem, size = 0x9000, scoped, tag = 'internal scratch']
  %s0 = inlined_call_operand.vmem [shape: bf16[2,4096], index: 0, kind: input, shape index: {}]
  %s1 = inlined_call_operand.vmem [shape: bf16[4096,64], index: 1, kind: input, shape index: {}]
  %s2 = inlined_call_operand.vmem [shape: f32[1,64], index: 2, kind: input, shape index: {}]
  %s3 = inlined_call_operand.vmem [shape: bf16[64,9], index: 3, kind: input, shape index: {}]
  %s4 = inlined_call_operand.vmem [shape: f32[1,9], index: 4, kind: input, shape index: {}]
  %s5 = inlined_call_operand.hbm [shape: f32[2,9], index: 5, kind: output, shape index: {}]
  %s6 = sld [smem:[#allocation0]]
  $region30: #{forward.9} parent=0
    _
  %s8 = ssub.s32 1, %s6
  %s9 = scalar_select 0, %s8, %s6
  $region1: #{forward.9} parent=0
    #allocation2 [shape = 'u8[1024]{0}', space=vmem, size = 0x400, scoped, tag = 'output window, operand 0, single buffered']
    #allocation3 [shape = 's32[1]{0}', space=sflag, size = 0x4, scoped, tag = 'scoped memory for forward.9']
    %10 = vsyncpa [#allocation3], 0
    // Predicated region
    $region2: #{forward.9} parent=1 // pred_check
      _
    $region3: #{forward.9} parent=1 // pred_check_branch
      %12 = sbr.rel (0) target = $region5
    $region4: #{forward.9} parent=1 // pred_region
      _
    $region5: #{forward.9} parent=1 // pred_fallthru
      _
    // Predicated region
    $region6: #{forward.9} parent=1 // pred_check
      _
    $region7: #{forward.9} parent=1 // pred_check_branch
      %14 = sbr.rel (0) target = $region9
    $region8: #{forward.9} parent=1 // pred_region
      _
    $region9: #{forward.9} parent=1 // pred_fallthru
      _
    // Predicated region
    $region10: #{forward.9} parent=1 // pred_check
      _
    $region11: #{forward.9} parent=1 // pred_check_branch
      %16 = sbr.rel (0) target = $region13
    $region12: #{forward.9} parent=1 // pred_region
      _
    $region13: #{forward.9} parent=1 // pred_fallthru
      _
    // Predicated region
    $region14: #{forward.9} parent=1 // pred_check
      _
    $region15: #{forward.9} parent=1 // pred_check_branch
      %18 = sbr.rel (0) target = $region17
    $region16: #{forward.9} parent=1 // pred_region
      _
    $region17: #{forward.9} parent=1 // pred_fallthru
      _
    // Predicated region
    $region18: #{forward.9} parent=1 // pred_check
      _
    $region19: #{forward.9} parent=1 // pred_check_branch
      %20 = sbr.rel (0) target = $region21
    $region20: #{forward.9} parent=1 // pred_region
      _
    $region21: #{forward.9} parent=1 // pred_fallthru
      _
    %v22 = vld [vmem:[%s0] sm:$0xff]
    %v23 = vld [vmem:[%s0 + $0x8] sm:$0xff]
    %v24 = vld [vmem:[%s0 + $0x10] sm:$0xff]
    %v25 = vld [vmem:[%s0 + $0x18] sm:$0xff]
    %v26 = vld [vmem:[%s1] sm:$0xf]
    %v27 = vld [vmem:[%s1 + $0x4] sm:$0xf]
    %v28 = vld [vmem:[%s1 + $0x8] sm:$0xf]
    %v29 = vld [vmem:[%s1 + $0xc] sm:$0xf]
    %v30 = vld [vmem:[%s1 + $0x10] sm:$0xf]
    %v31 = vld [vmem:[%s1 + $0x14] sm:$0xf]
    %v32 = vld [vmem:[%s1 + $0x18] sm:$0xf]
    %v33 = vld [vmem:[%s1 + $0x1c] sm:$0xf]
    %v34 = vld [vmem:[%s1 + $0x20] sm:$0xf]
    %v35 = vld [vmem:[%s1 + $0x24] sm:$0xf]
    %v36 = vld [vmem:[%s1 + $0x28] sm:$0xf]
    %v37 = vld [vmem:[%s1 + $0x2c] sm:$0xf]
    %v38 = vld [vmem:[%s1 + $0x30] sm:$0xf]
    %v39 = vld [vmem:[%s1 + $0x34] sm:$0xf]
    %v40 = vld [vmem:[%s1 + $0x38] sm:$0xf]
    %v41 = vld [vmem:[%s1 + $0x3c] sm:$0xf]
    %v42 = vld [vmem:[%s1 + $0x40] sm:$0xf]
    %v43 = vld [vmem:[%s1 + $0x44] sm:$0xf]
    %v44 = vld [vmem:[%s1 + $0x48] sm:$0xf]
    %v45 = vld [vmem:[%s1 + $0x4c] sm:$0xf]
    %v46 = vld [vmem:[%s1 + $0x50] sm:$0xf]
    %v47 = vld [vmem:[%s1 + $0x54] sm:$0xf]
    %v48 = vld [vmem:[%s1 + $0x58] sm:$0xf]
    %v49 = vld [vmem:[%s1 + $0x5c] sm:$0xf]
    %v50 = vld [vmem:[%s1 + $0x60] sm:$0xf]
    %v51 = vld [vmem:[%s1 + $0x64] sm:$0xf]
    %v52 = vld [vmem:[%s1 + $0x68] sm:$0xf]
    %v53 = vld [vmem:[%s1 + $0x6c] sm:$0xf]
    %v54 = vld [vmem:[%s1 + $0x70] sm:$0xf]
    %v55 = vld [vmem:[%s1 + $0x74] sm:$0xf]
    %v56 = vld [vmem:[%s1 + $0x78] sm:$0xf]
    %v57 = vld [vmem:[%s1 + $0x7c] sm:$0xf]
    %v58 = vld [vmem:[%s1 + $0x80] sm:$0xf]
    %v59 = vld [vmem:[%s1 + $0x84] sm:$0xf]
    %v60 = vld [vmem:[%s1 + $0x88] sm:$0xf]
    %v61 = vld [vmem:[%s1 + $0x8c] sm:$0xf]
    %v62 = vld [vmem:[%s1 + $0x90] sm:$0xf]
    %v63 = vld [vmem:[%s1 + $0x94] sm:$0xf]
    %v64 = vld [vmem:[%s1 + $0x98] sm:$0xf]
    %v65 = vld [vmem:[%s1 + $0x9c] sm:$0xf]
    %v66 = vld [vmem:[%s1 + $0xa0] sm:$0xf]
    %v67 = vld [vmem:[%s1 + $0xa4] sm:$0xf]
    %v68 = vld [vmem:[%s1 + $0xa8] sm:$0xf]
    %v69 = vld [vmem:[%s1 + $0xac] sm:$0xf]
    %v70 = vld [vmem:[%s1 + $0xb0] sm:$0xf]
    %v71 = vld [vmem:[%s1 + $0xb4] sm:$0xf]
    %v72 = vld [vmem:[%s1 + $0xb8] sm:$0xf]
    %v73 = vld [vmem:[%s1 + $0xbc] sm:$0xf]
    %v74 = vld [vmem:[%s1 + $0xc0] sm:$0xf]
    %v75 = vld [vmem:[%s1 + $0xc4] sm:$0xf]
    %v76 = vld [vmem:[%s1 + $0xc8] sm:$0xf]
    %v77 = vld [vmem:[%s1 + $0xcc] sm:$0xf]
    %v78 = vld [vmem:[%s1 + $0xd0] sm:$0xf]
    %v79 = vld [vmem:[%s1 + $0xd4] sm:$0xf]
    %v80 = vld [vmem:[%s1 + $0xd8] sm:$0xf]
    %v81 = vld [vmem:[%s1 + $0xdc] sm:$0xf]
    %v82 = vld [vmem:[%s1 + $0xe0] sm:$0xf]
    %v83 = vld [vmem:[%s1 + $0xe4] sm:$0xf]
    %v84 = vld [vmem:[%s1 + $0xe8] sm:$0xf]
    %v85 = vld [vmem:[%s1 + $0xec] sm:$0xf]
    %v86 = vld [vmem:[%s1 + $0xf0] sm:$0xf]
    %v87 = vld [vmem:[%s1 + $0xf4] sm:$0xf]
    %v88 = vld [vmem:[%s1 + $0xf8] sm:$0xf]
    %v89 = vld [vmem:[%s1 + $0xfc] sm:$0xf]
    %v90 = vld [vmem:[%s1 + $0x100] sm:$0xf]
    %v91 = vld [vmem:[%s1 + $0x104] sm:$0xf]
    %v92 = vld [vmem:[%s1 + $0x108] sm:$0xf]
    %v93 = vld [vmem:[%s1 + $0x10c] sm:$0xf]
    %v94 = vld [vmem:[%s1 + $0x110] sm:$0xf]
    %v95 = vld [vmem:[%s1 + $0x114] sm:$0xf]
    %v96 = vld [vmem:[%s1 + $0x118] sm:$0xf]
    %v97 = vld [vmem:[%s1 + $0x11c] sm:$0xf]
    %v98 = vld [vmem:[%s1 + $0x120] sm:$0xf]
    %v99 = vld [vmem:[%s1 + $0x124] sm:$0xf]
    %v100 = vld [vmem:[%s1 + $0x128] sm:$0xf]
    %v101 = vld [vmem:[%s1 + $0x12c] sm:$0xf]
    %v102 = vld [vmem:[%s1 + $0x130] sm:$0xf]
    %v103 = vld [vmem:[%s1 + $0x134] sm:$0xf]
    %v104 = vld [vmem:[%s1 + $0x138] sm:$0xf]
    %v105 = vld [vmem:[%s1 + $0x13c] sm:$0xf]
    %v106 = vld [vmem:[%s1 + $0x140] sm:$0xf]
    %v107 = vld [vmem:[%s1 + $0x144] sm:$0xf]
    %v108 = vld [vmem:[%s1 + $0x148] sm:$0xf]
    %v109 = vld [vmem:[%s1 + $0x14c] sm:$0xf]
    %v110 = vld [vmem:[%s1 + $0x150] sm:$0xf]
    %v111 = vld [vmem:[%s1 + $0x154] sm:$0xf]
    %v112 = vld [vmem:[%s1 + $0x158] sm:$0xf]
    %v113 = vld [vmem:[%s1 + $0x15c] sm:$0xf]
    %v114 = vld [vmem:[%s1 + $0x160] sm:$0xf]
    %v115 = vld [vmem:[%s1 + $0x164] sm:$0xf]
    %v116 = vld [vmem:[%s1 + $0x168] sm:$0xf]
    %v117 = vld [vmem:[%s1 + $0x16c] sm:$0xf]
    %v118 = vld [vmem:[%s1 + $0x170] sm:$0xf]
    %v119 = vld [vmem:[%s1 + $0x174] sm:$0xf]
    %v120 = vld [vmem:[%s1 + $0x178] sm:$0xf]
    %v121 = vld [vmem:[%s1 + $0x17c] sm:$0xf]
    %v122 = vld [vmem:[%s1 + $0x180] sm:$0xf]
    %v123 = vld [vmem:[%s1 + $0x184] sm:$0xf]
    %v124 = vld [vmem:[%s1 + $0x188] sm:$0xf]
    %v125 = vld [vmem:[%s1 + $0x18c] sm:$0xf]
    %v126 = vld [vmem:[%s1 + $0x190] sm:$0xf]
    %v127 = vld [vmem:[%s1 + $0x194] sm:$0xf]
    %v128 = vld [vmem:[%s1 + $0x198] sm:$0xf]
    %v129 = vld [vmem:[%s1 + $0x19c] sm:$0xf]
    %v130 = vld [vmem:[%s1 + $0x1a0] sm:$0xf]
    %v131 = vld [vmem:[%s1 + $0x1a4] sm:$0xf]
    %v132 = vld [vmem:[%s1 + $0x1a8] sm:$0xf]
    %v133 = vld [vmem:[%s1 + $0x1ac] sm:$0xf]
    %v134 = vld [vmem:[%s1 + $0x1b0] sm:$0xf]
    %v135 = vld [vmem:[%s1 + $0x1b4] sm:$0xf]
    %v136 = vld [vmem:[%s1 + $0x1b8] sm:$0xf]
    %v137 = vld [vmem:[%s1 + $0x1bc] sm:$0xf]
    %v138 = vld [vmem:[%s1 + $0x1c0] sm:$0xf]
    %v139 = vld [vmem:[%s1 + $0x1c4] sm:$0xf]
    %v140 = vld [vmem:[%s1 + $0x1c8] sm:$0xf]
    %v141 = vld [vmem:[%s1 + $0x1cc] sm:$0xf]
    %v142 = vld [vmem:[%s1 + $0x1d0] sm:$0xf]
    %v143 = vld [vmem:[%s1 + $0x1d4] sm:$0xf]
    %v144 = vld [vmem:[%s1 + $0x1d8] sm:$0xf]
    %v145 = vld [vmem:[%s1 + $0x1dc] sm:$0xf]
    %v146 = vld [vmem:[%s1 + $0x1e0] sm:$0xf]
    %v147 = vld [vmem:[%s1 + $0x1e4] sm:$0xf]
    %v148 = vld [vmem:[%s1 + $0x1e8] sm:$0xf]
    %v149 = vld [vmem:[%s1 + $0x1ec] sm:$0xf]
    %v150 = vld [vmem:[%s1 + $0x1f0] sm:$0xf]
    %v151 = vld [vmem:[%s1 + $0x1f4] sm:$0xf]
    %v152 = vld [vmem:[%s1 + $0x1f8] sm:$0xf]
    %v153 = vld [vmem:[%s1 + $0x1fc] sm:$0xf]
    %v154 = vld [vmem:[%s1 + $0x200] sm:$0xf]
    %v155 = vld [vmem:[%s1 + $0x204] sm:$0xf]
    %v156 = vld [vmem:[%s1 + $0x208] sm:$0xf]
    %v157 = vld [vmem:[%s1 + $0x20c] sm:$0xf]
    %v158 = vld [vmem:[%s1 + $0x210] sm:$0xf]
    %v159 = vld [vmem:[%s1 + $0x214] sm:$0xf]
    %v160 = vld [vmem:[%s1 + $0x218] sm:$0xf]
    %v161 = vld [vmem:[%s1 + $0x21c] sm:$0xf]
    %v162 = vld [vmem:[%s1 + $0x220] sm:$0xf]
    %v163 = vld [vmem:[%s1 + $0x224] sm:$0xf]
    %v164 = vld [vmem:[%s1 + $0x228] sm:$0xf]
    %v165 = vld [vmem:[%s1 + $0x22c] sm:$0xf]
    %v166 = vld [vmem:[%s1 + $0x230] sm:$0xf]
    %v167 = vld [vmem:[%s1 + $0x234] sm:$0xf]
    %v168 = vld [vmem:[%s1 + $0x238] sm:$0xf]
    %v169 = vld [vmem:[%s1 + $0x23c] sm:$0xf]
    %v170 = vld [vmem:[%s1 + $0x240] sm:$0xf]
    %v171 = vld [vmem:[%s1 + $0x244] sm:$0xf]
    %v172 = vld [vmem:[%s1 + $0x248] sm:$0xf]
    %v173 = vld [vmem:[%s1 + $0x24c] sm:$0xf]
    %v174 = vld [vmem:[%s1 + $0x250] sm:$0xf]
    %v175 = vld [vmem:[%s1 + $0x254] sm:$0xf]
    %v176 = vld [vmem:[%s1 + $0x258] sm:$0xf]
    %v177 = vld [vmem:[%s1 + $0x25c] sm:$0xf]
    %v178 = vld [vmem:[%s1 + $0x260] sm:$0xf]
    %v179 = vld [vmem:[%s1 + $0x264] sm:$0xf]
    %v180 = vld [vmem:[%s1 + $0x268] sm:$0xf]
    %v181 = vld [vmem:[%s1 + $0x26c] sm:$0xf]
    %v182 = vld [vmem:[%s1 + $0x270] sm:$0xf]
    %v183 = vld [vmem:[%s1 + $0x274] sm:$0xf]
    %v184 = vld [vmem:[%s1 + $0x278] sm:$0xf]
    %v185 = vld [vmem:[%s1 + $0x27c] sm:$0xf]
    %v186 = vld [vmem:[%s1 + $0x280] sm:$0xf]
    %v187 = vld [vmem:[%s1 + $0x284] sm:$0xf]
    %v188 = vld [vmem:[%s1 + $0x288] sm:$0xf]
    %v189 = vld [vmem:[%s1 + $0x28c] sm:$0xf]
    %v190 = vld [vmem:[%s1 + $0x290] sm:$0xf]
    %v191 = vld [vmem:[%s1 + $0x294] sm:$0xf]
    %v192 = vld [vmem:[%s1 + $0x298] sm:$0xf]
    %v193 = vld [vmem:[%s1 + $0x29c] sm:$0xf]
    %v194 = vld [vmem:[%s1 + $0x2a0] sm:$0xf]
    %v195 = vld [vmem:[%s1 + $0x2a4] sm:$0xf]
    %v196 = vld [vmem:[%s1 + $0x2a8] sm:$0xf]
    %v197 = vld [vmem:[%s1 + $0x2ac] sm:$0xf]
    %v198 = vld [vmem:[%s1 + $0x2b0] sm:$0xf]
    %v199 = vld [vmem:[%s1 + $0x2b4] sm:$0xf]
    %v200 = vld [vmem:[%s1 + $0x2b8] sm:$0xf]
    %v201 = vld [vmem:[%s1 + $0x2bc] sm:$0xf]
    %v202 = vld [vmem:[%s1 + $0x2c0] sm:$0xf]
    %v203 = vld [vmem:[%s1 + $0x2c4] sm:$0xf]
    %v204 = vld [vmem:[%s1 + $0x2c8] sm:$0xf]
    %v205 = vld [vmem:[%s1 + $0x2cc] sm:$0xf]
    %v206 = vld [vmem:[%s1 + $0x2d0] sm:$0xf]
    %v207 = vld [vmem:[%s1 + $0x2d4] sm:$0xf]
    %v208 = vld [vmem:[%s1 + $0x2d8] sm:$0xf]
    %v209 = vld [vmem:[%s1 + $0x2dc] sm:$0xf]
    %v210 = vld [vmem:[%s1 + $0x2e0] sm:$0xf]
    %v211 = vld [vmem:[%s1 + $0x2e4] sm:$0xf]
    %v212 = vld [vmem:[%s1 + $0x2e8] sm:$0xf]
    %v213 = vld [vmem:[%s1 + $0x2ec] sm:$0xf]
    %v214 = vld [vmem:[%s1 + $0x2f0] sm:$0xf]
    %v215 = vld [vmem:[%s1 + $0x2f4] sm:$0xf]
    %v216 = vld [vmem:[%s1 + $0x2f8] sm:$0xf]
    %v217 = vld [vmem:[%s1 + $0x2fc] sm:$0xf]
    %v218 = vld [vmem:[%s1 + $0x300] sm:$0xf]
    %v219 = vld [vmem:[%s1 + $0x304] sm:$0xf]
    %v220 = vld [vmem:[%s1 + $0x308] sm:$0xf]
    %v221 = vld [vmem:[%s1 + $0x30c] sm:$0xf]
    %v222 = vld [vmem:[%s1 + $0x310] sm:$0xf]
    %v223 = vld [vmem:[%s1 + $0x314] sm:$0xf]
    %v224 = vld [vmem:[%s1 + $0x318] sm:$0xf]
    %v225 = vld [vmem:[%s1 + $0x31c] sm:$0xf]
    %v226 = vld [vmem:[%s1 + $0x320] sm:$0xf]
    %v227 = vld [vmem:[%s1 + $0x324] sm:$0xf]
    %v228 = vld [vmem:[%s1 + $0x328] sm:$0xf]
    %v229 = vld [vmem:[%s1 + $0x32c] sm:$0xf]
    %v230 = vld [vmem:[%s1 + $0x330] sm:$0xf]
    %v231 = vld [vmem:[%s1 + $0x334] sm:$0xf]
    %v232 = vld [vmem:[%s1 + $0x338] sm:$0xf]
    %v233 = vld [vmem:[%s1 + $0x33c] sm:$0xf]
    %v234 = vld [vmem:[%s1 + $0x340] sm:$0xf]
    %v235 = vld [vmem:[%s1 + $0x344] sm:$0xf]
    %v236 = vld [vmem:[%s1 + $0x348] sm:$0xf]
    %v237 = vld [vmem:[%s1 + $0x34c] sm:$0xf]
    %v238 = vld [vmem:[%s1 + $0x350] sm:$0xf]
    %v239 = vld [vmem:[%s1 + $0x354] sm:$0xf]
    %v240 = vld [vmem:[%s1 + $0x358] sm:$0xf]
    %v241 = vld [vmem:[%s1 + $0x35c] sm:$0xf]
    %v242 = vld [vmem:[%s1 + $0x360] sm:$0xf]
    %v243 = vld [vmem:[%s1 + $0x364] sm:$0xf]
    %v244 = vld [vmem:[%s1 + $0x368] sm:$0xf]
    %v245 = vld [vmem:[%s1 + $0x36c] sm:$0xf]
    %v246 = vld [vmem:[%s1 + $0x370] sm:$0xf]
    %v247 = vld [vmem:[%s1 + $0x374] sm:$0xf]
    %v248 = vld [vmem:[%s1 + $0x378] sm:$0xf]
    %v249 = vld [vmem:[%s1 + $0x37c] sm:$0xf]
    %v250 = vld [vmem:[%s1 + $0x380] sm:$0xf]
    %v251 = vld [vmem:[%s1 + $0x384] sm:$0xf]
    %v252 = vld [vmem:[%s1 + $0x388] sm:$0xf]
    %v253 = vld [vmem:[%s1 + $0x38c] sm:$0xf]
    %v254 = vld [vmem:[%s1 + $0x390] sm:$0xf]
    %v255 = vld [vmem:[%s1 + $0x394] sm:$0xf]
    %v256 = vld [vmem:[%s1 + $0x398] sm:$0xf]
    %v257 = vld [vmem:[%s1 + $0x39c] sm:$0xf]
    %v258 = vld [vmem:[%s1 + $0x3a0] sm:$0xf]
    %v259 = vld [vmem:[%s1 + $0x3a4] sm:$0xf]
    %v260 = vld [vmem:[%s1 + $0x3a8] sm:$0xf]
    %v261 = vld [vmem:[%s1 + $0x3ac] sm:$0xf]
    %v262 = vld [vmem:[%s1 + $0x3b0] sm:$0xf]
    %v263 = vld [vmem:[%s1 + $0x3b4] sm:$0xf]
    %v264 = vld [vmem:[%s1 + $0x3b8] sm:$0xf]
    %v265 = vld [vmem:[%s1 + $0x3bc] sm:$0xf]
    %v266 = vld [vmem:[%s1 + $0x3c0] sm:$0xf]
    %v267 = vld [vmem:[%s1 + $0x3c4] sm:$0xf]
    %v268 = vld [vmem:[%s1 + $0x3c8] sm:$0xf]
    %v269 = vld [vmem:[%s1 + $0x3cc] sm:$0xf]
    %v270 = vld [vmem:[%s1 + $0x3d0] sm:$0xf]
    %v271 = vld [vmem:[%s1 + $0x3d4] sm:$0xf]
    %v272 = vld [vmem:[%s1 + $0x3d8] sm:$0xf]
    %v273 = vld [vmem:[%s1 + $0x3dc] sm:$0xf]
    %v274 = vld [vmem:[%s1 + $0x3e0] sm:$0xf]
    %v275 = vld [vmem:[%s1 + $0x3e4] sm:$0xf]
    %v276 = vld [vmem:[%s1 + $0x3e8] sm:$0xf]
    %v277 = vld [vmem:[%s1 + $0x3ec] sm:$0xf]
    %v278 = vld [vmem:[%s1 + $0x3f0] sm:$0xf]
    %v279 = vld [vmem:[%s1 + $0x3f4] sm:$0xf]
    %v280 = vld [vmem:[%s1 + $0x3f8] sm:$0xf]
    %v281 = vld [vmem:[%s1 + $0x3fc] sm:$0xf]
    %v282 = vld [vmem:[%s1 + $0x400] sm:$0xf]
    %v283 = vld [vmem:[%s1 + $0x404] sm:$0xf]
    %v284 = vld [vmem:[%s1 + $0x408] sm:$0xf]
    %v285 = vld [vmem:[%s1 + $0x40c] sm:$0xf]
    %v286 = vld [vmem:[%s1 + $0x410] sm:$0xf]
    %v287 = vld [vmem:[%s1 + $0x414] sm:$0xf]
    %v288 = vld [vmem:[%s1 + $0x418] sm:$0xf]
    %v289 = vld [vmem:[%s1 + $0x41c] sm:$0xf]
    %v290 = vld [vmem:[%s1 + $0x420] sm:$0xf]
    %v291 = vld [vmem:[%s1 + $0x424] sm:$0xf]
    %v292 = vld [vmem:[%s1 + $0x428] sm:$0xf]
    %v293 = vld [vmem:[%s1 + $0x42c] sm:$0xf]
    %v294 = vld [vmem:[%s1 + $0x430] sm:$0xf]
    %v295 = vld [vmem:[%s1 + $0x434] sm:$0xf]
    %v296 = vld [vmem:[%s1 + $0x438] sm:$0xf]
    %v297 = vld [vmem:[%s1 + $0x43c] sm:$0xf]
    %v298 = vld [vmem:[%s1 + $0x440] sm:$0xf]
    %v299 = vld [vmem:[%s1 + $0x444] sm:$0xf]
    %v300 = vld [vmem:[%s1 + $0x448] sm:$0xf]
    %v301 = vld [vmem:[%s1 + $0x44c] sm:$0xf]
    %v302 = vld [vmem:[%s1 + $0x450] sm:$0xf]
    %v303 = vld [vmem:[%s1 + $0x454] sm:$0xf]
    %v304 = vld [vmem:[%s1 + $0x458] sm:$0xf]
    %v305 = vld [vmem:[%s1 + $0x45c] sm:$0xf]
    %v306 = vld [vmem:[%s1 + $0x460] sm:$0xf]
    %v307 = vld [vmem:[%s1 + $0x464] sm:$0xf]
    %v308 = vld [vmem:[%s1 + $0x468] sm:$0xf]
    %v309 = vld [vmem:[%s1 + $0x46c] sm:$0xf]
    %v310 = vld [vmem:[%s1 + $0x470] sm:$0xf]
    %v311 = vld [vmem:[%s1 + $0x474] sm:$0xf]
    %v312 = vld [vmem:[%s1 + $0x478] sm:$0xf]
    %v313 = vld [vmem:[%s1 + $0x47c] sm:$0xf]
    %v314 = vld [vmem:[%s1 + $0x480] sm:$0xf]
    %v315 = vld [vmem:[%s1 + $0x484] sm:$0xf]
    %v316 = vld [vmem:[%s1 + $0x488] sm:$0xf]
    %v317 = vld [vmem:[%s1 + $0x48c] sm:$0xf]
    %v318 = vld [vmem:[%s1 + $0x490] sm:$0xf]
    %v319 = vld [vmem:[%s1 + $0x494] sm:$0xf]
    %v320 = vld [vmem:[%s1 + $0x498] sm:$0xf]
    %v321 = vld [vmem:[%s1 + $0x49c] sm:$0xf]
    %v322 = vld [vmem:[%s1 + $0x4a0] sm:$0xf]
    %v323 = vld [vmem:[%s1 + $0x4a4] sm:$0xf]
    %v324 = vld [vmem:[%s1 + $0x4a8] sm:$0xf]
    %v325 = vld [vmem:[%s1 + $0x4ac] sm:$0xf]
    %v326 = vld [vmem:[%s1 + $0x4b0] sm:$0xf]
    %v327 = vld [vmem:[%s1 + $0x4b4] sm:$0xf]
    %v328 = vld [vmem:[%s1 + $0x4b8] sm:$0xf]
    %v329 = vld [vmem:[%s1 + $0x4bc] sm:$0xf]
    %v330 = vld [vmem:[%s1 + $0x4c0] sm:$0xf]
    %v331 = vld [vmem:[%s1 + $0x4c4] sm:$0xf]
    %v332 = vld [vmem:[%s1 + $0x4c8] sm:$0xf]
    %v333 = vld [vmem:[%s1 + $0x4cc] sm:$0xf]
    %v334 = vld [vmem:[%s1 + $0x4d0] sm:$0xf]
    %v335 = vld [vmem:[%s1 + $0x4d4] sm:$0xf]
    %v336 = vld [vmem:[%s1 + $0x4d8] sm:$0xf]
    %v337 = vld [vmem:[%s1 + $0x4dc] sm:$0xf]
    %v338 = vld [vmem:[%s1 + $0x4e0] sm:$0xf]
    %v339 = vld [vmem:[%s1 + $0x4e4] sm:$0xf]
    %v340 = vld [vmem:[%s1 + $0x4e8] sm:$0xf]
    %v341 = vld [vmem:[%s1 + $0x4ec] sm:$0xf]
    %v342 = vld [vmem:[%s1 + $0x4f0] sm:$0xf]
    %v343 = vld [vmem:[%s1 + $0x4f4] sm:$0xf]
    %v344 = vld [vmem:[%s1 + $0x4f8] sm:$0xf]
    %v345 = vld [vmem:[%s1 + $0x4fc] sm:$0xf]
    %v346 = vld [vmem:[%s1 + $0x500] sm:$0xf]
    %v347 = vld [vmem:[%s1 + $0x504] sm:$0xf]
    %v348 = vld [vmem:[%s1 + $0x508] sm:$0xf]
    %v349 = vld [vmem:[%s1 + $0x50c] sm:$0xf]
    %v350 = vld [vmem:[%s1 + $0x510] sm:$0xf]
    %v351 = vld [vmem:[%s1 + $0x514] sm:$0xf]
    %v352 = vld [vmem:[%s1 + $0x518] sm:$0xf]
    %v353 = vld [vmem:[%s1 + $0x51c] sm:$0xf]
    %v354 = vld [vmem:[%s1 + $0x520] sm:$0xf]
    %v355 = vld [vmem:[%s1 + $0x524] sm:$0xf]
    %v356 = vld [vmem:[%s1 + $0x528] sm:$0xf]
    %v357 = vld [vmem:[%s1 + $0x52c] sm:$0xf]
    %v358 = vld [vmem:[%s1 + $0x530] sm:$0xf]
    %v359 = vld [vmem:[%s1 + $0x534] sm:$0xf]
    %v360 = vld [vmem:[%s1 + $0x538] sm:$0xf]
    %v361 = vld [vmem:[%s1 + $0x53c] sm:$0xf]
    %v362 = vld [vmem:[%s1 + $0x540] sm:$0xf]
    %v363 = vld [vmem:[%s1 + $0x544] sm:$0xf]
    %v364 = vld [vmem:[%s1 + $0x548] sm:$0xf]
    %v365 = vld [vmem:[%s1 + $0x54c] sm:$0xf]
    %v366 = vld [vmem:[%s1 + $0x550] sm:$0xf]
    %v367 = vld [vmem:[%s1 + $0x554] sm:$0xf]
    %v368 = vld [vmem:[%s1 + $0x558] sm:$0xf]
    %v369 = vld [vmem:[%s1 + $0x55c] sm:$0xf]
    %v370 = vld [vmem:[%s1 + $0x560] sm:$0xf]
    %v371 = vld [vmem:[%s1 + $0x564] sm:$0xf]
    %v372 = vld [vmem:[%s1 + $0x568] sm:$0xf]
    %v373 = vld [vmem:[%s1 + $0x56c] sm:$0xf]
    %v374 = vld [vmem:[%s1 + $0x570] sm:$0xf]
    %v375 = vld [vmem:[%s1 + $0x574] sm:$0xf]
    %v376 = vld [vmem:[%s1 + $0x578] sm:$0xf]
    %v377 = vld [vmem:[%s1 + $0x57c] sm:$0xf]
    %v378 = vld [vmem:[%s1 + $0x580] sm:$0xf]
    %v379 = vld [vmem:[%s1 + $0x584] sm:$0xf]
    %v380 = vld [vmem:[%s1 + $0x588] sm:$0xf]
    %v381 = vld [vmem:[%s1 + $0x58c] sm:$0xf]
    %v382 = vld [vmem:[%s1 + $0x590] sm:$0xf]
    %v383 = vld [vmem:[%s1 + $0x594] sm:$0xf]
    %v384 = vld [vmem:[%s1 + $0x598] sm:$0xf]
    %v385 = vld [vmem:[%s1 + $0x59c] sm:$0xf]
    %v386 = vld [vmem:[%s1 + $0x5a0] sm:$0xf]
    %v387 = vld [vmem:[%s1 + $0x5a4] sm:$0xf]
    %v388 = vld [vmem:[%s1 + $0x5a8] sm:$0xf]
    %v389 = vld [vmem:[%s1 + $0x5ac] sm:$0xf]
    %v390 = vld [vmem:[%s1 + $0x5b0] sm:$0xf]
    %v391 = vld [vmem:[%s1 + $0x5b4] sm:$0xf]
    %v392 = vld [vmem:[%s1 + $0x5b8] sm:$0xf]
    %v393 = vld [vmem:[%s1 + $0x5bc] sm:$0xf]
    %v394 = vld [vmem:[%s1 + $0x5c0] sm:$0xf]
    %v395 = vld [vmem:[%s1 + $0x5c4] sm:$0xf]
    %v396 = vld [vmem:[%s1 + $0x5c8] sm:$0xf]
    %v397 = vld [vmem:[%s1 + $0x5cc] sm:$0xf]
    %v398 = vld [vmem:[%s1 + $0x5d0] sm:$0xf]
    %v399 = vld [vmem:[%s1 + $0x5d4] sm:$0xf]
    %v400 = vld [vmem:[%s1 + $0x5d8] sm:$0xf]
    %v401 = vld [vmem:[%s1 + $0x5dc] sm:$0xf]
    %v402 = vld [vmem:[%s1 + $0x5e0] sm:$0xf]
    %v403 = vld [vmem:[%s1 + $0x5e4] sm:$0xf]
    %v404 = vld [vmem:[%s1 + $0x5e8] sm:$0xf]
    %v405 = vld [vmem:[%s1 + $0x5ec] sm:$0xf]
    %v406 = vld [vmem:[%s1 + $0x5f0] sm:$0xf]
    %v407 = vld [vmem:[%s1 + $0x5f4] sm:$0xf]
    %v408 = vld [vmem:[%s1 + $0x5f8] sm:$0xf]
    %v409 = vld [vmem:[%s1 + $0x5fc] sm:$0xf]
    %v410 = vld [vmem:[%s1 + $0x600] sm:$0xf]
    %v411 = vld [vmem:[%s1 + $0x604] sm:$0xf]
    %v412 = vld [vmem:[%s1 + $0x608] sm:$0xf]
    %v413 = vld [vmem:[%s1 + $0x60c] sm:$0xf]
    %v414 = vld [vmem:[%s1 + $0x610] sm:$0xf]
    %v415 = vld [vmem:[%s1 + $0x614] sm:$0xf]
    %v416 = vld [vmem:[%s1 + $0x618] sm:$0xf]
    %v417 = vld [vmem:[%s1 + $0x61c] sm:$0xf]
    %v418 = vld [vmem:[%s1 + $0x620] sm:$0xf]
    %v419 = vld [vmem:[%s1 + $0x624] sm:$0xf]
    %v420 = vld [vmem:[%s1 + $0x628] sm:$0xf]
    %v421 = vld [vmem:[%s1 + $0x62c] sm:$0xf]
    %v422 = vld [vmem:[%s1 + $0x630] sm:$0xf]
    %v423 = vld [vmem:[%s1 + $0x634] sm:$0xf]
    %v424 = vld [vmem:[%s1 + $0x638] sm:$0xf]
    %v425 = vld [vmem:[%s1 + $0x63c] sm:$0xf]
    %v426 = vld [vmem:[%s1 + $0x640] sm:$0xf]
    %v427 = vld [vmem:[%s1 + $0x644] sm:$0xf]
    %v428 = vld [vmem:[%s1 + $0x648] sm:$0xf]
    %v429 = vld [vmem:[%s1 + $0x64c] sm:$0xf]
    %v430 = vld [vmem:[%s1 + $0x650] sm:$0xf]
    %v431 = vld [vmem:[%s1 + $0x654] sm:$0xf]
    %v432 = vld [vmem:[%s1 + $0x658] sm:$0xf]
    %v433 = vld [vmem:[%s1 + $0x65c] sm:$0xf]
    %v434 = vld [vmem:[%s1 + $0x660] sm:$0xf]
    %v435 = vld [vmem:[%s1 + $0x664] sm:$0xf]
    %v436 = vld [vmem:[%s1 + $0x668] sm:$0xf]
    %v437 = vld [vmem:[%s1 + $0x66c] sm:$0xf]
    %v438 = vld [vmem:[%s1 + $0x670] sm:$0xf]
    %v439 = vld [vmem:[%s1 + $0x674] sm:$0xf]
    %v440 = vld [vmem:[%s1 + $0x678] sm:$0xf]
    %v441 = vld [vmem:[%s1 + $0x67c] sm:$0xf]
    %v442 = vld [vmem:[%s1 + $0x680] sm:$0xf]
    %v443 = vld [vmem:[%s1 + $0x684] sm:$0xf]
    %v444 = vld [vmem:[%s1 + $0x688] sm:$0xf]
    %v445 = vld [vmem:[%s1 + $0x68c] sm:$0xf]
    %v446 = vld [vmem:[%s1 + $0x690] sm:$0xf]
    %v447 = vld [vmem:[%s1 + $0x694] sm:$0xf]
    %v448 = vld [vmem:[%s1 + $0x698] sm:$0xf]
    %v449 = vld [vmem:[%s1 + $0x69c] sm:$0xf]
    %v450 = vld [vmem:[%s1 + $0x6a0] sm:$0xf]
    %v451 = vld [vmem:[%s1 + $0x6a4] sm:$0xf]
    %v452 = vld [vmem:[%s1 + $0x6a8] sm:$0xf]
    %v453 = vld [vmem:[%s1 + $0x6ac] sm:$0xf]
    %v454 = vld [vmem:[%s1 + $0x6b0] sm:$0xf]
    %v455 = vld [vmem:[%s1 + $0x6b4] sm:$0xf]
    %v456 = vld [vmem:[%s1 + $0x6b8] sm:$0xf]
    %v457 = vld [vmem:[%s1 + $0x6bc] sm:$0xf]
    %v458 = vld [vmem:[%s1 + $0x6c0] sm:$0xf]
    %v459 = vld [vmem:[%s1 + $0x6c4] sm:$0xf]
    %v460 = vld [vmem:[%s1 + $0x6c8] sm:$0xf]
    %v461 = vld [vmem:[%s1 + $0x6cc] sm:$0xf]
    %v462 = vld [vmem:[%s1 + $0x6d0] sm:$0xf]
    %v463 = vld [vmem:[%s1 + $0x6d4] sm:$0xf]
    %v464 = vld [vmem:[%s1 + $0x6d8] sm:$0xf]
    %v465 = vld [vmem:[%s1 + $0x6dc] sm:$0xf]
    %v466 = vld [vmem:[%s1 + $0x6e0] sm:$0xf]
    %v467 = vld [vmem:[%s1 + $0x6e4] sm:$0xf]
    %v468 = vld [vmem:[%s1 + $0x6e8] sm:$0xf]
    %v469 = vld [vmem:[%s1 + $0x6ec] sm:$0xf]
    %v470 = vld [vmem:[%s1 + $0x6f0] sm:$0xf]
    %v471 = vld [vmem:[%s1 + $0x6f4] sm:$0xf]
    %v472 = vld [vmem:[%s1 + $0x6f8] sm:$0xf]
    %v473 = vld [vmem:[%s1 + $0x6fc] sm:$0xf]
    %v474 = vld [vmem:[%s1 + $0x700] sm:$0xf]
    %v475 = vld [vmem:[%s1 + $0x704] sm:$0xf]
    %v476 = vld [vmem:[%s1 + $0x708] sm:$0xf]
    %v477 = vld [vmem:[%s1 + $0x70c] sm:$0xf]
    %v478 = vld [vmem:[%s1 + $0x710] sm:$0xf]
    %v479 = vld [vmem:[%s1 + $0x714] sm:$0xf]
    %v480 = vld [vmem:[%s1 + $0x718] sm:$0xf]
    %v481 = vld [vmem:[%s1 + $0x71c] sm:$0xf]
    %v482 = vld [vmem:[%s1 + $0x720] sm:$0xf]
    %v483 = vld [vmem:[%s1 + $0x724] sm:$0xf]
    %v484 = vld [vmem:[%s1 + $0x728] sm:$0xf]
    %v485 = vld [vmem:[%s1 + $0x72c] sm:$0xf]
    %v486 = vld [vmem:[%s1 + $0x730] sm:$0xf]
    %v487 = vld [vmem:[%s1 + $0x734] sm:$0xf]
    %v488 = vld [vmem:[%s1 + $0x738] sm:$0xf]
    %v489 = vld [vmem:[%s1 + $0x73c] sm:$0xf]
    %v490 = vld [vmem:[%s1 + $0x740] sm:$0xf]
    %v491 = vld [vmem:[%s1 + $0x744] sm:$0xf]
    %v492 = vld [vmem:[%s1 + $0x748] sm:$0xf]
    %v493 = vld [vmem:[%s1 + $0x74c] sm:$0xf]
    %v494 = vld [vmem:[%s1 + $0x750] sm:$0xf]
    %v495 = vld [vmem:[%s1 + $0x754] sm:$0xf]
    %v496 = vld [vmem:[%s1 + $0x758] sm:$0xf]
    %v497 = vld [vmem:[%s1 + $0x75c] sm:$0xf]
    %v498 = vld [vmem:[%s1 + $0x760] sm:$0xf]
    %v499 = vld [vmem:[%s1 + $0x764] sm:$0xf]
    %v500 = vld [vmem:[%s1 + $0x768] sm:$0xf]
    %v501 = vld [vmem:[%s1 + $0x76c] sm:$0xf]
    %v502 = vld [vmem:[%s1 + $0x770] sm:$0xf]
    %v503 = vld [vmem:[%s1 + $0x774] sm:$0xf]
    %v504 = vld [vmem:[%s1 + $0x778] sm:$0xf]
    %v505 = vld [vmem:[%s1 + $0x77c] sm:$0xf]
    %v506 = vld [vmem:[%s1 + $0x780] sm:$0xf]
    %v507 = vld [vmem:[%s1 + $0x784] sm:$0xf]
    %v508 = vld [vmem:[%s1 + $0x788] sm:$0xf]
    %v509 = vld [vmem:[%s1 + $0x78c] sm:$0xf]
    %v510 = vld [vmem:[%s1 + $0x790] sm:$0xf]
    %v511 = vld [vmem:[%s1 + $0x794] sm:$0xf]
    %v512 = vld [vmem:[%s1 + $0x798] sm:$0xf]
    %v513 = vld [vmem:[%s1 + $0x79c] sm:$0xf]
    %v514 = vld [vmem:[%s1 + $0x7a0] sm:$0xf]
    %v515 = vld [vmem:[%s1 + $0x7a4] sm:$0xf]
    %v516 = vld [vmem:[%s1 + $0x7a8] sm:$0xf]
    %v517 = vld [vmem:[%s1 + $0x7ac] sm:$0xf]
    %v518 = vld [vmem:[%s1 + $0x7b0] sm:$0xf]
    %v519 = vld [vmem:[%s1 + $0x7b4] sm:$0xf]
    %v520 = vld [vmem:[%s1 + $0x7b8] sm:$0xf]
    %v521 = vld [vmem:[%s1 + $0x7bc] sm:$0xf]
    %v522 = vld [vmem:[%s1 + $0x7c0] sm:$0xf]
    %v523 = vld [vmem:[%s1 + $0x7c4] sm:$0xf]
    %v524 = vld [vmem:[%s1 + $0x7c8] sm:$0xf]
    %v525 = vld [vmem:[%s1 + $0x7cc] sm:$0xf]
    %v526 = vld [vmem:[%s1 + $0x7d0] sm:$0xf]
    %v527 = vld [vmem:[%s1 + $0x7d4] sm:$0xf]
    %v528 = vld [vmem:[%s1 + $0x7d8] sm:$0xf]
    %v529 = vld [vmem:[%s1 + $0x7dc] sm:$0xf]
    %v530 = vld [vmem:[%s1 + $0x7e0] sm:$0xf]
    %v531 = vld [vmem:[%s1 + $0x7e4] sm:$0xf]
    %v532 = vld [vmem:[%s1 + $0x7e8] sm:$0xf]
    %v533 = vld [vmem:[%s1 + $0x7ec] sm:$0xf]
    %v534 = vld [vmem:[%s1 + $0x7f0] sm:$0xf]
    %v535 = vld [vmem:[%s1 + $0x7f4] sm:$0xf]
    %v536 = vld [vmem:[%s1 + $0x7f8] sm:$0xf]
    %v537 = vld [vmem:[%s1 + $0x7fc] sm:$0xf]
    %v538 = vld [vmem:[%s2] sm:$0x1]
    %v540 = vperm.slane %v538, 0
    %543 = vst [vmem:[#allocation1] ss:$9 sm:$0xff] %v22
    %v544 = vld [vmem:[#allocation1] sm:$0xff]
    %v545 = vld [vmem:[#allocation1 + $0x9] sm:$0xff]
    %v546 = vld [vmem:[#allocation1 + $0x12] sm:$0xff]
    %v547 = vld [vmem:[#allocation1 + $0x1b] sm:$0xff]
    %v548 = vld [vmem:[#allocation1 + $0x24] sm:$0xff]
    %v549 = vld [vmem:[#allocation1 + $0x2d] sm:$0xff]
    %v550 = vld [vmem:[#allocation1 + $0x36] sm:$0xff]
    %v551 = vld [vmem:[#allocation1 + $0x3f] sm:$0xff]
    %553 = vst [vmem:[#allocation1] ss:$9 sm:$0xff] %v23
    %v554 = vld [vmem:[#allocation1] sm:$0xff]
    %v555 = vld [vmem:[#allocation1 + $0x9] sm:$0xff]
    %v556 = vld [vmem:[#allocation1 + $0x12] sm:$0xff]
    %v557 = vld [vmem:[#allocation1 + $0x1b] sm:$0xff]
    %v558 = vld [vmem:[#allocation1 + $0x24] sm:$0xff]
    %v559 = vld [vmem:[#allocation1 + $0x2d] sm:$0xff]
    %v560 = vld [vmem:[#allocation1 + $0x36] sm:$0xff]
    %v561 = vld [vmem:[#allocation1 + $0x3f] sm:$0xff]
    %563 = vst [vmem:[#allocation1] ss:$9 sm:$0xff] %v24
    %v564 = vld [vmem:[#allocation1] sm:$0xff]
    %v565 = vld [vmem:[#allocation1 + $0x9] sm:$0xff]
    %v566 = vld [vmem:[#allocation1 + $0x12] sm:$0xff]
    %v567 = vld [vmem:[#allocation1 + $0x1b] sm:$0xff]
    %v568 = vld [vmem:[#allocation1 + $0x24] sm:$0xff]
    %v569 = vld [vmem:[#allocation1 + $0x2d] sm:$0xff]
    %v570 = vld [vmem:[#allocation1 + $0x36] sm:$0xff]
    %v571 = vld [vmem:[#allocation1 + $0x3f] sm:$0xff]
    %573 = vst [vmem:[#allocation1] ss:$9 sm:$0xff] %v25
    %v574 = vld [vmem:[#allocation1] sm:$0xff]
    %v575 = vld [vmem:[#allocation1 + $0x9] sm:$0xff]
    %v576 = vld [vmem:[#allocation1 + $0x12] sm:$0xff]
    %v577 = vld [vmem:[#allocation1 + $0x1b] sm:$0xff]
    %v578 = vld [vmem:[#allocation1 + $0x24] sm:$0xff]
    %v579 = vld [vmem:[#allocation1 + $0x2d] sm:$0xff]
    %v580 = vld [vmem:[#allocation1 + $0x36] sm:$0xff]
    %v581 = vld [vmem:[#allocation1 + $0x3f] sm:$0xff]
    %v1126 = vunpack.c.l.b16 %v26
    %v1127 = vunpack.c.l.b16 %v27
    %v1128 = vunpack.c.l.b16 %v28
    %v1129 = vunpack.c.l.b16 %v29
    %v1130 = vunpack.c.l.b16 %v30
    %v1131 = vunpack.c.l.b16 %v31
    %v1132 = vunpack.c.l.b16 %v32
    %v1133 = vunpack.c.l.b16 %v33
    %v1134 = vunpack.c.l.b16 %v34
    %v1135 = vunpack.c.l.b16 %v35
    %v1136 = vunpack.c.l.b16 %v36
    %v1137 = vunpack.c.l.b16 %v37
    %v1138 = vunpack.c.l.b16 %v38
    %v1139 = vunpack.c.l.b16 %v39
    %v1140 = vunpack.c.l.b16 %v40
    %v1141 = vunpack.c.l.b16 %v41
    %v1142 = vunpack.c.l.b16 %v42
    %v1143 = vunpack.c.l.b16 %v43
    %v1144 = vunpack.c.l.b16 %v44
    %v1145 = vunpack.c.l.b16 %v45
    %v1146 = vunpack.c.l.b16 %v46
    %v1147 = vunpack.c.l.b16 %v47
    %v1148 = vunpack.c.l.b16 %v48
    %v1149 = vunpack.c.l.b16 %v49
    %v1150 = vunpack.c.l.b16 %v50
    %v1151 = vunpack.c.l.b16 %v51
    %v1152 = vunpack.c.l.b16 %v52
    %v1153 = vunpack.c.l.b16 %v53
    %v1154 = vunpack.c.l.b16 %v54
    %v1155 = vunpack.c.l.b16 %v55
    %v1156 = vunpack.c.l.b16 %v56
    %v1157 = vunpack.c.l.b16 %v57
    %v1158 = vunpack.c.l.b16 %v58
    %v1159 = vunpack.c.l.b16 %v59
    %v1160 = vunpack.c.l.b16 %v60
    %v1161 = vunpack.c.l.b16 %v61
    %v1162 = vunpack.c.l.b16 %v62
    %v1163 = vunpack.c.l.b16 %v63
    %v1164 = vunpack.c.l.b16 %v64
    %v1165 = vunpack.c.l.b16 %v65
    %v1166 = vunpack.c.l.b16 %v66
    %v1167 = vunpack.c.l.b16 %v67
    %v1168 = vunpack.c.l.b16 %v68
    %v1169 = vunpack.c.l.b16 %v69
    %v1170 = vunpack.c.l.b16 %v70
    %v1171 = vunpack.c.l.b16 %v71
    %v1172 = vunpack.c.l.b16 %v72
    %v1173 = vunpack.c.l.b16 %v73
    %v1174 = vunpack.c.l.b16 %v74
    %v1175 = vunpack.c.l.b16 %v75
    %v1176 = vunpack.c.l.b16 %v76
    %v1177 = vunpack.c.l.b16 %v77
    %v1178 = vunpack.c.l.b16 %v78
    %v1179 = vunpack.c.l.b16 %v79
    %v1180 = vunpack.c.l.b16 %v80
    %v1181 = vunpack.c.l.b16 %v81
    %v1182 = vunpack.c.l.b16 %v82
    %v1183 = vunpack.c.l.b16 %v83
    %v1184 = vunpack.c.l.b16 %v84
    %v1185 = vunpack.c.l.b16 %v85
    %v1186 = vunpack.c.l.b16 %v86
    %v1187 = vunpack.c.l.b16 %v87
    %v1188 = vunpack.c.l.b16 %v88
    %v1189 = vunpack.c.l.b16 %v89
    %v1190 = vunpack.c.l.b16 %v90
    %v1191 = vunpack.c.l.b16 %v91
    %v1192 = vunpack.c.l.b16 %v92
    %v1193 = vunpack.c.l.b16 %v93
    %v1194 = vunpack.c.l.b16 %v94
    %v1195 = vunpack.c.l.b16 %v95
    %v1196 = vunpack.c.l.b16 %v96
    %v1197 = vunpack.c.l.b16 %v97
    %v1198 = vunpack.c.l.b16 %v98
    %v1199 = vunpack.c.l.b16 %v99
    %v1200 = vunpack.c.l.b16 %v100
    %v1201 = vunpack.c.l.b16 %v101
    %v1202 = vunpack.c.l.b16 %v102
    %v1203 = vunpack.c.l.b16 %v103
    %v1204 = vunpack.c.l.b16 %v104
    %v1205 = vunpack.c.l.b16 %v105
    %v1206 = vunpack.c.l.b16 %v106
    %v1207 = vunpack.c.l.b16 %v107
    %v1208 = vunpack.c.l.b16 %v108
    %v1209 = vunpack.c.l.b16 %v109
    %v1210 = vunpack.c.l.b16 %v110
    %v1211 = vunpack.c.l.b16 %v111
    %v1212 = vunpack.c.l.b16 %v112
    %v1213 = vunpack.c.l.b16 %v113
    %v1214 = vunpack.c.l.b16 %v114
    %v1215 = vunpack.c.l.b16 %v115
    %v1216 = vunpack.c.l.b16 %v116
    %v1217 = vunpack.c.l.b16 %v117
    %v1218 = vunpack.c.l.b16 %v118
    %v1219 = vunpack.c.l.b16 %v119
    %v1220 = vunpack.c.l.b16 %v120
    %v1221 = vunpack.c.l.b16 %v121
    %v1222 = vunpack.c.l.b16 %v122
    %v1223 = vunpack.c.l.b16 %v123
    %v1224 = vunpack.c.l.b16 %v124
    %v1225 = vunpack.c.l.b16 %v125
    %v1226 = vunpack.c.l.b16 %v126
    %v1227 = vunpack.c.l.b16 %v127
    %v1228 = vunpack.c.l.b16 %v128
    %v1229 = vunpack.c.l.b16 %v129
    %v1230 = vunpack.c.l.b16 %v130
    %v1231 = vunpack.c.l.b16 %v131
    %v1232 = vunpack.c.l.b16 %v132
    %v1233 = vunpack.c.l.b16 %v133
    %v1234 = vunpack.c.l.b16 %v134
    %v1235 = vunpack.c.l.b16 %v135
    %v1236 = vunpack.c.l.b16 %v136
    %v1237 = vunpack.c.l.b16 %v137
    %v1238 = vunpack.c.l.b16 %v138
    %v1239 = vunpack.c.l.b16 %v139
    %v1240 = vunpack.c.l.b16 %v140
    %v1241 = vunpack.c.l.b16 %v141
    %v1242 = vunpack.c.l.b16 %v142
    %v1243 = vunpack.c.l.b16 %v143
    %v1244 = vunpack.c.l.b16 %v144
    %v1245 = vunpack.c.l.b16 %v145
    %v1246 = vunpack.c.l.b16 %v146
    %v1247 = vunpack.c.l.b16 %v147
    %v1248 = vunpack.c.l.b16 %v148
    %v1249 = vunpack.c.l.b16 %v149
    %v1250 = vunpack.c.l.b16 %v150
    %v1251 = vunpack.c.l.b16 %v151
    %v1252 = vunpack.c.l.b16 %v152
    %v1253 = vunpack.c.l.b16 %v153
    %v1254 = vunpack.c.l.b16 %v154
    %v1255 = vunpack.c.l.b16 %v155
    %v1256 = vunpack.c.l.b16 %v156
    %v1257 = vunpack.c.l.b16 %v157
    %v1258 = vunpack.c.l.b16 %v158
    %v1259 = vunpack.c.l.b16 %v159
    %v1260 = vunpack.c.l.b16 %v160
    %v1261 = vunpack.c.l.b16 %v161
    %v1262 = vunpack.c.l.b16 %v162
    %v1263 = vunpack.c.l.b16 %v163
    %v1264 = vunpack.c.l.b16 %v164
    %v1265 = vunpack.c.l.b16 %v165
    %v1266 = vunpack.c.l.b16 %v166
    %v1267 = vunpack.c.l.b16 %v167
    %v1268 = vunpack.c.l.b16 %v168
    %v1269 = vunpack.c.l.b16 %v169
    %v1270 = vunpack.c.l.b16 %v170
    %v1271 = vunpack.c.l.b16 %v171
    %v1272 = vunpack.c.l.b16 %v172
    %v1273 = vunpack.c.l.b16 %v173
    %v1274 = vunpack.c.l.b16 %v174
    %v1275 = vunpack.c.l.b16 %v175
    %v1276 = vunpack.c.l.b16 %v176
    %v1277 = vunpack.c.l.b16 %v177
    %v1278 = vunpack.c.l.b16 %v178
    %v1279 = vunpack.c.l.b16 %v179
    %v1280 = vunpack.c.l.b16 %v180
    %v1281 = vunpack.c.l.b16 %v181
    %v1282 = vunpack.c.l.b16 %v182
    %v1283 = vunpack.c.l.b16 %v183
    %v1284 = vunpack.c.l.b16 %v184
    %v1285 = vunpack.c.l.b16 %v185
    %v1286 = vunpack.c.l.b16 %v186
    %v1287 = vunpack.c.l.b16 %v187
    %v1288 = vunpack.c.l.b16 %v188
    %v1289 = vunpack.c.l.b16 %v189
    %v1290 = vunpack.c.l.b16 %v190
    %v1291 = vunpack.c.l.b16 %v191
    %v1292 = vunpack.c.l.b16 %v192
    %v1293 = vunpack.c.l.b16 %v193
    %v1294 = vunpack.c.l.b16 %v194
    %v1295 = vunpack.c.l.b16 %v195
    %v1296 = vunpack.c.l.b16 %v196
    %v1297 = vunpack.c.l.b16 %v197
    %v1298 = vunpack.c.l.b16 %v198
    %v1299 = vunpack.c.l.b16 %v199
    %v1300 = vunpack.c.l.b16 %v200
    %v1301 = vunpack.c.l.b16 %v201
    %v1302 = vunpack.c.l.b16 %v202
    %v1303 = vunpack.c.l.b16 %v203
    %v1304 = vunpack.c.l.b16 %v204
    %v1305 = vunpack.c.l.b16 %v205
    %v1306 = vunpack.c.l.b16 %v206
    %v1307 = vunpack.c.l.b16 %v207
    %v1308 = vunpack.c.l.b16 %v208
    %v1309 = vunpack.c.l.b16 %v209
    %v1310 = vunpack.c.l.b16 %v210
    %v1311 = vunpack.c.l.b16 %v211
    %v1312 = vunpack.c.l.b16 %v212
    %v1313 = vunpack.c.l.b16 %v213
    %v1314 = vunpack.c.l.b16 %v214
    %v1315 = vunpack.c.l.b16 %v215
    %v1316 = vunpack.c.l.b16 %v216
    %v1317 = vunpack.c.l.b16 %v217
    %v1318 = vunpack.c.l.b16 %v218
    %v1319 = vunpack.c.l.b16 %v219
    %v1320 = vunpack.c.l.b16 %v220
    %v1321 = vunpack.c.l.b16 %v221
    %v1322 = vunpack.c.l.b16 %v222
    %v1323 = vunpack.c.l.b16 %v223
    %v1324 = vunpack.c.l.b16 %v224
    %v1325 = vunpack.c.l.b16 %v225
    %v1326 = vunpack.c.l.b16 %v226
    %v1327 = vunpack.c.l.b16 %v227
    %v1328 = vunpack.c.l.b16 %v228
    %v1329 = vunpack.c.l.b16 %v229
    %v1330 = vunpack.c.l.b16 %v230
    %v1331 = vunpack.c.l.b16 %v231
    %v1332 = vunpack.c.l.b16 %v232
    %v1333 = vunpack.c.l.b16 %v233
    %v1334 = vunpack.c.l.b16 %v234
    %v1335 = vunpack.c.l.b16 %v235
    %v1336 = vunpack.c.l.b16 %v236
    %v1337 = vunpack.c.l.b16 %v237
    %v1338 = vunpack.c.l.b16 %v238
    %v1339 = vunpack.c.l.b16 %v239
    %v1340 = vunpack.c.l.b16 %v240
    %v1341 = vunpack.c.l.b16 %v241
    %v1342 = vunpack.c.l.b16 %v242
    %v1343 = vunpack.c.l.b16 %v243
    %v1344 = vunpack.c.l.b16 %v244
    %v1345 = vunpack.c.l.b16 %v245
    %v1346 = vunpack.c.l.b16 %v246
    %v1347 = vunpack.c.l.b16 %v247
    %v1348 = vunpack.c.l.b16 %v248
    %v1349 = vunpack.c.l.b16 %v249
    %v1350 = vunpack.c.l.b16 %v250
    %v1351 = vunpack.c.l.b16 %v251
    %v1352 = vunpack.c.l.b16 %v252
    %v1353 = vunpack.c.l.b16 %v253
    %v1354 = vunpack.c.l.b16 %v254
    %v1355 = vunpack.c.l.b16 %v255
    %v1356 = vunpack.c.l.b16 %v256
    %v1357 = vunpack.c.l.b16 %v257
    %v1358 = vunpack.c.l.b16 %v258
    %v1359 = vunpack.c.l.b16 %v259
    %v1360 = vunpack.c.l.b16 %v260
    %v1361 = vunpack.c.l.b16 %v261
    %v1362 = vunpack.c.l.b16 %v262
    %v1363 = vunpack.c.l.b16 %v263
    %v1364 = vunpack.c.l.b16 %v264
    %v1365 = vunpack.c.l.b16 %v265
    %v1366 = vunpack.c.l.b16 %v266
    %v1367 = vunpack.c.l.b16 %v267
    %v1368 = vunpack.c.l.b16 %v268
    %v1369 = vunpack.c.l.b16 %v269
    %v1370 = vunpack.c.l.b16 %v270
    %v1371 = vunpack.c.l.b16 %v271
    %v1372 = vunpack.c.l.b16 %v272
    %v1373 = vunpack.c.l.b16 %v273
    %v1374 = vunpack.c.l.b16 %v274
    %v1375 = vunpack.c.l.b16 %v275
    %v1376 = vunpack.c.l.b16 %v276
    %v1377 = vunpack.c.l.b16 %v277
    %v1378 = vunpack.c.l.b16 %v278
    %v1379 = vunpack.c.l.b16 %v279
    %v1380 = vunpack.c.l.b16 %v280
    %v1381 = vunpack.c.l.b16 %v281
    %v1382 = vunpack.c.l.b16 %v282
    %v1383 = vunpack.c.l.b16 %v283
    %v1384 = vunpack.c.l.b16 %v284
    %v1385 = vunpack.c.l.b16 %v285
    %v1386 = vunpack.c.l.b16 %v286
    %v1387 = vunpack.c.l.b16 %v287
    %v1388 = vunpack.c.l.b16 %v288
    %v1389 = vunpack.c.l.b16 %v289
    %v1390 = vunpack.c.l.b16 %v290
    %v1391 = vunpack.c.l.b16 %v291
    %v1392 = vunpack.c.l.b16 %v292
    %v1393 = vunpack.c.l.b16 %v293
    %v1394 = vunpack.c.l.b16 %v294
    %v1395 = vunpack.c.l.b16 %v295
    %v1396 = vunpack.c.l.b16 %v296
    %v1397 = vunpack.c.l.b16 %v297
    %v1398 = vunpack.c.l.b16 %v298
    %v1399 = vunpack.c.l.b16 %v299
    %v1400 = vunpack.c.l.b16 %v300
    %v1401 = vunpack.c.l.b16 %v301
    %v1402 = vunpack.c.l.b16 %v302
    %v1403 = vunpack.c.l.b16 %v303
    %v1404 = vunpack.c.l.b16 %v304
    %v1405 = vunpack.c.l.b16 %v305
    %v1406 = vunpack.c.l.b16 %v306
    %v1407 = vunpack.c.l.b16 %v307
    %v1408 = vunpack.c.l.b16 %v308
    %v1409 = vunpack.c.l.b16 %v309
    %v1410 = vunpack.c.l.b16 %v310
    %v1411 = vunpack.c.l.b16 %v311
    %v1412 = vunpack.c.l.b16 %v312
    %v1413 = vunpack.c.l.b16 %v313
    %v1414 = vunpack.c.l.b16 %v314
    %v1415 = vunpack.c.l.b16 %v315
    %v1416 = vunpack.c.l.b16 %v316
    %v1417 = vunpack.c.l.b16 %v317
    %v1418 = vunpack.c.l.b16 %v318
    %v1419 = vunpack.c.l.b16 %v319
    %v1420 = vunpack.c.l.b16 %v320
    %v1421 = vunpack.c.l.b16 %v321
    %v1422 = vunpack.c.l.b16 %v322
    %v1423 = vunpack.c.l.b16 %v323
    %v1424 = vunpack.c.l.b16 %v324
    %v1425 = vunpack.c.l.b16 %v325
    %v1426 = vunpack.c.l.b16 %v326
    %v1427 = vunpack.c.l.b16 %v327
    %v1428 = vunpack.c.l.b16 %v328
    %v1429 = vunpack.c.l.b16 %v329
    %v1430 = vunpack.c.l.b16 %v330
    %v1431 = vunpack.c.l.b16 %v331
    %v1432 = vunpack.c.l.b16 %v332
    %v1433 = vunpack.c.l.b16 %v333
    %v1434 = vunpack.c.l.b16 %v334
    %v1435 = vunpack.c.l.b16 %v335
    %v1436 = vunpack.c.l.b16 %v336
    %v1437 = vunpack.c.l.b16 %v337
    %v1438 = vunpack.c.l.b16 %v338
    %v1439 = vunpack.c.l.b16 %v339
    %v1440 = vunpack.c.l.b16 %v340
    %v1441 = vunpack.c.l.b16 %v341
    %v1442 = vunpack.c.l.b16 %v342
    %v1443 = vunpack.c.l.b16 %v343
    %v1444 = vunpack.c.l.b16 %v344
    %v1445 = vunpack.c.l.b16 %v345
    %v1446 = vunpack.c.l.b16 %v346
    %v1447 = vunpack.c.l.b16 %v347
    %v1448 = vunpack.c.l.b16 %v348
    %v1449 = vunpack.c.l.b16 %v349
    %v1450 = vunpack.c.l.b16 %v350
    %v1451 = vunpack.c.l.b16 %v351
    %v1452 = vunpack.c.l.b16 %v352
    %v1453 = vunpack.c.l.b16 %v353
    %v1454 = vunpack.c.l.b16 %v354
    %v1455 = vunpack.c.l.b16 %v355
    %v1456 = vunpack.c.l.b16 %v356
    %v1457 = vunpack.c.l.b16 %v357
    %v1458 = vunpack.c.l.b16 %v358
    %v1459 = vunpack.c.l.b16 %v359
    %v1460 = vunpack.c.l.b16 %v360
    %v1461 = vunpack.c.l.b16 %v361
    %v1462 = vunpack.c.l.b16 %v362
    %v1463 = vunpack.c.l.b16 %v363
    %v1464 = vunpack.c.l.b16 %v364
    %v1465 = vunpack.c.l.b16 %v365
    %v1466 = vunpack.c.l.b16 %v366
    %v1467 = vunpack.c.l.b16 %v367
    %v1468 = vunpack.c.l.b16 %v368
    %v1469 = vunpack.c.l.b16 %v369
    %v1470 = vunpack.c.l.b16 %v370
    %v1471 = vunpack.c.l.b16 %v371
    %v1472 = vunpack.c.l.b16 %v372
    %v1473 = vunpack.c.l.b16 %v373
    %v1474 = vunpack.c.l.b16 %v374
    %v1475 = vunpack.c.l.b16 %v375
    %v1476 = vunpack.c.l.b16 %v376
    %v1477 = vunpack.c.l.b16 %v377
    %v1478 = vunpack.c.l.b16 %v378
    %v1479 = vunpack.c.l.b16 %v379
    %v1480 = vunpack.c.l.b16 %v380
    %v1481 = vunpack.c.l.b16 %v381
    %v1482 = vunpack.c.l.b16 %v382
    %v1483 = vunpack.c.l.b16 %v383
    %v1484 = vunpack.c.l.b16 %v384
    %v1485 = vunpack.c.l.b16 %v385
    %v1486 = vunpack.c.l.b16 %v386
    %v1487 = vunpack.c.l.b16 %v387
    %v1488 = vunpack.c.l.b16 %v388
    %v1489 = vunpack.c.l.b16 %v389
    %v1490 = vunpack.c.l.b16 %v390
    %v1491 = vunpack.c.l.b16 %v391
    %v1492 = vunpack.c.l.b16 %v392
    %v1493 = vunpack.c.l.b16 %v393
    %v1494 = vunpack.c.l.b16 %v394
    %v1495 = vunpack.c.l.b16 %v395
    %v1496 = vunpack.c.l.b16 %v396
    %v1497 = vunpack.c.l.b16 %v397
    %v1498 = vunpack.c.l.b16 %v398
    %v1499 = vunpack.c.l.b16 %v399
    %v1500 = vunpack.c.l.b16 %v400
    %v1501 = vunpack.c.l.b16 %v401
    %v1502 = vunpack.c.l.b16 %v402
    %v1503 = vunpack.c.l.b16 %v403
    %v1504 = vunpack.c.l.b16 %v404
    %v1505 = vunpack.c.l.b16 %v405
    %v1506 = vunpack.c.l.b16 %v406
    %v1507 = vunpack.c.l.b16 %v407
    %v1508 = vunpack.c.l.b16 %v408
    %v1509 = vunpack.c.l.b16 %v409
    %v1510 = vunpack.c.l.b16 %v410
    %v1511 = vunpack.c.l.b16 %v411
    %v1512 = vunpack.c.l.b16 %v412
    %v1513 = vunpack.c.l.b16 %v413
    %v1514 = vunpack.c.l.b16 %v414
    %v1515 = vunpack.c.l.b16 %v415
    %v1516 = vunpack.c.l.b16 %v416
    %v1517 = vunpack.c.l.b16 %v417
    %v1518 = vunpack.c.l.b16 %v418
    %v1519 = vunpack.c.l.b16 %v419
    %v1520 = vunpack.c.l.b16 %v420
    %v1521 = vunpack.c.l.b16 %v421
    %v1522 = vunpack.c.l.b16 %v422
    %v1523 = vunpack.c.l.b16 %v423
    %v1524 = vunpack.c.l.b16 %v424
    %v1525 = vunpack.c.l.b16 %v425
    %v1526 = vunpack.c.l.b16 %v426
    %v1527 = vunpack.c.l.b16 %v427
    %v1528 = vunpack.c.l.b16 %v428
    %v1529 = vunpack.c.l.b16 %v429
    %v1530 = vunpack.c.l.b16 %v430
    %v1531 = vunpack.c.l.b16 %v431
    %v1532 = vunpack.c.l.b16 %v432
    %v1533 = vunpack.c.l.b16 %v433
    %v1534 = vunpack.c.l.b16 %v434
    %v1535 = vunpack.c.l.b16 %v435
    %v1536 = vunpack.c.l.b16 %v436
    %v1537 = vunpack.c.l.b16 %v437
    %v1538 = vunpack.c.l.b16 %v438
    %v1539 = vunpack.c.l.b16 %v439
    %v1540 = vunpack.c.l.b16 %v440
    %v1541 = vunpack.c.l.b16 %v441
    %v1542 = vunpack.c.l.b16 %v442
    %v1543 = vunpack.c.l.b16 %v443
    %v1544 = vunpack.c.l.b16 %v444
    %v1545 = vunpack.c.l.b16 %v445
    %v1546 = vunpack.c.l.b16 %v446
    %v1547 = vunpack.c.l.b16 %v447
    %v1548 = vunpack.c.l.b16 %v448
    %v1549 = vunpack.c.l.b16 %v449
    %v1550 = vunpack.c.l.b16 %v450
    %v1551 = vunpack.c.l.b16 %v451
    %v1552 = vunpack.c.l.b16 %v452
    %v1553 = vunpack.c.l.b16 %v453
    %v1554 = vunpack.c.l.b16 %v454
    %v1555 = vunpack.c.l.b16 %v455
    %v1556 = vunpack.c.l.b16 %v456
    %v1557 = vunpack.c.l.b16 %v457
    %v1558 = vunpack.c.l.b16 %v458
    %v1559 = vunpack.c.l.b16 %v459
    %v1560 = vunpack.c.l.b16 %v460
    %v1561 = vunpack.c.l.b16 %v461
    %v1562 = vunpack.c.l.b16 %v462
    %v1563 = vunpack.c.l.b16 %v463
    %v1564 = vunpack.c.l.b16 %v464
    %v1565 = vunpack.c.l.b16 %v465
    %v1566 = vunpack.c.l.b16 %v466
    %v1567 = vunpack.c.l.b16 %v467
    %v1568 = vunpack.c.l.b16 %v468
    %v1569 = vunpack.c.l.b16 %v469
    %v1570 = vunpack.c.l.b16 %v470
    %v1571 = vunpack.c.l.b16 %v471
    %v1572 = vunpack.c.l.b16 %v472
    %v1573 = vunpack.c.l.b16 %v473
    %v1574 = vunpack.c.l.b16 %v474
    %v1575 = vunpack.c.l.b16 %v475
    %v1576 = vunpack.c.l.b16 %v476
    %v1577 = vunpack.c.l.b16 %v477
    %v1578 = vunpack.c.l.b16 %v478
    %v1579 = vunpack.c.l.b16 %v479
    %v1580 = vunpack.c.l.b16 %v480
    %v1581 = vunpack.c.l.b16 %v481
    %v1582 = vunpack.c.l.b16 %v482
    %v1583 = vunpack.c.l.b16 %v483
    %v1584 = vunpack.c.l.b16 %v484
    %v1585 = vunpack.c.l.b16 %v485
    %v1586 = vunpack.c.l.b16 %v486
    %v1587 = vunpack.c.l.b16 %v487
    %v1588 = vunpack.c.l.b16 %v488
    %v1589 = vunpack.c.l.b16 %v489
    %v1590 = vunpack.c.l.b16 %v490
    %v1591 = vunpack.c.l.b16 %v491
    %v1592 = vunpack.c.l.b16 %v492
    %v1593 = vunpack.c.l.b16 %v493
    %v1594 = vunpack.c.l.b16 %v494
    %v1595 = vunpack.c.l.b16 %v495
    %v1596 = vunpack.c.l.b16 %v496
    %v1597 = vunpack.c.l.b16 %v497
    %v1598 = vunpack.c.l.b16 %v498
    %v1599 = vunpack.c.l.b16 %v499
    %v1600 = vunpack.c.l.b16 %v500
    %v1601 = vunpack.c.l.b16 %v501
    %v1602 = vunpack.c.l.b16 %v502
    %v1603 = vunpack.c.l.b16 %v503
    %v1604 = vunpack.c.l.b16 %v504
    %v1605 = vunpack.c.l.b16 %v505
    %v1606 = vunpack.c.l.b16 %v506
    %v1607 = vunpack.c.l.b16 %v507
    %v1608 = vunpack.c.l.b16 %v508
    %v1609 = vunpack.c.l.b16 %v509
    %v1610 = vunpack.c.l.b16 %v510
    %v1611 = vunpack.c.l.b16 %v511
    %v1612 = vunpack.c.l.b16 %v512
    %v1613 = vunpack.c.l.b16 %v513
    %v1614 = vunpack.c.l.b16 %v514
    %v1615 = vunpack.c.l.b16 %v515
    %v1616 = vunpack.c.l.b16 %v516
    %v1617 = vunpack.c.l.b16 %v517
    %v1618 = vunpack.c.l.b16 %v518
    %v1619 = vunpack.c.l.b16 %v519
    %v1620 = vunpack.c.l.b16 %v520
    %v1621 = vunpack.c.l.b16 %v521
    %v1622 = vunpack.c.l.b16 %v522
    %v1623 = vunpack.c.l.b16 %v523
    %v1624 = vunpack.c.l.b16 %v524
    %v1625 = vunpack.c.l.b16 %v525
    %v1626 = vunpack.c.l.b16 %v526
    %v1627 = vunpack.c.l.b16 %v527
    %v1628 = vunpack.c.l.b16 %v528
    %v1629 = vunpack.c.l.b16 %v529
    %v1630 = vunpack.c.l.b16 %v530
    %v1631 = vunpack.c.l.b16 %v531
    %v1632 = vunpack.c.l.b16 %v532
    %v1633 = vunpack.c.l.b16 %v533
    %v1634 = vunpack.c.l.b16 %v534
    %v1635 = vunpack.c.l.b16 %v535
    %v1636 = vunpack.c.l.b16 %v536
    %v1637 = vunpack.c.l.b16 %v537
    %v1638 = vpack.c.b16 %v1127, %v1126
    %v1639 = vpack.c.b16 %v1129, %v1128
    %v1640 = vpack.c.b16 %v1131, %v1130
    %v1641 = vpack.c.b16 %v1133, %v1132
    %v1642 = vpack.c.b16 %v1135, %v1134
    %v1643 = vpack.c.b16 %v1137, %v1136
    %v1644 = vpack.c.b16 %v1139, %v1138
    %v1645 = vpack.c.b16 %v1141, %v1140
    %v1646 = vpack.c.b16 %v1143, %v1142
    %v1647 = vpack.c.b16 %v1145, %v1144
    %v1648 = vpack.c.b16 %v1147, %v1146
    %v1649 = vpack.c.b16 %v1149, %v1148
    %v1650 = vpack.c.b16 %v1151, %v1150
    %v1651 = vpack.c.b16 %v1153, %v1152
    %v1652 = vpack.c.b16 %v1155, %v1154
    %v1653 = vpack.c.b16 %v1157, %v1156
    %v1654 = vpack.c.b16 %v1159, %v1158
    %v1655 = vpack.c.b16 %v1161, %v1160
    %v1656 = vpack.c.b16 %v1163, %v1162
    %v1657 = vpack.c.b16 %v1165, %v1164
    %v1658 = vpack.c.b16 %v1167, %v1166
    %v1659 = vpack.c.b16 %v1169, %v1168
    %v1660 = vpack.c.b16 %v1171, %v1170
    %v1661 = vpack.c.b16 %v1173, %v1172
    %v1662 = vpack.c.b16 %v1175, %v1174
    %v1663 = vpack.c.b16 %v1177, %v1176
    %v1664 = vpack.c.b16 %v1179, %v1178
    %v1665 = vpack.c.b16 %v1181, %v1180
    %v1666 = vpack.c.b16 %v1183, %v1182
    %v1667 = vpack.c.b16 %v1185, %v1184
    %v1668 = vpack.c.b16 %v1187, %v1186
    %v1669 = vpack.c.b16 %v1189, %v1188
    %v1670 = vpack.c.b16 %v1191, %v1190
    %v1671 = vpack.c.b16 %v1193, %v1192
    %v1672 = vpack.c.b16 %v1195, %v1194
    %v1673 = vpack.c.b16 %v1197, %v1196
    %v1674 = vpack.c.b16 %v1199, %v1198
    %v1675 = vpack.c.b16 %v1201, %v1200
    %v1676 = vpack.c.b16 %v1203, %v1202
    %v1677 = vpack.c.b16 %v1205, %v1204
    %v1678 = vpack.c.b16 %v1207, %v1206
    %v1679 = vpack.c.b16 %v1209, %v1208
    %v1680 = vpack.c.b16 %v1211, %v1210
    %v1681 = vpack.c.b16 %v1213, %v1212
    %v1682 = vpack.c.b16 %v1215, %v1214
    %v1683 = vpack.c.b16 %v1217, %v1216
    %v1684 = vpack.c.b16 %v1219, %v1218
    %v1685 = vpack.c.b16 %v1221, %v1220
    %v1686 = vpack.c.b16 %v1223, %v1222
    %v1687 = vpack.c.b16 %v1225, %v1224
    %v1688 = vpack.c.b16 %v1227, %v1226
    %v1689 = vpack.c.b16 %v1229, %v1228
    %v1690 = vpack.c.b16 %v1231, %v1230
    %v1691 = vpack.c.b16 %v1233, %v1232
    %v1692 = vpack.c.b16 %v1235, %v1234
    %v1693 = vpack.c.b16 %v1237, %v1236
    %v1694 = vpack.c.b16 %v1239, %v1238
    %v1695 = vpack.c.b16 %v1241, %v1240
    %v1696 = vpack.c.b16 %v1243, %v1242
    %v1697 = vpack.c.b16 %v1245, %v1244
    %v1698 = vpack.c.b16 %v1247, %v1246
    %v1699 = vpack.c.b16 %v1249, %v1248
    %v1700 = vpack.c.b16 %v1251, %v1250
    %v1701 = vpack.c.b16 %v1253, %v1252
    %v1702 = vpack.c.b16 %v1255, %v1254
    %v1703 = vpack.c.b16 %v1257, %v1256
    %v1704 = vpack.c.b16 %v1259, %v1258
    %v1705 = vpack.c.b16 %v1261, %v1260
    %v1706 = vpack.c.b16 %v1263, %v1262
    %v1707 = vpack.c.b16 %v1265, %v1264
    %v1708 = vpack.c.b16 %v1267, %v1266
    %v1709 = vpack.c.b16 %v1269, %v1268
    %v1710 = vpack.c.b16 %v1271, %v1270
    %v1711 = vpack.c.b16 %v1273, %v1272
    %v1712 = vpack.c.b16 %v1275, %v1274
    %v1713 = vpack.c.b16 %v1277, %v1276
    %v1714 = vpack.c.b16 %v1279, %v1278
    %v1715 = vpack.c.b16 %v1281, %v1280
    %v1716 = vpack.c.b16 %v1283, %v1282
    %v1717 = vpack.c.b16 %v1285, %v1284
    %v1718 = vpack.c.b16 %v1287, %v1286
    %v1719 = vpack.c.b16 %v1289, %v1288
    %v1720 = vpack.c.b16 %v1291, %v1290
    %v1721 = vpack.c.b16 %v1293, %v1292
    %v1722 = vpack.c.b16 %v1295, %v1294
    %v1723 = vpack.c.b16 %v1297, %v1296
    %v1724 = vpack.c.b16 %v1299, %v1298
    %v1725 = vpack.c.b16 %v1301, %v1300
    %v1726 = vpack.c.b16 %v1303, %v1302
    %v1727 = vpack.c.b16 %v1305, %v1304
    %v1728 = vpack.c.b16 %v1307, %v1306
    %v1729 = vpack.c.b16 %v1309, %v1308
    %v1730 = vpack.c.b16 %v1311, %v1310
    %v1731 = vpack.c.b16 %v1313, %v1312
    %v1732 = vpack.c.b16 %v1315, %v1314
    %v1733 = vpack.c.b16 %v1317, %v1316
    %v1734 = vpack.c.b16 %v1319, %v1318
    %v1735 = vpack.c.b16 %v1321, %v1320
    %v1736 = vpack.c.b16 %v1323, %v1322
    %v1737 = vpack.c.b16 %v1325, %v1324
    %v1738 = vpack.c.b16 %v1327, %v1326
    %v1739 = vpack.c.b16 %v1329, %v1328
    %v1740 = vpack.c.b16 %v1331, %v1330
    %v1741 = vpack.c.b16 %v1333, %v1332
    %v1742 = vpack.c.b16 %v1335, %v1334
    %v1743 = vpack.c.b16 %v1337, %v1336
    %v1744 = vpack.c.b16 %v1339, %v1338
    %v1745 = vpack.c.b16 %v1341, %v1340
    %v1746 = vpack.c.b16 %v1343, %v1342
    %v1747 = vpack.c.b16 %v1345, %v1344
    %v1748 = vpack.c.b16 %v1347, %v1346
    %v1749 = vpack.c.b16 %v1349, %v1348
    %v1750 = vpack.c.b16 %v1351, %v1350
    %v1751 = vpack.c.b16 %v1353, %v1352
    %v1752 = vpack.c.b16 %v1355, %v1354
    %v1753 = vpack.c.b16 %v1357, %v1356
    %v1754 = vpack.c.b16 %v1359, %v1358
    %v1755 = vpack.c.b16 %v1361, %v1360
    %v1756 = vpack.c.b16 %v1363, %v1362
    %v1757 = vpack.c.b16 %v1365, %v1364
    %v1758 = vpack.c.b16 %v1367, %v1366
    %v1759 = vpack.c.b16 %v1369, %v1368
    %v1760 = vpack.c.b16 %v1371, %v1370
    %v1761 = vpack.c.b16 %v1373, %v1372
    %v1762 = vpack.c.b16 %v1375, %v1374
    %v1763 = vpack.c.b16 %v1377, %v1376
    %v1764 = vpack.c.b16 %v1379, %v1378
    %v1765 = vpack.c.b16 %v1381, %v1380
    %v1766 = vpack.c.b16 %v1383, %v1382
    %v1767 = vpack.c.b16 %v1385, %v1384
    %v1768 = vpack.c.b16 %v1387, %v1386
    %v1769 = vpack.c.b16 %v1389, %v1388
    %v1770 = vpack.c.b16 %v1391, %v1390
    %v1771 = vpack.c.b16 %v1393, %v1392
    %v1772 = vpack.c.b16 %v1395, %v1394
    %v1773 = vpack.c.b16 %v1397, %v1396
    %v1774 = vpack.c.b16 %v1399, %v1398
    %v1775 = vpack.c.b16 %v1401, %v1400
    %v1776 = vpack.c.b16 %v1403, %v1402
    %v1777 = vpack.c.b16 %v1405, %v1404
    %v1778 = vpack.c.b16 %v1407, %v1406
    %v1779 = vpack.c.b16 %v1409, %v1408
    %v1780 = vpack.c.b16 %v1411, %v1410
    %v1781 = vpack.c.b16 %v1413, %v1412
    %v1782 = vpack.c.b16 %v1415, %v1414
    %v1783 = vpack.c.b16 %v1417, %v1416
    %v1784 = vpack.c.b16 %v1419, %v1418
    %v1785 = vpack.c.b16 %v1421, %v1420
    %v1786 = vpack.c.b16 %v1423, %v1422
    %v1787 = vpack.c.b16 %v1425, %v1424
    %v1788 = vpack.c.b16 %v1427, %v1426
    %v1789 = vpack.c.b16 %v1429, %v1428
    %v1790 = vpack.c.b16 %v1431, %v1430
    %v1791 = vpack.c.b16 %v1433, %v1432
    %v1792 = vpack.c.b16 %v1435, %v1434
    %v1793 = vpack.c.b16 %v1437, %v1436
    %v1794 = vpack.c.b16 %v1439, %v1438
    %v1795 = vpack.c.b16 %v1441, %v1440
    %v1796 = vpack.c.b16 %v1443, %v1442
    %v1797 = vpack.c.b16 %v1445, %v1444
    %v1798 = vpack.c.b16 %v1447, %v1446
    %v1799 = vpack.c.b16 %v1449, %v1448
    %v1800 = vpack.c.b16 %v1451, %v1450
    %v1801 = vpack.c.b16 %v1453, %v1452
    %v1802 = vpack.c.b16 %v1455, %v1454
    %v1803 = vpack.c.b16 %v1457, %v1456
    %v1804 = vpack.c.b16 %v1459, %v1458
    %v1805 = vpack.c.b16 %v1461, %v1460
    %v1806 = vpack.c.b16 %v1463, %v1462
    %v1807 = vpack.c.b16 %v1465, %v1464
    %v1808 = vpack.c.b16 %v1467, %v1466
    %v1809 = vpack.c.b16 %v1469, %v1468
    %v1810 = vpack.c.b16 %v1471, %v1470
    %v1811 = vpack.c.b16 %v1473, %v1472
    %v1812 = vpack.c.b16 %v1475, %v1474
    %v1813 = vpack.c.b16 %v1477, %v1476
    %v1814 = vpack.c.b16 %v1479, %v1478
    %v1815 = vpack.c.b16 %v1481, %v1480
    %v1816 = vpack.c.b16 %v1483, %v1482
    %v1817 = vpack.c.b16 %v1485, %v1484
    %v1818 = vpack.c.b16 %v1487, %v1486
    %v1819 = vpack.c.b16 %v1489, %v1488
    %v1820 = vpack.c.b16 %v1491, %v1490
    %v1821 = vpack.c.b16 %v1493, %v1492
    %v1822 = vpack.c.b16 %v1495, %v1494
    %v1823 = vpack.c.b16 %v1497, %v1496
    %v1824 = vpack.c.b16 %v1499, %v1498
    %v1825 = vpack.c.b16 %v1501, %v1500
    %v1826 = vpack.c.b16 %v1503, %v1502
    %v1827 = vpack.c.b16 %v1505, %v1504
    %v1828 = vpack.c.b16 %v1507, %v1506
    %v1829 = vpack.c.b16 %v1509, %v1508
    %v1830 = vpack.c.b16 %v1511, %v1510
    %v1831 = vpack.c.b16 %v1513, %v1512
    %v1832 = vpack.c.b16 %v1515, %v1514
    %v1833 = vpack.c.b16 %v1517, %v1516
    %v1834 = vpack.c.b16 %v1519, %v1518
    %v1835 = vpack.c.b16 %v1521, %v1520
    %v1836 = vpack.c.b16 %v1523, %v1522
    %v1837 = vpack.c.b16 %v1525, %v1524
    %v1838 = vpack.c.b16 %v1527, %v1526
    %v1839 = vpack.c.b16 %v1529, %v1528
    %v1840 = vpack.c.b16 %v1531, %v1530
    %v1841 = vpack.c.b16 %v1533, %v1532
    %v1842 = vpack.c.b16 %v1535, %v1534
    %v1843 = vpack.c.b16 %v1537, %v1536
    %v1844 = vpack.c.b16 %v1539, %v1538
    %v1845 = vpack.c.b16 %v1541, %v1540
    %v1846 = vpack.c.b16 %v1543, %v1542
    %v1847 = vpack.c.b16 %v1545, %v1544
    %v1848 = vpack.c.b16 %v1547, %v1546
    %v1849 = vpack.c.b16 %v1549, %v1548
    %v1850 = vpack.c.b16 %v1551, %v1550
    %v1851 = vpack.c.b16 %v1553, %v1552
    %v1852 = vpack.c.b16 %v1555, %v1554
    %v1853 = vpack.c.b16 %v1557, %v1556
    %v1854 = vpack.c.b16 %v1559, %v1558
    %v1855 = vpack.c.b16 %v1561, %v1560
    %v1856 = vpack.c.b16 %v1563, %v1562
    %v1857 = vpack.c.b16 %v1565, %v1564
    %v1858 = vpack.c.b16 %v1567, %v1566
    %v1859 = vpack.c.b16 %v1569, %v1568
    %v1860 = vpack.c.b16 %v1571, %v1570
    %v1861 = vpack.c.b16 %v1573, %v1572
    %v1862 = vpack.c.b16 %v1575, %v1574
    %v1863 = vpack.c.b16 %v1577, %v1576
    %v1864 = vpack.c.b16 %v1579, %v1578
    %v1865 = vpack.c.b16 %v1581, %v1580
    %v1866 = vpack.c.b16 %v1583, %v1582
    %v1867 = vpack.c.b16 %v1585, %v1584
    %v1868 = vpack.c.b16 %v1587, %v1586
    %v1869 = vpack.c.b16 %v1589, %v1588
    %v1870 = vpack.c.b16 %v1591, %v1590
    %v1871 = vpack.c.b16 %v1593, %v1592
    %v1872 = vpack.c.b16 %v1595, %v1594
    %v1873 = vpack.c.b16 %v1597, %v1596
    %v1874 = vpack.c.b16 %v1599, %v1598
    %v1875 = vpack.c.b16 %v1601, %v1600
    %v1876 = vpack.c.b16 %v1603, %v1602
    %v1877 = vpack.c.b16 %v1605, %v1604
    %v1878 = vpack.c.b16 %v1607, %v1606
    %v1879 = vpack.c.b16 %v1609, %v1608
    %v1880 = vpack.c.b16 %v1611, %v1610
    %v1881 = vpack.c.b16 %v1613, %v1612
    %v1882 = vpack.c.b16 %v1615, %v1614
    %v1883 = vpack.c.b16 %v1617, %v1616
    %v1884 = vpack.c.b16 %v1619, %v1618
    %v1885 = vpack.c.b16 %v1621, %v1620
    %v1886 = vpack.c.b16 %v1623, %v1622
    %v1887 = vpack.c.b16 %v1625, %v1624
    %v1888 = vpack.c.b16 %v1627, %v1626
    %v1889 = vpack.c.b16 %v1629, %v1628
    %v1890 = vpack.c.b16 %v1631, %v1630
    %v1891 = vpack.c.b16 %v1633, %v1632
    %v1892 = vpack.c.b16 %v1635, %v1634
    %v1893 = vpack.c.b16 %v1637, %v1636
    %2150 = vmatpush.bf16.msra.mxu0 %v1645
    %2151 = vmatpush.bf16.msra.mxu0 %v1644
    %2152 = vmatpush.bf16.msra.mxu0 %v1643
    %2153 = vmatpush.bf16.msra.mxu0 %v1642
    %2154 = vmatpush.bf16.msra.mxu0 %v1641
    %2155 = vmatpush.bf16.msra.mxu0 %v1640
    %2156 = vmatpush.bf16.msra.mxu0 %v1639
    %2157 = vmatpush.bf16.msra.mxu0 %v1638
    %2158 = vmatmul.bf16.gmra.mxu0 %v544
    %v2159 = vpop.f32.mrf.mxu0
    %v2160 = vadd.f32 %v540, %v2159
    %v2161 = vpop.f32.mrf.mxu0
    %2162 = vdwg.mxu0
    %2163 = vmatpush.bf16.msra.mxu0 %v1653
    %2164 = vmatpush.bf16.msra.mxu0 %v1652
    %2165 = vmatpush.bf16.msra.mxu0 %v1651
    %2166 = vmatpush.bf16.msra.mxu0 %v1650
    %2167 = vmatpush.bf16.msra.mxu0 %v1649
    %2168 = vmatpush.bf16.msra.mxu0 %v1648
    %2169 = vmatpush.bf16.msra.mxu0 %v1647
    %2170 = vmatpush.bf16.msra.mxu0 %v1646
    %2171 = vmatmul.bf16.gmra.mxu0 %v545
    %v2172 = vpop.f32.mrf.mxu0
    %v2173 = vadd.f32 %v2160, %v2172
    %v2174 = vpop.f32.mrf.mxu0
    %2175 = vdwg.mxu0
    %2176 = vmatpush.bf16.msra.mxu0 %v1661
    %2177 = vmatpush.bf16.msra.mxu0 %v1660
    %2178 = vmatpush.bf16.msra.mxu0 %v1659
    %2179 = vmatpush.bf16.msra.mxu0 %v1658
    %2180 = vmatpush.bf16.msra.mxu0 %v1657
    %2181 = vmatpush.bf16.msra.mxu0 %v1656
    %2182 = vmatpush.bf16.msra.mxu0 %v1655
    %2183 = vmatpush.bf16.msra.mxu0 %v1654
    %2184 = vmatmul.bf16.gmra.mxu0 %v546
    %v2185 = vpop.f32.mrf.mxu0
    %v2186 = vadd.f32 %v2173, %v2185
    %v2187 = vpop.f32.mrf.mxu0
    %2188 = vdwg.mxu0
    %2189 = vmatpush.bf16.msra.mxu0 %v1669
    %2190 = vmatpush.bf16.msra.mxu0 %v1668
    %2191 = vmatpush.bf16.msra.mxu0 %v1667
    %2192 = vmatpush.bf16.msra.mxu0 %v1666
    %2193 = vmatpush.bf16.msra.mxu0 %v1665
    %2194 = vmatpush.bf16.msra.mxu0 %v1664
    %2195 = vmatpush.bf16.msra.mxu0 %v1663
    %2196 = vmatpush.bf16.msra.mxu0 %v1662
    %2197 = vmatmul.bf16.gmra.mxu0 %v547
    %v2198 = vpop.f32.mrf.mxu0
    %v2199 = vadd.f32 %v2186, %v2198
    %v2200 = vpop.f32.mrf.mxu0
    %2201 = vdwg.mxu0
    %2202 = vmatpush.bf16.msra.mxu0 %v1677
    %2203 = vmatpush.bf16.msra.mxu0 %v1676
    %2204 = vmatpush.bf16.msra.mxu0 %v1675
    %2205 = vmatpush.bf16.msra.mxu0 %v1674
    %2206 = vmatpush.bf16.msra.mxu0 %v1673
    %2207 = vmatpush.bf16.msra.mxu0 %v1672
    %2208 = vmatpush.bf16.msra.mxu0 %v1671
    %2209 = vmatpush.bf16.msra.mxu0 %v1670
    %2210 = vmatmul.bf16.gmra.mxu0 %v548
    %v2211 = vpop.f32.mrf.mxu0
    %v2212 = vadd.f32 %v2199, %v2211
    %v2213 = vpop.f32.mrf.mxu0
    %2214 = vdwg.mxu0
    %2215 = vmatpush.bf16.msra.mxu0 %v1685
    %2216 = vmatpush.bf16.msra.mxu0 %v1684
    %2217 = vmatpush.bf16.msra.mxu0 %v1683
    %2218 = vmatpush.bf16.msra.mxu0 %v1682
    %2219 = vmatpush.bf16.msra.mxu0 %v1681
    %2220 = vmatpush.bf16.msra.mxu0 %v1680
    %2221 = vmatpush.bf16.msra.mxu0 %v1679
    %2222 = vmatpush.bf16.msra.mxu0 %v1678
    %2223 = vmatmul.bf16.gmra.mxu0 %v549
    %v2224 = vpop.f32.mrf.mxu0
    %v2225 = vadd.f32 %v2212, %v2224
    %v2226 = vpop.f32.mrf.mxu0
    %2227 = vdwg.mxu0
    %2228 = vmatpush.bf16.msra.mxu0 %v1693
    %2229 = vmatpush.bf16.msra.mxu0 %v1692
    %2230 = vmatpush.bf16.msra.mxu0 %v1691
    %2231 = vmatpush.bf16.msra.mxu0 %v1690
    %2232 = vmatpush.bf16.msra.mxu0 %v1689
    %2233 = vmatpush.bf16.msra.mxu0 %v1688
    %2234 = vmatpush.bf16.msra.mxu0 %v1687
    %2235 = vmatpush.bf16.msra.mxu0 %v1686
    %2236 = vmatmul.bf16.gmra.mxu0 %v550
    %v2237 = vpop.f32.mrf.mxu0
    %v2238 = vadd.f32 %v2225, %v2237
    %v2239 = vpop.f32.mrf.mxu0
    %2240 = vdwg.mxu0
    %2241 = vmatpush.bf16.msra.mxu0 %v1701
    %2242 = vmatpush.bf16.msra.mxu0 %v1700
    %2243 = vmatpush.bf16.msra.mxu0 %v1699
    %2244 = vmatpush.bf16.msra.mxu0 %v1698
    %2245 = vmatpush.bf16.msra.mxu0 %v1697
    %2246 = vmatpush.bf16.msra.mxu0 %v1696
    %2247 = vmatpush.bf16.msra.mxu0 %v1695
    %2248 = vmatpush.bf16.msra.mxu0 %v1694
    %2249 = vmatmul.bf16.gmra.mxu0 %v551
    %v2250 = vpop.f32.mrf.mxu0
    %v2251 = vadd.f32 %v2238, %v2250
    %v2252 = vpop.f32.mrf.mxu0
    %2253 = vdwg.mxu0
    %2254 = vmatpush.bf16.msra.mxu0 %v1709
    %2255 = vmatpush.bf16.msra.mxu0 %v1708
    %2256 = vmatpush.bf16.msra.mxu0 %v1707
    %2257 = vmatpush.bf16.msra.mxu0 %v1706
    %2258 = vmatpush.bf16.msra.mxu0 %v1705
    %2259 = vmatpush.bf16.msra.mxu0 %v1704
    %2260 = vmatpush.bf16.msra.mxu0 %v1703
    %2261 = vmatpush.bf16.msra.mxu0 %v1702
    %2262 = vmatmul.bf16.gmra.mxu0 %v554
    %v2263 = vpop.f32.mrf.mxu0
    %v2264 = vadd.f32 %v2251, %v2263
    %v2265 = vpop.f32.mrf.mxu0
    %2266 = vdwg.mxu0
    %2267 = vmatpush.bf16.msra.mxu0 %v1717
    %2268 = vmatpush.bf16.msra.mxu0 %v1716
    %2269 = vmatpush.bf16.msra.mxu0 %v1715
    %2270 = vmatpush.bf16.msra.mxu0 %v1714
    %2271 = vmatpush.bf16.msra.mxu0 %v1713
    %2272 = vmatpush.bf16.msra.mxu0 %v1712
    %2273 = vmatpush.bf16.msra.mxu0 %v1711
    %2274 = vmatpush.bf16.msra.mxu0 %v1710
    %2275 = vmatmul.bf16.gmra.mxu0 %v555
    %v2276 = vpop.f32.mrf.mxu0
    %v2277 = vadd.f32 %v2264, %v2276
    %v2278 = vpop.f32.mrf.mxu0
    %2279 = vdwg.mxu0
    %2280 = vmatpush.bf16.msra.mxu0 %v1725
    %2281 = vmatpush.bf16.msra.mxu0 %v1724
    %2282 = vmatpush.bf16.msra.mxu0 %v1723
    %2283 = vmatpush.bf16.msra.mxu0 %v1722
    %2284 = vmatpush.bf16.msra.mxu0 %v1721
    %2285 = vmatpush.bf16.msra.mxu0 %v1720
    %2286 = vmatpush.bf16.msra.mxu0 %v1719
    %2287 = vmatpush.bf16.msra.mxu0 %v1718
    %2288 = vmatmul.bf16.gmra.mxu0 %v556
    %v2289 = vpop.f32.mrf.mxu0
    %v2290 = vadd.f32 %v2277, %v2289
    %v2291 = vpop.f32.mrf.mxu0
    %2292 = vdwg.mxu0
    %2293 = vmatpush.bf16.msra.mxu0 %v1733
    %2294 = vmatpush.bf16.msra.mxu0 %v1732
    %2295 = vmatpush.bf16.msra.mxu0 %v1731
    %2296 = vmatpush.bf16.msra.mxu0 %v1730
    %2297 = vmatpush.bf16.msra.mxu0 %v1729
    %2298 = vmatpush.bf16.msra.mxu0 %v1728
    %2299 = vmatpush.bf16.msra.mxu0 %v1727
    %2300 = vmatpush.bf16.msra.mxu0 %v1726
    %2301 = vmatmul.bf16.gmra.mxu0 %v557
    %v2302 = vpop.f32.mrf.mxu0
    %v2303 = vadd.f32 %v2290, %v2302
    %v2304 = vpop.f32.mrf.mxu0
    %2305 = vdwg.mxu0
    %2306 = vmatpush.bf16.msra.mxu0 %v1741
    %2307 = vmatpush.bf16.msra.mxu0 %v1740
    %2308 = vmatpush.bf16.msra.mxu0 %v1739
    %2309 = vmatpush.bf16.msra.mxu0 %v1738
    %2310 = vmatpush.bf16.msra.mxu0 %v1737
    %2311 = vmatpush.bf16.msra.mxu0 %v1736
    %2312 = vmatpush.bf16.msra.mxu0 %v1735
    %2313 = vmatpush.bf16.msra.mxu0 %v1734
    %2314 = vmatmul.bf16.gmra.mxu0 %v558
    %v2315 = vpop.f32.mrf.mxu0
    %v2316 = vadd.f32 %v2303, %v2315
    %v2317 = vpop.f32.mrf.mxu0
    %2318 = vdwg.mxu0
    %2319 = vmatpush.bf16.msra.mxu0 %v1749
    %2320 = vmatpush.bf16.msra.mxu0 %v1748
    %2321 = vmatpush.bf16.msra.mxu0 %v1747
    %2322 = vmatpush.bf16.msra.mxu0 %v1746
    %2323 = vmatpush.bf16.msra.mxu0 %v1745
    %2324 = vmatpush.bf16.msra.mxu0 %v1744
    %2325 = vmatpush.bf16.msra.mxu0 %v1743
    %2326 = vmatpush.bf16.msra.mxu0 %v1742
    %2327 = vmatmul.bf16.gmra.mxu0 %v559
    %v2328 = vpop.f32.mrf.mxu0
    %v2329 = vadd.f32 %v2316, %v2328
    %v2330 = vpop.f32.mrf.mxu0
    %2331 = vdwg.mxu0
    %2332 = vmatpush.bf16.msra.mxu0 %v1757
    %2333 = vmatpush.bf16.msra.mxu0 %v1756
    %2334 = vmatpush.bf16.msra.mxu0 %v1755
    %2335 = vmatpush.bf16.msra.mxu0 %v1754
    %2336 = vmatpush.bf16.msra.mxu0 %v1753
    %2337 = vmatpush.bf16.msra.mxu0 %v1752
    %2338 = vmatpush.bf16.msra.mxu0 %v1751
    %2339 = vmatpush.bf16.msra.mxu0 %v1750
    %2340 = vmatmul.bf16.gmra.mxu0 %v560
    %v2341 = vpop.f32.mrf.mxu0
    %v2342 = vadd.f32 %v2329, %v2341
    %v2343 = vpop.f32.mrf.mxu0
    %2344 = vdwg.mxu0
    %2345 = vmatpush.bf16.msra.mxu0 %v1765
    %2346 = vmatpush.bf16.msra.mxu0 %v1764
    %2347 = vmatpush.bf16.msra.mxu0 %v1763
    %2348 = vmatpush.bf16.msra.mxu0 %v1762
    %2349 = vmatpush.bf16.msra.mxu0 %v1761
    %2350 = vmatpush.bf16.msra.mxu0 %v1760
    %2351 = vmatpush.bf16.msra.mxu0 %v1759
    %2352 = vmatpush.bf16.msra.mxu0 %v1758
    %2353 = vmatmul.bf16.gmra.mxu0 %v561
    %v2354 = vpop.f32.mrf.mxu0
    %v2355 = vadd.f32 %v2342, %v2354
    %v2356 = vpop.f32.mrf.mxu0
    %2357 = vdwg.mxu0
    %2358 = vmatpush.bf16.msra.mxu0 %v1773
    %2359 = vmatpush.bf16.msra.mxu0 %v1772
    %2360 = vmatpush.bf16.msra.mxu0 %v1771
    %2361 = vmatpush.bf16.msra.mxu0 %v1770
    %2362 = vmatpush.bf16.msra.mxu0 %v1769
    %2363 = vmatpush.bf16.msra.mxu0 %v1768
    %2364 = vmatpush.bf16.msra.mxu0 %v1767
    %2365 = vmatpush.bf16.msra.mxu0 %v1766
    %2366 = vmatmul.bf16.gmra.mxu0 %v564
    %v2367 = vpop.f32.mrf.mxu0
    %v2368 = vadd.f32 %v2355, %v2367
    %v2369 = vpop.f32.mrf.mxu0
    %2370 = vdwg.mxu0
    %2371 = vmatpush.bf16.msra.mxu0 %v1781
    %2372 = vmatpush.bf16.msra.mxu0 %v1780
    %2373 = vmatpush.bf16.msra.mxu0 %v1779
    %2374 = vmatpush.bf16.msra.mxu0 %v1778
    %2375 = vmatpush.bf16.msra.mxu0 %v1777
    %2376 = vmatpush.bf16.msra.mxu0 %v1776
    %2377 = vmatpush.bf16.msra.mxu0 %v1775
    %2378 = vmatpush.bf16.msra.mxu0 %v1774
    %2379 = vmatmul.bf16.gmra.mxu0 %v565
    %v2380 = vpop.f32.mrf.mxu0
    %v2381 = vadd.f32 %v2368, %v2380
    %v2382 = vpop.f32.mrf.mxu0
    %2383 = vdwg.mxu0
    %2384 = vmatpush.bf16.msra.mxu0 %v1789
    %2385 = vmatpush.bf16.msra.mxu0 %v1788
    %2386 = vmatpush.bf16.msra.mxu0 %v1787
    %2387 = vmatpush.bf16.msra.mxu0 %v1786
    %2388 = vmatpush.bf16.msra.mxu0 %v1785
    %2389 = vmatpush.bf16.msra.mxu0 %v1784
    %2390 = vmatpush.bf16.msra.mxu0 %v1783
    %2391 = vmatpush.bf16.msra.mxu0 %v1782
    %2392 = vmatmul.bf16.gmra.mxu0 %v566
    %v2393 = vpop.f32.mrf.mxu0
    %v2394 = vadd.f32 %v2381, %v2393
    %v2395 = vpop.f32.mrf.mxu0
    %2396 = vdwg.mxu0
    %2397 = vmatpush.bf16.msra.mxu0 %v1797
    %2398 = vmatpush.bf16.msra.mxu0 %v1796
    %2399 = vmatpush.bf16.msra.mxu0 %v1795
    %2400 = vmatpush.bf16.msra.mxu0 %v1794
    %2401 = vmatpush.bf16.msra.mxu0 %v1793
    %2402 = vmatpush.bf16.msra.mxu0 %v1792
    %2403 = vmatpush.bf16.msra.mxu0 %v1791
    %2404 = vmatpush.bf16.msra.mxu0 %v1790
    %2405 = vmatmul.bf16.gmra.mxu0 %v567
    %v2406 = vpop.f32.mrf.mxu0
    %v2407 = vadd.f32 %v2394, %v2406
    %v2408 = vpop.f32.mrf.mxu0
    %2409 = vdwg.mxu0
    %2410 = vmatpush.bf16.msra.mxu0 %v1805
    %2411 = vmatpush.bf16.msra.mxu0 %v1804
    %2412 = vmatpush.bf16.msra.mxu0 %v1803
    %2413 = vmatpush.bf16.msra.mxu0 %v1802
    %2414 = vmatpush.bf16.msra.mxu0 %v1801
    %2415 = vmatpush.bf16.msra.mxu0 %v1800
    %2416 = vmatpush.bf16.msra.mxu0 %v1799
    %2417 = vmatpush.bf16.msra.mxu0 %v1798
    %2418 = vmatmul.bf16.gmra.mxu0 %v568
    %v2419 = vpop.f32.mrf.mxu0
    %v2420 = vadd.f32 %v2407, %v2419
    %v2421 = vpop.f32.mrf.mxu0
    %2422 = vdwg.mxu0
    %2423 = vmatpush.bf16.msra.mxu0 %v1813
    %2424 = vmatpush.bf16.msra.mxu0 %v1812
    %2425 = vmatpush.bf16.msra.mxu0 %v1811
    %2426 = vmatpush.bf16.msra.mxu0 %v1810
    %2427 = vmatpush.bf16.msra.mxu0 %v1809
    %2428 = vmatpush.bf16.msra.mxu0 %v1808
    %2429 = vmatpush.bf16.msra.mxu0 %v1807
    %2430 = vmatpush.bf16.msra.mxu0 %v1806
    %2431 = vmatmul.bf16.gmra.mxu0 %v569
    %v2432 = vpop.f32.mrf.mxu0
    %v2433 = vadd.f32 %v2420, %v2432
    %v2434 = vpop.f32.mrf.mxu0
    %2435 = vdwg.mxu0
    %2436 = vmatpush.bf16.msra.mxu0 %v1821
    %2437 = vmatpush.bf16.msra.mxu0 %v1820
    %2438 = vmatpush.bf16.msra.mxu0 %v1819
    %2439 = vmatpush.bf16.msra.mxu0 %v1818
    %2440 = vmatpush.bf16.msra.mxu0 %v1817
    %2441 = vmatpush.bf16.msra.mxu0 %v1816
    %2442 = vmatpush.bf16.msra.mxu0 %v1815
    %2443 = vmatpush.bf16.msra.mxu0 %v1814
    %2444 = vmatmul.bf16.gmra.mxu0 %v570
    %v2445 = vpop.f32.mrf.mxu0
    %v2446 = vadd.f32 %v2433, %v2445
    %v2447 = vpop.f32.mrf.mxu0
    %2448 = vdwg.mxu0
    %2449 = vmatpush.bf16.msra.mxu0 %v1829
    %2450 = vmatpush.bf16.msra.mxu0 %v1828
    %2451 = vmatpush.bf16.msra.mxu0 %v1827
    %2452 = vmatpush.bf16.msra.mxu0 %v1826
    %2453 = vmatpush.bf16.msra.mxu0 %v1825
    %2454 = vmatpush.bf16.msra.mxu0 %v1824
    %2455 = vmatpush.bf16.msra.mxu0 %v1823
    %2456 = vmatpush.bf16.msra.mxu0 %v1822
    %2457 = vmatmul.bf16.gmra.mxu0 %v571
    %v2458 = vpop.f32.mrf.mxu0
    %v2459 = vadd.f32 %v2446, %v2458
    %v2460 = vpop.f32.mrf.mxu0
    %2461 = vdwg.mxu0
    %2462 = vmatpush.bf16.msra.mxu0 %v1837
    %2463 = vmatpush.bf16.msra.mxu0 %v1836
    %2464 = vmatpush.bf16.msra.mxu0 %v1835
    %2465 = vmatpush.bf16.msra.mxu0 %v1834
    %2466 = vmatpush.bf16.msra.mxu0 %v1833
    %2467 = vmatpush.bf16.msra.mxu0 %v1832
    %2468 = vmatpush.bf16.msra.mxu0 %v1831
    %2469 = vmatpush.bf16.msra.mxu0 %v1830
    %2470 = vmatmul.bf16.gmra.mxu0 %v574
    %v2471 = vpop.f32.mrf.mxu0
    %v2472 = vadd.f32 %v2459, %v2471
    %v2473 = vpop.f32.mrf.mxu0
    %2474 = vdwg.mxu0
    %2475 = vmatpush.bf16.msra.mxu0 %v1845
    %2476 = vmatpush.bf16.msra.mxu0 %v1844
    %2477 = vmatpush.bf16.msra.mxu0 %v1843
    %2478 = vmatpush.bf16.msra.mxu0 %v1842
    %2479 = vmatpush.bf16.msra.mxu0 %v1841
    %2480 = vmatpush.bf16.msra.mxu0 %v1840
    %2481 = vmatpush.bf16.msra.mxu0 %v1839
    %2482 = vmatpush.bf16.msra.mxu0 %v1838
    %2483 = vmatmul.bf16.gmra.mxu0 %v575
    %v2484 = vpop.f32.mrf.mxu0
    %v2485 = vadd.f32 %v2472, %v2484
    %v2486 = vpop.f32.mrf.mxu0
    %2487 = vdwg.mxu0
    %2488 = vmatpush.bf16.msra.mxu0 %v1853
    %2489 = vmatpush.bf16.msra.mxu0 %v1852
    %2490 = vmatpush.bf16.msra.mxu0 %v1851
    %2491 = vmatpush.bf16.msra.mxu0 %v1850
    %2492 = vmatpush.bf16.msra.mxu0 %v1849
    %2493 = vmatpush.bf16.msra.mxu0 %v1848
    %2494 = vmatpush.bf16.msra.mxu0 %v1847
    %2495 = vmatpush.bf16.msra.mxu0 %v1846
    %2496 = vmatmul.bf16.gmra.mxu0 %v576
    %v2497 = vpop.f32.mrf.mxu0
    %v2498 = vadd.f32 %v2485, %v2497
    %v2499 = vpop.f32.mrf.mxu0
    %2500 = vdwg.mxu0
    %2501 = vmatpush.bf16.msra.mxu0 %v1861
    %2502 = vmatpush.bf16.msra.mxu0 %v1860
    %2503 = vmatpush.bf16.msra.mxu0 %v1859
    %2504 = vmatpush.bf16.msra.mxu0 %v1858
    %2505 = vmatpush.bf16.msra.mxu0 %v1857
    %2506 = vmatpush.bf16.msra.mxu0 %v1856
    %2507 = vmatpush.bf16.msra.mxu0 %v1855
    %2508 = vmatpush.bf16.msra.mxu0 %v1854
    %2509 = vmatmul.bf16.gmra.mxu0 %v577
    %v2510 = vpop.f32.mrf.mxu0
    %v2511 = vadd.f32 %v2498, %v2510
    %v2512 = vpop.f32.mrf.mxu0
    %2513 = vdwg.mxu0
    %2514 = vmatpush.bf16.msra.mxu0 %v1869
    %2515 = vmatpush.bf16.msra.mxu0 %v1868
    %2516 = vmatpush.bf16.msra.mxu0 %v1867
    %2517 = vmatpush.bf16.msra.mxu0 %v1866
    %2518 = vmatpush.bf16.msra.mxu0 %v1865
    %2519 = vmatpush.bf16.msra.mxu0 %v1864
    %2520 = vmatpush.bf16.msra.mxu0 %v1863
    %2521 = vmatpush.bf16.msra.mxu0 %v1862
    %2522 = vmatmul.bf16.gmra.mxu0 %v578
    %v2523 = vpop.f32.mrf.mxu0
    %v2524 = vadd.f32 %v2511, %v2523
    %v2525 = vpop.f32.mrf.mxu0
    %2526 = vdwg.mxu0
    %2527 = vmatpush.bf16.msra.mxu0 %v1877
    %2528 = vmatpush.bf16.msra.mxu0 %v1876
    %2529 = vmatpush.bf16.msra.mxu0 %v1875
    %2530 = vmatpush.bf16.msra.mxu0 %v1874
    %2531 = vmatpush.bf16.msra.mxu0 %v1873
    %2532 = vmatpush.bf16.msra.mxu0 %v1872
    %2533 = vmatpush.bf16.msra.mxu0 %v1871
    %2534 = vmatpush.bf16.msra.mxu0 %v1870
    %2535 = vmatmul.bf16.gmra.mxu0 %v579
    %v2536 = vpop.f32.mrf.mxu0
    %v2537 = vadd.f32 %v2524, %v2536
    %v2538 = vpop.f32.mrf.mxu0
    %2539 = vdwg.mxu0
    %2540 = vmatpush.bf16.msra.mxu0 %v1885
    %2541 = vmatpush.bf16.msra.mxu0 %v1884
    %2542 = vmatpush.bf16.msra.mxu0 %v1883
    %2543 = vmatpush.bf16.msra.mxu0 %v1882
    %2544 = vmatpush.bf16.msra.mxu0 %v1881
    %2545 = vmatpush.bf16.msra.mxu0 %v1880
    %2546 = vmatpush.bf16.msra.mxu0 %v1879
    %2547 = vmatpush.bf16.msra.mxu0 %v1878
    %2548 = vmatmul.bf16.gmra.mxu0 %v580
    %v2549 = vpop.f32.mrf.mxu0
    %v2550 = vadd.f32 %v2537, %v2549
    %v2551 = vpop.f32.mrf.mxu0
    %2552 = vdwg.mxu0
    %2553 = vmatpush.bf16.msra.mxu0 %v1893
    %2554 = vmatpush.bf16.msra.mxu0 %v1892
    %2555 = vmatpush.bf16.msra.mxu0 %v1891
    %2556 = vmatpush.bf16.msra.mxu0 %v1890
    %2557 = vmatpush.bf16.msra.mxu0 %v1889
    %2558 = vmatpush.bf16.msra.mxu0 %v1888
    %2559 = vmatpush.bf16.msra.mxu0 %v1887
    %2560 = vmatpush.bf16.msra.mxu0 %v1886
    %2561 = vmatmul.bf16.gmra.mxu0 %v581
    %v2562 = vpop.f32.mrf.mxu0
    %v2563 = vadd.f32 %v2550, %v2562
    %v2564 = vpop.f32.mrf.mxu0
    %2565 = vdwg.mxu0
    %v2566 = vmax.f32 %v2563, 0.0
    %v2567 = vpack.c.bf16 %v2566, %v2566
    %v2568 = vld [vmem:[%s3] sm:$0xf]
    %v2569 = vld [vmem:[%s3 + $0x4] sm:$0xf]
    %v2570 = vld [vmem:[%s3 + $0x8] sm:$0xf]
    %v2571 = vld [vmem:[%s3 + $0xc] sm:$0xf]
    %v2572 = vld [vmem:[%s3 + $0x10] sm:$0xf]
    %v2573 = vld [vmem:[%s3 + $0x14] sm:$0xf]
    %v2574 = vld [vmem:[%s3 + $0x18] sm:$0xf]
    %v2575 = vld [vmem:[%s3 + $0x1c] sm:$0xf]
    %v2576 = vld [vmem:[%s4] sm:$0x1]
    %v2578 = vperm.slane %v2576, 0
    %v2588 = vunpack.c.l.b16 %v2568
    %v2589 = vunpack.c.l.b16 %v2569
    %v2590 = vunpack.c.l.b16 %v2570
    %v2591 = vunpack.c.l.b16 %v2571
    %v2592 = vunpack.c.l.b16 %v2572
    %v2593 = vunpack.c.l.b16 %v2573
    %v2594 = vunpack.c.l.b16 %v2574
    %v2595 = vunpack.c.l.b16 %v2575
    %v2596 = vpack.c.b16 %v2589, %v2588
    %v2597 = vpack.c.b16 %v2591, %v2590
    %v2598 = vpack.c.b16 %v2593, %v2592
    %v2599 = vpack.c.b16 %v2595, %v2594
    %vm2604 = vcmask 523264
    %v2606 = vsel %vm2604, %v2567, 0
    %2608 = vmatpush.bf16.msra.mxu0 0
    %2609 = vmatpush.bf16.msra.mxu0 0
    %2610 = vmatpush.bf16.msra.mxu0 0
    %2611 = vmatpush.bf16.msra.mxu0 0
    %2612 = vmatpush.bf16.msra.mxu0 %v2599
    %2613 = vmatpush.bf16.msra.mxu0 %v2598
    %2614 = vmatpush.bf16.msra.mxu0 %v2597
    %2615 = vmatpush.bf16.msra.mxu0 %v2596
    %2616 = vmatmul.bf16.gmra.mxu0 %v2606
    %v2617 = vpop.f32.mrf.mxu0
    %v2618 = vadd.f32 %v2578, %v2617
    %v2619 = vpop.f32.mrf.mxu0
    %2620 = vdwg.mxu0
    %vm2621 = vcmask 66560
    %2622 = vst.msk [vmem:[#allocation2] sm:$0x3] %vm2621, %v2618
    // Predicated region
    $region22: #{forward.9} parent=1 // pred_check
      _
    $region23: #{forward.9} parent=1 // pred_check_branch
      %2624 = sbr.rel (0) target = $region25
    $region24: #{forward.9} parent=1 // pred_region
      %2626 = vsyncadd [#allocation3], 0
      %s2628 = sshll.u32 [#allocation2], 4
      %s2629 = int_to_ptr.vmem [resolvable:$true] %s2628
      %s2630 = sshll.u32 %s5, 4
      %s2631 = int_to_ptr.hbm [resolvable:$true] %s2630
      %2633 = dma.vmem_to_hbm [thread:$0]  %s2629, 32, %s2631, [#allocation3]
    $region25: #{forward.9} parent=1 // pred_fallthru
      _
    // Predicated region
    $region26: #{forward.9} parent=1 // pred_check
      _
    $region27: #{forward.9} parent=1 // pred_check_branch
      %2635 = sbr.rel (0) target = $region29
    $region28: #{forward.9} parent=1 // pred_region
      %2637 = dma.done [#allocation3], 32
    $region29: #{forward.9} parent=1 // pred_fallthru
      _
    %2638 = vsyncpa [#allocation3], 1

</llo_original>
